<compile_context>
chip_gen: v7x
topology: tpu7x:2x2x1
jax: 0.10.0
libtpu: 0.0.40
codegen_flags: <defaults>
</compile_context>

<pallas_src>
import functools

import jax
import jax.numpy as jnp
from jax.experimental import pallas as pl
from jax.experimental.pallas import tpu as pltpu

LANE = 128
VMEM_LIMIT = 32 * 1024 * 1024   # safe headroom on v5e/v6e/v7x
SLOPE = 0.01                    # torch.nn.LeakyReLU default


def _round_up(v, m):
    return ((v + m - 1) // m) * m


# ----------------------------------------------------------------------------
# Conv2d(k=4, s=2, p=1) + LeakyReLU with im2col fused in-kernel.
# Input arrives space-to-depth'd: x[b, i, j, (r*2+s)*Cin + c] = xpad[b, 2i+r, 2j+s, c]
# so output(oh,ow) = sum_{di,dj} xs2d[oh+di, ow+dj, :] @ Wtap[di*2+dj]
# ----------------------------------------------------------------------------
def _conv_kernel(x_ref, w_ref, b_ref, o_ref, *, oh, ow, slope):
    kc = x_ref.shape[-1]
    cp = o_ref.shape[-1]
    x = x_ref[0]                                   # (oh+1, ow+1, kc) bf16
    bias = b_ref[...]                              # (1, cp) f32
    w_taps = [w_ref[t] for t in range(4)]          # each (kc, cp) bf16

    if ow % 8 == 0:
        # Lane/sublane-friendly: one big matmul per tap over all output pixels.
        acc = jnp.zeros((oh * ow, cp), jnp.float32)
        for di in range(2):
            for dj in range(2):
                xs = x[di:di + oh, dj:dj + ow, :].reshape(oh * ow, kc)
                acc = acc + jnp.dot(xs, w_taps[di * 2 + dj],
                                    preferred_element_type=jnp.float32)
        y = acc + bias
        y = jnp.where(y >= 0.0, y, slope * y)
        o_ref[0] = y.astype(o_ref.dtype)
    else:
        # Small-spatial fallback (ow < 8): per-output-row matmuls, no reshapes.
        for r in range(oh):
            acc = jnp.zeros((ow, cp), jnp.float32)
            for di in range(2):
                for dj in range(2):
                    xs = x[r + di, dj:dj + ow, :]              # (ow, kc)
                    acc = acc + jnp.dot(xs, w_taps[di * 2 + dj],
                                        preferred_element_type=jnp.float32)
            y = acc + bias
            y = jnp.where(y >= 0.0, y, slope * y)
            o_ref[0, r * ow:(r + 1) * ow, :] = y.astype(o_ref.dtype)


def conv2d_leaky(x, wt, b, *, slope=SLOPE):
    """x: (B,H,W,Cin_p) bf16, wt: (4,4*Cin_p,Cout_p) bf16, b: (1,Cout_p) f32
    -> (B, H//2, W//2, Cout_p) bf16 (NHWC, channel-padded to 128 lanes)."""
    B, H, W, cin = x.shape
    assert H % 2 == 0 and W % 2 == 0
    oh, ow = H // 2, W // 2
    kc = 4 * cin
    assert wt.shape[0] == 4 and wt.shape[1] == kc
    cp = wt.shape[-1]

    # pad=1 spatially, then 2x2 space-to-depth (pure layout plumbing, one pass).
    xp = jnp.pad(x, ((0, 0), (1, 1), (1, 1), (0, 0)))
    xs2d = xp.reshape(B, oh + 1, 2, ow + 1, 2, cin)
    xs2d = xs2d.transpose(0, 1, 3, 2, 4, 5).reshape(B, oh + 1, ow + 1, kc)

    kernel = functools.partial(_conv_kernel, oh=oh, ow=ow, slope=slope)
    out = pl.pallas_call(
        kernel,
        out_shape=jax.ShapeDtypeStruct((B, oh * ow, cp), jnp.bfloat16),
        grid=(B,),
        in_specs=[
            pl.BlockSpec((1, oh + 1, ow + 1, kc), lambda i: (i, 0, 0, 0)),
            pl.BlockSpec((4, kc, cp), lambda i: (0, 0, 0)),     # resident weight
            pl.BlockSpec((1, cp), lambda i: (0, 0)),            # resident bias
        ],
        out_specs=pl.BlockSpec((1, oh * ow, cp), lambda i: (i, 0, 0)),
        compiler_params=pltpu.CompilerParams(
            dimension_semantics=("parallel",),
            vmem_limit_bytes=VMEM_LIMIT),
    )(xs2d, wt, b)
    return out.reshape(B, oh, ow, cp)


# ----------------------------------------------------------------------------
# Fused MLP head:  z = (leaky_relu(h @ W1 + b1)) @ W2 + b2   in one pallas_call.
# Grid: (M tiles "parallel", K tiles of fc_in "arbitrary"); W2 stays resident.
# ----------------------------------------------------------------------------
def _head_kernel(h_ref, w1_ref, b1_ref, w2_ref, b2_ref, o_ref, acc_ref, *, slope):
    k = pl.program_id(1)

    @pl.when(k == 0)
    def _():
        acc_ref[...] = jnp.zeros_like(acc_ref)

    acc_ref[...] += jnp.dot(h_ref[...], w1_ref[...],
                            preferred_element_type=jnp.float32)

    @pl.when(k == pl.num_programs(1) - 1)
    def _():
        h1 = acc_ref[...] + b1_ref[...]
        h1 = jnp.where(h1 >= 0.0, h1, slope * h1)
        z = jnp.dot(h1.astype(jnp.bfloat16), w2_ref[...],
                    preferred_element_type=jnp.float32)
        o_ref[...] = (z + b2_ref[...]).astype(o_ref.dtype)


def mlp_head(h, w1, b1, w2, b2, z_dim, *, slope=SLOPE):
    """h: (B, K) bf16, w1: (K, 1024) bf16, w2: (1024, Npad) bf16 -> (B, z_dim) f32."""
    B, K = h.shape
    Kw, H1 = w1.shape
    assert K == Kw and K % LANE == 0
    npad = w2.shape[1]

    if B <= 256:
        tm = _round_up(B, 16)
        m_pad = tm
    else:
        tm = 256
        m_pad = _round_up(B, tm)
    tk = 512 if K % 512 == 0 else (256 if K % 256 == 0 else 128)

    hp = h if m_pad == B else jnp.pad(h, ((0, m_pad - B), (0, 0)))

    kernel = functools.partial(_head_kernel, slope=slope)
    out = pl.pallas_call(
        kernel,
        out_shape=jax.ShapeDtypeStruct((m_pad, npad), jnp.float32),
        grid=(m_pad // tm, K // tk),
        in_specs=[
            pl.BlockSpec((tm, tk), lambda i, k: (i, k)),
            pl.BlockSpec((tk, H1), lambda i, k: (k, 0)),
            pl.BlockSpec((1, H1), lambda i, k: (0, 0)),
            pl.BlockSpec((H1, npad), lambda i, k: (0, 0)),
            pl.BlockSpec((1, npad), lambda i, k: (0, 0)),
        ],
        out_specs=pl.BlockSpec((tm, npad), lambda i, k: (i, 0)),
        scratch_shapes=[pltpu.VMEM((tm, H1), jnp.float32)],
        compiler_params=pltpu.CompilerParams(
            dimension_semantics=("parallel", "arbitrary"),
            vmem_limit_bytes=VMEM_LIMIT),
    )(hp, w1, b1, w2, b2)
    return out[:B, :z_dim]


# ----------------------------------------------------------------------------
# Encoder forward
# ----------------------------------------------------------------------------
def encoder_forward(x_nchw, kp, *, z_dim):
    x = jnp.transpose(x_nchw, (0, 2, 3, 1)).astype(jnp.bfloat16)   # NHWC bf16
    h = conv2d_leaky(x, kp["conv1_wt"], kp["conv1_b"])
    h = conv2d_leaky(h, kp["conv2_wt"], kp["conv2_b"])
    B = h.shape[0]
    hf = h.reshape(B, -1)   # NHWC flatten; fc1_w rows were permuted to match
    return mlp_head(hf, kp["fc1_w"], kp["fc1_b"], kp["fc2_w"], kp["fc2_b"], z_dim)


# ----------------------------------------------------------------------------
# Parameters: torch-layout init, then a one-time repack into kernel layout.
# ----------------------------------------------------------------------------
def init_params(key, z_dim, nc, n_filters, after_conv):
    """torch layout: Conv2d weight [Cout, Cin, 4, 4]; Linear stored [in, out]."""
    def uniform(key, shape, fan_in):
        bound = 1.0 / jnp.sqrt(jnp.float32(fan_in))
        return jax.random.uniform(key, shape, jnp.float32, -bound, bound)

    ks = jax.random.split(key, 8)
    nf = n_filters
    fc_in = nf * 2 * after_conv * after_conv
    return {
        "conv1_w": uniform(ks[0], (nf, nc, 4, 4), nc * 16),
        "conv1_b": uniform(ks[1], (nf,), nc * 16),
        "conv2_w": uniform(ks[2], (nf * 2, nf, 4, 4), nf * 16),
        "conv2_b": uniform(ks[3], (nf * 2,), nf * 16),
        "fc1_w": uniform(ks[4], (fc_in, 1024), fc_in),   # [in, out]
        "fc1_b": uniform(ks[5], (1024,), fc_in),
        "fc2_w": uniform(ks[6], (1024, z_dim), 1024),    # [in, out]
        "fc2_b": uniform(ks[7], (z_dim,), 1024),
    }


def prepare_params(p, nc, n_filters, after_conv, z_dim):
    """One-time repack: bf16 weights, lane-padded channels, space-to-depth conv
    weight taps, and fc1 row permutation for the NHWC-padded flatten."""
    nf = n_filters
    c1p = _round_up(nf, LANE)
    c2p = _round_up(2 * nf, LANE)
    npad = _round_up(z_dim, LANE)
    A = after_conv

    def conv_wt(w, cin_p, cout_p):
        cout, cin = w.shape[0], w.shape[1]
        wp = jnp.zeros((cout_p, cin_p, 4, 4), w.dtype).at[:cout, :cin].set(w)
        a = wp.transpose(2, 3, 1, 0)                  # (kh, kw, cin_p, cout_p)
        a = a.reshape(2, 2, 2, 2, cin_p, cout_p)      # (di, r, dj, s, c, co)
        a = a.transpose(0, 2, 1, 3, 4, 5)             # (di, dj, r, s, c, co)
        return a.reshape(4, 4 * cin_p, cout_p).astype(jnp.bfloat16)

    def pad_bias(b, cp):
        return jnp.zeros((1, cp), jnp.float32).at[0, :b.shape[0]].set(b)

    # fc1: torch flattens NCHW (row = c*A*A + i*A + j); kernel path flattens
    # padded NHWC (row = (i*A + j)*c2p + c).  Permute + zero-pad rows once.
    w1 = p["fc1_w"].reshape(2 * nf, A, A, 1024)
    w1 = jnp.zeros((c2p, A, A, 1024), w1.dtype).at[:2 * nf].set(w1)
    w1 = w1.transpose(1, 2, 0, 3).reshape(A * A * c2p, 1024)

    w2 = jnp.zeros((1024, npad), p["fc2_w"].dtype).at[:, :z_dim].set(p["fc2_w"])

    return {
        "conv1_wt": conv_wt(p["conv1_w"], nc, c1p),
        "conv1_b": pad_bias(p["conv1_b"], c1p),
        "conv2_wt": conv_wt(p["conv2_w"], c1p, c2p),
        "conv2_b": pad_bias(p["conv2_b"], c2p),
        "fc1_w": w1.astype(jnp.bfloat16),
        "fc1_b": p["fc1_b"].reshape(1, 1024).astype(jnp.float32),
        "fc2_w": w2.astype(jnp.bfloat16),
        "fc2_b": jnp.zeros((1, npad), jnp.float32).at[0, :z_dim].set(p["fc2_b"]),
    }


if __name__ == "__main__":
    # Small shapes consistent with the module:
    #   batch=2, nc=4, spatial=16 -> after two stride-2 convs: after_conv=4
    B, NC, H = 2, 4, 16
    N_FILTERS = 8
    Z_DIM = 32
    AFTER_CONV = H // 4  # = 4

    key = jax.random.PRNGKey(0)
    k_x, k_p = jax.random.split(key)
    x = jax.random.normal(k_x, (B, NC, H, H), jnp.float32)

    torch_params = init_params(k_p, Z_DIM, NC, N_FILTERS, AFTER_CONV)
    kparams = prepare_params(torch_params, NC, N_FILTERS, AFTER_CONV, Z_DIM)

    fwd = jax.jit(functools.partial(encoder_forward, z_dim=Z_DIM))
    z = fwd(x, kparams)
    jax.block_until_ready(z)
    assert z.shape == (B, Z_DIM), z.shape
    print("KERNEL_OK")
</pallas_src>

<mosaic_0001>
module attributes {stable_mosaic.version = 11 : i64} {
  func.func @_conv_kernel(%arg0: i32, %arg1: memref<1x9x9x16xbf16, #tpu.memory_space<vmem>>, %arg2: memref<4x16x128xbf16, #tpu.memory_space<vmem>>, %arg3: memref<1x128xf32, #tpu.memory_space<vmem>>, %arg4: memref<1x64x128xbf16, #tpu.memory_space<vmem>>) attributes {dimension_semantics = [#tpu.dimension_semantics<parallel>], iteration_bounds = array<i64: 2>, scalar_prefetch = 0 : i64, scratch_operands = 0 : i64, tpu.core_type = #tpu.core_type<tc>, window_params = [{transform_indices = @transform_0, window_bounds = array<i64: 1, 9, 9, 16>}, {pipeline_mode = #tpu.pipeline_mode<synchronous>, transform_indices = @transform_1, window_bounds = array<i64: 4, 16, 128>}, {pipeline_mode = #tpu.pipeline_mode<synchronous>, transform_indices = @transform_2, window_bounds = array<i64: 1, 128>}, {transform_indices = @transform_3, window_bounds = array<i64: 1, 64, 128>}]} {
    %c0 = arith.constant 0 : index
    %c0_0 = arith.constant 0 : index
    %c0_1 = arith.constant 0 : index
    %c0_2 = arith.constant 0 : index
    %0 = vector.load %arg1[%c0, %c0_0, %c0_1, %c0_2] : memref<1x9x9x16xbf16, #tpu.memory_space<vmem>>, vector<1x9x9x16xbf16>
    %1 = vector.shape_cast %0 : vector<1x9x9x16xbf16> to vector<9x9x16xbf16>
    %c0_3 = arith.constant 0 : index
    %c0_4 = arith.constant 0 : index
    %2 = vector.load %arg3[%c0_3, %c0_4] : memref<1x128xf32, #tpu.memory_space<vmem>>, vector<1x128xf32>
    %c0_5 = arith.constant 0 : index
    %c0_6 = arith.constant 0 : index
    %c0_7 = arith.constant 0 : index
    %3 = vector.load %arg2[%c0_5, %c0_6, %c0_7] : memref<4x16x128xbf16, #tpu.memory_space<vmem>>, vector<1x16x128xbf16>
    %4 = vector.shape_cast %3 : vector<1x16x128xbf16> to vector<16x128xbf16>
    %c1 = arith.constant 1 : index
    %c0_8 = arith.constant 0 : index
    %c0_9 = arith.constant 0 : index
    %5 = vector.load %arg2[%c1, %c0_8, %c0_9] : memref<4x16x128xbf16, #tpu.memory_space<vmem>>, vector<1x16x128xbf16>
    %6 = vector.shape_cast %5 : vector<1x16x128xbf16> to vector<16x128xbf16>
    %c2 = arith.constant 2 : index
    %c0_10 = arith.constant 0 : index
    %c0_11 = arith.constant 0 : index
    %7 = vector.load %arg2[%c2, %c0_10, %c0_11] : memref<4x16x128xbf16, #tpu.memory_space<vmem>>, vector<1x16x128xbf16>
    %8 = vector.shape_cast %7 : vector<1x16x128xbf16> to vector<16x128xbf16>
    %c3 = arith.constant 3 : index
    %c0_12 = arith.constant 0 : index
    %c0_13 = arith.constant 0 : index
    %9 = vector.load %arg2[%c3, %c0_12, %c0_13] : memref<4x16x128xbf16, #tpu.memory_space<vmem>>, vector<1x16x128xbf16>
    %10 = vector.shape_cast %9 : vector<1x16x128xbf16> to vector<16x128xbf16>
    %cst = arith.constant 0.000000e+00 : f32
    %11 = vector.broadcast %cst : f32 to vector<64x128xf32>
    %12 = vector.extract_strided_slice %1 {offsets = [0, 0, 0], sizes = [8, 8, 16], strides = [1, 1, 1]} : vector<9x9x16xbf16> to vector<8x8x16xbf16>
    %13 = vector.shape_cast %12 : vector<8x8x16xbf16> to vector<64x16xbf16>
    %cst_14 = arith.constant dense<0.000000e+00> : vector<64x128xf32>
    %14 = tpu.matmul %13, %4, %cst_14 {dimension_numbers = #tpu.dot_dimension_numbers<[1], [0], [0], [1], [0, 0, 1, 1], [], []>} : vector<64x16xbf16>, vector<16x128xbf16>, vector<64x128xf32> -> vector<64x128xf32>
    %15 = arith.addf %11, %14 : vector<64x128xf32>
    %16 = vector.extract_strided_slice %1 {offsets = [0, 1, 0], sizes = [8, 8, 16], strides = [1, 1, 1]} : vector<9x9x16xbf16> to vector<8x8x16xbf16>
    %17 = vector.shape_cast %16 : vector<8x8x16xbf16> to vector<64x16xbf16>
    %cst_15 = arith.constant dense<0.000000e+00> : vector<64x128xf32>
    %18 = tpu.matmul %17, %6, %cst_15 {dimension_numbers = #tpu.dot_dimension_numbers<[1], [0], [0], [1], [0, 0, 1, 1], [], []>} : vector<64x16xbf16>, vector<16x128xbf16>, vector<64x128xf32> -> vector<64x128xf32>
    %19 = arith.addf %15, %18 : vector<64x128xf32>
    %20 = vector.extract_strided_slice %1 {offsets = [1, 0, 0], sizes = [8, 8, 16], strides = [1, 1, 1]} : vector<9x9x16xbf16> to vector<8x8x16xbf16>
    %21 = vector.shape_cast %20 : vector<8x8x16xbf16> to vector<64x16xbf16>
    %cst_16 = arith.constant dense<0.000000e+00> : vector<64x128xf32>
    %22 = tpu.matmul %21, %8, %cst_16 {dimension_numbers = #tpu.dot_dimension_numbers<[1], [0], [0], [1], [0, 0, 1, 1], [], []>} : vector<64x16xbf16>, vector<16x128xbf16>, vector<64x128xf32> -> vector<64x128xf32>
    %23 = arith.addf %19, %22 : vector<64x128xf32>
    %24 = vector.extract_strided_slice %1 {offsets = [1, 1, 0], sizes = [8, 8, 16], strides = [1, 1, 1]} : vector<9x9x16xbf16> to vector<8x8x16xbf16>
    %25 = vector.shape_cast %24 : vector<8x8x16xbf16> to vector<64x16xbf16>
    %cst_17 = arith.constant dense<0.000000e+00> : vector<64x128xf32>
    %26 = tpu.matmul %25, %10, %cst_17 {dimension_numbers = #tpu.dot_dimension_numbers<[1], [0], [0], [1], [0, 0, 1, 1], [], []>} : vector<64x16xbf16>, vector<16x128xbf16>, vector<64x128xf32> -> vector<64x128xf32>
    %27 = arith.addf %23, %26 : vector<64x128xf32>
    %28 = vector.broadcast %2 : vector<1x128xf32> to vector<64x128xf32>
    %29 = arith.addf %27, %28 : vector<64x128xf32>
    %cst_18 = arith.constant 0.000000e+00 : f32
    %30 = vector.broadcast %cst_18 : f32 to vector<64x128xf32>
    %31 = arith.cmpf oge, %29, %30 : vector<64x128xf32>
    %cst_19 = arith.constant 0.00999999977 : f32
    %32 = vector.broadcast %cst_19 : f32 to vector<64x128xf32>
    %33 = arith.mulf %32, %29 : vector<64x128xf32>
    %34 = arith.select %31, %29, %33 : vector<64x128xi1>, vector<64x128xf32>
    %35 = arith.truncf %34 : vector<64x128xf32> to vector<64x128xbf16>
    %c0_20 = arith.constant 0 : index
    %c0_21 = arith.constant 0 : index
    %c0_22 = arith.constant 0 : index
    %36 = vector.load %arg4[%c0_20, %c0_21, %c0_22] : memref<1x64x128xbf16, #tpu.memory_space<vmem>>, vector<1x64x128xbf16>
    %37 = vector.shape_cast %36 : vector<1x64x128xbf16> to vector<64x128xbf16>
    %38 = vector.shape_cast %35 : vector<64x128xbf16> to vector<1x64x128xbf16>
    tpu.vector_store %arg4[%c0_20, %c0_21, %c0_22], %38 {strides = array<i32>} : memref<1x64x128xbf16, #tpu.memory_space<vmem>>, vector<1x64x128xbf16>,
    return
  }
  func.func @transform_0(%arg0: i32) -> (i32, i32, i32, i32) {
    %c0_i32 = arith.constant 0 : i32
    %c0_i32_0 = arith.constant 0 : i32
    %c0_i32_1 = arith.constant 0 : i32
    %c0_i32_2 = arith.constant 0 : i32
    return %arg0, %c0_i32, %c0_i32_0, %c0_i32_1 : i32, i32, i32, i32
  }
  func.func @transform_1(%arg0: i32) -> (i32, i32, i32) {
    %c0_i32 = arith.constant 0 : i32
    %c0_i32_0 = arith.constant 0 : i32
    %c0_i32_1 = arith.constant 0 : i32
    %c0_i32_2 = arith.constant 0 : i32
    return %c0_i32, %c0_i32_0, %c0_i32_1 : i32, i32, i32
  }
  func.func @transform_2(%arg0: i32) -> (i32, i32) {
    %c0_i32 = arith.constant 0 : i32
    %c0_i32_0 = arith.constant 0 : i32
    %c0_i32_1 = arith.constant 0 : i32
    return %c0_i32, %c0_i32_0 : i32, i32
  }
  func.func @transform_3(%arg0: i32) -> (i32, i32, i32) {
    %c0_i32 = arith.constant 0 : i32
    %c0_i32_0 = arith.constant 0 : i32
    %c0_i32_1 = arith.constant 0 : i32
    return %arg0, %c0_i32, %c0_i32_0 : i32, i32, i32
  }
}

module attributes {stable_mosaic.version = 11 : i64} {
  func.func @_conv_kernel(%arg0: i32, %arg1: memref<1x5x5x512xbf16, #tpu.memory_space<vmem>>, %arg2: memref<4x512x128xbf16, #tpu.memory_space<vmem>>, %arg3: memref<1x128xf32, #tpu.memory_space<vmem>>, %arg4: memref<1x16x128xbf16, #tpu.memory_space<vmem>>) attributes {dimension_semantics = [#tpu.dimension_semantics<parallel>], iteration_bounds = array<i64: 2>, scalar_prefetch = 0 : i64, scratch_operands = 0 : i64, tpu.core_type = #tpu.core_type<tc>, window_params = [{transform_indices = @transform_0, window_bounds = array<i64: 1, 5, 5, 512>}, {pipeline_mode = #tpu.pipeline_mode<synchronous>, transform_indices = @transform_1, window_bounds = array<i64: 4, 512, 128>}, {pipeline_mode = #tpu.pipeline_mode<synchronous>, transform_indices = @transform_2, window_bounds = array<i64: 1, 128>}, {transform_indices = @transform_3, window_bounds = array<i64: 1, 16, 128>}]} {
    %c0 = arith.constant 0 : index
    %c0_0 = arith.constant 0 : index
    %c0_1 = arith.constant 0 : index
    %c0_2 = arith.constant 0 : index
    %0 = vector.load %arg1[%c0, %c0_0, %c0_1, %c0_2] : memref<1x5x5x512xbf16, #tpu.memory_space<vmem>>, vector<1x5x5x512xbf16>
    %1 = vector.shape_cast %0 : vector<1x5x5x512xbf16> to vector<5x5x512xbf16>
    %c0_3 = arith.constant 0 : index
    %c0_4 = arith.constant 0 : index
    %2 = vector.load %arg3[%c0_3, %c0_4] : memref<1x128xf32, #tpu.memory_space<vmem>>, vector<1x128xf32>
    %c0_5 = arith.constant 0 : index
    %c0_6 = arith.constant 0 : index
    %c0_7 = arith.constant 0 : index
    %3 = vector.load %arg2[%c0_5, %c0_6, %c0_7] : memref<4x512x128xbf16, #tpu.memory_space<vmem>>, vector<1x512x128xbf16>
    %4 = vector.shape_cast %3 : vector<1x512x128xbf16> to vector<512x128xbf16>
    %c1 = arith.constant 1 : index
    %c0_8 = arith.constant 0 : index
    %c0_9 = arith.constant 0 : index
    %5 = vector.load %arg2[%c1, %c0_8, %c0_9] : memref<4x512x128xbf16, #tpu.memory_space<vmem>>, vector<1x512x128xbf16>
    %6 = vector.shape_cast %5 : vector<1x512x128xbf16> to vector<512x128xbf16>
    %c2 = arith.constant 2 : index
    %c0_10 = arith.constant 0 : index
    %c0_11 = arith.constant 0 : index
    %7 = vector.load %arg2[%c2, %c0_10, %c0_11] : memref<4x512x128xbf16, #tpu.memory_space<vmem>>, vector<1x512x128xbf16>
    %8 = vector.shape_cast %7 : vector<1x512x128xbf16> to vector<512x128xbf16>
    %c3 = arith.constant 3 : index
    %c0_12 = arith.constant 0 : index
    %c0_13 = arith.constant 0 : index
    %9 = vector.load %arg2[%c3, %c0_12, %c0_13] : memref<4x512x128xbf16, #tpu.memory_space<vmem>>, vector<1x512x128xbf16>
    %10 = vector.shape_cast %9 : vector<1x512x128xbf16> to vector<512x128xbf16>
    %cst = arith.constant 0.000000e+00 : f32
    %11 = vector.broadcast %cst : f32 to vector<4x128xf32>
    %12 = vector.extract_strided_slice %1 {offsets = [0, 0, 0], sizes = [1, 4, 512], strides = [1, 1, 1]} : vector<5x5x512xbf16> to vector<1x4x512xbf16>
    %13 = vector.shape_cast %12 : vector<1x4x512xbf16> to vector<4x512xbf16>
    %cst_14 = arith.constant dense<0.000000e+00> : vector<4x128xf32>
    %14 = tpu.matmul %13, %4, %cst_14 {dimension_numbers = #tpu.dot_dimension_numbers<[1], [0], [0], [1], [0, 0, 1, 1], [], []>} : vector<4x512xbf16>, vector<512x128xbf16>, vector<4x128xf32> -> vector<4x128xf32>
    %15 = arith.addf %11, %14 : vector<4x128xf32>
    %16 = vector.extract_strided_slice %1 {offsets = [0, 1, 0], sizes = [1, 4, 512], strides = [1, 1, 1]} : vector<5x5x512xbf16> to vector<1x4x512xbf16>
    %17 = vector.shape_cast %16 : vector<1x4x512xbf16> to vector<4x512xbf16>
    %cst_15 = arith.constant dense<0.000000e+00> : vector<4x128xf32>
    %18 = tpu.matmul %17, %6, %cst_15 {dimension_numbers = #tpu.dot_dimension_numbers<[1], [0], [0], [1], [0, 0, 1, 1], [], []>} : vector<4x512xbf16>, vector<512x128xbf16>, vector<4x128xf32> -> vector<4x128xf32>
    %19 = arith.addf %15, %18 : vector<4x128xf32>
    %20 = vector.extract_strided_slice %1 {offsets = [1, 0, 0], sizes = [1, 4, 512], strides = [1, 1, 1]} : vector<5x5x512xbf16> to vector<1x4x512xbf16>
    %21 = vector.shape_cast %20 : vector<1x4x512xbf16> to vector<4x512xbf16>
    %cst_16 = arith.constant dense<0.000000e+00> : vector<4x128xf32>
    %22 = tpu.matmul %21, %8, %cst_16 {dimension_numbers = #tpu.dot_dimension_numbers<[1], [0], [0], [1], [0, 0, 1, 1], [], []>} : vector<4x512xbf16>, vector<512x128xbf16>, vector<4x128xf32> -> vector<4x128xf32>
    %23 = arith.addf %19, %22 : vector<4x128xf32>
    %24 = vector.extract_strided_slice %1 {offsets = [1, 1, 0], sizes = [1, 4, 512], strides = [1, 1, 1]} : vector<5x5x512xbf16> to vector<1x4x512xbf16>
    %25 = vector.shape_cast %24 : vector<1x4x512xbf16> to vector<4x512xbf16>
    %cst_17 = arith.constant dense<0.000000e+00> : vector<4x128xf32>
    %26 = tpu.matmul %25, %10, %cst_17 {dimension_numbers = #tpu.dot_dimension_numbers<[1], [0], [0], [1], [0, 0, 1, 1], [], []>} : vector<4x512xbf16>, vector<512x128xbf16>, vector<4x128xf32> -> vector<4x128xf32>
    %27 = arith.addf %23, %26 : vector<4x128xf32>
    %28 = vector.broadcast %2 : vector<1x128xf32> to vector<4x128xf32>
    %29 = arith.addf %27, %28 : vector<4x128xf32>
    %cst_18 = arith.constant 0.000000e+00 : f32
    %30 = vector.broadcast %cst_18 : f32 to vector<4x128xf32>
    %31 = arith.cmpf oge, %29, %30 : vector<4x128xf32>
    %cst_19 = arith.constant 0.00999999977 : f32
    %32 = vector.broadcast %cst_19 : f32 to vector<4x128xf32>
    %33 = arith.mulf %32, %29 : vector<4x128xf32>
    %34 = arith.select %31, %29, %33 : vector<4x128xi1>, vector<4x128xf32>
    %35 = arith.truncf %34 : vector<4x128xf32> to vector<4x128xbf16>
    %c0_20 = arith.constant 0 : index
    %c0_21 = arith.constant 0 : index
    %c0_22 = arith.constant 0 : index
    %36 = vector.load %arg4[%c0_20, %c0_21, %c0_22] : memref<1x16x128xbf16, #tpu.memory_space<vmem>>, vector<1x4x128xbf16>
    %37 = vector.shape_cast %36 : vector<1x4x128xbf16> to vector<4x128xbf16>
    %38 = vector.shape_cast %35 : vector<4x128xbf16> to vector<1x4x128xbf16>
    tpu.vector_store %arg4[%c0_20, %c0_21, %c0_22], %38 {strides = array<i32>} : memref<1x16x128xbf16, #tpu.memory_space<vmem>>, vector<1x4x128xbf16>,
    %cst_23 = arith.constant 0.000000e+00 : f32
    %39 = vector.broadcast %cst_23 : f32 to vector<4x128xf32>
    %40 = vector.extract_strided_slice %1 {offsets = [1, 0, 0], sizes = [1, 4, 512], strides = [1, 1, 1]} : vector<5x5x512xbf16> to vector<1x4x512xbf16>
    %41 = vector.shape_cast %40 : vector<1x4x512xbf16> to vector<4x512xbf16>
    %cst_24 = arith.constant dense<0.000000e+00> : vector<4x128xf32>
    %42 = tpu.matmul %41, %4, %cst_24 {dimension_numbers = #tpu.dot_dimension_numbers<[1], [0], [0], [1], [0, 0, 1, 1], [], []>} : vector<4x512xbf16>, vector<512x128xbf16>, vector<4x128xf32> -> vector<4x128xf32>
    %43 = arith.addf %39, %42 : vector<4x128xf32>
    %44 = vector.extract_strided_slice %1 {offsets = [1, 1, 0], sizes = [1, 4, 512], strides = [1, 1, 1]} : vector<5x5x512xbf16> to vector<1x4x512xbf16>
    %45 = vector.shape_cast %44 : vector<1x4x512xbf16> to vector<4x512xbf16>
    %cst_25 = arith.constant dense<0.000000e+00> : vector<4x128xf32>
    %46 = tpu.matmul %45, %6, %cst_25 {dimension_numbers = #tpu.dot_dimension_numbers<[1], [0], [0], [1], [0, 0, 1, 1], [], []>} : vector<4x512xbf16>, vector<512x128xbf16>, vector<4x128xf32> -> vector<4x128xf32>
    %47 = arith.addf %43, %46 : vector<4x128xf32>
    %48 = vector.extract_strided_slice %1 {offsets = [2, 0, 0], sizes = [1, 4, 512], strides = [1, 1, 1]} : vector<5x5x512xbf16> to vector<1x4x512xbf16>
    %49 = vector.shape_cast %48 : vector<1x4x512xbf16> to vector<4x512xbf16>
    %cst_26 = arith.constant dense<0.000000e+00> : vector<4x128xf32>
    %50 = tpu.matmul %49, %8, %cst_26 {dimension_numbers = #tpu.dot_dimension_numbers<[1], [0], [0], [1], [0, 0, 1, 1], [], []>} : vector<4x512xbf16>, vector<512x128xbf16>, vector<4x128xf32> -> vector<4x128xf32>
    %51 = arith.addf %47, %50 : vector<4x128xf32>
    %52 = vector.extract_strided_slice %1 {offsets = [2, 1, 0], sizes = [1, 4, 512], strides = [1, 1, 1]} : vector<5x5x512xbf16> to vector<1x4x512xbf16>
    %53 = vector.shape_cast %52 : vector<1x4x512xbf16> to vector<4x512xbf16>
    %cst_27 = arith.constant dense<0.000000e+00> : vector<4x128xf32>
    %54 = tpu.matmul %53, %10, %cst_27 {dimension_numbers = #tpu.dot_dimension_numbers<[1], [0], [0], [1], [0, 0, 1, 1], [], []>} : vector<4x512xbf16>, vector<512x128xbf16>, vector<4x128xf32> -> vector<4x128xf32>
    %55 = arith.addf %51, %54 : vector<4x128xf32>
    %56 = vector.broadcast %2 : vector<1x128xf32> to vector<4x128xf32>
    %57 = arith.addf %55, %56 : vector<4x128xf32>
    %cst_28 = arith.constant 0.000000e+00 : f32
    %58 = vector.broadcast %cst_28 : f32 to vector<4x128xf32>
    %59 = arith.cmpf oge, %57, %58 : vector<4x128xf32>
    %cst_29 = arith.constant 0.00999999977 : f32
    %60 = vector.broadcast %cst_29 : f32 to vector<4x128xf32>
    %61 = arith.mulf %60, %57 : vector<4x128xf32>
    %62 = arith.select %59, %57, %61 : vector<4x128xi1>, vector<4x128xf32>
    %63 = arith.truncf %62 : vector<4x128xf32> to vector<4x128xbf16>
    %c0_30 = arith.constant 0 : index
    %c4 = arith.constant 4 : index
    %c0_31 = arith.constant 0 : index
    %64 = vector.load %arg4[%c0_30, %c4, %c0_31] : memref<1x16x128xbf16, #tpu.memory_space<vmem>>, vector<1x4x128xbf16>
    %65 = vector.shape_cast %64 : vector<1x4x128xbf16> to vector<4x128xbf16>
    %66 = vector.shape_cast %63 : vector<4x128xbf16> to vector<1x4x128xbf16>
    tpu.vector_store %arg4[%c0_30, %c4, %c0_31], %66 {strides = array<i32>} : memref<1x16x128xbf16, #tpu.memory_space<vmem>>, vector<1x4x128xbf16>,
    %cst_32 = arith.constant 0.000000e+00 : f32
    %67 = vector.broadcast %cst_32 : f32 to vector<4x128xf32>
    %68 = vector.extract_strided_slice %1 {offsets = [2, 0, 0], sizes = [1, 4, 512], strides = [1, 1, 1]} : vector<5x5x512xbf16> to vector<1x4x512xbf16>
    %69 = vector.shape_cast %68 : vector<1x4x512xbf16> to vector<4x512xbf16>
    %cst_33 = arith.constant dense<0.000000e+00> : vector<4x128xf32>
    %70 = tpu.matmul %69, %4, %cst_33 {dimension_numbers = #tpu.dot_dimension_numbers<[1], [0], [0], [1], [0, 0, 1, 1], [], []>} : vector<4x512xbf16>, vector<512x128xbf16>, vector<4x128xf32> -> vector<4x128xf32>
    %71 = arith.addf %67, %70 : vector<4x128xf32>
    %72 = vector.extract_strided_slice %1 {offsets = [2, 1, 0], sizes = [1, 4, 512], strides = [1, 1, 1]} : vector<5x5x512xbf16> to vector<1x4x512xbf16>
    %73 = vector.shape_cast %72 : vector<1x4x512xbf16> to vector<4x512xbf16>
    %cst_34 = arith.constant dense<0.000000e+00> : vector<4x128xf32>
    %74 = tpu.matmul %73, %6, %cst_34 {dimension_numbers = #tpu.dot_dimension_numbers<[1], [0], [0], [1], [0, 0, 1, 1], [], []>} : vector<4x512xbf16>, vector<512x128xbf16>, vector<4x128xf32> -> vector<4x128xf32>
    %75 = arith.addf %71, %74 : vector<4x128xf32>
    %76 = vector.extract_strided_slice %1 {offsets = [3, 0, 0], sizes = [1, 4, 512], strides = [1, 1, 1]} : vector<5x5x512xbf16> to vector<1x4x512xbf16>
    %77 = vector.shape_cast %76 : vector<1x4x512xbf16> to vector<4x512xbf16>
    %cst_35 = arith.constant dense<0.000000e+00> : vector<4x128xf32>
    %78 = tpu.matmul %77, %8, %cst_35 {dimension_numbers = #tpu.dot_dimension_numbers<[1], [0], [0], [1], [0, 0, 1, 1], [], []>} : vector<4x512xbf16>, vector<512x128xbf16>, vector<4x128xf32> -> vector<4x128xf32>
    %79 = arith.addf %75, %78 : vector<4x128xf32>
    %80 = vector.extract_strided_slice %1 {offsets = [3, 1, 0], sizes = [1, 4, 512], strides = [1, 1, 1]} : vector<5x5x512xbf16> to vector<1x4x512xbf16>
    %81 = vector.shape_cast %80 : vector<1x4x512xbf16> to vector<4x512xbf16>
    %cst_36 = arith.constant dense<0.000000e+00> : vector<4x128xf32>
    %82 = tpu.matmul %81, %10, %cst_36 {dimension_numbers = #tpu.dot_dimension_numbers<[1], [0], [0], [1], [0, 0, 1, 1], [], []>} : vector<4x512xbf16>, vector<512x128xbf16>, vector<4x128xf32> -> vector<4x128xf32>
    %83 = arith.addf %79, %82 : vector<4x128xf32>
    %84 = vector.broadcast %2 : vector<1x128xf32> to vector<4x128xf32>
    %85 = arith.addf %83, %84 : vector<4x128xf32>
    %cst_37 = arith.constant 0.000000e+00 : f32
    %86 = vector.broadcast %cst_37 : f32 to vector<4x128xf32>
    %87 = arith.cmpf oge, %85, %86 : vector<4x128xf32>
    %cst_38 = arith.constant 0.00999999977 : f32
    %88 = vector.broadcast %cst_38 : f32 to vector<4x128xf32>
    %89 = arith.mulf %88, %85 : vector<4x128xf32>
    %90 = arith.select %87, %85, %89 : vector<4x128xi1>, vector<4x128xf32>
    %91 = arith.truncf %90 : vector<4x128xf32> to vector<4x128xbf16>
    %c0_39 = arith.constant 0 : index
    %c8 = arith.constant 8 : index
    %c0_40 = arith.constant 0 : index
    %92 = vector.load %arg4[%c0_39, %c8, %c0_40] : memref<1x16x128xbf16, #tpu.memory_space<vmem>>, vector<1x4x128xbf16>
    %93 = vector.shape_cast %92 : vector<1x4x128xbf16> to vector<4x128xbf16>
    %94 = vector.shape_cast %91 : vector<4x128xbf16> to vector<1x4x128xbf16>
    tpu.vector_store %arg4[%c0_39, %c8, %c0_40], %94 {strides = array<i32>} : memref<1x16x128xbf16, #tpu.memory_space<vmem>>, vector<1x4x128xbf16>,
    %cst_41 = arith.constant 0.000000e+00 : f32
    %95 = vector.broadcast %cst_41 : f32 to vector<4x128xf32>
    %96 = vector.extract_strided_slice %1 {offsets = [3, 0, 0], sizes = [1, 4, 512], strides = [1, 1, 1]} : vector<5x5x512xbf16> to vector<1x4x512xbf16>
    %97 = vector.shape_cast %96 : vector<1x4x512xbf16> to vector<4x512xbf16>
    %cst_42 = arith.constant dense<0.000000e+00> : vector<4x128xf32>
    %98 = tpu.matmul %97, %4, %cst_42 {dimension_numbers = #tpu.dot_dimension_numbers<[1], [0], [0], [1], [0, 0, 1, 1], [], []>} : vector<4x512xbf16>, vector<512x128xbf16>, vector<4x128xf32> -> vector<4x128xf32>
    %99 = arith.addf %95, %98 : vector<4x128xf32>
    %100 = vector.extract_strided_slice %1 {offsets = [3, 1, 0], sizes = [1, 4, 512], strides = [1, 1, 1]} : vector<5x5x512xbf16> to vector<1x4x512xbf16>
    %101 = vector.shape_cast %100 : vector<1x4x512xbf16> to vector<4x512xbf16>
    %cst_43 = arith.constant dense<0.000000e+00> : vector<4x128xf32>
    %102 = tpu.matmul %101, %6, %cst_43 {dimension_numbers = #tpu.dot_dimension_numbers<[1], [0], [0], [1], [0, 0, 1, 1], [], []>} : vector<4x512xbf16>, vector<512x128xbf16>, vector<4x128xf32> -> vector<4x128xf32>
    %103 = arith.addf %99, %102 : vector<4x128xf32>
    %104 = vector.extract_strided_slice %1 {offsets = [4, 0, 0], sizes = [1, 4, 512], strides = [1, 1, 1]} : vector<5x5x512xbf16> to vector<1x4x512xbf16>
    %105 = vector.shape_cast %104 : vector<1x4x512xbf16> to vector<4x512xbf16>
    %cst_44 = arith.constant dense<0.000000e+00> : vector<4x128xf32>
    %106 = tpu.matmul %105, %8, %cst_44 {dimension_numbers = #tpu.dot_dimension_numbers<[1], [0], [0], [1], [0, 0, 1, 1], [], []>} : vector<4x512xbf16>, vector<512x128xbf16>, vector<4x128xf32> -> vector<4x128xf32>
    %107 = arith.addf %103, %106 : vector<4x128xf32>
    %108 = vector.extract_strided_slice %1 {offsets = [4, 1, 0], sizes = [1, 4, 512], strides = [1, 1, 1]} : vector<5x5x512xbf16> to vector<1x4x512xbf16>
    %109 = vector.shape_cast %108 : vector<1x4x512xbf16> to vector<4x512xbf16>
    %cst_45 = arith.constant dense<0.000000e+00> : vector<4x128xf32>
    %110 = tpu.matmul %109, %10, %cst_45 {dimension_numbers = #tpu.dot_dimension_numbers<[1], [0], [0], [1], [0, 0, 1, 1], [], []>} : vector<4x512xbf16>, vector<512x128xbf16>, vector<4x128xf32> -> vector<4x128xf32>
    %111 = arith.addf %107, %110 : vector<4x128xf32>
    %112 = vector.broadcast %2 : vector<1x128xf32> to vector<4x128xf32>
    %113 = arith.addf %111, %112 : vector<4x128xf32>
    %cst_46 = arith.constant 0.000000e+00 : f32
    %114 = vector.broadcast %cst_46 : f32 to vector<4x128xf32>
    %115 = arith.cmpf oge, %113, %114 : vector<4x128xf32>
    %cst_47 = arith.constant 0.00999999977 : f32
    %116 = vector.broadcast %cst_47 : f32 to vector<4x128xf32>
    %117 = arith.mulf %116, %113 : vector<4x128xf32>
    %118 = arith.select %115, %113, %117 : vector<4x128xi1>, vector<4x128xf32>
    %119 = arith.truncf %118 : vector<4x128xf32> to vector<4x128xbf16>
    %c0_48 = arith.constant 0 : index
    %c12 = arith.constant 12 : index
    %c0_49 = arith.constant 0 : index
    %120 = vector.load %arg4[%c0_48, %c12, %c0_49] : memref<1x16x128xbf16, #tpu.memory_space<vmem>>, vector<1x4x128xbf16>
    %121 = vector.shape_cast %120 : vector<1x4x128xbf16> to vector<4x128xbf16>
    %122 = vector.shape_cast %119 : vector<4x128xbf16> to vector<1x4x128xbf16>
    tpu.vector_store %arg4[%c0_48, %c12, %c0_49], %122 {strides = array<i32>} : memref<1x16x128xbf16, #tpu.memory_space<vmem>>, vector<1x4x128xbf16>,
    return
  }
  func.func @transform_0(%arg0: i32) -> (i32, i32, i32, i32) {
    %c0_i32 = arith.constant 0 : i32
    %c0_i32_0 = arith.constant 0 : i32
    %c0_i32_1 = arith.constant 0 : i32
    %c0_i32_2 = arith.constant 0 : i32
    return %arg0, %c0_i32, %c0_i32_0, %c0_i32_1 : i32, i32, i32, i32
  }
  func.func @transform_1(%arg0: i32) -> (i32, i32, i32) {
    %c0_i32 = arith.constant 0 : i32
    %c0_i32_0 = arith.constant 0 : i32
    %c0_i32_1 = arith.constant 0 : i32
    %c0_i32_2 = arith.constant 0 : i32
    return %c0_i32, %c0_i32_0, %c0_i32_1 : i32, i32, i32
  }
  func.func @transform_2(%arg0: i32) -> (i32, i32) {
    %c0_i32 = arith.constant 0 : i32
    %c0_i32_0 = arith.constant 0 : i32
    %c0_i32_1 = arith.constant 0 : i32
    return %c0_i32, %c0_i32_0 : i32, i32
  }
  func.func @transform_3(%arg0: i32) -> (i32, i32, i32) {
    %c0_i32 = arith.constant 0 : i32
    %c0_i32_0 = arith.constant 0 : i32
    %c0_i32_1 = arith.constant 0 : i32
    return %arg0, %c0_i32, %c0_i32_0 : i32, i32, i32
  }
}

module attributes {stable_mosaic.version = 11 : i64} {
  func.func @_head_kernel(%arg0: i32, %arg1: i32, %arg2: memref<16x512xbf16, #tpu.memory_space<vmem>>, %arg3: memref<512x1024xbf16, #tpu.memory_space<vmem>>, %arg4: memref<1x1024xf32, #tpu.memory_space<vmem>>, %arg5: memref<1024x128xbf16, #tpu.memory_space<vmem>>, %arg6: memref<1x128xf32, #tpu.memory_space<vmem>>, %arg7: memref<16x128xf32, #tpu.memory_space<vmem>>, %arg8: memref<16x1024xf32, #tpu.memory_space<vmem>>) attributes {dimension_semantics = [#tpu.dimension_semantics<parallel>, #tpu.dimension_semantics<arbitrary>], iteration_bounds = array<i64: 1, 4>, scalar_prefetch = 0 : i64, scratch_operands = 1 : i64, tpu.core_type = #tpu.core_type<tc>, window_params = [{transform_indices = @transform_0, window_bounds = array<i64: 16, 512>}, {transform_indices = @transform_1, window_bounds = array<i64: 512, 1024>}, {pipeline_mode = #tpu.pipeline_mode<synchronous>, transform_indices = @transform_2, window_bounds = array<i64: 1, 1024>}, {pipeline_mode = #tpu.pipeline_mode<synchronous>, transform_indices = @transform_3, window_bounds = array<i64: 1024, 128>}, {pipeline_mode = #tpu.pipeline_mode<synchronous>, transform_indices = @transform_4, window_bounds = array<i64: 1, 128>}, {transform_indices = @transform_5, window_bounds = array<i64: 16, 128>}]} {
    %c0_i32 = arith.constant 0 : i32
    %0 = arith.cmpi eq, %arg1, %c0_i32 : i32
    %1 = arith.extui %0 : i1 to i32
    %c0_i32_0 = arith.constant 0 : i32
    %2 = arith.cmpi ne, %1, %c0_i32_0 : i32
    scf.if %2 {
      %cst_9 = arith.constant 0.000000e+00 : f32
      %12 = vector.broadcast %cst_9 : f32 to vector<16x1024xf32>
      %c0_10 = arith.constant 0 : index
      %c0_11 = arith.constant 0 : index
      %13 = vector.load %arg8[%c0_10, %c0_11] : memref<16x1024xf32, #tpu.memory_space<vmem>>, vector<16x1024xf32>
      tpu.vector_store %arg8[%c0_10, %c0_11], %12 {strides = array<i32>} : memref<16x1024xf32, #tpu.memory_space<vmem>>, vector<16x1024xf32>,
    } else {
    }
    %c0 = arith.constant 0 : index
    %c0_1 = arith.constant 0 : index
    %3 = vector.load %arg8[%c0, %c0_1] : memref<16x1024xf32, #tpu.memory_space<vmem>>, vector<16x1024xf32>
    %c0_2 = arith.constant 0 : index
    %c0_3 = arith.constant 0 : index
    %4 = vector.load %arg2[%c0_2, %c0_3] : memref<16x512xbf16, #tpu.memory_space<vmem>>, vector<16x512xbf16>
    %c0_4 = arith.constant 0 : index
    %c0_5 = arith.constant 0 : index
    %5 = vector.load %arg3[%c0_4, %c0_5] : memref<512x1024xbf16, #tpu.memory_space<vmem>>, vector<512x1024xbf16>
    %cst = arith.constant dense<0.000000e+00> : vector<16x1024xf32>
    %6 = tpu.matmul %4, %5, %cst {dimension_numbers = #tpu.dot_dimension_numbers<[1], [0], [0], [1], [0, 0, 1, 1], [], []>} : vector<16x512xbf16>, vector<512x1024xbf16>, vector<16x1024xf32> -> vector<16x1024xf32>
    %7 = arith.addf %3, %6 : vector<16x1024xf32>
    %c0_6 = arith.constant 0 : index
    %c0_7 = arith.constant 0 : index
    %8 = vector.load %arg8[%c0_6, %c0_7] : memref<16x1024xf32, #tpu.memory_space<vmem>>, vector<16x1024xf32>
    tpu.vector_store %arg8[%c0_6, %c0_7], %7 {strides = array<i32>} : memref<16x1024xf32, #tpu.memory_space<vmem>>, vector<16x1024xf32>,
    %c3_i32 = arith.constant 3 : i32
    %9 = arith.cmpi eq, %arg1, %c3_i32 : i32
    %10 = arith.extui %9 : i1 to i32
    %c0_i32_8 = arith.constant 0 : i32
    %11 = arith.cmpi ne, %10, %c0_i32_8 : i32
    scf.if %11 {
      %c0_9 = arith.constant 0 : index
      %c0_10 = arith.constant 0 : index
      %12 = vector.load %arg8[%c0_9, %c0_10] : memref<16x1024xf32, #tpu.memory_space<vmem>>, vector<16x1024xf32>
      %c0_11 = arith.constant 0 : index
      %c0_12 = arith.constant 0 : index
      %13 = vector.load %arg4[%c0_11, %c0_12] : memref<1x1024xf32, #tpu.memory_space<vmem>>, vector<1x1024xf32>
      %14 = vector.broadcast %13 : vector<1x1024xf32> to vector<16x1024xf32>
      %15 = arith.addf %12, %14 : vector<16x1024xf32>
      %cst_13 = arith.constant 0.000000e+00 : f32
      %16 = vector.broadcast %cst_13 : f32 to vector<16x1024xf32>
      %17 = arith.cmpf oge, %15, %16 : vector<16x1024xf32>
      %cst_14 = arith.constant 0.00999999977 : f32
      %18 = vector.broadcast %cst_14 : f32 to vector<16x1024xf32>
      %19 = arith.mulf %18, %15 : vector<16x1024xf32>
      %20 = arith.select %17, %15, %19 : vector<16x1024xi1>, vector<16x1024xf32>
      %21 = arith.truncf %20 : vector<16x1024xf32> to vector<16x1024xbf16>
      %c0_15 = arith.constant 0 : index
      %c0_16 = arith.constant 0 : index
      %22 = vector.load %arg5[%c0_15, %c0_16] : memref<1024x128xbf16, #tpu.memory_space<vmem>>, vector<1024x128xbf16>
      %cst_17 = arith.constant dense<0.000000e+00> : vector<16x128xf32>
      %23 = tpu.matmul %21, %22, %cst_17 {dimension_numbers = #tpu.dot_dimension_numbers<[1], [0], [0], [1], [0, 0, 1, 1], [], []>} : vector<16x1024xbf16>, vector<1024x128xbf16>, vector<16x128xf32> -> vector<16x128xf32>
      %c0_18 = arith.constant 0 : index
      %c0_19 = arith.constant 0 : index
      %24 = vector.load %arg6[%c0_18, %c0_19] : memref<1x128xf32, #tpu.memory_space<vmem>>, vector<1x128xf32>
      %25 = vector.broadcast %24 : vector<1x128xf32> to vector<16x128xf32>
      %26 = arith.addf %23, %25 : vector<16x128xf32>
      %c0_20 = arith.constant 0 : index
      %c0_21 = arith.constant 0 : index
      %27 = vector.load %arg7[%c0_20, %c0_21] : memref<16x128xf32, #tpu.memory_space<vmem>>, vector<16x128xf32>
      tpu.vector_store %arg7[%c0_20, %c0_21], %26 {strides = array<i32>} : memref<16x128xf32, #tpu.memory_space<vmem>>, vector<16x128xf32>,
    } else {
    }
    return
  }
  func.func @transform_0(%arg0: i32, %arg1: i32) -> (i32, i32) {
    %c0_i32 = arith.constant 0 : i32
    return %arg0, %arg1 : i32, i32
  }
  func.func @transform_1(%arg0: i32, %arg1: i32) -> (i32, i32) {
    %c0_i32 = arith.constant 0 : i32
    %c0_i32_0 = arith.constant 0 : i32
    return %arg1, %c0_i32 : i32, i32
  }
  func.func @transform_2(%arg0: i32, %arg1: i32) -> (i32, i32) {
    %c0_i32 = arith.constant 0 : i32
    %c0_i32_0 = arith.constant 0 : i32
    %c0_i32_1 = arith.constant 0 : i32
    return %c0_i32, %c0_i32_0 : i32, i32
  }
  func.func @transform_3(%arg0: i32, %arg1: i32) -> (i32, i32) {
    %c0_i32 = arith.constant 0 : i32
    %c0_i32_0 = arith.constant 0 : i32
    %c0_i32_1 = arith.constant 0 : i32
    return %c0_i32, %c0_i32_0 : i32, i32
  }
  func.func @transform_4(%arg0: i32, %arg1: i32) -> (i32, i32) {
    %c0_i32 = arith.constant 0 : i32
    %c0_i32_0 = arith.constant 0 : i32
    %c0_i32_1 = arith.constant 0 : i32
    return %c0_i32, %c0_i32_0 : i32, i32
  }
  func.func @transform_5(%arg0: i32, %arg1: i32) -> (i32, i32) {
    %c0_i32 = arith.constant 0 : i32
    %c0_i32_0 = arith.constant 0 : i32
    return %arg0, %c0_i32 : i32, i32
  }
}

</mosaic_0001>

<llo_original>
// kernel: encoder_forward.3
$region0: #{encoder_forward.3}
  #allocation0 [shape = 'u32[]', space=smem, size = 0x4, offset = 0x4, fixed_abs, tag = 'smem constant byte address 0x4 - core index']
  #allocation1 [shape = 'u32[144,128]{1,0:T(1,128)}', space=vmem, size = 0x12000, scoped, tag = 'internal scratch']
  %s0 = inlined_call_operand.vmem [shape: bf16[2,9,9,16], index: 0, kind: input, shape index: {}]
  %s1 = inlined_call_operand.hbm [shape: bf16[4,16,128], index: 1, kind: input, shape index: {}]
  %s2 = inlined_call_operand.hbm [shape: f32[1,128], index: 2, kind: input, shape index: {}]
  %s3 = inlined_call_operand.vmem [shape: bf16[2,64,128], index: 3, kind: output, shape index: {}]
  %s4 = sld [smem:[#allocation0]]
  $region53: #{encoder_forward.3} parent=0
    _
  %s6 = ssub.s32 1, %s4
  %s7 = scalar_select 0, %s6, %s4
  $region1: #{encoder_forward.3} parent=0
    #allocation2 [shape = 'u8[16384]{0}', space=vmem, size = 0x4000, scoped, tag = 'input window, operand 1, single buffered']
    #allocation3 [shape = 's32[2]{0}', space=sflag, size = 0x8, scoped, tag = 'scoped memory for encoder_forward.3']
    #allocation4 [shape = 'u8[512]{0}', space=vmem, size = 0x400, scoped, tag = 'input window, operand 2, single buffered']
    #allocation5 [shape = 's32[1]{0}', space=sflag, size = 0x4, scoped, tag = 'scoped memory for encoder_forward.3']
    %8 = vsyncpa [#allocation3], 0
    %9 = vsyncpa [#allocation5], 0
    loop: start=0, step=1, limit=4
    $region2: #{encoder_forward.3} parent=1 // loop_pre_header
      _
    $region3: #{encoder_forward.3} parent=1 // loop_header
      %s11 = sphi 0, %s15
      %p12 = scmp.ge.s32.totalorder %s11, 4
      %s21 = sphi 0, %s23
      %s24 = sphi 0, %s21
      %s25 = sphi 0, %s24
      %s41 = sphi 0, %s25
      %s45 = sphi 0, %s45
      %s47 = sphi 0, %s45
      %s48 = sphi 0, %s47
      %s62 = sphi 0, %s48
      %s66 = sphi 0, %s66
      %s68 = sphi 0, %s66
      %s69 = sphi 0, %s68
      %s83 = sphi 0, %s69
      %s89 = sphi 0, %s91
      %s92 = sphi 0, %s89
      %s93 = sphi 0, %s92
      %s109 = sphi 0, %s93
    $region4: #{encoder_forward.3} parent=1 // loop_header_branch
      %14 = sbr.rel (%p12) target = $region8
    $region5: #{encoder_forward.3} parent=1 // loop_body
      %s16 = ssub.s32 %s11, 1
      %s17 = ssub.s32 %s11, 2
      %s18 = sadd.s32 %s11, 1
      %s19 = ssub.s32 %s11, %s18
      %p20 = scmp.eq.s32.totalorder %s19, 0
      %s22 = sadd.s32 %s21, 1
      %s23 = scalar_select %p20, %s21, %s22
      %p26 = pneg %p20
      %p27 = scmp.eq.s32.totalorder %s11, 1
      %p28 = por %p26, %p27
      %p29 = scmp.ne.s32.totalorder %s21, %s24
      %p30 = scmp.eq.s32.totalorder %s11, 0
      %p31 = por %p29, %p30
      %p32 = scmp.ne.s32.totalorder %s21, %s24
      %p33 = scmp.eq.s32.totalorder %s16, 1
      %p34 = por %p32, %p33
      %p35 = scmp.ne.s32.totalorder %s24, %s25
      %p36 = scmp.eq.s32.totalorder %s16, 0
      %p37 = por %p35, %p36
      %p38 = scmp.ne.s32.totalorder %s24, %s25
      %p39 = scmp.eq.s32.totalorder %s17, 1
      %p40 = por %p38, %p39
      %p42 = scmp.ne.s32.totalorder %s25, %s41
      %p43 = scmp.eq.s32.totalorder %s17, 0
      %p44 = por %p42, %p43
      %s46 = sadd.s32 %s45, 1
      %p49 = scmp.eq.s32.totalorder %s11, 1
      %p50 = scmp.ne.s32.totalorder %s45, %s47
      %p51 = scmp.eq.s32.totalorder %s11, 0
      %p52 = por %p50, %p51
      %p53 = scmp.ne.s32.totalorder %s45, %s47
      %p54 = scmp.eq.s32.totalorder %s16, 1
      %p55 = por %p53, %p54
      %p56 = scmp.ne.s32.totalorder %s47, %s48
      %p57 = scmp.eq.s32.totalorder %s16, 0
      %p58 = por %p56, %p57
      %p59 = scmp.ne.s32.totalorder %s47, %s48
      %p60 = scmp.eq.s32.totalorder %s17, 1
      %p61 = por %p59, %p60
      %p63 = scmp.ne.s32.totalorder %s48, %s62
      %p64 = scmp.eq.s32.totalorder %s17, 0
      %p65 = por %p63, %p64
      %s67 = sadd.s32 %s66, 1
      %p70 = scmp.eq.s32.totalorder %s11, 1
      %p71 = scmp.ne.s32.totalorder %s66, %s68
      %p72 = scmp.eq.s32.totalorder %s11, 0
      %p73 = por %p71, %p72
      %p74 = scmp.ne.s32.totalorder %s66, %s68
      %p75 = scmp.eq.s32.totalorder %s16, 1
      %p76 = por %p74, %p75
      %p77 = scmp.ne.s32.totalorder %s68, %s69
      %p78 = scmp.eq.s32.totalorder %s16, 0
      %p79 = por %p77, %p78
      %p80 = scmp.ne.s32.totalorder %s68, %s69
      %p81 = scmp.eq.s32.totalorder %s17, 1
      %p82 = por %p80, %p81
      %p84 = scmp.ne.s32.totalorder %s69, %s83
      %p85 = scmp.eq.s32.totalorder %s17, 0
      %p86 = por %p84, %p85
      %s87 = ssub.s32 %s11, %s18
      %p88 = scmp.eq.s32.totalorder %s87, 0
      %s90 = sadd.s32 %s89, 1
      %s91 = scalar_select %p88, %s89, %s90
      %p94 = pneg %p88
      %p95 = scmp.eq.s32.totalorder %s11, 1
      %p96 = por %p94, %p95
      %p97 = scmp.ne.s32.totalorder %s89, %s92
      %p98 = scmp.eq.s32.totalorder %s11, 0
      %p99 = por %p97, %p98
      %p100 = scmp.ne.s32.totalorder %s89, %s92
      %p101 = scmp.eq.s32.totalorder %s16, 1
      %p102 = por %p100, %p101
      %p103 = scmp.ne.s32.totalorder %s92, %s93
      %p104 = scmp.eq.s32.totalorder %s16, 0
      %p105 = por %p103, %p104
      %p106 = scmp.ne.s32.totalorder %s92, %s93
      %p107 = scmp.eq.s32.totalorder %s17, 1
      %p108 = por %p106, %p107
      %p110 = scmp.ne.s32.totalorder %s93, %s109
      %p111 = scmp.eq.s32.totalorder %s17, 0
      %p112 = por %p110, %p111
      %p113 = scmp.le.s32.totalorder 1, %s11
      %p114 = scmp.lt.s32.totalorder %s11, 3
      %p115 = pnand %p113, %p114
      %p116 = pneg %p115
      // Predicated region
      $region9: #{encoder_forward.3} parent=5 // pred_check
        _
      $region10: #{encoder_forward.3} parent=5 // pred_check_branch
        %118 = sbr.rel (%p115) target = $region12
      $region11: #{encoder_forward.3} parent=5 // pred_region
        %s119 = ssub.s32 %s11, 1
        // Predicated region
        $region13: #{encoder_forward.3} parent=11 // pred_check
          %p120 = pneg %p58
        $region14: #{encoder_forward.3} parent=11 // pred_check_branch
          %122 = sbr.rel (%p120) target = $region16
        $region15: #{encoder_forward.3} parent=11 // pred_region
          %s124 = ssub.s32 512, 512
          %125 = vsyncadd [#allocation3], %s124
          %s126 = sshll.u32 [#allocation2], 4
          %s127 = int_to_ptr.vmem [resolvable:$true] %s126
          %132 = dma.hbm_to_vmem [thread:$0]  %s1, 512, %s127, [#allocation3], 64, 64, 4
        $region16: #{encoder_forward.3} parent=11 // pred_fallthru
          _
        // Predicated region
        $region17: #{encoder_forward.3} parent=11 // pred_check
          %p133 = pneg %p79
        $region18: #{encoder_forward.3} parent=11 // pred_check_branch
          %135 = sbr.rel (%p133) target = $region20
        $region19: #{encoder_forward.3} parent=11 // pred_region
          %s137 = ssub.s32 16, 16
          %138 = vsyncadd [#allocation5], %s137
          %s140 = sshll.u32 [#allocation4], 4
          %s141 = int_to_ptr.vmem [resolvable:$true] %s140
          %143 = dma.hbm_to_vmem [thread:$0]  %s2, 16, %s141, [#allocation5]
        $region20: #{encoder_forward.3} parent=11 // pred_fallthru
          _
      $region12: #{encoder_forward.3} parent=5 // pred_fallthru
        _
      %p144 = scmp.lt.s32.totalorder %s11, 2
      // Predicated region
      $region21: #{encoder_forward.3} parent=5 // pred_check
        %p145 = pneg %p144
      $region22: #{encoder_forward.3} parent=5 // pred_check_branch
        %147 = sbr.rel (%p145) target = $region24
      $region23: #{encoder_forward.3} parent=5 // pred_region
        // Predicated region
        $region25: #{encoder_forward.3} parent=23 // pred_check
          %p148 = pneg %p31
        $region26: #{encoder_forward.3} parent=23 // pred_check_branch
          %150 = sbr.rel (%p148) target = $region28
        $region27: #{encoder_forward.3} parent=23 // pred_region
          %p151 = scmp.lt.s32.totalorder %s11, 1
          %s152 = scalar_select %p151, %s11, 1
          %s153 = smul.addr %s152, 18
          %s154 = smul.addr %s153, 4
          %s155 = scalar_lea.vmem %s0, %s154
        $region28: #{encoder_forward.3} parent=23 // pred_fallthru
          _
      $region24: #{encoder_forward.3} parent=5 // pred_fallthru
        _
      %p156 = scmp.le.s32.totalorder 1, %s11
      %p157 = scmp.lt.s32.totalorder %s11, 3
      %p158 = pnand %p156, %p157
      %p159 = pneg %p158
      // Predicated region
      $region29: #{encoder_forward.3} parent=5 // pred_check
        _
      $region30: #{encoder_forward.3} parent=5 // pred_check_branch
        %161 = sbr.rel (%p158) target = $region32
      $region31: #{encoder_forward.3} parent=5 // pred_region
        %s162 = ssub.s32 %s11, 1
        // Predicated region
        $region33: #{encoder_forward.3} parent=31 // pred_check
          %p163 = pneg %p58
        $region34: #{encoder_forward.3} parent=31 // pred_check_branch
          %165 = sbr.rel (%p163) target = $region36
        $region35: #{encoder_forward.3} parent=31 // pred_region
          %166 = dma.done [#allocation3], 512
        $region36: #{encoder_forward.3} parent=31 // pred_fallthru
          _
        // Predicated region
        $region37: #{encoder_forward.3} parent=31 // pred_check
          %p167 = pneg %p79
        $region38: #{encoder_forward.3} parent=31 // pred_check_branch
          %169 = sbr.rel (%p167) target = $region40
        $region39: #{encoder_forward.3} parent=31 // pred_region
          %170 = dma.done [#allocation5], 16
        $region40: #{encoder_forward.3} parent=31 // pred_fallthru
          _
        %p171 = scmp.lt.s32.totalorder %s16, 1
        %s172 = scalar_select %p171, %s16, 1
        %s173 = smul.addr %s172, 18
        %s174 = smul.addr %s173, 4
        %s175 = scalar_lea.vmem %s0, %s174
        %p176 = pneg %p37
        %p177 = pneg %p34
        %p178 = pneg %p58
        %p179 = pneg %p55
        %p180 = pneg %p79
        %p181 = pneg %p76
        %p182 = pneg %p105
        %p183 = pneg %p102
        %p184 = scmp.lt.s32.totalorder %s16, 1
        %s185 = scalar_select %p184, %s16, 1
        %s186 = smul.addr %s185, 8
        %s187 = smul.addr %s186, 4
        %s188 = scalar_lea.vmem %s3, %s187
        %p189 = scmp.lt.s32.totalorder %s16, 1
        %s190 = scalar_select %p189, %s16, 1
        %s191 = smul.addr %s190, 18
        %s192 = smul.addr %s191, 4
        %s193 = scalar_lea.vmem %s0, %s192
        %p194 = scmp.lt.s32.totalorder %s16, 1
        %s195 = scalar_select %p194, %s16, 1
        %s196 = smul.addr %s195, 8
        %s197 = smul.addr %s196, 4
        %s198 = scalar_lea.vmem %s3, %s197
        %v200 = vld [vmem:[%s193] sm:$0xf]
        %v201 = vld [vmem:[%s193 + $0x4] sm:$0x1]
        %v202 = vld [vmem:[%s193 + $0x8] sm:$0xf]
        %v203 = vld [vmem:[%s193 + $0xc] sm:$0x1]
        %v204 = vld [vmem:[%s193 + $0x10] sm:$0xf]
        %v205 = vld [vmem:[%s193 + $0x14] sm:$0x1]
        %v206 = vld [vmem:[%s193 + $0x18] sm:$0xf]
        %v207 = vld [vmem:[%s193 + $0x1c] sm:$0x1]
        %v208 = vld [vmem:[%s193 + $0x20] sm:$0xf]
        %v209 = vld [vmem:[%s193 + $0x24] sm:$0x1]
        %v210 = vld [vmem:[%s193 + $0x28] sm:$0xf]
        %v211 = vld [vmem:[%s193 + $0x2c] sm:$0x1]
        %v212 = vld [vmem:[%s193 + $0x30] sm:$0xf]
        %v213 = vld [vmem:[%s193 + $0x34] sm:$0x1]
        %v214 = vld [vmem:[%s193 + $0x38] sm:$0xf]
        %v215 = vld [vmem:[%s193 + $0x3c] sm:$0x1]
        %v216 = vld [vmem:[%s193 + $0x40] sm:$0xf]
        %v217 = vld [vmem:[%s193 + $0x44] sm:$0x1]
        %v218 = vld [vmem:[#allocation4] sm:$0x1]
        %v219 = vld [vmem:[#allocation2] sm:$0xf]
        %v220 = vld [vmem:[#allocation2 + $0x4] sm:$0xf]
        %s221 = scalar_lea.vmem [#allocation2], 8
        %v222 = vld [vmem:[%s221] sm:$0xf]
        %v223 = vld [vmem:[%s221 + $0x4] sm:$0xf]
        %s224 = scalar_lea.vmem [#allocation2], 16
        %v225 = vld [vmem:[%s224] sm:$0xf]
        %v226 = vld [vmem:[%s224 + $0x4] sm:$0xf]
        %s227 = scalar_lea.vmem [#allocation2], 24
        %v228 = vld [vmem:[%s227] sm:$0xf]
        %v229 = vld [vmem:[%s227 + $0x4] sm:$0xf]
        %vm230 = vsmask.f32 3328
        %vm231 = vsmask.f32 7440
        %vm232 = vmor %vm230, %vm231
        %v234 = vshrl.u32 %v200, 16
        %v236 = vrot.slane %v234, 4
        %v237 = vshll.u32 %v200, 16
        %v239 = vrot.slane %v237, 5
        %v240 = vor.u32 %v236, %v239
        %v241 = vrot.slane %v240, 4
        %v243 = vshll.u32 %v201, 16
        %v245 = vrot.slane %v243, 5
        %v246 = vsel %vm232, %v241, %v245
        %v248 = vshrl.u32 %v202, 16
        %v250 = vrot.slane %v248, 4
        %v251 = vshll.u32 %v202, 16
        %v253 = vrot.slane %v251, 5
        %v254 = vor.u32 %v250, %v253
        %v255 = vrot.slane %v254, 4
        %v257 = vshll.u32 %v203, 16
        %v259 = vrot.slane %v257, 5
        %v260 = vsel %vm232, %v255, %v259
        %v262 = vshrl.u32 %v204, 16
        %v264 = vrot.slane %v262, 4
        %v265 = vshll.u32 %v204, 16
        %v267 = vrot.slane %v265, 5
        %v268 = vor.u32 %v264, %v267
        %v269 = vrot.slane %v268, 4
        %v271 = vshll.u32 %v205, 16
        %v273 = vrot.slane %v271, 5
        %v274 = vsel %vm232, %v269, %v273
        %v276 = vshrl.u32 %v206, 16
        %v278 = vrot.slane %v276, 4
        %v279 = vshll.u32 %v206, 16
        %v281 = vrot.slane %v279, 5
        %v282 = vor.u32 %v278, %v281
        %v283 = vrot.slane %v282, 4
        %v285 = vshll.u32 %v207, 16
        %v287 = vrot.slane %v285, 5
        %v288 = vsel %vm232, %v283, %v287
        %v290 = vshrl.u32 %v208, 16
        %v292 = vrot.slane %v290, 4
        %v293 = vshll.u32 %v208, 16
        %v295 = vrot.slane %v293, 5
        %v296 = vor.u32 %v292, %v295
        %v297 = vrot.slane %v296, 4
        %v299 = vshll.u32 %v209, 16
        %v301 = vrot.slane %v299, 5
        %v302 = vsel %vm232, %v297, %v301
        %v304 = vshrl.u32 %v210, 16
        %v306 = vrot.slane %v304, 4
        %v307 = vshll.u32 %v210, 16
        %v309 = vrot.slane %v307, 5
        %v310 = vor.u32 %v306, %v309
        %v311 = vrot.slane %v310, 4
        %v313 = vshll.u32 %v211, 16
        %v315 = vrot.slane %v313, 5
        %v316 = vsel %vm232, %v311, %v315
        %v318 = vshrl.u32 %v212, 16
        %v320 = vrot.slane %v318, 4
        %v321 = vshll.u32 %v212, 16
        %v323 = vrot.slane %v321, 5
        %v324 = vor.u32 %v320, %v323
        %v325 = vrot.slane %v324, 4
        %v327 = vshll.u32 %v213, 16
        %v329 = vrot.slane %v327, 5
        %v330 = vsel %vm232, %v325, %v329
        %v332 = vshrl.u32 %v214, 16
        %v334 = vrot.slane %v332, 4
        %v335 = vshll.u32 %v214, 16
        %v337 = vrot.slane %v335, 5
        %v338 = vor.u32 %v334, %v337
        %v339 = vrot.slane %v338, 4
        %v341 = vshll.u32 %v215, 16
        %v343 = vrot.slane %v341, 5
        %v344 = vsel %vm232, %v339, %v343
        %v345 = vunpack.c.l.b16 %v246
        %v346 = vunpack.c.l.b16 %v260
        %v347 = vunpack.c.l.b16 %v274
        %v348 = vunpack.c.l.b16 %v288
        %v349 = vunpack.c.l.b16 %v302
        %v350 = vunpack.c.l.b16 %v316
        %v351 = vunpack.c.l.b16 %v330
        %v352 = vunpack.c.l.b16 %v344
        %v353 = vpack.c.b16 %v346, %v345
        %v354 = vpack.c.b16 %v348, %v347
        %v355 = vpack.c.b16 %v350, %v349
        %v356 = vpack.c.b16 %v352, %v351
        %v359 = vunpack.c.l.b16 %v222
        %v360 = vunpack.c.l.b16 %v223
        %v361 = vpack.c.b16 %v360, %v359
        %vm363 = vcmask 130048
        %v365 = vsel %vm363, %v353, 0
        %v368 = vsel %vm363, %v354, 0
        %v371 = vsel %vm363, %v355, 0
        %v374 = vsel %vm363, %v356, 0
        %376 = vmatprep.subr.bf16.mxu0 0
        %377 = vmatpush1.bf16.msra.mxu0 %v361
        %378 = vmatprep.subr.bf16.mxu0 0
        %379 = vmatpush1.bf16.msra.mxu0 0
        %380 = vmatprep.subr.bf16.mxu0 0
        %381 = vmatpush1.bf16.msra.mxu0 0
        %382 = vmatprep.subr.bf16.mxu0 0
        %383 = vmatpush1.bf16.msra.mxu0 0
        %384 = vmatprep.subr.bf16.mxu0 0
        %385 = vmatpush1.bf16.msra.mxu0 0
        %386 = vmatprep.subr.bf16.mxu0 0
        %387 = vmatpush1.bf16.msra.mxu0 0
        %388 = vmatprep.subr.bf16.mxu0 0
        %389 = vmatpush1.bf16.msra.mxu0 0
        %390 = vmatprep.subr.bf16.mxu0 0
        %391 = vmatpush1.bf16.msra.mxu0 0
        %392 = vmatprep.subr.bf16.mxu0 0
        %393 = vmatpush1.bf16.msra.mxu0 0
        %394 = vmatprep.subr.bf16.mxu0 0
        %395 = vmatpush1.bf16.msra.mxu0 0
        %396 = vmatprep.subr.bf16.mxu0 0
        %397 = vmatpush1.bf16.msra.mxu0 0
        %398 = vmatprep.subr.bf16.mxu0 0
        %399 = vmatpush1.bf16.msra.mxu0 0
        %400 = vmatprep.subr.bf16.mxu0 0
        %401 = vmatpush1.bf16.msra.mxu0 0
        %402 = vmatprep.subr.bf16.mxu0 0
        %403 = vmatpush1.bf16.msra.mxu0 0
        %404 = vmatprep.subr.bf16.mxu0 0
        %405 = vmatpush1.bf16.msra.mxu0 0
        %406 = vmatprep.subr.bf16.mxu0 0
        %407 = vmatpush1.bf16.msra.mxu0 0
        %408 = vmatprep.mubr.bf16.mxu0 0
        %409 = vmatmul.mubr.bf16.gmra.mrb[0].mxu0 %v365
        %v410 = vpop.f32.mrb[0].mxu0
        %v411 = vadd.f32 0.0, %v410
        %v412 = vpop.f32.mrb[0].mxu0
        %v413 = vpop.f32.mrb[0].mxu0
        %v414 = vadd.f32 0.0, %v413
        %v415 = vpop.f32.mrb[0].mxu0
        %416 = vmatprep.mubr.bf16.mxu0 0
        %417 = vmatmul.mubr.bf16.gmra.mrb[0].mxu0 %v368
        %v418 = vpop.f32.mrb[0].mxu0
        %v419 = vadd.f32 0.0, %v418
        %v420 = vpop.f32.mrb[0].mxu0
        %v421 = vpop.f32.mrb[0].mxu0
        %v422 = vadd.f32 0.0, %v421
        %v423 = vpop.f32.mrb[0].mxu0
        %424 = vmatprep.mubr.bf16.mxu0 0
        %425 = vmatmul.mubr.bf16.gmra.mrb[0].mxu0 %v371
        %v426 = vpop.f32.mrb[0].mxu0
        %v427 = vadd.f32 0.0, %v426
        %v428 = vpop.f32.mrb[0].mxu0
        %v429 = vpop.f32.mrb[0].mxu0
        %v430 = vadd.f32 0.0, %v429
        %v431 = vpop.f32.mrb[0].mxu0
        %432 = vmatprep.mubr.bf16.mxu0 0
        %433 = vmatmul.mubr.bf16.gmra.mrb[0].mxu0 %v374
        %v434 = vpop.f32.mrb[0].mxu0
        %v435 = vadd.f32 0.0, %v434
        %v436 = vpop.f32.mrb[0].mxu0
        %v437 = vpop.f32.mrb[0].mxu0
        %v438 = vadd.f32 0.0, %v437
        %v439 = vpop.f32.mrb[0].mxu0
        %440 = vdwg.mxu0
        %v449 = vunpack.c.l.b16 %v200
        %v450 = vunpack.c.l.b16 %v202
        %v451 = vunpack.c.l.b16 %v204
        %v452 = vunpack.c.l.b16 %v206
        %v453 = vunpack.c.l.b16 %v208
        %v454 = vunpack.c.l.b16 %v210
        %v455 = vunpack.c.l.b16 %v212
        %v456 = vunpack.c.l.b16 %v214
        %v457 = vpack.c.b16 %v450, %v449
        %v458 = vpack.c.b16 %v452, %v451
        %v459 = vpack.c.b16 %v454, %v453
        %v460 = vpack.c.b16 %v456, %v455
        %v463 = vunpack.c.l.b16 %v219
        %v464 = vunpack.c.l.b16 %v220
        %v465 = vpack.c.b16 %v464, %v463
        %v468 = vsel %vm363, %v457, 0
        %v471 = vsel %vm363, %v458, 0
        %v474 = vsel %vm363, %v459, 0
        %v477 = vsel %vm363, %v460, 0
        %479 = vmatprep.subr.bf16.mxu0 0
        %480 = vmatpush1.bf16.msra.mxu0 %v465
        %481 = vmatprep.subr.bf16.mxu0 0
        %482 = vmatpush1.bf16.msra.mxu0 0
        %483 = vmatprep.subr.bf16.mxu0 0
        %484 = vmatpush1.bf16.msra.mxu0 0
        %485 = vmatprep.subr.bf16.mxu0 0
        %486 = vmatpush1.bf16.msra.mxu0 0
        %487 = vmatprep.subr.bf16.mxu0 0
        %488 = vmatpush1.bf16.msra.mxu0 0
        %489 = vmatprep.subr.bf16.mxu0 0
        %490 = vmatpush1.bf16.msra.mxu0 0
        %491 = vmatprep.subr.bf16.mxu0 0
        %492 = vmatpush1.bf16.msra.mxu0 0
        %493 = vmatprep.subr.bf16.mxu0 0
        %494 = vmatpush1.bf16.msra.mxu0 0
        %495 = vmatprep.subr.bf16.mxu0 0
        %496 = vmatpush1.bf16.msra.mxu0 0
        %497 = vmatprep.subr.bf16.mxu0 0
        %498 = vmatpush1.bf16.msra.mxu0 0
        %499 = vmatprep.subr.bf16.mxu0 0
        %500 = vmatpush1.bf16.msra.mxu0 0
        %501 = vmatprep.subr.bf16.mxu0 0
        %502 = vmatpush1.bf16.msra.mxu0 0
        %503 = vmatprep.subr.bf16.mxu0 0
        %504 = vmatpush1.bf16.msra.mxu0 0
        %505 = vmatprep.subr.bf16.mxu0 0
        %506 = vmatpush1.bf16.msra.mxu0 0
        %507 = vmatprep.subr.bf16.mxu0 0
        %508 = vmatpush1.bf16.msra.mxu0 0
        %509 = vmatprep.subr.bf16.mxu0 0
        %510 = vmatpush1.bf16.msra.mxu0 0
        %511 = vmatprep.mubr.bf16.mxu0 0
        %512 = vmatmul.mubr.bf16.gmra.mrb[0].mxu0 %v468
        %v513 = vpop.f32.mrb[0].mxu0
        %v514 = vadd.f32 %v411, %v513
        %v515 = vpop.f32.mrb[0].mxu0
        %v516 = vpop.f32.mrb[0].mxu0
        %v517 = vadd.f32 %v414, %v516
        %v518 = vpop.f32.mrb[0].mxu0
        %519 = vmatprep.mubr.bf16.mxu0 0
        %520 = vmatmul.mubr.bf16.gmra.mrb[0].mxu0 %v471
        %v521 = vpop.f32.mrb[0].mxu0
        %v522 = vadd.f32 %v419, %v521
        %v523 = vpop.f32.mrb[0].mxu0
        %v524 = vpop.f32.mrb[0].mxu0
        %v525 = vadd.f32 %v422, %v524
        %v526 = vpop.f32.mrb[0].mxu0
        %527 = vmatprep.mubr.bf16.mxu0 0
        %528 = vmatmul.mubr.bf16.gmra.mrb[0].mxu0 %v474
        %v529 = vpop.f32.mrb[0].mxu0
        %v530 = vadd.f32 %v427, %v529
        %v531 = vpop.f32.mrb[0].mxu0
        %v532 = vpop.f32.mrb[0].mxu0
        %v533 = vadd.f32 %v430, %v532
        %v534 = vpop.f32.mrb[0].mxu0
        %535 = vmatprep.mubr.bf16.mxu0 0
        %536 = vmatmul.mubr.bf16.gmra.mrb[0].mxu0 %v477
        %v537 = vpop.f32.mrb[0].mxu0
        %v538 = vadd.f32 %v435, %v537
        %v539 = vpop.f32.mrb[0].mxu0
        %v540 = vpop.f32.mrb[0].mxu0
        %v541 = vadd.f32 %v438, %v540
        %v542 = vpop.f32.mrb[0].mxu0
        %543 = vdwg.mxu0
        %v545 = vunpack.c.l.b16 %v216
        %v546 = vpack.c.b16 %v451, %v450
        %v547 = vpack.c.b16 %v453, %v452
        %v548 = vpack.c.b16 %v455, %v454
        %v549 = vpack.c.b16 %v545, %v456
        %v552 = vunpack.c.l.b16 %v225
        %v553 = vunpack.c.l.b16 %v226
        %v554 = vpack.c.b16 %v553, %v552
        %v557 = vsel %vm363, %v546, 0
        %v560 = vsel %vm363, %v547, 0
        %v563 = vsel %vm363, %v548, 0
        %v566 = vsel %vm363, %v549, 0
        %568 = vmatprep.subr.bf16.mxu0 0
        %569 = vmatpush1.bf16.msra.mxu0 %v554
        %570 = vmatprep.subr.bf16.mxu0 0
        %571 = vmatpush1.bf16.msra.mxu0 0
        %572 = vmatprep.subr.bf16.mxu0 0
        %573 = vmatpush1.bf16.msra.mxu0 0
        %574 = vmatprep.subr.bf16.mxu0 0
        %575 = vmatpush1.bf16.msra.mxu0 0
        %576 = vmatprep.subr.bf16.mxu0 0
        %577 = vmatpush1.bf16.msra.mxu0 0
        %578 = vmatprep.subr.bf16.mxu0 0
        %579 = vmatpush1.bf16.msra.mxu0 0
        %580 = vmatprep.subr.bf16.mxu0 0
        %581 = vmatpush1.bf16.msra.mxu0 0
        %582 = vmatprep.subr.bf16.mxu0 0
        %583 = vmatpush1.bf16.msra.mxu0 0
        %584 = vmatprep.subr.bf16.mxu0 0
        %585 = vmatpush1.bf16.msra.mxu0 0
        %586 = vmatprep.subr.bf16.mxu0 0
        %587 = vmatpush1.bf16.msra.mxu0 0
        %588 = vmatprep.subr.bf16.mxu0 0
        %589 = vmatpush1.bf16.msra.mxu0 0
        %590 = vmatprep.subr.bf16.mxu0 0
        %591 = vmatpush1.bf16.msra.mxu0 0
        %592 = vmatprep.subr.bf16.mxu0 0
        %593 = vmatpush1.bf16.msra.mxu0 0
        %594 = vmatprep.subr.bf16.mxu0 0
        %595 = vmatpush1.bf16.msra.mxu0 0
        %596 = vmatprep.subr.bf16.mxu0 0
        %597 = vmatpush1.bf16.msra.mxu0 0
        %598 = vmatprep.subr.bf16.mxu0 0
        %599 = vmatpush1.bf16.msra.mxu0 0
        %600 = vmatprep.mubr.bf16.mxu0 0
        %601 = vmatmul.mubr.bf16.gmra.mrb[0].mxu0 %v557
        %v602 = vpop.f32.mrb[0].mxu0
        %v603 = vadd.f32 0.0, %v602
        %v604 = vpop.f32.mrb[0].mxu0
        %v605 = vpop.f32.mrb[0].mxu0
        %v606 = vadd.f32 0.0, %v605
        %v607 = vpop.f32.mrb[0].mxu0
        %608 = vmatprep.mubr.bf16.mxu0 0
        %609 = vmatmul.mubr.bf16.gmra.mrb[0].mxu0 %v560
        %v610 = vpop.f32.mrb[0].mxu0
        %v611 = vadd.f32 0.0, %v610
        %v612 = vpop.f32.mrb[0].mxu0
        %v613 = vpop.f32.mrb[0].mxu0
        %v614 = vadd.f32 0.0, %v613
        %v615 = vpop.f32.mrb[0].mxu0
        %616 = vmatprep.mubr.bf16.mxu0 0
        %617 = vmatmul.mubr.bf16.gmra.mrb[0].mxu0 %v563
        %v618 = vpop.f32.mrb[0].mxu0
        %v619 = vadd.f32 0.0, %v618
        %v620 = vpop.f32.mrb[0].mxu0
        %v621 = vpop.f32.mrb[0].mxu0
        %v622 = vadd.f32 0.0, %v621
        %v623 = vpop.f32.mrb[0].mxu0
        %624 = vmatprep.mubr.bf16.mxu0 0
        %625 = vmatmul.mubr.bf16.gmra.mrb[0].mxu0 %v566
        %v626 = vpop.f32.mrb[0].mxu0
        %v627 = vadd.f32 0.0, %v626
        %v628 = vpop.f32.mrb[0].mxu0
        %v629 = vpop.f32.mrb[0].mxu0
        %v630 = vadd.f32 0.0, %v629
        %v631 = vpop.f32.mrb[0].mxu0
        %632 = vdwg.mxu0
        %v633 = vadd.f32 %v514, %v603
        %v634 = vadd.f32 %v517, %v606
        %v635 = vadd.f32 %v522, %v611
        %v636 = vadd.f32 %v525, %v614
        %v637 = vadd.f32 %v530, %v619
        %v638 = vadd.f32 %v533, %v622
        %v639 = vadd.f32 %v538, %v627
        %v640 = vadd.f32 %v541, %v630
        %v642 = vshrl.u32 %v216, 16
        %v644 = vrot.slane %v642, 4
        %v645 = vshll.u32 %v216, 16
        %v647 = vrot.slane %v645, 5
        %v648 = vor.u32 %v644, %v647
        %v649 = vrot.slane %v648, 4
        %v651 = vshll.u32 %v217, 16
        %v653 = vrot.slane %v651, 5
        %v654 = vsel %vm232, %v649, %v653
        %v655 = vunpack.c.l.b16 %v654
        %v656 = vpack.c.b16 %v347, %v346
        %v657 = vpack.c.b16 %v349, %v348
        %v658 = vpack.c.b16 %v351, %v350
        %v659 = vpack.c.b16 %v655, %v352
        %v662 = vunpack.c.l.b16 %v228
        %v663 = vunpack.c.l.b16 %v229
        %v664 = vpack.c.b16 %v663, %v662
        %v667 = vsel %vm363, %v656, 0
        %v670 = vsel %vm363, %v657, 0
        %v673 = vsel %vm363, %v658, 0
        %v676 = vsel %vm363, %v659, 0
        %678 = vmatprep.subr.bf16.mxu0 0
        %679 = vmatpush1.bf16.msra.mxu0 %v664
        %680 = vmatprep.subr.bf16.mxu0 0
        %681 = vmatpush1.bf16.msra.mxu0 0
        %682 = vmatprep.subr.bf16.mxu0 0
        %683 = vmatpush1.bf16.msra.mxu0 0
        %684 = vmatprep.subr.bf16.mxu0 0
        %685 = vmatpush1.bf16.msra.mxu0 0
        %686 = vmatprep.subr.bf16.mxu0 0
        %687 = vmatpush1.bf16.msra.mxu0 0
        %688 = vmatprep.subr.bf16.mxu0 0
        %689 = vmatpush1.bf16.msra.mxu0 0
        %690 = vmatprep.subr.bf16.mxu0 0
        %691 = vmatpush1.bf16.msra.mxu0 0
        %692 = vmatprep.subr.bf16.mxu0 0
        %693 = vmatpush1.bf16.msra.mxu0 0
        %694 = vmatprep.subr.bf16.mxu0 0
        %695 = vmatpush1.bf16.msra.mxu0 0
        %696 = vmatprep.subr.bf16.mxu0 0
        %697 = vmatpush1.bf16.msra.mxu0 0
        %698 = vmatprep.subr.bf16.mxu0 0
        %699 = vmatpush1.bf16.msra.mxu0 0
        %700 = vmatprep.subr.bf16.mxu0 0
        %701 = vmatpush1.bf16.msra.mxu0 0
        %702 = vmatprep.subr.bf16.mxu0 0
        %703 = vmatpush1.bf16.msra.mxu0 0
        %704 = vmatprep.subr.bf16.mxu0 0
        %705 = vmatpush1.bf16.msra.mxu0 0
        %706 = vmatprep.subr.bf16.mxu0 0
        %707 = vmatpush1.bf16.msra.mxu0 0
        %708 = vmatprep.subr.bf16.mxu0 0
        %709 = vmatpush1.bf16.msra.mxu0 0
        %710 = vmatprep.mubr.bf16.mxu0 0
        %711 = vmatmul.mubr.bf16.gmra.mrb[0].mxu0 %v667
        %v712 = vpop.f32.mrb[0].mxu0
        %v713 = vadd.f32 0.0, %v712
        %v714 = vpop.f32.mrb[0].mxu0
        %v715 = vpop.f32.mrb[0].mxu0
        %v716 = vadd.f32 0.0, %v715
        %v717 = vpop.f32.mrb[0].mxu0
        %718 = vmatprep.mubr.bf16.mxu0 0
        %719 = vmatmul.mubr.bf16.gmra.mrb[0].mxu0 %v670
        %v720 = vpop.f32.mrb[0].mxu0
        %v721 = vadd.f32 0.0, %v720
        %v722 = vpop.f32.mrb[0].mxu0
        %v723 = vpop.f32.mrb[0].mxu0
        %v724 = vadd.f32 0.0, %v723
        %v725 = vpop.f32.mrb[0].mxu0
        %726 = vmatprep.mubr.bf16.mxu0 0
        %727 = vmatmul.mubr.bf16.gmra.mrb[0].mxu0 %v673
        %v728 = vpop.f32.mrb[0].mxu0
        %v729 = vadd.f32 0.0, %v728
        %v730 = vpop.f32.mrb[0].mxu0
        %v731 = vpop.f32.mrb[0].mxu0
        %v732 = vadd.f32 0.0, %v731
        %v733 = vpop.f32.mrb[0].mxu0
        %734 = vmatprep.mubr.bf16.mxu0 0
        %735 = vmatmul.mubr.bf16.gmra.mrb[0].mxu0 %v676
        %v736 = vpop.f32.mrb[0].mxu0
        %v737 = vadd.f32 0.0, %v736
        %v738 = vpop.f32.mrb[0].mxu0
        %v739 = vpop.f32.mrb[0].mxu0
        %v740 = vadd.f32 0.0, %v739
        %v741 = vpop.f32.mrb[0].mxu0
        %742 = vdwg.mxu0
        %v743 = vadd.f32 %v633, %v713
        %v744 = vadd.f32 %v634, %v716
        %v745 = vadd.f32 %v635, %v721
        %v746 = vadd.f32 %v636, %v724
        %v747 = vadd.f32 %v637, %v729
        %v748 = vadd.f32 %v638, %v732
        %v749 = vadd.f32 %v639, %v737
        %v750 = vadd.f32 %v640, %v740
        %v752 = vlaneseq
        %v753 = vshrl.u32 %v752, 7
        %v754 = vsub.s32 0, %v753
        %v755 = vrot.slane %v218, %v754
        %v757 = vadd.f32 %v743, %v755
        %v758 = vadd.f32 %v744, %v755
        %v759 = vadd.f32 %v745, %v755
        %v760 = vadd.f32 %v746, %v755
        %v761 = vadd.f32 %v747, %v755
        %v762 = vadd.f32 %v748, %v755
        %v763 = vadd.f32 %v749, %v755
        %v764 = vadd.f32 %v750, %v755
        %vm765 = vcmp.ge.f32.partialorder %v757, 0.0
        %vm766 = vcmp.ge.f32.partialorder %v758, 0.0
        %vm767 = vcmp.ge.f32.partialorder %v759, 0.0
        %vm768 = vcmp.ge.f32.partialorder %v760, 0.0
        %vm769 = vcmp.ge.f32.partialorder %v761, 0.0
        %vm770 = vcmp.ge.f32.partialorder %v762, 0.0
        %vm771 = vcmp.ge.f32.partialorder %v763, 0.0
        %vm772 = vcmp.ge.f32.partialorder %v764, 0.0
        %v773 = vmul.f32 %v757, 0.01
        %v774 = vmul.f32 %v758, 0.01
        %v775 = vmul.f32 %v759, 0.01
        %v776 = vmul.f32 %v760, 0.01
        %v777 = vmul.f32 %v761, 0.01
        %v778 = vmul.f32 %v762, 0.01
        %v779 = vmul.f32 %v763, 0.01
        %v780 = vmul.f32 %v764, 0.01
        %v781 = vsel %vm765, %v757, %v773
        %v782 = vsel %vm766, %v758, %v774
        %v783 = vsel %vm767, %v759, %v775
        %v784 = vsel %vm768, %v760, %v776
        %v785 = vsel %vm769, %v761, %v777
        %v786 = vsel %vm770, %v762, %v778
        %v787 = vsel %vm771, %v763, %v779
        %v788 = vsel %vm772, %v764, %v780
        %v789 = vpack.c.bf16 %v782, %v781
        %v790 = vpack.c.bf16 %v784, %v783
        %v791 = vpack.c.bf16 %v786, %v785
        %v792 = vpack.c.bf16 %v788, %v787
        %v797 = vunpack.c.l.b16 %v789
        %v798 = vunpack.c.h.b16 %v789
        %v799 = vunpack.c.l.b16 %v790
        %v800 = vunpack.c.h.b16 %v790
        %v801 = vunpack.c.l.b16 %v791
        %v802 = vunpack.c.h.b16 %v791
        %v803 = vunpack.c.l.b16 %v792
        %v804 = vunpack.c.h.b16 %v792
        %v805 = vpack.c.b16 %v797, %v797
        %v806 = vpack.c.b16 %v798, %v798
        %v807 = vpack.c.b16 %v799, %v799
        %v808 = vpack.c.b16 %v800, %v800
        %v809 = vpack.c.b16 %v801, %v801
        %v810 = vpack.c.b16 %v802, %v802
        %v811 = vpack.c.b16 %v803, %v803
        %v812 = vpack.c.b16 %v804, %v804
        %821 = vst [vmem:[%s198] sm:$0xf] %v805
        %822 = vst [vmem:[%s198 + $0x4] sm:$0xf] %v806
        %823 = vst [vmem:[%s198 + $0x8] sm:$0xf] %v807
        %824 = vst [vmem:[%s198 + $0xc] sm:$0xf] %v808
        %825 = vst [vmem:[%s198 + $0x10] sm:$0xf] %v809
        %826 = vst [vmem:[%s198 + $0x14] sm:$0xf] %v810
        %827 = vst [vmem:[%s198 + $0x18] sm:$0xf] %v811
        %828 = vst [vmem:[%s198 + $0x1c] sm:$0xf] %v812
        %p829 = scmp.lt.s32.totalorder %s16, 1
        %s830 = scalar_select %p829, %s16, 1
        %s831 = smul.addr %s830, 8
        %s832 = smul.addr %s831, 4
        %s833 = scalar_lea.vmem %s3, %s832
        // Predicated region
        $region41: #{encoder_forward.3} parent=31 // pred_check
          %p834 = pneg %p102
        $region42: #{encoder_forward.3} parent=31 // pred_check_branch
          %836 = sbr.rel (%p834) target = $region44
        $region43: #{encoder_forward.3} parent=31 // pred_region
          _
        $region44: #{encoder_forward.3} parent=31 // pred_fallthru
          _
      $region32: #{encoder_forward.3} parent=5 // pred_fallthru
        _
      %p837 = scmp.le.s32.totalorder 2, %s11
      // Predicated region
      $region45: #{encoder_forward.3} parent=5 // pred_check
        %p838 = pneg %p837
      $region46: #{encoder_forward.3} parent=5 // pred_check_branch
        %840 = sbr.rel (%p838) target = $region48
      $region47: #{encoder_forward.3} parent=5 // pred_region
        %s841 = ssub.s32 %s11, 2
        // Predicated region
        $region49: #{encoder_forward.3} parent=47 // pred_check
          %p842 = pneg %p108
        $region50: #{encoder_forward.3} parent=47 // pred_check_branch
          %844 = sbr.rel (%p842) target = $region52
        $region51: #{encoder_forward.3} parent=47 // pred_region
          %p845 = scmp.lt.s32.totalorder %s17, 1
          %s846 = scalar_select %p845, %s17, 1
          %s847 = smul.addr %s846, 8
          %s848 = smul.addr %s847, 4
          %s849 = scalar_lea.vmem %s3, %s848
        $region52: #{encoder_forward.3} parent=47 // pred_fallthru
          _
      $region48: #{encoder_forward.3} parent=5 // pred_fallthru
        _
    $region6: #{encoder_forward.3} parent=1 // loop_footer
      %s15 = sadd.s32 1, %s11
    $region7: #{encoder_forward.3} parent=1 // loop_footer_branch
      %10 = sbr.rel target = $region3
    $region8: #{encoder_forward.3} parent=1 // loop_exit
      _
    %850 = vsyncpa [#allocation3], 1
    %s851 = scalar_lea.sflag [#allocation3], 1
    %852 = vsyncpa %s851, 1
    %853 = vsyncpa [#allocation5], 1

// kernel: encoder_forward.4
$region0: #{encoder_forward.4}
  #allocation0 [shape = 'u32[]', space=smem, size = 0x4, offset = 0x4, fixed_abs, tag = 'smem constant byte address 0x4 - core index']
  #allocation1 [shape = 'u32[144,128]{1,0:T(1,128)}', space=vmem, size = 0x12000, scoped, tag = 'internal scratch']
  %s0 = inlined_call_operand.vmem [shape: bf16[2,5,5,512], index: 0, kind: input, shape index: {}]
  %s1 = inlined_call_operand.hbm [shape: bf16[4,512,128], index: 1, kind: input, shape index: {}]
  %s2 = inlined_call_operand.hbm [shape: f32[1,128], index: 2, kind: input, shape index: {}]
  %s3 = inlined_call_operand.vmem [shape: bf16[2,16,128], index: 3, kind: output, shape index: {}]
  %s4 = sld [smem:[#allocation0]]
  $region53: #{encoder_forward.4} parent=0
    _
  %s6 = ssub.s32 1, %s4
  %s7 = scalar_select 0, %s6, %s4
  $region1: #{encoder_forward.4} parent=0
    #allocation2 [shape = 'u8[524288]{0}', space=vmem, size = 0x80000, scoped, tag = 'input window, operand 1, single buffered']
    #allocation3 [shape = 's32[2]{0}', space=sflag, size = 0x8, scoped, tag = 'scoped memory for encoder_forward.4']
    #allocation4 [shape = 'u8[512]{0}', space=vmem, size = 0x400, scoped, tag = 'input window, operand 2, single buffered']
    #allocation5 [shape = 's32[1]{0}', space=sflag, size = 0x4, scoped, tag = 'scoped memory for encoder_forward.4']
    %8 = vsyncpa [#allocation3], 0
    %9 = vsyncpa [#allocation5], 0
    loop: start=0, step=1, limit=4
    $region2: #{encoder_forward.4} parent=1 // loop_pre_header
      _
    $region3: #{encoder_forward.4} parent=1 // loop_header
      %s11 = sphi 0, %s15
      %p12 = scmp.ge.s32.totalorder %s11, 4
      %s21 = sphi 0, %s23
      %s24 = sphi 0, %s21
      %s25 = sphi 0, %s24
      %s41 = sphi 0, %s25
      %s45 = sphi 0, %s45
      %s47 = sphi 0, %s45
      %s48 = sphi 0, %s47
      %s62 = sphi 0, %s48
      %s66 = sphi 0, %s66
      %s68 = sphi 0, %s66
      %s69 = sphi 0, %s68
      %s83 = sphi 0, %s69
      %s89 = sphi 0, %s91
      %s92 = sphi 0, %s89
      %s93 = sphi 0, %s92
      %s109 = sphi 0, %s93
    $region4: #{encoder_forward.4} parent=1 // loop_header_branch
      %14 = sbr.rel (%p12) target = $region8
    $region5: #{encoder_forward.4} parent=1 // loop_body
      %s16 = ssub.s32 %s11, 1
      %s17 = ssub.s32 %s11, 2
      %s18 = sadd.s32 %s11, 1
      %s19 = ssub.s32 %s11, %s18
      %p20 = scmp.eq.s32.totalorder %s19, 0
      %s22 = sadd.s32 %s21, 1
      %s23 = scalar_select %p20, %s21, %s22
      %p26 = pneg %p20
      %p27 = scmp.eq.s32.totalorder %s11, 1
      %p28 = por %p26, %p27
      %p29 = scmp.ne.s32.totalorder %s21, %s24
      %p30 = scmp.eq.s32.totalorder %s11, 0
      %p31 = por %p29, %p30
      %p32 = scmp.ne.s32.totalorder %s21, %s24
      %p33 = scmp.eq.s32.totalorder %s16, 1
      %p34 = por %p32, %p33
      %p35 = scmp.ne.s32.totalorder %s24, %s25
      %p36 = scmp.eq.s32.totalorder %s16, 0
      %p37 = por %p35, %p36
      %p38 = scmp.ne.s32.totalorder %s24, %s25
      %p39 = scmp.eq.s32.totalorder %s17, 1
      %p40 = por %p38, %p39
      %p42 = scmp.ne.s32.totalorder %s25, %s41
      %p43 = scmp.eq.s32.totalorder %s17, 0
      %p44 = por %p42, %p43
      %s46 = sadd.s32 %s45, 1
      %p49 = scmp.eq.s32.totalorder %s11, 1
      %p50 = scmp.ne.s32.totalorder %s45, %s47
      %p51 = scmp.eq.s32.totalorder %s11, 0
      %p52 = por %p50, %p51
      %p53 = scmp.ne.s32.totalorder %s45, %s47
      %p54 = scmp.eq.s32.totalorder %s16, 1
      %p55 = por %p53, %p54
      %p56 = scmp.ne.s32.totalorder %s47, %s48
      %p57 = scmp.eq.s32.totalorder %s16, 0
      %p58 = por %p56, %p57
      %p59 = scmp.ne.s32.totalorder %s47, %s48
      %p60 = scmp.eq.s32.totalorder %s17, 1
      %p61 = por %p59, %p60
      %p63 = scmp.ne.s32.totalorder %s48, %s62
      %p64 = scmp.eq.s32.totalorder %s17, 0
      %p65 = por %p63, %p64
      %s67 = sadd.s32 %s66, 1
      %p70 = scmp.eq.s32.totalorder %s11, 1
      %p71 = scmp.ne.s32.totalorder %s66, %s68
      %p72 = scmp.eq.s32.totalorder %s11, 0
      %p73 = por %p71, %p72
      %p74 = scmp.ne.s32.totalorder %s66, %s68
      %p75 = scmp.eq.s32.totalorder %s16, 1
      %p76 = por %p74, %p75
      %p77 = scmp.ne.s32.totalorder %s68, %s69
      %p78 = scmp.eq.s32.totalorder %s16, 0
      %p79 = por %p77, %p78
      %p80 = scmp.ne.s32.totalorder %s68, %s69
      %p81 = scmp.eq.s32.totalorder %s17, 1
      %p82 = por %p80, %p81
      %p84 = scmp.ne.s32.totalorder %s69, %s83
      %p85 = scmp.eq.s32.totalorder %s17, 0
      %p86 = por %p84, %p85
      %s87 = ssub.s32 %s11, %s18
      %p88 = scmp.eq.s32.totalorder %s87, 0
      %s90 = sadd.s32 %s89, 1
      %s91 = scalar_select %p88, %s89, %s90
      %p94 = pneg %p88
      %p95 = scmp.eq.s32.totalorder %s11, 1
      %p96 = por %p94, %p95
      %p97 = scmp.ne.s32.totalorder %s89, %s92
      %p98 = scmp.eq.s32.totalorder %s11, 0
      %p99 = por %p97, %p98
      %p100 = scmp.ne.s32.totalorder %s89, %s92
      %p101 = scmp.eq.s32.totalorder %s16, 1
      %p102 = por %p100, %p101
      %p103 = scmp.ne.s32.totalorder %s92, %s93
      %p104 = scmp.eq.s32.totalorder %s16, 0
      %p105 = por %p103, %p104
      %p106 = scmp.ne.s32.totalorder %s92, %s93
      %p107 = scmp.eq.s32.totalorder %s17, 1
      %p108 = por %p106, %p107
      %p110 = scmp.ne.s32.totalorder %s93, %s109
      %p111 = scmp.eq.s32.totalorder %s17, 0
      %p112 = por %p110, %p111
      %p113 = scmp.le.s32.totalorder 1, %s11
      %p114 = scmp.lt.s32.totalorder %s11, 3
      %p115 = pnand %p113, %p114
      %p116 = pneg %p115
      // Predicated region
      $region9: #{encoder_forward.4} parent=5 // pred_check
        _
      $region10: #{encoder_forward.4} parent=5 // pred_check_branch
        %118 = sbr.rel (%p115) target = $region12
      $region11: #{encoder_forward.4} parent=5 // pred_region
        %s119 = ssub.s32 %s11, 1
        // Predicated region
        $region13: #{encoder_forward.4} parent=11 // pred_check
          %p120 = pneg %p58
        $region14: #{encoder_forward.4} parent=11 // pred_check_branch
          %122 = sbr.rel (%p120) target = $region16
        $region15: #{encoder_forward.4} parent=11 // pred_region
          %s124 = ssub.s32 16384, 16384
          %125 = vsyncadd [#allocation3], %s124
          %s126 = sshll.u32 [#allocation2], 4
          %s127 = int_to_ptr.vmem [resolvable:$true] %s126
          %132 = dma.hbm_to_vmem [thread:$0]  %s1, 16384, %s127, [#allocation3], 64, 64, 4
        $region16: #{encoder_forward.4} parent=11 // pred_fallthru
          _
        // Predicated region
        $region17: #{encoder_forward.4} parent=11 // pred_check
          %p133 = pneg %p79
        $region18: #{encoder_forward.4} parent=11 // pred_check_branch
          %135 = sbr.rel (%p133) target = $region20
        $region19: #{encoder_forward.4} parent=11 // pred_region
          %s137 = ssub.s32 16, 16
          %138 = vsyncadd [#allocation5], %s137
          %s140 = sshll.u32 [#allocation4], 4
          %s141 = int_to_ptr.vmem [resolvable:$true] %s140
          %143 = dma.hbm_to_vmem [thread:$0]  %s2, 16, %s141, [#allocation5]
        $region20: #{encoder_forward.4} parent=11 // pred_fallthru
          _
      $region12: #{encoder_forward.4} parent=5 // pred_fallthru
        _
      %p144 = scmp.lt.s32.totalorder %s11, 2
      // Predicated region
      $region21: #{encoder_forward.4} parent=5 // pred_check
        %p145 = pneg %p144
      $region22: #{encoder_forward.4} parent=5 // pred_check_branch
        %147 = sbr.rel (%p145) target = $region24
      $region23: #{encoder_forward.4} parent=5 // pred_region
        // Predicated region
        $region25: #{encoder_forward.4} parent=23 // pred_check
          %p148 = pneg %p31
        $region26: #{encoder_forward.4} parent=23 // pred_check_branch
          %150 = sbr.rel (%p148) target = $region28
        $region27: #{encoder_forward.4} parent=23 // pred_region
          %p151 = scmp.lt.s32.totalorder %s11, 1
          %s152 = scalar_select %p151, %s11, 1
          %s153 = smul.addr %s152, 20
          %s154 = smul.addr %s153, 4
          %s155 = scalar_lea.vmem %s0, %s154
        $region28: #{encoder_forward.4} parent=23 // pred_fallthru
          _
      $region24: #{encoder_forward.4} parent=5 // pred_fallthru
        _
      %p156 = scmp.le.s32.totalorder 1, %s11
      %p157 = scmp.lt.s32.totalorder %s11, 3
      %p158 = pnand %p156, %p157
      %p159 = pneg %p158
      // Predicated region
      $region29: #{encoder_forward.4} parent=5 // pred_check
        _
      $region30: #{encoder_forward.4} parent=5 // pred_check_branch
        %161 = sbr.rel (%p158) target = $region32
      $region31: #{encoder_forward.4} parent=5 // pred_region
        %s162 = ssub.s32 %s11, 1
        // Predicated region
        $region33: #{encoder_forward.4} parent=31 // pred_check
          %p163 = pneg %p58
        $region34: #{encoder_forward.4} parent=31 // pred_check_branch
          %165 = sbr.rel (%p163) target = $region36
        $region35: #{encoder_forward.4} parent=31 // pred_region
          %166 = dma.done [#allocation3], 16384
        $region36: #{encoder_forward.4} parent=31 // pred_fallthru
          _
        // Predicated region
        $region37: #{encoder_forward.4} parent=31 // pred_check
          %p167 = pneg %p79
        $region38: #{encoder_forward.4} parent=31 // pred_check_branch
          %169 = sbr.rel (%p167) target = $region40
        $region39: #{encoder_forward.4} parent=31 // pred_region
          %170 = dma.done [#allocation5], 16
        $region40: #{encoder_forward.4} parent=31 // pred_fallthru
          _
        %p171 = scmp.lt.s32.totalorder %s16, 1
        %s172 = scalar_select %p171, %s16, 1
        %s173 = smul.addr %s172, 20
        %s174 = smul.addr %s173, 4
        %s175 = scalar_lea.vmem %s0, %s174
        %p176 = pneg %p37
        %p177 = pneg %p34
        %p178 = pneg %p58
        %p179 = pneg %p55
        %p180 = pneg %p79
        %p181 = pneg %p76
        %p182 = pneg %p105
        %p183 = pneg %p102
        %p184 = scmp.lt.s32.totalorder %s16, 1
        %s185 = scalar_select %p184, %s16, 1
        %s186 = smul.addr %s185, 2
        %s187 = smul.addr %s186, 4
        %s188 = scalar_lea.vmem %s3, %s187
        %p189 = scmp.lt.s32.totalorder %s16, 1
        %s190 = scalar_select %p189, %s16, 1
        %s191 = smul.addr %s190, 20
        %s192 = smul.addr %s191, 4
        %s193 = scalar_lea.vmem %s0, %s192
        %p194 = scmp.lt.s32.totalorder %s16, 1
        %s195 = scalar_select %p194, %s16, 1
        %s196 = smul.addr %s195, 2
        %s197 = smul.addr %s196, 4
        %s198 = scalar_lea.vmem %s3, %s197
        %v200 = vld [vmem:[%s193] sm:$0x77]
        %v201 = vld [vmem:[%s193 + $0x8] sm:$0x77]
        %v202 = vld [vmem:[%s193 + $0x10] sm:$0x77]
        %v203 = vld [vmem:[%s193 + $0x18] sm:$0x77]
        %v204 = vld [vmem:[%s193 + $0x20] sm:$0x77]
        %v205 = vld [vmem:[%s193 + $0x28] sm:$0x77]
        %v206 = vld [vmem:[%s193 + $0x30] sm:$0x77]
        %v207 = vld [vmem:[%s193 + $0x38] sm:$0x77]
        %v208 = vld [vmem:[%s193 + $0x40] sm:$0x77]
        %v209 = vld [vmem:[%s193 + $0x48] sm:$0x77]
        %v210 = vld [vmem:[#allocation4] sm:$0x1]
        %v211 = vld [vmem:[#allocation2] sm:$0xf]
        %v212 = vld [vmem:[#allocation2 + $0x4] sm:$0xf]
        %v213 = vld [vmem:[#allocation2 + $0x8] sm:$0xf]
        %v214 = vld [vmem:[#allocation2 + $0xc] sm:$0xf]
        %v215 = vld [vmem:[#allocation2 + $0x10] sm:$0xf]
        %v216 = vld [vmem:[#allocation2 + $0x14] sm:$0xf]
        %v217 = vld [vmem:[#allocation2 + $0x18] sm:$0xf]
        %v218 = vld [vmem:[#allocation2 + $0x1c] sm:$0xf]
        %v219 = vld [vmem:[#allocation2 + $0x20] sm:$0xf]
        %v220 = vld [vmem:[#allocation2 + $0x24] sm:$0xf]
        %v221 = vld [vmem:[#allocation2 + $0x28] sm:$0xf]
        %v222 = vld [vmem:[#allocation2 + $0x2c] sm:$0xf]
        %v223 = vld [vmem:[#allocation2 + $0x30] sm:$0xf]
        %v224 = vld [vmem:[#allocation2 + $0x34] sm:$0xf]
        %v225 = vld [vmem:[#allocation2 + $0x38] sm:$0xf]
        %v226 = vld [vmem:[#allocation2 + $0x3c] sm:$0xf]
        %v227 = vld [vmem:[#allocation2 + $0x40] sm:$0xf]
        %v228 = vld [vmem:[#allocation2 + $0x44] sm:$0xf]
        %v229 = vld [vmem:[#allocation2 + $0x48] sm:$0xf]
        %v230 = vld [vmem:[#allocation2 + $0x4c] sm:$0xf]
        %v231 = vld [vmem:[#allocation2 + $0x50] sm:$0xf]
        %v232 = vld [vmem:[#allocation2 + $0x54] sm:$0xf]
        %v233 = vld [vmem:[#allocation2 + $0x58] sm:$0xf]
        %v234 = vld [vmem:[#allocation2 + $0x5c] sm:$0xf]
        %v235 = vld [vmem:[#allocation2 + $0x60] sm:$0xf]
        %v236 = vld [vmem:[#allocation2 + $0x64] sm:$0xf]
        %v237 = vld [vmem:[#allocation2 + $0x68] sm:$0xf]
        %v238 = vld [vmem:[#allocation2 + $0x6c] sm:$0xf]
        %v239 = vld [vmem:[#allocation2 + $0x70] sm:$0xf]
        %v240 = vld [vmem:[#allocation2 + $0x74] sm:$0xf]
        %v241 = vld [vmem:[#allocation2 + $0x78] sm:$0xf]
        %v242 = vld [vmem:[#allocation2 + $0x7c] sm:$0xf]
        %v243 = vld [vmem:[#allocation2 + $0x80] sm:$0xf]
        %v244 = vld [vmem:[#allocation2 + $0x84] sm:$0xf]
        %v245 = vld [vmem:[#allocation2 + $0x88] sm:$0xf]
        %v246 = vld [vmem:[#allocation2 + $0x8c] sm:$0xf]
        %v247 = vld [vmem:[#allocation2 + $0x90] sm:$0xf]
        %v248 = vld [vmem:[#allocation2 + $0x94] sm:$0xf]
        %v249 = vld [vmem:[#allocation2 + $0x98] sm:$0xf]
        %v250 = vld [vmem:[#allocation2 + $0x9c] sm:$0xf]
        %v251 = vld [vmem:[#allocation2 + $0xa0] sm:$0xf]
        %v252 = vld [vmem:[#allocation2 + $0xa4] sm:$0xf]
        %v253 = vld [vmem:[#allocation2 + $0xa8] sm:$0xf]
        %v254 = vld [vmem:[#allocation2 + $0xac] sm:$0xf]
        %v255 = vld [vmem:[#allocation2 + $0xb0] sm:$0xf]
        %v256 = vld [vmem:[#allocation2 + $0xb4] sm:$0xf]
        %v257 = vld [vmem:[#allocation2 + $0xb8] sm:$0xf]
        %v258 = vld [vmem:[#allocation2 + $0xbc] sm:$0xf]
        %v259 = vld [vmem:[#allocation2 + $0xc0] sm:$0xf]
        %v260 = vld [vmem:[#allocation2 + $0xc4] sm:$0xf]
        %v261 = vld [vmem:[#allocation2 + $0xc8] sm:$0xf]
        %v262 = vld [vmem:[#allocation2 + $0xcc] sm:$0xf]
        %v263 = vld [vmem:[#allocation2 + $0xd0] sm:$0xf]
        %v264 = vld [vmem:[#allocation2 + $0xd4] sm:$0xf]
        %v265 = vld [vmem:[#allocation2 + $0xd8] sm:$0xf]
        %v266 = vld [vmem:[#allocation2 + $0xdc] sm:$0xf]
        %v267 = vld [vmem:[#allocation2 + $0xe0] sm:$0xf]
        %v268 = vld [vmem:[#allocation2 + $0xe4] sm:$0xf]
        %v269 = vld [vmem:[#allocation2 + $0xe8] sm:$0xf]
        %v270 = vld [vmem:[#allocation2 + $0xec] sm:$0xf]
        %v271 = vld [vmem:[#allocation2 + $0xf0] sm:$0xf]
        %v272 = vld [vmem:[#allocation2 + $0xf4] sm:$0xf]
        %v273 = vld [vmem:[#allocation2 + $0xf8] sm:$0xf]
        %v274 = vld [vmem:[#allocation2 + $0xfc] sm:$0xf]
        %s275 = scalar_lea.vmem [#allocation2], 256
        %v276 = vld [vmem:[%s275] sm:$0xf]
        %v277 = vld [vmem:[%s275 + $0x4] sm:$0xf]
        %v278 = vld [vmem:[%s275 + $0x8] sm:$0xf]
        %v279 = vld [vmem:[%s275 + $0xc] sm:$0xf]
        %v280 = vld [vmem:[%s275 + $0x10] sm:$0xf]
        %v281 = vld [vmem:[%s275 + $0x14] sm:$0xf]
        %v282 = vld [vmem:[%s275 + $0x18] sm:$0xf]
        %v283 = vld [vmem:[%s275 + $0x1c] sm:$0xf]
        %v284 = vld [vmem:[%s275 + $0x20] sm:$0xf]
        %v285 = vld [vmem:[%s275 + $0x24] sm:$0xf]
        %v286 = vld [vmem:[%s275 + $0x28] sm:$0xf]
        %v287 = vld [vmem:[%s275 + $0x2c] sm:$0xf]
        %v288 = vld [vmem:[%s275 + $0x30] sm:$0xf]
        %v289 = vld [vmem:[%s275 + $0x34] sm:$0xf]
        %v290 = vld [vmem:[%s275 + $0x38] sm:$0xf]
        %v291 = vld [vmem:[%s275 + $0x3c] sm:$0xf]
        %v292 = vld [vmem:[%s275 + $0x40] sm:$0xf]
        %v293 = vld [vmem:[%s275 + $0x44] sm:$0xf]
        %v294 = vld [vmem:[%s275 + $0x48] sm:$0xf]
        %v295 = vld [vmem:[%s275 + $0x4c] sm:$0xf]
        %v296 = vld [vmem:[%s275 + $0x50] sm:$0xf]
        %v297 = vld [vmem:[%s275 + $0x54] sm:$0xf]
        %v298 = vld [vmem:[%s275 + $0x58] sm:$0xf]
        %v299 = vld [vmem:[%s275 + $0x5c] sm:$0xf]
        %v300 = vld [vmem:[%s275 + $0x60] sm:$0xf]
        %v301 = vld [vmem:[%s275 + $0x64] sm:$0xf]
        %v302 = vld [vmem:[%s275 + $0x68] sm:$0xf]
        %v303 = vld [vmem:[%s275 + $0x6c] sm:$0xf]
        %v304 = vld [vmem:[%s275 + $0x70] sm:$0xf]
        %v305 = vld [vmem:[%s275 + $0x74] sm:$0xf]
        %v306 = vld [vmem:[%s275 + $0x78] sm:$0xf]
        %v307 = vld [vmem:[%s275 + $0x7c] sm:$0xf]
        %v308 = vld [vmem:[%s275 + $0x80] sm:$0xf]
        %v309 = vld [vmem:[%s275 + $0x84] sm:$0xf]
        %v310 = vld [vmem:[%s275 + $0x88] sm:$0xf]
        %v311 = vld [vmem:[%s275 + $0x8c] sm:$0xf]
        %v312 = vld [vmem:[%s275 + $0x90] sm:$0xf]
        %v313 = vld [vmem:[%s275 + $0x94] sm:$0xf]
        %v314 = vld [vmem:[%s275 + $0x98] sm:$0xf]
        %v315 = vld [vmem:[%s275 + $0x9c] sm:$0xf]
        %v316 = vld [vmem:[%s275 + $0xa0] sm:$0xf]
        %v317 = vld [vmem:[%s275 + $0xa4] sm:$0xf]
        %v318 = vld [vmem:[%s275 + $0xa8] sm:$0xf]
        %v319 = vld [vmem:[%s275 + $0xac] sm:$0xf]
        %v320 = vld [vmem:[%s275 + $0xb0] sm:$0xf]
        %v321 = vld [vmem:[%s275 + $0xb4] sm:$0xf]
        %v322 = vld [vmem:[%s275 + $0xb8] sm:$0xf]
        %v323 = vld [vmem:[%s275 + $0xbc] sm:$0xf]
        %v324 = vld [vmem:[%s275 + $0xc0] sm:$0xf]
        %v325 = vld [vmem:[%s275 + $0xc4] sm:$0xf]
        %v326 = vld [vmem:[%s275 + $0xc8] sm:$0xf]
        %v327 = vld [vmem:[%s275 + $0xcc] sm:$0xf]
        %v328 = vld [vmem:[%s275 + $0xd0] sm:$0xf]
        %v329 = vld [vmem:[%s275 + $0xd4] sm:$0xf]
        %v330 = vld [vmem:[%s275 + $0xd8] sm:$0xf]
        %v331 = vld [vmem:[%s275 + $0xdc] sm:$0xf]
        %v332 = vld [vmem:[%s275 + $0xe0] sm:$0xf]
        %v333 = vld [vmem:[%s275 + $0xe4] sm:$0xf]
        %v334 = vld [vmem:[%s275 + $0xe8] sm:$0xf]
        %v335 = vld [vmem:[%s275 + $0xec] sm:$0xf]
        %v336 = vld [vmem:[%s275 + $0xf0] sm:$0xf]
        %v337 = vld [vmem:[%s275 + $0xf4] sm:$0xf]
        %v338 = vld [vmem:[%s275 + $0xf8] sm:$0xf]
        %v339 = vld [vmem:[%s275 + $0xfc] sm:$0xf]
        %s340 = scalar_lea.vmem [#allocation2], 512
        %v341 = vld [vmem:[%s340] sm:$0xf]
        %v342 = vld [vmem:[%s340 + $0x4] sm:$0xf]
        %v343 = vld [vmem:[%s340 + $0x8] sm:$0xf]
        %v344 = vld [vmem:[%s340 + $0xc] sm:$0xf]
        %v345 = vld [vmem:[%s340 + $0x10] sm:$0xf]
        %v346 = vld [vmem:[%s340 + $0x14] sm:$0xf]
        %v347 = vld [vmem:[%s340 + $0x18] sm:$0xf]
        %v348 = vld [vmem:[%s340 + $0x1c] sm:$0xf]
        %v349 = vld [vmem:[%s340 + $0x20] sm:$0xf]
        %v350 = vld [vmem:[%s340 + $0x24] sm:$0xf]
        %v351 = vld [vmem:[%s340 + $0x28] sm:$0xf]
        %v352 = vld [vmem:[%s340 + $0x2c] sm:$0xf]
        %v353 = vld [vmem:[%s340 + $0x30] sm:$0xf]
        %v354 = vld [vmem:[%s340 + $0x34] sm:$0xf]
        %v355 = vld [vmem:[%s340 + $0x38] sm:$0xf]
        %v356 = vld [vmem:[%s340 + $0x3c] sm:$0xf]
        %v357 = vld [vmem:[%s340 + $0x40] sm:$0xf]
        %v358 = vld [vmem:[%s340 + $0x44] sm:$0xf]
        %v359 = vld [vmem:[%s340 + $0x48] sm:$0xf]
        %v360 = vld [vmem:[%s340 + $0x4c] sm:$0xf]
        %v361 = vld [vmem:[%s340 + $0x50] sm:$0xf]
        %v362 = vld [vmem:[%s340 + $0x54] sm:$0xf]
        %v363 = vld [vmem:[%s340 + $0x58] sm:$0xf]
        %v364 = vld [vmem:[%s340 + $0x5c] sm:$0xf]
        %v365 = vld [vmem:[%s340 + $0x60] sm:$0xf]
        %v366 = vld [vmem:[%s340 + $0x64] sm:$0xf]
        %v367 = vld [vmem:[%s340 + $0x68] sm:$0xf]
        %v368 = vld [vmem:[%s340 + $0x6c] sm:$0xf]
        %v369 = vld [vmem:[%s340 + $0x70] sm:$0xf]
        %v370 = vld [vmem:[%s340 + $0x74] sm:$0xf]
        %v371 = vld [vmem:[%s340 + $0x78] sm:$0xf]
        %v372 = vld [vmem:[%s340 + $0x7c] sm:$0xf]
        %v373 = vld [vmem:[%s340 + $0x80] sm:$0xf]
        %v374 = vld [vmem:[%s340 + $0x84] sm:$0xf]
        %v375 = vld [vmem:[%s340 + $0x88] sm:$0xf]
        %v376 = vld [vmem:[%s340 + $0x8c] sm:$0xf]
        %v377 = vld [vmem:[%s340 + $0x90] sm:$0xf]
        %v378 = vld [vmem:[%s340 + $0x94] sm:$0xf]
        %v379 = vld [vmem:[%s340 + $0x98] sm:$0xf]
        %v380 = vld [vmem:[%s340 + $0x9c] sm:$0xf]
        %v381 = vld [vmem:[%s340 + $0xa0] sm:$0xf]
        %v382 = vld [vmem:[%s340 + $0xa4] sm:$0xf]
        %v383 = vld [vmem:[%s340 + $0xa8] sm:$0xf]
        %v384 = vld [vmem:[%s340 + $0xac] sm:$0xf]
        %v385 = vld [vmem:[%s340 + $0xb0] sm:$0xf]
        %v386 = vld [vmem:[%s340 + $0xb4] sm:$0xf]
        %v387 = vld [vmem:[%s340 + $0xb8] sm:$0xf]
        %v388 = vld [vmem:[%s340 + $0xbc] sm:$0xf]
        %v389 = vld [vmem:[%s340 + $0xc0] sm:$0xf]
        %v390 = vld [vmem:[%s340 + $0xc4] sm:$0xf]
        %v391 = vld [vmem:[%s340 + $0xc8] sm:$0xf]
        %v392 = vld [vmem:[%s340 + $0xcc] sm:$0xf]
        %v393 = vld [vmem:[%s340 + $0xd0] sm:$0xf]
        %v394 = vld [vmem:[%s340 + $0xd4] sm:$0xf]
        %v395 = vld [vmem:[%s340 + $0xd8] sm:$0xf]
        %v396 = vld [vmem:[%s340 + $0xdc] sm:$0xf]
        %v397 = vld [vmem:[%s340 + $0xe0] sm:$0xf]
        %v398 = vld [vmem:[%s340 + $0xe4] sm:$0xf]
        %v399 = vld [vmem:[%s340 + $0xe8] sm:$0xf]
        %v400 = vld [vmem:[%s340 + $0xec] sm:$0xf]
        %v401 = vld [vmem:[%s340 + $0xf0] sm:$0xf]
        %v402 = vld [vmem:[%s340 + $0xf4] sm:$0xf]
        %v403 = vld [vmem:[%s340 + $0xf8] sm:$0xf]
        %v404 = vld [vmem:[%s340 + $0xfc] sm:$0xf]
        %s405 = scalar_lea.vmem [#allocation2], 768
        %v406 = vld [vmem:[%s405] sm:$0xf]
        %v407 = vld [vmem:[%s405 + $0x4] sm:$0xf]
        %v408 = vld [vmem:[%s405 + $0x8] sm:$0xf]
        %v409 = vld [vmem:[%s405 + $0xc] sm:$0xf]
        %v410 = vld [vmem:[%s405 + $0x10] sm:$0xf]
        %v411 = vld [vmem:[%s405 + $0x14] sm:$0xf]
        %v412 = vld [vmem:[%s405 + $0x18] sm:$0xf]
        %v413 = vld [vmem:[%s405 + $0x1c] sm:$0xf]
        %v414 = vld [vmem:[%s405 + $0x20] sm:$0xf]
        %v415 = vld [vmem:[%s405 + $0x24] sm:$0xf]
        %v416 = vld [vmem:[%s405 + $0x28] sm:$0xf]
        %v417 = vld [vmem:[%s405 + $0x2c] sm:$0xf]
        %v418 = vld [vmem:[%s405 + $0x30] sm:$0xf]
        %v419 = vld [vmem:[%s405 + $0x34] sm:$0xf]
        %v420 = vld [vmem:[%s405 + $0x38] sm:$0xf]
        %v421 = vld [vmem:[%s405 + $0x3c] sm:$0xf]
        %v422 = vld [vmem:[%s405 + $0x40] sm:$0xf]
        %v423 = vld [vmem:[%s405 + $0x44] sm:$0xf]
        %v424 = vld [vmem:[%s405 + $0x48] sm:$0xf]
        %v425 = vld [vmem:[%s405 + $0x4c] sm:$0xf]
        %v426 = vld [vmem:[%s405 + $0x50] sm:$0xf]
        %v427 = vld [vmem:[%s405 + $0x54] sm:$0xf]
        %v428 = vld [vmem:[%s405 + $0x58] sm:$0xf]
        %v429 = vld [vmem:[%s405 + $0x5c] sm:$0xf]
        %v430 = vld [vmem:[%s405 + $0x60] sm:$0xf]
        %v431 = vld [vmem:[%s405 + $0x64] sm:$0xf]
        %v432 = vld [vmem:[%s405 + $0x68] sm:$0xf]
        %v433 = vld [vmem:[%s405 + $0x6c] sm:$0xf]
        %v434 = vld [vmem:[%s405 + $0x70] sm:$0xf]
        %v435 = vld [vmem:[%s405 + $0x74] sm:$0xf]
        %v436 = vld [vmem:[%s405 + $0x78] sm:$0xf]
        %v437 = vld [vmem:[%s405 + $0x7c] sm:$0xf]
        %v438 = vld [vmem:[%s405 + $0x80] sm:$0xf]
        %v439 = vld [vmem:[%s405 + $0x84] sm:$0xf]
        %v440 = vld [vmem:[%s405 + $0x88] sm:$0xf]
        %v441 = vld [vmem:[%s405 + $0x8c] sm:$0xf]
        %v442 = vld [vmem:[%s405 + $0x90] sm:$0xf]
        %v443 = vld [vmem:[%s405 + $0x94] sm:$0xf]
        %v444 = vld [vmem:[%s405 + $0x98] sm:$0xf]
        %v445 = vld [vmem:[%s405 + $0x9c] sm:$0xf]
        %v446 = vld [vmem:[%s405 + $0xa0] sm:$0xf]
        %v447 = vld [vmem:[%s405 + $0xa4] sm:$0xf]
        %v448 = vld [vmem:[%s405 + $0xa8] sm:$0xf]
        %v449 = vld [vmem:[%s405 + $0xac] sm:$0xf]
        %v450 = vld [vmem:[%s405 + $0xb0] sm:$0xf]
        %v451 = vld [vmem:[%s405 + $0xb4] sm:$0xf]
        %v452 = vld [vmem:[%s405 + $0xb8] sm:$0xf]
        %v453 = vld [vmem:[%s405 + $0xbc] sm:$0xf]
        %v454 = vld [vmem:[%s405 + $0xc0] sm:$0xf]
        %v455 = vld [vmem:[%s405 + $0xc4] sm:$0xf]
        %v456 = vld [vmem:[%s405 + $0xc8] sm:$0xf]
        %v457 = vld [vmem:[%s405 + $0xcc] sm:$0xf]
        %v458 = vld [vmem:[%s405 + $0xd0] sm:$0xf]
        %v459 = vld [vmem:[%s405 + $0xd4] sm:$0xf]
        %v460 = vld [vmem:[%s405 + $0xd8] sm:$0xf]
        %v461 = vld [vmem:[%s405 + $0xdc] sm:$0xf]
        %v462 = vld [vmem:[%s405 + $0xe0] sm:$0xf]
        %v463 = vld [vmem:[%s405 + $0xe4] sm:$0xf]
        %v464 = vld [vmem:[%s405 + $0xe8] sm:$0xf]
        %v465 = vld [vmem:[%s405 + $0xec] sm:$0xf]
        %v466 = vld [vmem:[%s405 + $0xf0] sm:$0xf]
        %v467 = vld [vmem:[%s405 + $0xf4] sm:$0xf]
        %v468 = vld [vmem:[%s405 + $0xf8] sm:$0xf]
        %v469 = vld [vmem:[%s405 + $0xfc] sm:$0xf]
        %v472 = vunpack.c.l.b16 %v200
        %v473 = vunpack.c.h.b16 %v200
        %v474 = vunpack.c.l.b16 %v201
        %v475 = vunpack.c.h.b16 %v201
        %v476 = vpack.c.b16 %v472, %v472
        %v477 = vpack.c.b16 %v473, %v473
        %v478 = vpack.c.b16 %v474, %v474
        %v479 = vpack.c.b16 %v475, %v475
        %v481 = vshrl.u32 %v476, 16
        %v483 = vshll.u32 %v476, 16
        %v485 = vrot.slane %v483, 1
        %v486 = vor.u32 %v481, %v485
        %v488 = vshrl.u32 %v477, 16
        %v490 = vshll.u32 %v477, 16
        %v492 = vrot.slane %v490, 1
        %v493 = vor.u32 %v488, %v492
        %v495 = vshrl.u32 %v478, 16
        %v497 = vshll.u32 %v478, 16
        %v499 = vrot.slane %v497, 1
        %v500 = vor.u32 %v495, %v499
        %v502 = vshrl.u32 %v479, 16
        %v504 = vshll.u32 %v479, 16
        %v506 = vrot.slane %v504, 1
        %v507 = vor.u32 %v502, %v506
        %v576 = vunpack.c.l.b16 %v276
        %v577 = vunpack.c.l.b16 %v277
        %v578 = vunpack.c.l.b16 %v278
        %v579 = vunpack.c.l.b16 %v279
        %v580 = vunpack.c.l.b16 %v280
        %v581 = vunpack.c.l.b16 %v281
        %v582 = vunpack.c.l.b16 %v282
        %v583 = vunpack.c.l.b16 %v283
        %v584 = vunpack.c.l.b16 %v284
        %v585 = vunpack.c.l.b16 %v285
        %v586 = vunpack.c.l.b16 %v286
        %v587 = vunpack.c.l.b16 %v287
        %v588 = vunpack.c.l.b16 %v288
        %v589 = vunpack.c.l.b16 %v289
        %v590 = vunpack.c.l.b16 %v290
        %v591 = vunpack.c.l.b16 %v291
        %v592 = vunpack.c.l.b16 %v292
        %v593 = vunpack.c.l.b16 %v293
        %v594 = vunpack.c.l.b16 %v294
        %v595 = vunpack.c.l.b16 %v295
        %v596 = vunpack.c.l.b16 %v296
        %v597 = vunpack.c.l.b16 %v297
        %v598 = vunpack.c.l.b16 %v298
        %v599 = vunpack.c.l.b16 %v299
        %v600 = vunpack.c.l.b16 %v300
        %v601 = vunpack.c.l.b16 %v301
        %v602 = vunpack.c.l.b16 %v302
        %v603 = vunpack.c.l.b16 %v303
        %v604 = vunpack.c.l.b16 %v304
        %v605 = vunpack.c.l.b16 %v305
        %v606 = vunpack.c.l.b16 %v306
        %v607 = vunpack.c.l.b16 %v307
        %v608 = vunpack.c.l.b16 %v308
        %v609 = vunpack.c.l.b16 %v309
        %v610 = vunpack.c.l.b16 %v310
        %v611 = vunpack.c.l.b16 %v311
        %v612 = vunpack.c.l.b16 %v312
        %v613 = vunpack.c.l.b16 %v313
        %v614 = vunpack.c.l.b16 %v314
        %v615 = vunpack.c.l.b16 %v315
        %v616 = vunpack.c.l.b16 %v316
        %v617 = vunpack.c.l.b16 %v317
        %v618 = vunpack.c.l.b16 %v318
        %v619 = vunpack.c.l.b16 %v319
        %v620 = vunpack.c.l.b16 %v320
        %v621 = vunpack.c.l.b16 %v321
        %v622 = vunpack.c.l.b16 %v322
        %v623 = vunpack.c.l.b16 %v323
        %v624 = vunpack.c.l.b16 %v324
        %v625 = vunpack.c.l.b16 %v325
        %v626 = vunpack.c.l.b16 %v326
        %v627 = vunpack.c.l.b16 %v327
        %v628 = vunpack.c.l.b16 %v328
        %v629 = vunpack.c.l.b16 %v329
        %v630 = vunpack.c.l.b16 %v330
        %v631 = vunpack.c.l.b16 %v331
        %v632 = vunpack.c.l.b16 %v332
        %v633 = vunpack.c.l.b16 %v333
        %v634 = vunpack.c.l.b16 %v334
        %v635 = vunpack.c.l.b16 %v335
        %v636 = vunpack.c.l.b16 %v336
        %v637 = vunpack.c.l.b16 %v337
        %v638 = vunpack.c.l.b16 %v338
        %v639 = vunpack.c.l.b16 %v339
        %v640 = vpack.c.b16 %v577, %v576
        %v641 = vpack.c.b16 %v579, %v578
        %v642 = vpack.c.b16 %v581, %v580
        %v643 = vpack.c.b16 %v583, %v582
        %v644 = vpack.c.b16 %v585, %v584
        %v645 = vpack.c.b16 %v587, %v586
        %v646 = vpack.c.b16 %v589, %v588
        %v647 = vpack.c.b16 %v591, %v590
        %v648 = vpack.c.b16 %v593, %v592
        %v649 = vpack.c.b16 %v595, %v594
        %v650 = vpack.c.b16 %v597, %v596
        %v651 = vpack.c.b16 %v599, %v598
        %v652 = vpack.c.b16 %v601, %v600
        %v653 = vpack.c.b16 %v603, %v602
        %v654 = vpack.c.b16 %v605, %v604
        %v655 = vpack.c.b16 %v607, %v606
        %v656 = vpack.c.b16 %v609, %v608
        %v657 = vpack.c.b16 %v611, %v610
        %v658 = vpack.c.b16 %v613, %v612
        %v659 = vpack.c.b16 %v615, %v614
        %v660 = vpack.c.b16 %v617, %v616
        %v661 = vpack.c.b16 %v619, %v618
        %v662 = vpack.c.b16 %v621, %v620
        %v663 = vpack.c.b16 %v623, %v622
        %v664 = vpack.c.b16 %v625, %v624
        %v665 = vpack.c.b16 %v627, %v626
        %v666 = vpack.c.b16 %v629, %v628
        %v667 = vpack.c.b16 %v631, %v630
        %v668 = vpack.c.b16 %v633, %v632
        %v669 = vpack.c.b16 %v635, %v634
        %v670 = vpack.c.b16 %v637, %v636
        %v671 = vpack.c.b16 %v639, %v638
        %704 = vmatprep.subr.bf16.mxu0 0
        %705 = vmatpush1.bf16.msra.mxu0 %v640
        %706 = vmatprep.subr.bf16.mxu0 0
        %707 = vmatpush1.bf16.msra.mxu0 %v641
        %708 = vmatprep.subr.bf16.mxu0 0
        %709 = vmatpush1.bf16.msra.mxu0 %v642
        %710 = vmatprep.subr.bf16.mxu0 0
        %711 = vmatpush1.bf16.msra.mxu0 %v643
        %712 = vmatprep.subr.bf16.mxu0 0
        %713 = vmatpush1.bf16.msra.mxu0 %v644
        %714 = vmatprep.subr.bf16.mxu0 0
        %715 = vmatpush1.bf16.msra.mxu0 %v645
        %716 = vmatprep.subr.bf16.mxu0 0
        %717 = vmatpush1.bf16.msra.mxu0 %v646
        %718 = vmatprep.subr.bf16.mxu0 0
        %719 = vmatpush1.bf16.msra.mxu0 %v647
        %720 = vmatprep.subr.bf16.mxu0 0
        %721 = vmatpush1.bf16.msra.mxu0 %v648
        %722 = vmatprep.subr.bf16.mxu0 0
        %723 = vmatpush1.bf16.msra.mxu0 %v649
        %724 = vmatprep.subr.bf16.mxu0 0
        %725 = vmatpush1.bf16.msra.mxu0 %v650
        %726 = vmatprep.subr.bf16.mxu0 0
        %727 = vmatpush1.bf16.msra.mxu0 %v651
        %728 = vmatprep.subr.bf16.mxu0 0
        %729 = vmatpush1.bf16.msra.mxu0 %v652
        %730 = vmatprep.subr.bf16.mxu0 0
        %731 = vmatpush1.bf16.msra.mxu0 %v653
        %732 = vmatprep.subr.bf16.mxu0 0
        %733 = vmatpush1.bf16.msra.mxu0 %v654
        %734 = vmatprep.subr.bf16.mxu0 0
        %735 = vmatpush1.bf16.msra.mxu0 %v655
        %736 = vmatprep.mubr.bf16.mxu0 %v493
        %737 = vmatmul.mubr.bf16.gmra.mrb[0].mxu0 %v486
        %v738 = vpop.f32.mrb[0].mxu0
        %v739 = vadd.f32 0.0, %v738
        %v740 = vpop.f32.mrb[0].mxu0
        %v741 = vpop.f32.mrb[0].mxu0
        %v742 = vpop.f32.mrb[0].mxu0
        %743 = vdwg.mxu0
        %744 = vmatprep.subr.bf16.mxu0 0
        %745 = vmatpush1.bf16.msra.mxu0 %v656
        %746 = vmatprep.subr.bf16.mxu0 0
        %747 = vmatpush1.bf16.msra.mxu0 %v657
        %748 = vmatprep.subr.bf16.mxu0 0
        %749 = vmatpush1.bf16.msra.mxu0 %v658
        %750 = vmatprep.subr.bf16.mxu0 0
        %751 = vmatpush1.bf16.msra.mxu0 %v659
        %752 = vmatprep.subr.bf16.mxu0 0
        %753 = vmatpush1.bf16.msra.mxu0 %v660
        %754 = vmatprep.subr.bf16.mxu0 0
        %755 = vmatpush1.bf16.msra.mxu0 %v661
        %756 = vmatprep.subr.bf16.mxu0 0
        %757 = vmatpush1.bf16.msra.mxu0 %v662
        %758 = vmatprep.subr.bf16.mxu0 0
        %759 = vmatpush1.bf16.msra.mxu0 %v663
        %760 = vmatprep.subr.bf16.mxu0 0
        %761 = vmatpush1.bf16.msra.mxu0 %v664
        %762 = vmatprep.subr.bf16.mxu0 0
        %763 = vmatpush1.bf16.msra.mxu0 %v665
        %764 = vmatprep.subr.bf16.mxu0 0
        %765 = vmatpush1.bf16.msra.mxu0 %v666
        %766 = vmatprep.subr.bf16.mxu0 0
        %767 = vmatpush1.bf16.msra.mxu0 %v667
        %768 = vmatprep.subr.bf16.mxu0 0
        %769 = vmatpush1.bf16.msra.mxu0 %v668
        %770 = vmatprep.subr.bf16.mxu0 0
        %771 = vmatpush1.bf16.msra.mxu0 %v669
        %772 = vmatprep.subr.bf16.mxu0 0
        %773 = vmatpush1.bf16.msra.mxu0 %v670
        %774 = vmatprep.subr.bf16.mxu0 0
        %775 = vmatpush1.bf16.msra.mxu0 %v671
        %776 = vmatprep.mubr.bf16.mxu0 %v507
        %777 = vmatmul.mubr.bf16.gmra.mrb[0].mxu0 %v500
        %v778 = vpop.f32.mrb[0].mxu0
        %v779 = vadd.f32 %v739, %v778
        %v780 = vpop.f32.mrb[0].mxu0
        %v781 = vpop.f32.mrb[0].mxu0
        %v782 = vpop.f32.mrb[0].mxu0
        %783 = vdwg.mxu0
        %v852 = vunpack.c.l.b16 %v211
        %v853 = vunpack.c.l.b16 %v212
        %v854 = vunpack.c.l.b16 %v213
        %v855 = vunpack.c.l.b16 %v214
        %v856 = vunpack.c.l.b16 %v215
        %v857 = vunpack.c.l.b16 %v216
        %v858 = vunpack.c.l.b16 %v217
        %v859 = vunpack.c.l.b16 %v218
        %v860 = vunpack.c.l.b16 %v219
        %v861 = vunpack.c.l.b16 %v220
        %v862 = vunpack.c.l.b16 %v221
        %v863 = vunpack.c.l.b16 %v222
        %v864 = vunpack.c.l.b16 %v223
        %v865 = vunpack.c.l.b16 %v224
        %v866 = vunpack.c.l.b16 %v225
        %v867 = vunpack.c.l.b16 %v226
        %v868 = vunpack.c.l.b16 %v227
        %v869 = vunpack.c.l.b16 %v228
        %v870 = vunpack.c.l.b16 %v229
        %v871 = vunpack.c.l.b16 %v230
        %v872 = vunpack.c.l.b16 %v231
        %v873 = vunpack.c.l.b16 %v232
        %v874 = vunpack.c.l.b16 %v233
        %v875 = vunpack.c.l.b16 %v234
        %v876 = vunpack.c.l.b16 %v235
        %v877 = vunpack.c.l.b16 %v236
        %v878 = vunpack.c.l.b16 %v237
        %v879 = vunpack.c.l.b16 %v238
        %v880 = vunpack.c.l.b16 %v239
        %v881 = vunpack.c.l.b16 %v240
        %v882 = vunpack.c.l.b16 %v241
        %v883 = vunpack.c.l.b16 %v242
        %v884 = vunpack.c.l.b16 %v243
        %v885 = vunpack.c.l.b16 %v244
        %v886 = vunpack.c.l.b16 %v245
        %v887 = vunpack.c.l.b16 %v246
        %v888 = vunpack.c.l.b16 %v247
        %v889 = vunpack.c.l.b16 %v248
        %v890 = vunpack.c.l.b16 %v249
        %v891 = vunpack.c.l.b16 %v250
        %v892 = vunpack.c.l.b16 %v251
        %v893 = vunpack.c.l.b16 %v252
        %v894 = vunpack.c.l.b16 %v253
        %v895 = vunpack.c.l.b16 %v254
        %v896 = vunpack.c.l.b16 %v255
        %v897 = vunpack.c.l.b16 %v256
        %v898 = vunpack.c.l.b16 %v257
        %v899 = vunpack.c.l.b16 %v258
        %v900 = vunpack.c.l.b16 %v259
        %v901 = vunpack.c.l.b16 %v260
        %v902 = vunpack.c.l.b16 %v261
        %v903 = vunpack.c.l.b16 %v262
        %v904 = vunpack.c.l.b16 %v263
        %v905 = vunpack.c.l.b16 %v264
        %v906 = vunpack.c.l.b16 %v265
        %v907 = vunpack.c.l.b16 %v266
        %v908 = vunpack.c.l.b16 %v267
        %v909 = vunpack.c.l.b16 %v268
        %v910 = vunpack.c.l.b16 %v269
        %v911 = vunpack.c.l.b16 %v270
        %v912 = vunpack.c.l.b16 %v271
        %v913 = vunpack.c.l.b16 %v272
        %v914 = vunpack.c.l.b16 %v273
        %v915 = vunpack.c.l.b16 %v274
        %v916 = vpack.c.b16 %v853, %v852
        %v917 = vpack.c.b16 %v855, %v854
        %v918 = vpack.c.b16 %v857, %v856
        %v919 = vpack.c.b16 %v859, %v858
        %v920 = vpack.c.b16 %v861, %v860
        %v921 = vpack.c.b16 %v863, %v862
        %v922 = vpack.c.b16 %v865, %v864
        %v923 = vpack.c.b16 %v867, %v866
        %v924 = vpack.c.b16 %v869, %v868
        %v925 = vpack.c.b16 %v871, %v870
        %v926 = vpack.c.b16 %v873, %v872
        %v927 = vpack.c.b16 %v875, %v874
        %v928 = vpack.c.b16 %v877, %v876
        %v929 = vpack.c.b16 %v879, %v878
        %v930 = vpack.c.b16 %v881, %v880
        %v931 = vpack.c.b16 %v883, %v882
        %v932 = vpack.c.b16 %v885, %v884
        %v933 = vpack.c.b16 %v887, %v886
        %v934 = vpack.c.b16 %v889, %v888
        %v935 = vpack.c.b16 %v891, %v890
        %v936 = vpack.c.b16 %v893, %v892
        %v937 = vpack.c.b16 %v895, %v894
        %v938 = vpack.c.b16 %v897, %v896
        %v939 = vpack.c.b16 %v899, %v898
        %v940 = vpack.c.b16 %v901, %v900
        %v941 = vpack.c.b16 %v903, %v902
        %v942 = vpack.c.b16 %v905, %v904
        %v943 = vpack.c.b16 %v907, %v906
        %v944 = vpack.c.b16 %v909, %v908
        %v945 = vpack.c.b16 %v911, %v910
        %v946 = vpack.c.b16 %v913, %v912
        %v947 = vpack.c.b16 %v915, %v914
        %980 = vmatprep.subr.bf16.mxu0 0
        %981 = vmatpush1.bf16.msra.mxu0 %v916
        %982 = vmatprep.subr.bf16.mxu0 0
        %983 = vmatpush1.bf16.msra.mxu0 %v917
        %984 = vmatprep.subr.bf16.mxu0 0
        %985 = vmatpush1.bf16.msra.mxu0 %v918
        %986 = vmatprep.subr.bf16.mxu0 0
        %987 = vmatpush1.bf16.msra.mxu0 %v919
        %988 = vmatprep.subr.bf16.mxu0 0
        %989 = vmatpush1.bf16.msra.mxu0 %v920
        %990 = vmatprep.subr.bf16.mxu0 0
        %991 = vmatpush1.bf16.msra.mxu0 %v921
        %992 = vmatprep.subr.bf16.mxu0 0
        %993 = vmatpush1.bf16.msra.mxu0 %v922
        %994 = vmatprep.subr.bf16.mxu0 0
        %995 = vmatpush1.bf16.msra.mxu0 %v923
        %996 = vmatprep.subr.bf16.mxu0 0
        %997 = vmatpush1.bf16.msra.mxu0 %v924
        %998 = vmatprep.subr.bf16.mxu0 0
        %999 = vmatpush1.bf16.msra.mxu0 %v925
        %1000 = vmatprep.subr.bf16.mxu0 0
        %1001 = vmatpush1.bf16.msra.mxu0 %v926
        %1002 = vmatprep.subr.bf16.mxu0 0
        %1003 = vmatpush1.bf16.msra.mxu0 %v927
        %1004 = vmatprep.subr.bf16.mxu0 0
        %1005 = vmatpush1.bf16.msra.mxu0 %v928
        %1006 = vmatprep.subr.bf16.mxu0 0
        %1007 = vmatpush1.bf16.msra.mxu0 %v929
        %1008 = vmatprep.subr.bf16.mxu0 0
        %1009 = vmatpush1.bf16.msra.mxu0 %v930
        %1010 = vmatprep.subr.bf16.mxu0 0
        %1011 = vmatpush1.bf16.msra.mxu0 %v931
        %1012 = vmatprep.mubr.bf16.mxu0 %v477
        %1013 = vmatmul.mubr.bf16.gmra.mrb[0].mxu0 %v476
        %v1014 = vpop.f32.mrb[0].mxu0
        %v1015 = vadd.f32 %v779, %v1014
        %v1016 = vpop.f32.mrb[0].mxu0
        %v1017 = vpop.f32.mrb[0].mxu0
        %v1018 = vpop.f32.mrb[0].mxu0
        %1019 = vdwg.mxu0
        %1020 = vmatprep.subr.bf16.mxu0 0
        %1021 = vmatpush1.bf16.msra.mxu0 %v932
        %1022 = vmatprep.subr.bf16.mxu0 0
        %1023 = vmatpush1.bf16.msra.mxu0 %v933
        %1024 = vmatprep.subr.bf16.mxu0 0
        %1025 = vmatpush1.bf16.msra.mxu0 %v934
        %1026 = vmatprep.subr.bf16.mxu0 0
        %1027 = vmatpush1.bf16.msra.mxu0 %v935
        %1028 = vmatprep.subr.bf16.mxu0 0
        %1029 = vmatpush1.bf16.msra.mxu0 %v936
        %1030 = vmatprep.subr.bf16.mxu0 0
        %1031 = vmatpush1.bf16.msra.mxu0 %v937
        %1032 = vmatprep.subr.bf16.mxu0 0
        %1033 = vmatpush1.bf16.msra.mxu0 %v938
        %1034 = vmatprep.subr.bf16.mxu0 0
        %1035 = vmatpush1.bf16.msra.mxu0 %v939
        %1036 = vmatprep.subr.bf16.mxu0 0
        %1037 = vmatpush1.bf16.msra.mxu0 %v940
        %1038 = vmatprep.subr.bf16.mxu0 0
        %1039 = vmatpush1.bf16.msra.mxu0 %v941
        %1040 = vmatprep.subr.bf16.mxu0 0
        %1041 = vmatpush1.bf16.msra.mxu0 %v942
        %1042 = vmatprep.subr.bf16.mxu0 0
        %1043 = vmatpush1.bf16.msra.mxu0 %v943
        %1044 = vmatprep.subr.bf16.mxu0 0
        %1045 = vmatpush1.bf16.msra.mxu0 %v944
        %1046 = vmatprep.subr.bf16.mxu0 0
        %1047 = vmatpush1.bf16.msra.mxu0 %v945
        %1048 = vmatprep.subr.bf16.mxu0 0
        %1049 = vmatpush1.bf16.msra.mxu0 %v946
        %1050 = vmatprep.subr.bf16.mxu0 0
        %1051 = vmatpush1.bf16.msra.mxu0 %v947
        %1052 = vmatprep.mubr.bf16.mxu0 %v479
        %1053 = vmatmul.mubr.bf16.gmra.mrb[0].mxu0 %v478
        %v1054 = vpop.f32.mrb[0].mxu0
        %v1055 = vadd.f32 %v1015, %v1054
        %v1056 = vpop.f32.mrb[0].mxu0
        %v1057 = vpop.f32.mrb[0].mxu0
        %v1058 = vpop.f32.mrb[0].mxu0
        %1059 = vdwg.mxu0
        %v1062 = vunpack.c.l.b16 %v202
        %v1063 = vunpack.c.h.b16 %v202
        %v1064 = vunpack.c.l.b16 %v203
        %v1065 = vunpack.c.h.b16 %v203
        %v1066 = vpack.c.b16 %v1062, %v1062
        %v1067 = vpack.c.b16 %v1063, %v1063
        %v1068 = vpack.c.b16 %v1064, %v1064
        %v1069 = vpack.c.b16 %v1065, %v1065
        %v1138 = vunpack.c.l.b16 %v341
        %v1139 = vunpack.c.l.b16 %v342
        %v1140 = vunpack.c.l.b16 %v343
        %v1141 = vunpack.c.l.b16 %v344
        %v1142 = vunpack.c.l.b16 %v345
        %v1143 = vunpack.c.l.b16 %v346
        %v1144 = vunpack.c.l.b16 %v347
        %v1145 = vunpack.c.l.b16 %v348
        %v1146 = vunpack.c.l.b16 %v349
        %v1147 = vunpack.c.l.b16 %v350
        %v1148 = vunpack.c.l.b16 %v351
        %v1149 = vunpack.c.l.b16 %v352
        %v1150 = vunpack.c.l.b16 %v353
        %v1151 = vunpack.c.l.b16 %v354
        %v1152 = vunpack.c.l.b16 %v355
        %v1153 = vunpack.c.l.b16 %v356
        %v1154 = vunpack.c.l.b16 %v357
        %v1155 = vunpack.c.l.b16 %v358
        %v1156 = vunpack.c.l.b16 %v359
        %v1157 = vunpack.c.l.b16 %v360
        %v1158 = vunpack.c.l.b16 %v361
        %v1159 = vunpack.c.l.b16 %v362
        %v1160 = vunpack.c.l.b16 %v363
        %v1161 = vunpack.c.l.b16 %v364
        %v1162 = vunpack.c.l.b16 %v365
        %v1163 = vunpack.c.l.b16 %v366
        %v1164 = vunpack.c.l.b16 %v367
        %v1165 = vunpack.c.l.b16 %v368
        %v1166 = vunpack.c.l.b16 %v369
        %v1167 = vunpack.c.l.b16 %v370
        %v1168 = vunpack.c.l.b16 %v371
        %v1169 = vunpack.c.l.b16 %v372
        %v1170 = vunpack.c.l.b16 %v373
        %v1171 = vunpack.c.l.b16 %v374
        %v1172 = vunpack.c.l.b16 %v375
        %v1173 = vunpack.c.l.b16 %v376
        %v1174 = vunpack.c.l.b16 %v377
        %v1175 = vunpack.c.l.b16 %v378
        %v1176 = vunpack.c.l.b16 %v379
        %v1177 = vunpack.c.l.b16 %v380
        %v1178 = vunpack.c.l.b16 %v381
        %v1179 = vunpack.c.l.b16 %v382
        %v1180 = vunpack.c.l.b16 %v383
        %v1181 = vunpack.c.l.b16 %v384
        %v1182 = vunpack.c.l.b16 %v385
        %v1183 = vunpack.c.l.b16 %v386
        %v1184 = vunpack.c.l.b16 %v387
        %v1185 = vunpack.c.l.b16 %v388
        %v1186 = vunpack.c.l.b16 %v389
        %v1187 = vunpack.c.l.b16 %v390
        %v1188 = vunpack.c.l.b16 %v391
        %v1189 = vunpack.c.l.b16 %v392
        %v1190 = vunpack.c.l.b16 %v393
        %v1191 = vunpack.c.l.b16 %v394
        %v1192 = vunpack.c.l.b16 %v395
        %v1193 = vunpack.c.l.b16 %v396
        %v1194 = vunpack.c.l.b16 %v397
        %v1195 = vunpack.c.l.b16 %v398
        %v1196 = vunpack.c.l.b16 %v399
        %v1197 = vunpack.c.l.b16 %v400
        %v1198 = vunpack.c.l.b16 %v401
        %v1199 = vunpack.c.l.b16 %v402
        %v1200 = vunpack.c.l.b16 %v403
        %v1201 = vunpack.c.l.b16 %v404
        %v1202 = vpack.c.b16 %v1139, %v1138
        %v1203 = vpack.c.b16 %v1141, %v1140
        %v1204 = vpack.c.b16 %v1143, %v1142
        %v1205 = vpack.c.b16 %v1145, %v1144
        %v1206 = vpack.c.b16 %v1147, %v1146
        %v1207 = vpack.c.b16 %v1149, %v1148
        %v1208 = vpack.c.b16 %v1151, %v1150
        %v1209 = vpack.c.b16 %v1153, %v1152
        %v1210 = vpack.c.b16 %v1155, %v1154
        %v1211 = vpack.c.b16 %v1157, %v1156
        %v1212 = vpack.c.b16 %v1159, %v1158
        %v1213 = vpack.c.b16 %v1161, %v1160
        %v1214 = vpack.c.b16 %v1163, %v1162
        %v1215 = vpack.c.b16 %v1165, %v1164
        %v1216 = vpack.c.b16 %v1167, %v1166
        %v1217 = vpack.c.b16 %v1169, %v1168
        %v1218 = vpack.c.b16 %v1171, %v1170
        %v1219 = vpack.c.b16 %v1173, %v1172
        %v1220 = vpack.c.b16 %v1175, %v1174
        %v1221 = vpack.c.b16 %v1177, %v1176
        %v1222 = vpack.c.b16 %v1179, %v1178
        %v1223 = vpack.c.b16 %v1181, %v1180
        %v1224 = vpack.c.b16 %v1183, %v1182
        %v1225 = vpack.c.b16 %v1185, %v1184
        %v1226 = vpack.c.b16 %v1187, %v1186
        %v1227 = vpack.c.b16 %v1189, %v1188
        %v1228 = vpack.c.b16 %v1191, %v1190
        %v1229 = vpack.c.b16 %v1193, %v1192
        %v1230 = vpack.c.b16 %v1195, %v1194
        %v1231 = vpack.c.b16 %v1197, %v1196
        %v1232 = vpack.c.b16 %v1199, %v1198
        %v1233 = vpack.c.b16 %v1201, %v1200
        %1266 = vmatprep.subr.bf16.mxu0 0
        %1267 = vmatpush1.bf16.msra.mxu0 %v1202
        %1268 = vmatprep.subr.bf16.mxu0 0
        %1269 = vmatpush1.bf16.msra.mxu0 %v1203
        %1270 = vmatprep.subr.bf16.mxu0 0
        %1271 = vmatpush1.bf16.msra.mxu0 %v1204
        %1272 = vmatprep.subr.bf16.mxu0 0
        %1273 = vmatpush1.bf16.msra.mxu0 %v1205
        %1274 = vmatprep.subr.bf16.mxu0 0
        %1275 = vmatpush1.bf16.msra.mxu0 %v1206
        %1276 = vmatprep.subr.bf16.mxu0 0
        %1277 = vmatpush1.bf16.msra.mxu0 %v1207
        %1278 = vmatprep.subr.bf16.mxu0 0
        %1279 = vmatpush1.bf16.msra.mxu0 %v1208
        %1280 = vmatprep.subr.bf16.mxu0 0
        %1281 = vmatpush1.bf16.msra.mxu0 %v1209
        %1282 = vmatprep.subr.bf16.mxu0 0
        %1283 = vmatpush1.bf16.msra.mxu0 %v1210
        %1284 = vmatprep.subr.bf16.mxu0 0
        %1285 = vmatpush1.bf16.msra.mxu0 %v1211
        %1286 = vmatprep.subr.bf16.mxu0 0
        %1287 = vmatpush1.bf16.msra.mxu0 %v1212
        %1288 = vmatprep.subr.bf16.mxu0 0
        %1289 = vmatpush1.bf16.msra.mxu0 %v1213
        %1290 = vmatprep.subr.bf16.mxu0 0
        %1291 = vmatpush1.bf16.msra.mxu0 %v1214
        %1292 = vmatprep.subr.bf16.mxu0 0
        %1293 = vmatpush1.bf16.msra.mxu0 %v1215
        %1294 = vmatprep.subr.bf16.mxu0 0
        %1295 = vmatpush1.bf16.msra.mxu0 %v1216
        %1296 = vmatprep.subr.bf16.mxu0 0
        %1297 = vmatpush1.bf16.msra.mxu0 %v1217
        %1298 = vmatprep.mubr.bf16.mxu0 %v1067
        %1299 = vmatmul.mubr.bf16.gmra.mrb[0].mxu0 %v1066
        %v1300 = vpop.f32.mrb[0].mxu0
        %v1301 = vadd.f32 0.0, %v1300
        %v1302 = vpop.f32.mrb[0].mxu0
        %v1303 = vpop.f32.mrb[0].mxu0
        %v1304 = vpop.f32.mrb[0].mxu0
        %1305 = vdwg.mxu0
        %1306 = vmatprep.subr.bf16.mxu0 0
        %1307 = vmatpush1.bf16.msra.mxu0 %v1218
        %1308 = vmatprep.subr.bf16.mxu0 0
        %1309 = vmatpush1.bf16.msra.mxu0 %v1219
        %1310 = vmatprep.subr.bf16.mxu0 0
        %1311 = vmatpush1.bf16.msra.mxu0 %v1220
        %1312 = vmatprep.subr.bf16.mxu0 0
        %1313 = vmatpush1.bf16.msra.mxu0 %v1221
        %1314 = vmatprep.subr.bf16.mxu0 0
        %1315 = vmatpush1.bf16.msra.mxu0 %v1222
        %1316 = vmatprep.subr.bf16.mxu0 0
        %1317 = vmatpush1.bf16.msra.mxu0 %v1223
        %1318 = vmatprep.subr.bf16.mxu0 0
        %1319 = vmatpush1.bf16.msra.mxu0 %v1224
        %1320 = vmatprep.subr.bf16.mxu0 0
        %1321 = vmatpush1.bf16.msra.mxu0 %v1225
        %1322 = vmatprep.subr.bf16.mxu0 0
        %1323 = vmatpush1.bf16.msra.mxu0 %v1226
        %1324 = vmatprep.subr.bf16.mxu0 0
        %1325 = vmatpush1.bf16.msra.mxu0 %v1227
        %1326 = vmatprep.subr.bf16.mxu0 0
        %1327 = vmatpush1.bf16.msra.mxu0 %v1228
        %1328 = vmatprep.subr.bf16.mxu0 0
        %1329 = vmatpush1.bf16.msra.mxu0 %v1229
        %1330 = vmatprep.subr.bf16.mxu0 0
        %1331 = vmatpush1.bf16.msra.mxu0 %v1230
        %1332 = vmatprep.subr.bf16.mxu0 0
        %1333 = vmatpush1.bf16.msra.mxu0 %v1231
        %1334 = vmatprep.subr.bf16.mxu0 0
        %1335 = vmatpush1.bf16.msra.mxu0 %v1232
        %1336 = vmatprep.subr.bf16.mxu0 0
        %1337 = vmatpush1.bf16.msra.mxu0 %v1233
        %1338 = vmatprep.mubr.bf16.mxu0 %v1069
        %1339 = vmatmul.mubr.bf16.gmra.mrb[0].mxu0 %v1068
        %v1340 = vpop.f32.mrb[0].mxu0
        %v1341 = vadd.f32 %v1301, %v1340
        %v1342 = vpop.f32.mrb[0].mxu0
        %v1343 = vpop.f32.mrb[0].mxu0
        %v1344 = vpop.f32.mrb[0].mxu0
        %1345 = vdwg.mxu0
        %v1346 = vadd.f32 %v1055, %v1341
        %v1348 = vshrl.u32 %v1066, 16
        %v1350 = vshll.u32 %v1066, 16
        %v1352 = vrot.slane %v1350, 1
        %v1353 = vor.u32 %v1348, %v1352
        %v1355 = vshrl.u32 %v1067, 16
        %v1357 = vshll.u32 %v1067, 16
        %v1359 = vrot.slane %v1357, 1
        %v1360 = vor.u32 %v1355, %v1359
        %v1362 = vshrl.u32 %v1068, 16
        %v1364 = vshll.u32 %v1068, 16
        %v1366 = vrot.slane %v1364, 1
        %v1367 = vor.u32 %v1362, %v1366
        %v1369 = vshrl.u32 %v1069, 16
        %v1371 = vshll.u32 %v1069, 16
        %v1373 = vrot.slane %v1371, 1
        %v1374 = vor.u32 %v1369, %v1373
        %v1443 = vunpack.c.l.b16 %v406
        %v1444 = vunpack.c.l.b16 %v407
        %v1445 = vunpack.c.l.b16 %v408
        %v1446 = vunpack.c.l.b16 %v409
        %v1447 = vunpack.c.l.b16 %v410
        %v1448 = vunpack.c.l.b16 %v411
        %v1449 = vunpack.c.l.b16 %v412
        %v1450 = vunpack.c.l.b16 %v413
        %v1451 = vunpack.c.l.b16 %v414
        %v1452 = vunpack.c.l.b16 %v415
        %v1453 = vunpack.c.l.b16 %v416
        %v1454 = vunpack.c.l.b16 %v417
        %v1455 = vunpack.c.l.b16 %v418
        %v1456 = vunpack.c.l.b16 %v419
        %v1457 = vunpack.c.l.b16 %v420
        %v1458 = vunpack.c.l.b16 %v421
        %v1459 = vunpack.c.l.b16 %v422
        %v1460 = vunpack.c.l.b16 %v423
        %v1461 = vunpack.c.l.b16 %v424
        %v1462 = vunpack.c.l.b16 %v425
        %v1463 = vunpack.c.l.b16 %v426
        %v1464 = vunpack.c.l.b16 %v427
        %v1465 = vunpack.c.l.b16 %v428
        %v1466 = vunpack.c.l.b16 %v429
        %v1467 = vunpack.c.l.b16 %v430
        %v1468 = vunpack.c.l.b16 %v431
        %v1469 = vunpack.c.l.b16 %v432
        %v1470 = vunpack.c.l.b16 %v433
        %v1471 = vunpack.c.l.b16 %v434
        %v1472 = vunpack.c.l.b16 %v435
        %v1473 = vunpack.c.l.b16 %v436
        %v1474 = vunpack.c.l.b16 %v437
        %v1475 = vunpack.c.l.b16 %v438
        %v1476 = vunpack.c.l.b16 %v439
        %v1477 = vunpack.c.l.b16 %v440
        %v1478 = vunpack.c.l.b16 %v441
        %v1479 = vunpack.c.l.b16 %v442
        %v1480 = vunpack.c.l.b16 %v443
        %v1481 = vunpack.c.l.b16 %v444
        %v1482 = vunpack.c.l.b16 %v445
        %v1483 = vunpack.c.l.b16 %v446
        %v1484 = vunpack.c.l.b16 %v447
        %v1485 = vunpack.c.l.b16 %v448
        %v1486 = vunpack.c.l.b16 %v449
        %v1487 = vunpack.c.l.b16 %v450
        %v1488 = vunpack.c.l.b16 %v451
        %v1489 = vunpack.c.l.b16 %v452
        %v1490 = vunpack.c.l.b16 %v453
        %v1491 = vunpack.c.l.b16 %v454
        %v1492 = vunpack.c.l.b16 %v455
        %v1493 = vunpack.c.l.b16 %v456
        %v1494 = vunpack.c.l.b16 %v457
        %v1495 = vunpack.c.l.b16 %v458
        %v1496 = vunpack.c.l.b16 %v459
        %v1497 = vunpack.c.l.b16 %v460
        %v1498 = vunpack.c.l.b16 %v461
        %v1499 = vunpack.c.l.b16 %v462
        %v1500 = vunpack.c.l.b16 %v463
        %v1501 = vunpack.c.l.b16 %v464
        %v1502 = vunpack.c.l.b16 %v465
        %v1503 = vunpack.c.l.b16 %v466
        %v1504 = vunpack.c.l.b16 %v467
        %v1505 = vunpack.c.l.b16 %v468
        %v1506 = vunpack.c.l.b16 %v469
        %v1507 = vpack.c.b16 %v1444, %v1443
        %v1508 = vpack.c.b16 %v1446, %v1445
        %v1509 = vpack.c.b16 %v1448, %v1447
        %v1510 = vpack.c.b16 %v1450, %v1449
        %v1511 = vpack.c.b16 %v1452, %v1451
        %v1512 = vpack.c.b16 %v1454, %v1453
        %v1513 = vpack.c.b16 %v1456, %v1455
        %v1514 = vpack.c.b16 %v1458, %v1457
        %v1515 = vpack.c.b16 %v1460, %v1459
        %v1516 = vpack.c.b16 %v1462, %v1461
        %v1517 = vpack.c.b16 %v1464, %v1463
        %v1518 = vpack.c.b16 %v1466, %v1465
        %v1519 = vpack.c.b16 %v1468, %v1467
        %v1520 = vpack.c.b16 %v1470, %v1469
        %v1521 = vpack.c.b16 %v1472, %v1471
        %v1522 = vpack.c.b16 %v1474, %v1473
        %v1523 = vpack.c.b16 %v1476, %v1475
        %v1524 = vpack.c.b16 %v1478, %v1477
        %v1525 = vpack.c.b16 %v1480, %v1479
        %v1526 = vpack.c.b16 %v1482, %v1481
        %v1527 = vpack.c.b16 %v1484, %v1483
        %v1528 = vpack.c.b16 %v1486, %v1485
        %v1529 = vpack.c.b16 %v1488, %v1487
        %v1530 = vpack.c.b16 %v1490, %v1489
        %v1531 = vpack.c.b16 %v1492, %v1491
        %v1532 = vpack.c.b16 %v1494, %v1493
        %v1533 = vpack.c.b16 %v1496, %v1495
        %v1534 = vpack.c.b16 %v1498, %v1497
        %v1535 = vpack.c.b16 %v1500, %v1499
        %v1536 = vpack.c.b16 %v1502, %v1501
        %v1537 = vpack.c.b16 %v1504, %v1503
        %v1538 = vpack.c.b16 %v1506, %v1505
        %1571 = vmatprep.subr.bf16.mxu0 0
        %1572 = vmatpush1.bf16.msra.mxu0 %v1507
        %1573 = vmatprep.subr.bf16.mxu0 0
        %1574 = vmatpush1.bf16.msra.mxu0 %v1508
        %1575 = vmatprep.subr.bf16.mxu0 0
        %1576 = vmatpush1.bf16.msra.mxu0 %v1509
        %1577 = vmatprep.subr.bf16.mxu0 0
        %1578 = vmatpush1.bf16.msra.mxu0 %v1510
        %1579 = vmatprep.subr.bf16.mxu0 0
        %1580 = vmatpush1.bf16.msra.mxu0 %v1511
        %1581 = vmatprep.subr.bf16.mxu0 0
        %1582 = vmatpush1.bf16.msra.mxu0 %v1512
        %1583 = vmatprep.subr.bf16.mxu0 0
        %1584 = vmatpush1.bf16.msra.mxu0 %v1513
        %1585 = vmatprep.subr.bf16.mxu0 0
        %1586 = vmatpush1.bf16.msra.mxu0 %v1514
        %1587 = vmatprep.subr.bf16.mxu0 0
        %1588 = vmatpush1.bf16.msra.mxu0 %v1515
        %1589 = vmatprep.subr.bf16.mxu0 0
        %1590 = vmatpush1.bf16.msra.mxu0 %v1516
        %1591 = vmatprep.subr.bf16.mxu0 0
        %1592 = vmatpush1.bf16.msra.mxu0 %v1517
        %1593 = vmatprep.subr.bf16.mxu0 0
        %1594 = vmatpush1.bf16.msra.mxu0 %v1518
        %1595 = vmatprep.subr.bf16.mxu0 0
        %1596 = vmatpush1.bf16.msra.mxu0 %v1519
        %1597 = vmatprep.subr.bf16.mxu0 0
        %1598 = vmatpush1.bf16.msra.mxu0 %v1520
        %1599 = vmatprep.subr.bf16.mxu0 0
        %1600 = vmatpush1.bf16.msra.mxu0 %v1521
        %1601 = vmatprep.subr.bf16.mxu0 0
        %1602 = vmatpush1.bf16.msra.mxu0 %v1522
        %1603 = vmatprep.mubr.bf16.mxu0 %v1360
        %1604 = vmatmul.mubr.bf16.gmra.mrb[0].mxu0 %v1353
        %v1605 = vpop.f32.mrb[0].mxu0
        %v1606 = vadd.f32 0.0, %v1605
        %v1607 = vpop.f32.mrb[0].mxu0
        %v1608 = vpop.f32.mrb[0].mxu0
        %v1609 = vpop.f32.mrb[0].mxu0
        %1610 = vdwg.mxu0
        %1611 = vmatprep.subr.bf16.mxu0 0
        %1612 = vmatpush1.bf16.msra.mxu0 %v1523
        %1613 = vmatprep.subr.bf16.mxu0 0
        %1614 = vmatpush1.bf16.msra.mxu0 %v1524
        %1615 = vmatprep.subr.bf16.mxu0 0
        %1616 = vmatpush1.bf16.msra.mxu0 %v1525
        %1617 = vmatprep.subr.bf16.mxu0 0
        %1618 = vmatpush1.bf16.msra.mxu0 %v1526
        %1619 = vmatprep.subr.bf16.mxu0 0
        %1620 = vmatpush1.bf16.msra.mxu0 %v1527
        %1621 = vmatprep.subr.bf16.mxu0 0
        %1622 = vmatpush1.bf16.msra.mxu0 %v1528
        %1623 = vmatprep.subr.bf16.mxu0 0
        %1624 = vmatpush1.bf16.msra.mxu0 %v1529
        %1625 = vmatprep.subr.bf16.mxu0 0
        %1626 = vmatpush1.bf16.msra.mxu0 %v1530
        %1627 = vmatprep.subr.bf16.mxu0 0
        %1628 = vmatpush1.bf16.msra.mxu0 %v1531
        %1629 = vmatprep.subr.bf16.mxu0 0
        %1630 = vmatpush1.bf16.msra.mxu0 %v1532
        %1631 = vmatprep.subr.bf16.mxu0 0
        %1632 = vmatpush1.bf16.msra.mxu0 %v1533
        %1633 = vmatprep.subr.bf16.mxu0 0
        %1634 = vmatpush1.bf16.msra.mxu0 %v1534
        %1635 = vmatprep.subr.bf16.mxu0 0
        %1636 = vmatpush1.bf16.msra.mxu0 %v1535
        %1637 = vmatprep.subr.bf16.mxu0 0
        %1638 = vmatpush1.bf16.msra.mxu0 %v1536
        %1639 = vmatprep.subr.bf16.mxu0 0
        %1640 = vmatpush1.bf16.msra.mxu0 %v1537
        %1641 = vmatprep.subr.bf16.mxu0 0
        %1642 = vmatpush1.bf16.msra.mxu0 %v1538
        %1643 = vmatprep.mubr.bf16.mxu0 %v1374
        %1644 = vmatmul.mubr.bf16.gmra.mrb[0].mxu0 %v1367
        %v1645 = vpop.f32.mrb[0].mxu0
        %v1646 = vadd.f32 %v1606, %v1645
        %v1647 = vpop.f32.mrb[0].mxu0
        %v1648 = vpop.f32.mrb[0].mxu0
        %v1649 = vpop.f32.mrb[0].mxu0
        %1650 = vdwg.mxu0
        %v1651 = vadd.f32 %v1346, %v1646
        %v1653 = vlaneseq
        %v1654 = vshrl.u32 %v1653, 7
        %v1655 = vsub.s32 0, %v1654
        %v1656 = vrot.slane %v210, %v1655
        %v1658 = vadd.f32 %v1651, %v1656
        %vm1659 = vcmp.ge.f32.partialorder %v1658, 0.0
        %v1660 = vmul.f32 %v1658, 0.01
        %v1661 = vsel %vm1659, %v1658, %v1660
        %v1662 = vpack.c.bf16 %v1661, %v1661
        %1663 = vst [vmem:[%s198] sm:$0x3] %v1662
        %1664 = vmatprep.subr.bf16.mxu0 0
        %1665 = vmatpush1.bf16.msra.mxu0 %v640
        %1666 = vmatprep.subr.bf16.mxu0 0
        %1667 = vmatpush1.bf16.msra.mxu0 %v641
        %1668 = vmatprep.subr.bf16.mxu0 0
        %1669 = vmatpush1.bf16.msra.mxu0 %v642
        %1670 = vmatprep.subr.bf16.mxu0 0
        %1671 = vmatpush1.bf16.msra.mxu0 %v643
        %1672 = vmatprep.subr.bf16.mxu0 0
        %1673 = vmatpush1.bf16.msra.mxu0 %v644
        %1674 = vmatprep.subr.bf16.mxu0 0
        %1675 = vmatpush1.bf16.msra.mxu0 %v645
        %1676 = vmatprep.subr.bf16.mxu0 0
        %1677 = vmatpush1.bf16.msra.mxu0 %v646
        %1678 = vmatprep.subr.bf16.mxu0 0
        %1679 = vmatpush1.bf16.msra.mxu0 %v647
        %1680 = vmatprep.subr.bf16.mxu0 0
        %1681 = vmatpush1.bf16.msra.mxu0 %v648
        %1682 = vmatprep.subr.bf16.mxu0 0
        %1683 = vmatpush1.bf16.msra.mxu0 %v649
        %1684 = vmatprep.subr.bf16.mxu0 0
        %1685 = vmatpush1.bf16.msra.mxu0 %v650
        %1686 = vmatprep.subr.bf16.mxu0 0
        %1687 = vmatpush1.bf16.msra.mxu0 %v651
        %1688 = vmatprep.subr.bf16.mxu0 0
        %1689 = vmatpush1.bf16.msra.mxu0 %v652
        %1690 = vmatprep.subr.bf16.mxu0 0
        %1691 = vmatpush1.bf16.msra.mxu0 %v653
        %1692 = vmatprep.subr.bf16.mxu0 0
        %1693 = vmatpush1.bf16.msra.mxu0 %v654
        %1694 = vmatprep.subr.bf16.mxu0 0
        %1695 = vmatpush1.bf16.msra.mxu0 %v655
        %1696 = vmatprep.mubr.bf16.mxu0 %v1360
        %1697 = vmatmul.mubr.bf16.gmra.mrb[0].mxu0 %v1353
        %v1698 = vpop.f32.mrb[0].mxu0
        %v1699 = vadd.f32 0.0, %v1698
        %v1700 = vpop.f32.mrb[0].mxu0
        %v1701 = vpop.f32.mrb[0].mxu0
        %v1702 = vpop.f32.mrb[0].mxu0
        %1703 = vdwg.mxu0
        %1704 = vmatprep.subr.bf16.mxu0 0
        %1705 = vmatpush1.bf16.msra.mxu0 %v656
        %1706 = vmatprep.subr.bf16.mxu0 0
        %1707 = vmatpush1.bf16.msra.mxu0 %v657
        %1708 = vmatprep.subr.bf16.mxu0 0
        %1709 = vmatpush1.bf16.msra.mxu0 %v658
        %1710 = vmatprep.subr.bf16.mxu0 0
        %1711 = vmatpush1.bf16.msra.mxu0 %v659
        %1712 = vmatprep.subr.bf16.mxu0 0
        %1713 = vmatpush1.bf16.msra.mxu0 %v660
        %1714 = vmatprep.subr.bf16.mxu0 0
        %1715 = vmatpush1.bf16.msra.mxu0 %v661
        %1716 = vmatprep.subr.bf16.mxu0 0
        %1717 = vmatpush1.bf16.msra.mxu0 %v662
        %1718 = vmatprep.subr.bf16.mxu0 0
        %1719 = vmatpush1.bf16.msra.mxu0 %v663
        %1720 = vmatprep.subr.bf16.mxu0 0
        %1721 = vmatpush1.bf16.msra.mxu0 %v664
        %1722 = vmatprep.subr.bf16.mxu0 0
        %1723 = vmatpush1.bf16.msra.mxu0 %v665
        %1724 = vmatprep.subr.bf16.mxu0 0
        %1725 = vmatpush1.bf16.msra.mxu0 %v666
        %1726 = vmatprep.subr.bf16.mxu0 0
        %1727 = vmatpush1.bf16.msra.mxu0 %v667
        %1728 = vmatprep.subr.bf16.mxu0 0
        %1729 = vmatpush1.bf16.msra.mxu0 %v668
        %1730 = vmatprep.subr.bf16.mxu0 0
        %1731 = vmatpush1.bf16.msra.mxu0 %v669
        %1732 = vmatprep.subr.bf16.mxu0 0
        %1733 = vmatpush1.bf16.msra.mxu0 %v670
        %1734 = vmatprep.subr.bf16.mxu0 0
        %1735 = vmatpush1.bf16.msra.mxu0 %v671
        %1736 = vmatprep.mubr.bf16.mxu0 %v1374
        %1737 = vmatmul.mubr.bf16.gmra.mrb[0].mxu0 %v1367
        %v1738 = vpop.f32.mrb[0].mxu0
        %v1739 = vadd.f32 %v1699, %v1738
        %v1740 = vpop.f32.mrb[0].mxu0
        %v1741 = vpop.f32.mrb[0].mxu0
        %v1742 = vpop.f32.mrb[0].mxu0
        %1743 = vdwg.mxu0
        %1744 = vmatprep.subr.bf16.mxu0 0
        %1745 = vmatpush1.bf16.msra.mxu0 %v916
        %1746 = vmatprep.subr.bf16.mxu0 0
        %1747 = vmatpush1.bf16.msra.mxu0 %v917
        %1748 = vmatprep.subr.bf16.mxu0 0
        %1749 = vmatpush1.bf16.msra.mxu0 %v918
        %1750 = vmatprep.subr.bf16.mxu0 0
        %1751 = vmatpush1.bf16.msra.mxu0 %v919
        %1752 = vmatprep.subr.bf16.mxu0 0
        %1753 = vmatpush1.bf16.msra.mxu0 %v920
        %1754 = vmatprep.subr.bf16.mxu0 0
        %1755 = vmatpush1.bf16.msra.mxu0 %v921
        %1756 = vmatprep.subr.bf16.mxu0 0
        %1757 = vmatpush1.bf16.msra.mxu0 %v922
        %1758 = vmatprep.subr.bf16.mxu0 0
        %1759 = vmatpush1.bf16.msra.mxu0 %v923
        %1760 = vmatprep.subr.bf16.mxu0 0
        %1761 = vmatpush1.bf16.msra.mxu0 %v924
        %1762 = vmatprep.subr.bf16.mxu0 0
        %1763 = vmatpush1.bf16.msra.mxu0 %v925
        %1764 = vmatprep.subr.bf16.mxu0 0
        %1765 = vmatpush1.bf16.msra.mxu0 %v926
        %1766 = vmatprep.subr.bf16.mxu0 0
        %1767 = vmatpush1.bf16.msra.mxu0 %v927
        %1768 = vmatprep.subr.bf16.mxu0 0
        %1769 = vmatpush1.bf16.msra.mxu0 %v928
        %1770 = vmatprep.subr.bf16.mxu0 0
        %1771 = vmatpush1.bf16.msra.mxu0 %v929
        %1772 = vmatprep.subr.bf16.mxu0 0
        %1773 = vmatpush1.bf16.msra.mxu0 %v930
        %1774 = vmatprep.subr.bf16.mxu0 0
        %1775 = vmatpush1.bf16.msra.mxu0 %v931
        %1776 = vmatprep.mubr.bf16.mxu0 %v1067
        %1777 = vmatmul.mubr.bf16.gmra.mrb[0].mxu0 %v1066
        %v1778 = vpop.f32.mrb[0].mxu0
        %v1779 = vadd.f32 %v1739, %v1778
        %v1780 = vpop.f32.mrb[0].mxu0
        %v1781 = vpop.f32.mrb[0].mxu0
        %v1782 = vpop.f32.mrb[0].mxu0
        %1783 = vdwg.mxu0
        %1784 = vmatprep.subr.bf16.mxu0 0
        %1785 = vmatpush1.bf16.msra.mxu0 %v932
        %1786 = vmatprep.subr.bf16.mxu0 0
        %1787 = vmatpush1.bf16.msra.mxu0 %v933
        %1788 = vmatprep.subr.bf16.mxu0 0
        %1789 = vmatpush1.bf16.msra.mxu0 %v934
        %1790 = vmatprep.subr.bf16.mxu0 0
        %1791 = vmatpush1.bf16.msra.mxu0 %v935
        %1792 = vmatprep.subr.bf16.mxu0 0
        %1793 = vmatpush1.bf16.msra.mxu0 %v936
        %1794 = vmatprep.subr.bf16.mxu0 0
        %1795 = vmatpush1.bf16.msra.mxu0 %v937
        %1796 = vmatprep.subr.bf16.mxu0 0
        %1797 = vmatpush1.bf16.msra.mxu0 %v938
        %1798 = vmatprep.subr.bf16.mxu0 0
        %1799 = vmatpush1.bf16.msra.mxu0 %v939
        %1800 = vmatprep.subr.bf16.mxu0 0
        %1801 = vmatpush1.bf16.msra.mxu0 %v940
        %1802 = vmatprep.subr.bf16.mxu0 0
        %1803 = vmatpush1.bf16.msra.mxu0 %v941
        %1804 = vmatprep.subr.bf16.mxu0 0
        %1805 = vmatpush1.bf16.msra.mxu0 %v942
        %1806 = vmatprep.subr.bf16.mxu0 0
        %1807 = vmatpush1.bf16.msra.mxu0 %v943
        %1808 = vmatprep.subr.bf16.mxu0 0
        %1809 = vmatpush1.bf16.msra.mxu0 %v944
        %1810 = vmatprep.subr.bf16.mxu0 0
        %1811 = vmatpush1.bf16.msra.mxu0 %v945
        %1812 = vmatprep.subr.bf16.mxu0 0
        %1813 = vmatpush1.bf16.msra.mxu0 %v946
        %1814 = vmatprep.subr.bf16.mxu0 0
        %1815 = vmatpush1.bf16.msra.mxu0 %v947
        %1816 = vmatprep.mubr.bf16.mxu0 %v1069
        %1817 = vmatmul.mubr.bf16.gmra.mrb[0].mxu0 %v1068
        %v1818 = vpop.f32.mrb[0].mxu0
        %v1819 = vadd.f32 %v1779, %v1818
        %v1820 = vpop.f32.mrb[0].mxu0
        %v1821 = vpop.f32.mrb[0].mxu0
        %v1822 = vpop.f32.mrb[0].mxu0
        %1823 = vdwg.mxu0
        %v1826 = vunpack.c.l.b16 %v204
        %v1827 = vunpack.c.h.b16 %v204
        %v1828 = vunpack.c.l.b16 %v205
        %v1829 = vunpack.c.h.b16 %v205
        %v1830 = vpack.c.b16 %v1826, %v1826
        %v1831 = vpack.c.b16 %v1827, %v1827
        %v1832 = vpack.c.b16 %v1828, %v1828
        %v1833 = vpack.c.b16 %v1829, %v1829
        %1838 = vmatprep.subr.bf16.mxu0 0
        %1839 = vmatpush1.bf16.msra.mxu0 %v1202
        %1840 = vmatprep.subr.bf16.mxu0 0
        %1841 = vmatpush1.bf16.msra.mxu0 %v1203
        %1842 = vmatprep.subr.bf16.mxu0 0
        %1843 = vmatpush1.bf16.msra.mxu0 %v1204
        %1844 = vmatprep.subr.bf16.mxu0 0
        %1845 = vmatpush1.bf16.msra.mxu0 %v1205
        %1846 = vmatprep.subr.bf16.mxu0 0
        %1847 = vmatpush1.bf16.msra.mxu0 %v1206
        %1848 = vmatprep.subr.bf16.mxu0 0
        %1849 = vmatpush1.bf16.msra.mxu0 %v1207
        %1850 = vmatprep.subr.bf16.mxu0 0
        %1851 = vmatpush1.bf16.msra.mxu0 %v1208
        %1852 = vmatprep.subr.bf16.mxu0 0
        %1853 = vmatpush1.bf16.msra.mxu0 %v1209
        %1854 = vmatprep.subr.bf16.mxu0 0
        %1855 = vmatpush1.bf16.msra.mxu0 %v1210
        %1856 = vmatprep.subr.bf16.mxu0 0
        %1857 = vmatpush1.bf16.msra.mxu0 %v1211
        %1858 = vmatprep.subr.bf16.mxu0 0
        %1859 = vmatpush1.bf16.msra.mxu0 %v1212
        %1860 = vmatprep.subr.bf16.mxu0 0
        %1861 = vmatpush1.bf16.msra.mxu0 %v1213
        %1862 = vmatprep.subr.bf16.mxu0 0
        %1863 = vmatpush1.bf16.msra.mxu0 %v1214
        %1864 = vmatprep.subr.bf16.mxu0 0
        %1865 = vmatpush1.bf16.msra.mxu0 %v1215
        %1866 = vmatprep.subr.bf16.mxu0 0
        %1867 = vmatpush1.bf16.msra.mxu0 %v1216
        %1868 = vmatprep.subr.bf16.mxu0 0
        %1869 = vmatpush1.bf16.msra.mxu0 %v1217
        %1870 = vmatprep.mubr.bf16.mxu0 %v1831
        %1871 = vmatmul.mubr.bf16.gmra.mrb[0].mxu0 %v1830
        %v1872 = vpop.f32.mrb[0].mxu0
        %v1873 = vadd.f32 0.0, %v1872
        %v1874 = vpop.f32.mrb[0].mxu0
        %v1875 = vpop.f32.mrb[0].mxu0
        %v1876 = vpop.f32.mrb[0].mxu0
        %1877 = vdwg.mxu0
        %1878 = vmatprep.subr.bf16.mxu0 0
        %1879 = vmatpush1.bf16.msra.mxu0 %v1218
        %1880 = vmatprep.subr.bf16.mxu0 0
        %1881 = vmatpush1.bf16.msra.mxu0 %v1219
        %1882 = vmatprep.subr.bf16.mxu0 0
        %1883 = vmatpush1.bf16.msra.mxu0 %v1220
        %1884 = vmatprep.subr.bf16.mxu0 0
        %1885 = vmatpush1.bf16.msra.mxu0 %v1221
        %1886 = vmatprep.subr.bf16.mxu0 0
        %1887 = vmatpush1.bf16.msra.mxu0 %v1222
        %1888 = vmatprep.subr.bf16.mxu0 0
        %1889 = vmatpush1.bf16.msra.mxu0 %v1223
        %1890 = vmatprep.subr.bf16.mxu0 0
        %1891 = vmatpush1.bf16.msra.mxu0 %v1224
        %1892 = vmatprep.subr.bf16.mxu0 0
        %1893 = vmatpush1.bf16.msra.mxu0 %v1225
        %1894 = vmatprep.subr.bf16.mxu0 0
        %1895 = vmatpush1.bf16.msra.mxu0 %v1226
        %1896 = vmatprep.subr.bf16.mxu0 0
        %1897 = vmatpush1.bf16.msra.mxu0 %v1227
        %1898 = vmatprep.subr.bf16.mxu0 0
        %1899 = vmatpush1.bf16.msra.mxu0 %v1228
        %1900 = vmatprep.subr.bf16.mxu0 0
        %1901 = vmatpush1.bf16.msra.mxu0 %v1229
        %1902 = vmatprep.subr.bf16.mxu0 0
        %1903 = vmatpush1.bf16.msra.mxu0 %v1230
        %1904 = vmatprep.subr.bf16.mxu0 0
        %1905 = vmatpush1.bf16.msra.mxu0 %v1231
        %1906 = vmatprep.subr.bf16.mxu0 0
        %1907 = vmatpush1.bf16.msra.mxu0 %v1232
        %1908 = vmatprep.subr.bf16.mxu0 0
        %1909 = vmatpush1.bf16.msra.mxu0 %v1233
        %1910 = vmatprep.mubr.bf16.mxu0 %v1833
        %1911 = vmatmul.mubr.bf16.gmra.mrb[0].mxu0 %v1832
        %v1912 = vpop.f32.mrb[0].mxu0
        %v1913 = vadd.f32 %v1873, %v1912
        %v1914 = vpop.f32.mrb[0].mxu0
        %v1915 = vpop.f32.mrb[0].mxu0
        %v1916 = vpop.f32.mrb[0].mxu0
        %1917 = vdwg.mxu0
        %v1918 = vadd.f32 %v1819, %v1913
        %v1920 = vshrl.u32 %v1830, 16
        %v1922 = vshll.u32 %v1830, 16
        %v1924 = vrot.slane %v1922, 1
        %v1925 = vor.u32 %v1920, %v1924
        %v1927 = vshrl.u32 %v1831, 16
        %v1929 = vshll.u32 %v1831, 16
        %v1931 = vrot.slane %v1929, 1
        %v1932 = vor.u32 %v1927, %v1931
        %v1934 = vshrl.u32 %v1832, 16
        %v1936 = vshll.u32 %v1832, 16
        %v1938 = vrot.slane %v1936, 1
        %v1939 = vor.u32 %v1934, %v1938
        %v1941 = vshrl.u32 %v1833, 16
        %v1943 = vshll.u32 %v1833, 16
        %v1945 = vrot.slane %v1943, 1
        %v1946 = vor.u32 %v1941, %v1945
        %1951 = vmatprep.subr.bf16.mxu0 0
        %1952 = vmatpush1.bf16.msra.mxu0 %v1507
        %1953 = vmatprep.subr.bf16.mxu0 0
        %1954 = vmatpush1.bf16.msra.mxu0 %v1508
        %1955 = vmatprep.subr.bf16.mxu0 0
        %1956 = vmatpush1.bf16.msra.mxu0 %v1509
        %1957 = vmatprep.subr.bf16.mxu0 0
        %1958 = vmatpush1.bf16.msra.mxu0 %v1510
        %1959 = vmatprep.subr.bf16.mxu0 0
        %1960 = vmatpush1.bf16.msra.mxu0 %v1511
        %1961 = vmatprep.subr.bf16.mxu0 0
        %1962 = vmatpush1.bf16.msra.mxu0 %v1512
        %1963 = vmatprep.subr.bf16.mxu0 0
        %1964 = vmatpush1.bf16.msra.mxu0 %v1513
        %1965 = vmatprep.subr.bf16.mxu0 0
        %1966 = vmatpush1.bf16.msra.mxu0 %v1514
        %1967 = vmatprep.subr.bf16.mxu0 0
        %1968 = vmatpush1.bf16.msra.mxu0 %v1515
        %1969 = vmatprep.subr.bf16.mxu0 0
        %1970 = vmatpush1.bf16.msra.mxu0 %v1516
        %1971 = vmatprep.subr.bf16.mxu0 0
        %1972 = vmatpush1.bf16.msra.mxu0 %v1517
        %1973 = vmatprep.subr.bf16.mxu0 0
        %1974 = vmatpush1.bf16.msra.mxu0 %v1518
        %1975 = vmatprep.subr.bf16.mxu0 0
        %1976 = vmatpush1.bf16.msra.mxu0 %v1519
        %1977 = vmatprep.subr.bf16.mxu0 0
        %1978 = vmatpush1.bf16.msra.mxu0 %v1520
        %1979 = vmatprep.subr.bf16.mxu0 0
        %1980 = vmatpush1.bf16.msra.mxu0 %v1521
        %1981 = vmatprep.subr.bf16.mxu0 0
        %1982 = vmatpush1.bf16.msra.mxu0 %v1522
        %1983 = vmatprep.mubr.bf16.mxu0 %v1932
        %1984 = vmatmul.mubr.bf16.gmra.mrb[0].mxu0 %v1925
        %v1985 = vpop.f32.mrb[0].mxu0
        %v1986 = vadd.f32 0.0, %v1985
        %v1987 = vpop.f32.mrb[0].mxu0
        %v1988 = vpop.f32.mrb[0].mxu0
        %v1989 = vpop.f32.mrb[0].mxu0
        %1990 = vdwg.mxu0
        %1991 = vmatprep.subr.bf16.mxu0 0
        %1992 = vmatpush1.bf16.msra.mxu0 %v1523
        %1993 = vmatprep.subr.bf16.mxu0 0
        %1994 = vmatpush1.bf16.msra.mxu0 %v1524
        %1995 = vmatprep.subr.bf16.mxu0 0
        %1996 = vmatpush1.bf16.msra.mxu0 %v1525
        %1997 = vmatprep.subr.bf16.mxu0 0
        %1998 = vmatpush1.bf16.msra.mxu0 %v1526
        %1999 = vmatprep.subr.bf16.mxu0 0
        %2000 = vmatpush1.bf16.msra.mxu0 %v1527
        %2001 = vmatprep.subr.bf16.mxu0 0
        %2002 = vmatpush1.bf16.msra.mxu0 %v1528
        %2003 = vmatprep.subr.bf16.mxu0 0
        %2004 = vmatpush1.bf16.msra.mxu0 %v1529
        %2005 = vmatprep.subr.bf16.mxu0 0
        %2006 = vmatpush1.bf16.msra.mxu0 %v1530
        %2007 = vmatprep.subr.bf16.mxu0 0
        %2008 = vmatpush1.bf16.msra.mxu0 %v1531
        %2009 = vmatprep.subr.bf16.mxu0 0
        %2010 = vmatpush1.bf16.msra.mxu0 %v1532
        %2011 = vmatprep.subr.bf16.mxu0 0
        %2012 = vmatpush1.bf16.msra.mxu0 %v1533
        %2013 = vmatprep.subr.bf16.mxu0 0
        %2014 = vmatpush1.bf16.msra.mxu0 %v1534
        %2015 = vmatprep.subr.bf16.mxu0 0
        %2016 = vmatpush1.bf16.msra.mxu0 %v1535
        %2017 = vmatprep.subr.bf16.mxu0 0
        %2018 = vmatpush1.bf16.msra.mxu0 %v1536
        %2019 = vmatprep.subr.bf16.mxu0 0
        %2020 = vmatpush1.bf16.msra.mxu0 %v1537
        %2021 = vmatprep.subr.bf16.mxu0 0
        %2022 = vmatpush1.bf16.msra.mxu0 %v1538
        %2023 = vmatprep.mubr.bf16.mxu0 %v1946
        %2024 = vmatmul.mubr.bf16.gmra.mrb[0].mxu0 %v1939
        %v2025 = vpop.f32.mrb[0].mxu0
        %v2026 = vadd.f32 %v1986, %v2025
        %v2027 = vpop.f32.mrb[0].mxu0
        %v2028 = vpop.f32.mrb[0].mxu0
        %v2029 = vpop.f32.mrb[0].mxu0
        %2030 = vdwg.mxu0
        %v2031 = vadd.f32 %v1918, %v2026
        %v2032 = vadd.f32 %v2031, %v1656
        %vm2033 = vcmp.ge.f32.partialorder %v2032, 0.0
        %v2034 = vmul.f32 %v2032, 0.01
        %v2035 = vsel %vm2033, %v2032, %v2034
        %v2036 = vpack.c.bf16 %v2035, %v2035
        %v2038 = vunpack.c.l.b16 %v2036
        %v2039 = vpack.c.b16 %v2038, %v2038
        %v2040 = vrot.slane %v2039, 6
        %2042 = vst [vmem:[%s198] sm:$0xc] %v2040
        %2043 = vmatprep.subr.bf16.mxu0 0
        %2044 = vmatpush1.bf16.msra.mxu0 %v640
        %2045 = vmatprep.subr.bf16.mxu0 0
        %2046 = vmatpush1.bf16.msra.mxu0 %v641
        %2047 = vmatprep.subr.bf16.mxu0 0
        %2048 = vmatpush1.bf16.msra.mxu0 %v642
        %2049 = vmatprep.subr.bf16.mxu0 0
        %2050 = vmatpush1.bf16.msra.mxu0 %v643
        %2051 = vmatprep.subr.bf16.mxu0 0
        %2052 = vmatpush1.bf16.msra.mxu0 %v644
        %2053 = vmatprep.subr.bf16.mxu0 0
        %2054 = vmatpush1.bf16.msra.mxu0 %v645
        %2055 = vmatprep.subr.bf16.mxu0 0
        %2056 = vmatpush1.bf16.msra.mxu0 %v646
        %2057 = vmatprep.subr.bf16.mxu0 0
        %2058 = vmatpush1.bf16.msra.mxu0 %v647
        %2059 = vmatprep.subr.bf16.mxu0 0
        %2060 = vmatpush1.bf16.msra.mxu0 %v648
        %2061 = vmatprep.subr.bf16.mxu0 0
        %2062 = vmatpush1.bf16.msra.mxu0 %v649
        %2063 = vmatprep.subr.bf16.mxu0 0
        %2064 = vmatpush1.bf16.msra.mxu0 %v650
        %2065 = vmatprep.subr.bf16.mxu0 0
        %2066 = vmatpush1.bf16.msra.mxu0 %v651
        %2067 = vmatprep.subr.bf16.mxu0 0
        %2068 = vmatpush1.bf16.msra.mxu0 %v652
        %2069 = vmatprep.subr.bf16.mxu0 0
        %2070 = vmatpush1.bf16.msra.mxu0 %v653
        %2071 = vmatprep.subr.bf16.mxu0 0
        %2072 = vmatpush1.bf16.msra.mxu0 %v654
        %2073 = vmatprep.subr.bf16.mxu0 0
        %2074 = vmatpush1.bf16.msra.mxu0 %v655
        %2075 = vmatprep.mubr.bf16.mxu0 %v1932
        %2076 = vmatmul.mubr.bf16.gmra.mrb[0].mxu0 %v1925
        %v2077 = vpop.f32.mrb[0].mxu0
        %v2078 = vadd.f32 0.0, %v2077
        %v2079 = vpop.f32.mrb[0].mxu0
        %v2080 = vpop.f32.mrb[0].mxu0
        %v2081 = vpop.f32.mrb[0].mxu0
        %2082 = vdwg.mxu0
        %2083 = vmatprep.subr.bf16.mxu0 0
        %2084 = vmatpush1.bf16.msra.mxu0 %v656
        %2085 = vmatprep.subr.bf16.mxu0 0
        %2086 = vmatpush1.bf16.msra.mxu0 %v657
        %2087 = vmatprep.subr.bf16.mxu0 0
        %2088 = vmatpush1.bf16.msra.mxu0 %v658
        %2089 = vmatprep.subr.bf16.mxu0 0
        %2090 = vmatpush1.bf16.msra.mxu0 %v659
        %2091 = vmatprep.subr.bf16.mxu0 0
        %2092 = vmatpush1.bf16.msra.mxu0 %v660
        %2093 = vmatprep.subr.bf16.mxu0 0
        %2094 = vmatpush1.bf16.msra.mxu0 %v661
        %2095 = vmatprep.subr.bf16.mxu0 0
        %2096 = vmatpush1.bf16.msra.mxu0 %v662
        %2097 = vmatprep.subr.bf16.mxu0 0
        %2098 = vmatpush1.bf16.msra.mxu0 %v663
        %2099 = vmatprep.subr.bf16.mxu0 0
        %2100 = vmatpush1.bf16.msra.mxu0 %v664
        %2101 = vmatprep.subr.bf16.mxu0 0
        %2102 = vmatpush1.bf16.msra.mxu0 %v665
        %2103 = vmatprep.subr.bf16.mxu0 0
        %2104 = vmatpush1.bf16.msra.mxu0 %v666
        %2105 = vmatprep.subr.bf16.mxu0 0
        %2106 = vmatpush1.bf16.msra.mxu0 %v667
        %2107 = vmatprep.subr.bf16.mxu0 0
        %2108 = vmatpush1.bf16.msra.mxu0 %v668
        %2109 = vmatprep.subr.bf16.mxu0 0
        %2110 = vmatpush1.bf16.msra.mxu0 %v669
        %2111 = vmatprep.subr.bf16.mxu0 0
        %2112 = vmatpush1.bf16.msra.mxu0 %v670
        %2113 = vmatprep.subr.bf16.mxu0 0
        %2114 = vmatpush1.bf16.msra.mxu0 %v671
        %2115 = vmatprep.mubr.bf16.mxu0 %v1946
        %2116 = vmatmul.mubr.bf16.gmra.mrb[0].mxu0 %v1939
        %v2117 = vpop.f32.mrb[0].mxu0
        %v2118 = vadd.f32 %v2078, %v2117
        %v2119 = vpop.f32.mrb[0].mxu0
        %v2120 = vpop.f32.mrb[0].mxu0
        %v2121 = vpop.f32.mrb[0].mxu0
        %2122 = vdwg.mxu0
        %2123 = vmatprep.subr.bf16.mxu0 0
        %2124 = vmatpush1.bf16.msra.mxu0 %v916
        %2125 = vmatprep.subr.bf16.mxu0 0
        %2126 = vmatpush1.bf16.msra.mxu0 %v917
        %2127 = vmatprep.subr.bf16.mxu0 0
        %2128 = vmatpush1.bf16.msra.mxu0 %v918
        %2129 = vmatprep.subr.bf16.mxu0 0
        %2130 = vmatpush1.bf16.msra.mxu0 %v919
        %2131 = vmatprep.subr.bf16.mxu0 0
        %2132 = vmatpush1.bf16.msra.mxu0 %v920
        %2133 = vmatprep.subr.bf16.mxu0 0
        %2134 = vmatpush1.bf16.msra.mxu0 %v921
        %2135 = vmatprep.subr.bf16.mxu0 0
        %2136 = vmatpush1.bf16.msra.mxu0 %v922
        %2137 = vmatprep.subr.bf16.mxu0 0
        %2138 = vmatpush1.bf16.msra.mxu0 %v923
        %2139 = vmatprep.subr.bf16.mxu0 0
        %2140 = vmatpush1.bf16.msra.mxu0 %v924
        %2141 = vmatprep.subr.bf16.mxu0 0
        %2142 = vmatpush1.bf16.msra.mxu0 %v925
        %2143 = vmatprep.subr.bf16.mxu0 0
        %2144 = vmatpush1.bf16.msra.mxu0 %v926
        %2145 = vmatprep.subr.bf16.mxu0 0
        %2146 = vmatpush1.bf16.msra.mxu0 %v927
        %2147 = vmatprep.subr.bf16.mxu0 0
        %2148 = vmatpush1.bf16.msra.mxu0 %v928
        %2149 = vmatprep.subr.bf16.mxu0 0
        %2150 = vmatpush1.bf16.msra.mxu0 %v929
        %2151 = vmatprep.subr.bf16.mxu0 0
        %2152 = vmatpush1.bf16.msra.mxu0 %v930
        %2153 = vmatprep.subr.bf16.mxu0 0
        %2154 = vmatpush1.bf16.msra.mxu0 %v931
        %2155 = vmatprep.mubr.bf16.mxu0 %v1831
        %2156 = vmatmul.mubr.bf16.gmra.mrb[0].mxu0 %v1830
        %v2157 = vpop.f32.mrb[0].mxu0
        %v2158 = vadd.f32 %v2118, %v2157
        %v2159 = vpop.f32.mrb[0].mxu0
        %v2160 = vpop.f32.mrb[0].mxu0
        %v2161 = vpop.f32.mrb[0].mxu0
        %2162 = vdwg.mxu0
        %2163 = vmatprep.subr.bf16.mxu0 0
        %2164 = vmatpush1.bf16.msra.mxu0 %v932
        %2165 = vmatprep.subr.bf16.mxu0 0
        %2166 = vmatpush1.bf16.msra.mxu0 %v933
        %2167 = vmatprep.subr.bf16.mxu0 0
        %2168 = vmatpush1.bf16.msra.mxu0 %v934
        %2169 = vmatprep.subr.bf16.mxu0 0
        %2170 = vmatpush1.bf16.msra.mxu0 %v935
        %2171 = vmatprep.subr.bf16.mxu0 0
        %2172 = vmatpush1.bf16.msra.mxu0 %v936
        %2173 = vmatprep.subr.bf16.mxu0 0
        %2174 = vmatpush1.bf16.msra.mxu0 %v937
        %2175 = vmatprep.subr.bf16.mxu0 0
        %2176 = vmatpush1.bf16.msra.mxu0 %v938
        %2177 = vmatprep.subr.bf16.mxu0 0
        %2178 = vmatpush1.bf16.msra.mxu0 %v939
        %2179 = vmatprep.subr.bf16.mxu0 0
        %2180 = vmatpush1.bf16.msra.mxu0 %v940
        %2181 = vmatprep.subr.bf16.mxu0 0
        %2182 = vmatpush1.bf16.msra.mxu0 %v941
        %2183 = vmatprep.subr.bf16.mxu0 0
        %2184 = vmatpush1.bf16.msra.mxu0 %v942
        %2185 = vmatprep.subr.bf16.mxu0 0
        %2186 = vmatpush1.bf16.msra.mxu0 %v943
        %2187 = vmatprep.subr.bf16.mxu0 0
        %2188 = vmatpush1.bf16.msra.mxu0 %v944
        %2189 = vmatprep.subr.bf16.mxu0 0
        %2190 = vmatpush1.bf16.msra.mxu0 %v945
        %2191 = vmatprep.subr.bf16.mxu0 0
        %2192 = vmatpush1.bf16.msra.mxu0 %v946
        %2193 = vmatprep.subr.bf16.mxu0 0
        %2194 = vmatpush1.bf16.msra.mxu0 %v947
        %2195 = vmatprep.mubr.bf16.mxu0 %v1833
        %2196 = vmatmul.mubr.bf16.gmra.mrb[0].mxu0 %v1832
        %v2197 = vpop.f32.mrb[0].mxu0
        %v2198 = vadd.f32 %v2158, %v2197
        %v2199 = vpop.f32.mrb[0].mxu0
        %v2200 = vpop.f32.mrb[0].mxu0
        %v2201 = vpop.f32.mrb[0].mxu0
        %2202 = vdwg.mxu0
        %v2205 = vunpack.c.l.b16 %v206
        %v2206 = vunpack.c.h.b16 %v206
        %v2207 = vunpack.c.l.b16 %v207
        %v2208 = vunpack.c.h.b16 %v207
        %v2209 = vpack.c.b16 %v2205, %v2205
        %v2210 = vpack.c.b16 %v2206, %v2206
        %v2211 = vpack.c.b16 %v2207, %v2207
        %v2212 = vpack.c.b16 %v2208, %v2208
        %2217 = vmatprep.subr.bf16.mxu0 0
        %2218 = vmatpush1.bf16.msra.mxu0 %v1202
        %2219 = vmatprep.subr.bf16.mxu0 0
        %2220 = vmatpush1.bf16.msra.mxu0 %v1203
        %2221 = vmatprep.subr.bf16.mxu0 0
        %2222 = vmatpush1.bf16.msra.mxu0 %v1204
        %2223 = vmatprep.subr.bf16.mxu0 0
        %2224 = vmatpush1.bf16.msra.mxu0 %v1205
        %2225 = vmatprep.subr.bf16.mxu0 0
        %2226 = vmatpush1.bf16.msra.mxu0 %v1206
        %2227 = vmatprep.subr.bf16.mxu0 0
        %2228 = vmatpush1.bf16.msra.mxu0 %v1207
        %2229 = vmatprep.subr.bf16.mxu0 0
        %2230 = vmatpush1.bf16.msra.mxu0 %v1208
        %2231 = vmatprep.subr.bf16.mxu0 0
        %2232 = vmatpush1.bf16.msra.mxu0 %v1209
        %2233 = vmatprep.subr.bf16.mxu0 0
        %2234 = vmatpush1.bf16.msra.mxu0 %v1210
        %2235 = vmatprep.subr.bf16.mxu0 0
        %2236 = vmatpush1.bf16.msra.mxu0 %v1211
        %2237 = vmatprep.subr.bf16.mxu0 0
        %2238 = vmatpush1.bf16.msra.mxu0 %v1212
        %2239 = vmatprep.subr.bf16.mxu0 0
        %2240 = vmatpush1.bf16.msra.mxu0 %v1213
        %2241 = vmatprep.subr.bf16.mxu0 0
        %2242 = vmatpush1.bf16.msra.mxu0 %v1214
        %2243 = vmatprep.subr.bf16.mxu0 0
        %2244 = vmatpush1.bf16.msra.mxu0 %v1215
        %2245 = vmatprep.subr.bf16.mxu0 0
        %2246 = vmatpush1.bf16.msra.mxu0 %v1216
        %2247 = vmatprep.subr.bf16.mxu0 0
        %2248 = vmatpush1.bf16.msra.mxu0 %v1217
        %2249 = vmatprep.mubr.bf16.mxu0 %v2210
        %2250 = vmatmul.mubr.bf16.gmra.mrb[0].mxu0 %v2209
        %v2251 = vpop.f32.mrb[0].mxu0
        %v2252 = vadd.f32 0.0, %v2251
        %v2253 = vpop.f32.mrb[0].mxu0
        %v2254 = vpop.f32.mrb[0].mxu0
        %v2255 = vpop.f32.mrb[0].mxu0
        %2256 = vdwg.mxu0
        %2257 = vmatprep.subr.bf16.mxu0 0
        %2258 = vmatpush1.bf16.msra.mxu0 %v1218
        %2259 = vmatprep.subr.bf16.mxu0 0
        %2260 = vmatpush1.bf16.msra.mxu0 %v1219
        %2261 = vmatprep.subr.bf16.mxu0 0
        %2262 = vmatpush1.bf16.msra.mxu0 %v1220
        %2263 = vmatprep.subr.bf16.mxu0 0
        %2264 = vmatpush1.bf16.msra.mxu0 %v1221
        %2265 = vmatprep.subr.bf16.mxu0 0
        %2266 = vmatpush1.bf16.msra.mxu0 %v1222
        %2267 = vmatprep.subr.bf16.mxu0 0
        %2268 = vmatpush1.bf16.msra.mxu0 %v1223
        %2269 = vmatprep.subr.bf16.mxu0 0
        %2270 = vmatpush1.bf16.msra.mxu0 %v1224
        %2271 = vmatprep.subr.bf16.mxu0 0
        %2272 = vmatpush1.bf16.msra.mxu0 %v1225
        %2273 = vmatprep.subr.bf16.mxu0 0
        %2274 = vmatpush1.bf16.msra.mxu0 %v1226
        %2275 = vmatprep.subr.bf16.mxu0 0
        %2276 = vmatpush1.bf16.msra.mxu0 %v1227
        %2277 = vmatprep.subr.bf16.mxu0 0
        %2278 = vmatpush1.bf16.msra.mxu0 %v1228
        %2279 = vmatprep.subr.bf16.mxu0 0
        %2280 = vmatpush1.bf16.msra.mxu0 %v1229
        %2281 = vmatprep.subr.bf16.mxu0 0
        %2282 = vmatpush1.bf16.msra.mxu0 %v1230
        %2283 = vmatprep.subr.bf16.mxu0 0
        %2284 = vmatpush1.bf16.msra.mxu0 %v1231
        %2285 = vmatprep.subr.bf16.mxu0 0
        %2286 = vmatpush1.bf16.msra.mxu0 %v1232
        %2287 = vmatprep.subr.bf16.mxu0 0
        %2288 = vmatpush1.bf16.msra.mxu0 %v1233
        %2289 = vmatprep.mubr.bf16.mxu0 %v2212
        %2290 = vmatmul.mubr.bf16.gmra.mrb[0].mxu0 %v2211
        %v2291 = vpop.f32.mrb[0].mxu0
        %v2292 = vadd.f32 %v2252, %v2291
        %v2293 = vpop.f32.mrb[0].mxu0
        %v2294 = vpop.f32.mrb[0].mxu0
        %v2295 = vpop.f32.mrb[0].mxu0
        %2296 = vdwg.mxu0
        %v2297 = vadd.f32 %v2198, %v2292
        %v2299 = vshrl.u32 %v2209, 16
        %v2301 = vshll.u32 %v2209, 16
        %v2303 = vrot.slane %v2301, 1
        %v2304 = vor.u32 %v2299, %v2303
        %v2306 = vshrl.u32 %v2210, 16
        %v2308 = vshll.u32 %v2210, 16
        %v2310 = vrot.slane %v2308, 1
        %v2311 = vor.u32 %v2306, %v2310
        %v2313 = vshrl.u32 %v2211, 16
        %v2315 = vshll.u32 %v2211, 16
        %v2317 = vrot.slane %v2315, 1
        %v2318 = vor.u32 %v2313, %v2317
        %v2320 = vshrl.u32 %v2212, 16
        %v2322 = vshll.u32 %v2212, 16
        %v2324 = vrot.slane %v2322, 1
        %v2325 = vor.u32 %v2320, %v2324
        %2330 = vmatprep.subr.bf16.mxu0 0
        %2331 = vmatpush1.bf16.msra.mxu0 %v1507
        %2332 = vmatprep.subr.bf16.mxu0 0
        %2333 = vmatpush1.bf16.msra.mxu0 %v1508
        %2334 = vmatprep.subr.bf16.mxu0 0
        %2335 = vmatpush1.bf16.msra.mxu0 %v1509
        %2336 = vmatprep.subr.bf16.mxu0 0
        %2337 = vmatpush1.bf16.msra.mxu0 %v1510
        %2338 = vmatprep.subr.bf16.mxu0 0
        %2339 = vmatpush1.bf16.msra.mxu0 %v1511
        %2340 = vmatprep.subr.bf16.mxu0 0
        %2341 = vmatpush1.bf16.msra.mxu0 %v1512
        %2342 = vmatprep.subr.bf16.mxu0 0
        %2343 = vmatpush1.bf16.msra.mxu0 %v1513
        %2344 = vmatprep.subr.bf16.mxu0 0
        %2345 = vmatpush1.bf16.msra.mxu0 %v1514
        %2346 = vmatprep.subr.bf16.mxu0 0
        %2347 = vmatpush1.bf16.msra.mxu0 %v1515
        %2348 = vmatprep.subr.bf16.mxu0 0
        %2349 = vmatpush1.bf16.msra.mxu0 %v1516
        %2350 = vmatprep.subr.bf16.mxu0 0
        %2351 = vmatpush1.bf16.msra.mxu0 %v1517
        %2352 = vmatprep.subr.bf16.mxu0 0
        %2353 = vmatpush1.bf16.msra.mxu0 %v1518
        %2354 = vmatprep.subr.bf16.mxu0 0
        %2355 = vmatpush1.bf16.msra.mxu0 %v1519
        %2356 = vmatprep.subr.bf16.mxu0 0
        %2357 = vmatpush1.bf16.msra.mxu0 %v1520
        %2358 = vmatprep.subr.bf16.mxu0 0
        %2359 = vmatpush1.bf16.msra.mxu0 %v1521
        %2360 = vmatprep.subr.bf16.mxu0 0
        %2361 = vmatpush1.bf16.msra.mxu0 %v1522
        %2362 = vmatprep.mubr.bf16.mxu0 %v2311
        %2363 = vmatmul.mubr.bf16.gmra.mrb[0].mxu0 %v2304
        %v2364 = vpop.f32.mrb[0].mxu0
        %v2365 = vadd.f32 0.0, %v2364
        %v2366 = vpop.f32.mrb[0].mxu0
        %v2367 = vpop.f32.mrb[0].mxu0
        %v2368 = vpop.f32.mrb[0].mxu0
        %2369 = vdwg.mxu0
        %2370 = vmatprep.subr.bf16.mxu0 0
        %2371 = vmatpush1.bf16.msra.mxu0 %v1523
        %2372 = vmatprep.subr.bf16.mxu0 0
        %2373 = vmatpush1.bf16.msra.mxu0 %v1524
        %2374 = vmatprep.subr.bf16.mxu0 0
        %2375 = vmatpush1.bf16.msra.mxu0 %v1525
        %2376 = vmatprep.subr.bf16.mxu0 0
        %2377 = vmatpush1.bf16.msra.mxu0 %v1526
        %2378 = vmatprep.subr.bf16.mxu0 0
        %2379 = vmatpush1.bf16.msra.mxu0 %v1527
        %2380 = vmatprep.subr.bf16.mxu0 0
        %2381 = vmatpush1.bf16.msra.mxu0 %v1528
        %2382 = vmatprep.subr.bf16.mxu0 0
        %2383 = vmatpush1.bf16.msra.mxu0 %v1529
        %2384 = vmatprep.subr.bf16.mxu0 0
        %2385 = vmatpush1.bf16.msra.mxu0 %v1530
        %2386 = vmatprep.subr.bf16.mxu0 0
        %2387 = vmatpush1.bf16.msra.mxu0 %v1531
        %2388 = vmatprep.subr.bf16.mxu0 0
        %2389 = vmatpush1.bf16.msra.mxu0 %v1532
        %2390 = vmatprep.subr.bf16.mxu0 0
        %2391 = vmatpush1.bf16.msra.mxu0 %v1533
        %2392 = vmatprep.subr.bf16.mxu0 0
        %2393 = vmatpush1.bf16.msra.mxu0 %v1534
        %2394 = vmatprep.subr.bf16.mxu0 0
        %2395 = vmatpush1.bf16.msra.mxu0 %v1535
        %2396 = vmatprep.subr.bf16.mxu0 0
        %2397 = vmatpush1.bf16.msra.mxu0 %v1536
        %2398 = vmatprep.subr.bf16.mxu0 0
        %2399 = vmatpush1.bf16.msra.mxu0 %v1537
        %2400 = vmatprep.subr.bf16.mxu0 0
        %2401 = vmatpush1.bf16.msra.mxu0 %v1538
        %2402 = vmatprep.mubr.bf16.mxu0 %v2325
        %2403 = vmatmul.mubr.bf16.gmra.mrb[0].mxu0 %v2318
        %v2404 = vpop.f32.mrb[0].mxu0
        %v2405 = vadd.f32 %v2365, %v2404
        %v2406 = vpop.f32.mrb[0].mxu0
        %v2407 = vpop.f32.mrb[0].mxu0
        %v2408 = vpop.f32.mrb[0].mxu0
        %2409 = vdwg.mxu0
        %v2410 = vadd.f32 %v2297, %v2405
        %v2411 = vadd.f32 %v2410, %v1656
        %vm2412 = vcmp.ge.f32.partialorder %v2411, 0.0
        %v2413 = vmul.f32 %v2411, 0.01
        %v2414 = vsel %vm2412, %v2411, %v2413
        %v2415 = vpack.c.bf16 %v2414, %v2414
        %2416 = vst [vmem:[%s198 + $0x4] sm:$0x3] %v2415
        %2417 = vmatprep.subr.bf16.mxu0 0
        %2418 = vmatpush1.bf16.msra.mxu0 %v640
        %2419 = vmatprep.subr.bf16.mxu0 0
        %2420 = vmatpush1.bf16.msra.mxu0 %v641
        %2421 = vmatprep.subr.bf16.mxu0 0
        %2422 = vmatpush1.bf16.msra.mxu0 %v642
        %2423 = vmatprep.subr.bf16.mxu0 0
        %2424 = vmatpush1.bf16.msra.mxu0 %v643
        %2425 = vmatprep.subr.bf16.mxu0 0
        %2426 = vmatpush1.bf16.msra.mxu0 %v644
        %2427 = vmatprep.subr.bf16.mxu0 0
        %2428 = vmatpush1.bf16.msra.mxu0 %v645
        %2429 = vmatprep.subr.bf16.mxu0 0
        %2430 = vmatpush1.bf16.msra.mxu0 %v646
        %2431 = vmatprep.subr.bf16.mxu0 0
        %2432 = vmatpush1.bf16.msra.mxu0 %v647
        %2433 = vmatprep.subr.bf16.mxu0 0
        %2434 = vmatpush1.bf16.msra.mxu0 %v648
        %2435 = vmatprep.subr.bf16.mxu0 0
        %2436 = vmatpush1.bf16.msra.mxu0 %v649
        %2437 = vmatprep.subr.bf16.mxu0 0
        %2438 = vmatpush1.bf16.msra.mxu0 %v650
        %2439 = vmatprep.subr.bf16.mxu0 0
        %2440 = vmatpush1.bf16.msra.mxu0 %v651
        %2441 = vmatprep.subr.bf16.mxu0 0
        %2442 = vmatpush1.bf16.msra.mxu0 %v652
        %2443 = vmatprep.subr.bf16.mxu0 0
        %2444 = vmatpush1.bf16.msra.mxu0 %v653
        %2445 = vmatprep.subr.bf16.mxu0 0
        %2446 = vmatpush1.bf16.msra.mxu0 %v654
        %2447 = vmatprep.subr.bf16.mxu0 0
        %2448 = vmatpush1.bf16.msra.mxu0 %v655
        %2449 = vmatprep.mubr.bf16.mxu0 %v2311
        %2450 = vmatmul.mubr.bf16.gmra.mrb[0].mxu0 %v2304
        %v2451 = vpop.f32.mrb[0].mxu0
        %v2452 = vadd.f32 0.0, %v2451
        %v2453 = vpop.f32.mrb[0].mxu0
        %v2454 = vpop.f32.mrb[0].mxu0
        %v2455 = vpop.f32.mrb[0].mxu0
        %2456 = vdwg.mxu0
        %2457 = vmatprep.subr.bf16.mxu0 0
        %2458 = vmatpush1.bf16.msra.mxu0 %v656
        %2459 = vmatprep.subr.bf16.mxu0 0
        %2460 = vmatpush1.bf16.msra.mxu0 %v657
        %2461 = vmatprep.subr.bf16.mxu0 0
        %2462 = vmatpush1.bf16.msra.mxu0 %v658
        %2463 = vmatprep.subr.bf16.mxu0 0
        %2464 = vmatpush1.bf16.msra.mxu0 %v659
        %2465 = vmatprep.subr.bf16.mxu0 0
        %2466 = vmatpush1.bf16.msra.mxu0 %v660
        %2467 = vmatprep.subr.bf16.mxu0 0
        %2468 = vmatpush1.bf16.msra.mxu0 %v661
        %2469 = vmatprep.subr.bf16.mxu0 0
        %2470 = vmatpush1.bf16.msra.mxu0 %v662
        %2471 = vmatprep.subr.bf16.mxu0 0
        %2472 = vmatpush1.bf16.msra.mxu0 %v663
        %2473 = vmatprep.subr.bf16.mxu0 0
        %2474 = vmatpush1.bf16.msra.mxu0 %v664
        %2475 = vmatprep.subr.bf16.mxu0 0
        %2476 = vmatpush1.bf16.msra.mxu0 %v665
        %2477 = vmatprep.subr.bf16.mxu0 0
        %2478 = vmatpush1.bf16.msra.mxu0 %v666
        %2479 = vmatprep.subr.bf16.mxu0 0
        %2480 = vmatpush1.bf16.msra.mxu0 %v667
        %2481 = vmatprep.subr.bf16.mxu0 0
        %2482 = vmatpush1.bf16.msra.mxu0 %v668
        %2483 = vmatprep.subr.bf16.mxu0 0
        %2484 = vmatpush1.bf16.msra.mxu0 %v669
        %2485 = vmatprep.subr.bf16.mxu0 0
        %2486 = vmatpush1.bf16.msra.mxu0 %v670
        %2487 = vmatprep.subr.bf16.mxu0 0
        %2488 = vmatpush1.bf16.msra.mxu0 %v671
        %2489 = vmatprep.mubr.bf16.mxu0 %v2325
        %2490 = vmatmul.mubr.bf16.gmra.mrb[0].mxu0 %v2318
        %v2491 = vpop.f32.mrb[0].mxu0
        %v2492 = vadd.f32 %v2452, %v2491
        %v2493 = vpop.f32.mrb[0].mxu0
        %v2494 = vpop.f32.mrb[0].mxu0
        %v2495 = vpop.f32.mrb[0].mxu0
        %2496 = vdwg.mxu0
        %2497 = vmatprep.subr.bf16.mxu0 0
        %2498 = vmatpush1.bf16.msra.mxu0 %v916
        %2499 = vmatprep.subr.bf16.mxu0 0
        %2500 = vmatpush1.bf16.msra.mxu0 %v917
        %2501 = vmatprep.subr.bf16.mxu0 0
        %2502 = vmatpush1.bf16.msra.mxu0 %v918
        %2503 = vmatprep.subr.bf16.mxu0 0
        %2504 = vmatpush1.bf16.msra.mxu0 %v919
        %2505 = vmatprep.subr.bf16.mxu0 0
        %2506 = vmatpush1.bf16.msra.mxu0 %v920
        %2507 = vmatprep.subr.bf16.mxu0 0
        %2508 = vmatpush1.bf16.msra.mxu0 %v921
        %2509 = vmatprep.subr.bf16.mxu0 0
        %2510 = vmatpush1.bf16.msra.mxu0 %v922
        %2511 = vmatprep.subr.bf16.mxu0 0
        %2512 = vmatpush1.bf16.msra.mxu0 %v923
        %2513 = vmatprep.subr.bf16.mxu0 0
        %2514 = vmatpush1.bf16.msra.mxu0 %v924
        %2515 = vmatprep.subr.bf16.mxu0 0
        %2516 = vmatpush1.bf16.msra.mxu0 %v925
        %2517 = vmatprep.subr.bf16.mxu0 0
        %2518 = vmatpush1.bf16.msra.mxu0 %v926
        %2519 = vmatprep.subr.bf16.mxu0 0
        %2520 = vmatpush1.bf16.msra.mxu0 %v927
        %2521 = vmatprep.subr.bf16.mxu0 0
        %2522 = vmatpush1.bf16.msra.mxu0 %v928
        %2523 = vmatprep.subr.bf16.mxu0 0
        %2524 = vmatpush1.bf16.msra.mxu0 %v929
        %2525 = vmatprep.subr.bf16.mxu0 0
        %2526 = vmatpush1.bf16.msra.mxu0 %v930
        %2527 = vmatprep.subr.bf16.mxu0 0
        %2528 = vmatpush1.bf16.msra.mxu0 %v931
        %2529 = vmatprep.mubr.bf16.mxu0 %v2210
        %2530 = vmatmul.mubr.bf16.gmra.mrb[0].mxu0 %v2209
        %v2531 = vpop.f32.mrb[0].mxu0
        %v2532 = vadd.f32 %v2492, %v2531
        %v2533 = vpop.f32.mrb[0].mxu0
        %v2534 = vpop.f32.mrb[0].mxu0
        %v2535 = vpop.f32.mrb[0].mxu0
        %2536 = vdwg.mxu0
        %2537 = vmatprep.subr.bf16.mxu0 0
        %2538 = vmatpush1.bf16.msra.mxu0 %v932
        %2539 = vmatprep.subr.bf16.mxu0 0
        %2540 = vmatpush1.bf16.msra.mxu0 %v933
        %2541 = vmatprep.subr.bf16.mxu0 0
        %2542 = vmatpush1.bf16.msra.mxu0 %v934
        %2543 = vmatprep.subr.bf16.mxu0 0
        %2544 = vmatpush1.bf16.msra.mxu0 %v935
        %2545 = vmatprep.subr.bf16.mxu0 0
        %2546 = vmatpush1.bf16.msra.mxu0 %v936
        %2547 = vmatprep.subr.bf16.mxu0 0
        %2548 = vmatpush1.bf16.msra.mxu0 %v937
        %2549 = vmatprep.subr.bf16.mxu0 0
        %2550 = vmatpush1.bf16.msra.mxu0 %v938
        %2551 = vmatprep.subr.bf16.mxu0 0
        %2552 = vmatpush1.bf16.msra.mxu0 %v939
        %2553 = vmatprep.subr.bf16.mxu0 0
        %2554 = vmatpush1.bf16.msra.mxu0 %v940
        %2555 = vmatprep.subr.bf16.mxu0 0
        %2556 = vmatpush1.bf16.msra.mxu0 %v941
        %2557 = vmatprep.subr.bf16.mxu0 0
        %2558 = vmatpush1.bf16.msra.mxu0 %v942
        %2559 = vmatprep.subr.bf16.mxu0 0
        %2560 = vmatpush1.bf16.msra.mxu0 %v943
        %2561 = vmatprep.subr.bf16.mxu0 0
        %2562 = vmatpush1.bf16.msra.mxu0 %v944
        %2563 = vmatprep.subr.bf16.mxu0 0
        %2564 = vmatpush1.bf16.msra.mxu0 %v945
        %2565 = vmatprep.subr.bf16.mxu0 0
        %2566 = vmatpush1.bf16.msra.mxu0 %v946
        %2567 = vmatprep.subr.bf16.mxu0 0
        %2568 = vmatpush1.bf16.msra.mxu0 %v947
        %2569 = vmatprep.mubr.bf16.mxu0 %v2212
        %2570 = vmatmul.mubr.bf16.gmra.mrb[0].mxu0 %v2211
        %v2571 = vpop.f32.mrb[0].mxu0
        %v2572 = vadd.f32 %v2532, %v2571
        %v2573 = vpop.f32.mrb[0].mxu0
        %v2574 = vpop.f32.mrb[0].mxu0
        %v2575 = vpop.f32.mrb[0].mxu0
        %2576 = vdwg.mxu0
        %v2579 = vunpack.c.l.b16 %v208
        %v2580 = vunpack.c.h.b16 %v208
        %v2581 = vunpack.c.l.b16 %v209
        %v2582 = vunpack.c.h.b16 %v209
        %v2583 = vpack.c.b16 %v2579, %v2579
        %v2584 = vpack.c.b16 %v2580, %v2580
        %v2585 = vpack.c.b16 %v2581, %v2581
        %v2586 = vpack.c.b16 %v2582, %v2582
        %2591 = vmatprep.subr.bf16.mxu0 0
        %2592 = vmatpush1.bf16.msra.mxu0 %v1202
        %2593 = vmatprep.subr.bf16.mxu0 0
        %2594 = vmatpush1.bf16.msra.mxu0 %v1203
        %2595 = vmatprep.subr.bf16.mxu0 0
        %2596 = vmatpush1.bf16.msra.mxu0 %v1204
        %2597 = vmatprep.subr.bf16.mxu0 0
        %2598 = vmatpush1.bf16.msra.mxu0 %v1205
        %2599 = vmatprep.subr.bf16.mxu0 0
        %2600 = vmatpush1.bf16.msra.mxu0 %v1206
        %2601 = vmatprep.subr.bf16.mxu0 0
        %2602 = vmatpush1.bf16.msra.mxu0 %v1207
        %2603 = vmatprep.subr.bf16.mxu0 0
        %2604 = vmatpush1.bf16.msra.mxu0 %v1208
        %2605 = vmatprep.subr.bf16.mxu0 0
        %2606 = vmatpush1.bf16.msra.mxu0 %v1209
        %2607 = vmatprep.subr.bf16.mxu0 0
        %2608 = vmatpush1.bf16.msra.mxu0 %v1210
        %2609 = vmatprep.subr.bf16.mxu0 0
        %2610 = vmatpush1.bf16.msra.mxu0 %v1211
        %2611 = vmatprep.subr.bf16.mxu0 0
        %2612 = vmatpush1.bf16.msra.mxu0 %v1212
        %2613 = vmatprep.subr.bf16.mxu0 0
        %2614 = vmatpush1.bf16.msra.mxu0 %v1213
        %2615 = vmatprep.subr.bf16.mxu0 0
        %2616 = vmatpush1.bf16.msra.mxu0 %v1214
        %2617 = vmatprep.subr.bf16.mxu0 0
        %2618 = vmatpush1.bf16.msra.mxu0 %v1215
        %2619 = vmatprep.subr.bf16.mxu0 0
        %2620 = vmatpush1.bf16.msra.mxu0 %v1216
        %2621 = vmatprep.subr.bf16.mxu0 0
        %2622 = vmatpush1.bf16.msra.mxu0 %v1217
        %2623 = vmatprep.mubr.bf16.mxu0 %v2584
        %2624 = vmatmul.mubr.bf16.gmra.mrb[0].mxu0 %v2583
        %v2625 = vpop.f32.mrb[0].mxu0
        %v2626 = vadd.f32 0.0, %v2625
        %v2627 = vpop.f32.mrb[0].mxu0
        %v2628 = vpop.f32.mrb[0].mxu0
        %v2629 = vpop.f32.mrb[0].mxu0
        %2630 = vdwg.mxu0
        %2631 = vmatprep.subr.bf16.mxu0 0
        %2632 = vmatpush1.bf16.msra.mxu0 %v1218
        %2633 = vmatprep.subr.bf16.mxu0 0
        %2634 = vmatpush1.bf16.msra.mxu0 %v1219
        %2635 = vmatprep.subr.bf16.mxu0 0
        %2636 = vmatpush1.bf16.msra.mxu0 %v1220
        %2637 = vmatprep.subr.bf16.mxu0 0
        %2638 = vmatpush1.bf16.msra.mxu0 %v1221
        %2639 = vmatprep.subr.bf16.mxu0 0
        %2640 = vmatpush1.bf16.msra.mxu0 %v1222
        %2641 = vmatprep.subr.bf16.mxu0 0
        %2642 = vmatpush1.bf16.msra.mxu0 %v1223
        %2643 = vmatprep.subr.bf16.mxu0 0
        %2644 = vmatpush1.bf16.msra.mxu0 %v1224
        %2645 = vmatprep.subr.bf16.mxu0 0
        %2646 = vmatpush1.bf16.msra.mxu0 %v1225
        %2647 = vmatprep.subr.bf16.mxu0 0
        %2648 = vmatpush1.bf16.msra.mxu0 %v1226
        %2649 = vmatprep.subr.bf16.mxu0 0
        %2650 = vmatpush1.bf16.msra.mxu0 %v1227
        %2651 = vmatprep.subr.bf16.mxu0 0
        %2652 = vmatpush1.bf16.msra.mxu0 %v1228
        %2653 = vmatprep.subr.bf16.mxu0 0
        %2654 = vmatpush1.bf16.msra.mxu0 %v1229
        %2655 = vmatprep.subr.bf16.mxu0 0
        %2656 = vmatpush1.bf16.msra.mxu0 %v1230
        %2657 = vmatprep.subr.bf16.mxu0 0
        %2658 = vmatpush1.bf16.msra.mxu0 %v1231
        %2659 = vmatprep.subr.bf16.mxu0 0
        %2660 = vmatpush1.bf16.msra.mxu0 %v1232
        %2661 = vmatprep.subr.bf16.mxu0 0
        %2662 = vmatpush1.bf16.msra.mxu0 %v1233
        %2663 = vmatprep.mubr.bf16.mxu0 %v2586
        %2664 = vmatmul.mubr.bf16.gmra.mrb[0].mxu0 %v2585
        %v2665 = vpop.f32.mrb[0].mxu0
        %v2666 = vadd.f32 %v2626, %v2665
        %v2667 = vpop.f32.mrb[0].mxu0
        %v2668 = vpop.f32.mrb[0].mxu0
        %v2669 = vpop.f32.mrb[0].mxu0
        %2670 = vdwg.mxu0
        %v2671 = vadd.f32 %v2572, %v2666
        %v2673 = vshrl.u32 %v2583, 16
        %v2675 = vshll.u32 %v2583, 16
        %v2677 = vrot.slane %v2675, 1
        %v2678 = vor.u32 %v2673, %v2677
        %v2680 = vshrl.u32 %v2584, 16
        %v2682 = vshll.u32 %v2584, 16
        %v2684 = vrot.slane %v2682, 1
        %v2685 = vor.u32 %v2680, %v2684
        %v2687 = vshrl.u32 %v2585, 16
        %v2689 = vshll.u32 %v2585, 16
        %v2691 = vrot.slane %v2689, 1
        %v2692 = vor.u32 %v2687, %v2691
        %v2694 = vshrl.u32 %v2586, 16
        %v2696 = vshll.u32 %v2586, 16
        %v2698 = vrot.slane %v2696, 1
        %v2699 = vor.u32 %v2694, %v2698
        %2704 = vmatprep.subr.bf16.mxu0 0
        %2705 = vmatpush1.bf16.msra.mxu0 %v1507
        %2706 = vmatprep.subr.bf16.mxu0 0
        %2707 = vmatpush1.bf16.msra.mxu0 %v1508
        %2708 = vmatprep.subr.bf16.mxu0 0
        %2709 = vmatpush1.bf16.msra.mxu0 %v1509
        %2710 = vmatprep.subr.bf16.mxu0 0
        %2711 = vmatpush1.bf16.msra.mxu0 %v1510
        %2712 = vmatprep.subr.bf16.mxu0 0
        %2713 = vmatpush1.bf16.msra.mxu0 %v1511
        %2714 = vmatprep.subr.bf16.mxu0 0
        %2715 = vmatpush1.bf16.msra.mxu0 %v1512
        %2716 = vmatprep.subr.bf16.mxu0 0
        %2717 = vmatpush1.bf16.msra.mxu0 %v1513
        %2718 = vmatprep.subr.bf16.mxu0 0
        %2719 = vmatpush1.bf16.msra.mxu0 %v1514
        %2720 = vmatprep.subr.bf16.mxu0 0
        %2721 = vmatpush1.bf16.msra.mxu0 %v1515
        %2722 = vmatprep.subr.bf16.mxu0 0
        %2723 = vmatpush1.bf16.msra.mxu0 %v1516
        %2724 = vmatprep.subr.bf16.mxu0 0
        %2725 = vmatpush1.bf16.msra.mxu0 %v1517
        %2726 = vmatprep.subr.bf16.mxu0 0
        %2727 = vmatpush1.bf16.msra.mxu0 %v1518
        %2728 = vmatprep.subr.bf16.mxu0 0
        %2729 = vmatpush1.bf16.msra.mxu0 %v1519
        %2730 = vmatprep.subr.bf16.mxu0 0
        %2731 = vmatpush1.bf16.msra.mxu0 %v1520
        %2732 = vmatprep.subr.bf16.mxu0 0
        %2733 = vmatpush1.bf16.msra.mxu0 %v1521
        %2734 = vmatprep.subr.bf16.mxu0 0
        %2735 = vmatpush1.bf16.msra.mxu0 %v1522
        %2736 = vmatprep.mubr.bf16.mxu0 %v2685
        %2737 = vmatmul.mubr.bf16.gmra.mrb[0].mxu0 %v2678
        %v2738 = vpop.f32.mrb[0].mxu0
        %v2739 = vadd.f32 0.0, %v2738
        %v2740 = vpop.f32.mrb[0].mxu0
        %v2741 = vpop.f32.mrb[0].mxu0
        %v2742 = vpop.f32.mrb[0].mxu0
        %2743 = vdwg.mxu0
        %2744 = vmatprep.subr.bf16.mxu0 0
        %2745 = vmatpush1.bf16.msra.mxu0 %v1523
        %2746 = vmatprep.subr.bf16.mxu0 0
        %2747 = vmatpush1.bf16.msra.mxu0 %v1524
        %2748 = vmatprep.subr.bf16.mxu0 0
        %2749 = vmatpush1.bf16.msra.mxu0 %v1525
        %2750 = vmatprep.subr.bf16.mxu0 0
        %2751 = vmatpush1.bf16.msra.mxu0 %v1526
        %2752 = vmatprep.subr.bf16.mxu0 0
        %2753 = vmatpush1.bf16.msra.mxu0 %v1527
        %2754 = vmatprep.subr.bf16.mxu0 0
        %2755 = vmatpush1.bf16.msra.mxu0 %v1528
        %2756 = vmatprep.subr.bf16.mxu0 0
        %2757 = vmatpush1.bf16.msra.mxu0 %v1529
        %2758 = vmatprep.subr.bf16.mxu0 0
        %2759 = vmatpush1.bf16.msra.mxu0 %v1530
        %2760 = vmatprep.subr.bf16.mxu0 0
        %2761 = vmatpush1.bf16.msra.mxu0 %v1531
        %2762 = vmatprep.subr.bf16.mxu0 0
        %2763 = vmatpush1.bf16.msra.mxu0 %v1532
        %2764 = vmatprep.subr.bf16.mxu0 0
        %2765 = vmatpush1.bf16.msra.mxu0 %v1533
        %2766 = vmatprep.subr.bf16.mxu0 0
        %2767 = vmatpush1.bf16.msra.mxu0 %v1534
        %2768 = vmatprep.subr.bf16.mxu0 0
        %2769 = vmatpush1.bf16.msra.mxu0 %v1535
        %2770 = vmatprep.subr.bf16.mxu0 0
        %2771 = vmatpush1.bf16.msra.mxu0 %v1536
        %2772 = vmatprep.subr.bf16.mxu0 0
        %2773 = vmatpush1.bf16.msra.mxu0 %v1537
        %2774 = vmatprep.subr.bf16.mxu0 0
        %2775 = vmatpush1.bf16.msra.mxu0 %v1538
        %2776 = vmatprep.mubr.bf16.mxu0 %v2699
        %2777 = vmatmul.mubr.bf16.gmra.mrb[0].mxu0 %v2692
        %v2778 = vpop.f32.mrb[0].mxu0
        %v2779 = vadd.f32 %v2739, %v2778
        %v2780 = vpop.f32.mrb[0].mxu0
        %v2781 = vpop.f32.mrb[0].mxu0
        %v2782 = vpop.f32.mrb[0].mxu0
        %2783 = vdwg.mxu0
        %v2784 = vadd.f32 %v2671, %v2779
        %v2785 = vadd.f32 %v2784, %v1656
        %vm2786 = vcmp.ge.f32.partialorder %v2785, 0.0
        %v2787 = vmul.f32 %v2785, 0.01
        %v2788 = vsel %vm2786, %v2785, %v2787
        %v2789 = vpack.c.bf16 %v2788, %v2788
        %v2791 = vunpack.c.l.b16 %v2789
        %v2792 = vpack.c.b16 %v2791, %v2791
        %v2793 = vrot.slane %v2792, 6
        %2795 = vst [vmem:[%s198 + $0x4] sm:$0xc] %v2793
        %p2796 = scmp.lt.s32.totalorder %s16, 1
        %s2797 = scalar_select %p2796, %s16, 1
        %s2798 = smul.addr %s2797, 2
        %s2799 = smul.addr %s2798, 4
        %s2800 = scalar_lea.vmem %s3, %s2799
        // Predicated region
        $region41: #{encoder_forward.4} parent=31 // pred_check
          %p2801 = pneg %p102
        $region42: #{encoder_forward.4} parent=31 // pred_check_branch
          %2803 = sbr.rel (%p2801) target = $region44
        $region43: #{encoder_forward.4} parent=31 // pred_region
          _
        $region44: #{encoder_forward.4} parent=31 // pred_fallthru
          _
      $region32: #{encoder_forward.4} parent=5 // pred_fallthru
        _
      %p2804 = scmp.le.s32.totalorder 2, %s11
      // Predicated region
      $region45: #{encoder_forward.4} parent=5 // pred_check
        %p2805 = pneg %p2804
      $region46: #{encoder_forward.4} parent=5 // pred_check_branch
        %2807 = sbr.rel (%p2805) target = $region48
      $region47: #{encoder_forward.4} parent=5 // pred_region
        %s2808 = ssub.s32 %s11, 2
        // Predicated region
        $region49: #{encoder_forward.4} parent=47 // pred_check
          %p2809 = pneg %p108
        $region50: #{encoder_forward.4} parent=47 // pred_check_branch
          %2811 = sbr.rel (%p2809) target = $region52
        $region51: #{encoder_forward.4} parent=47 // pred_region
          %p2812 = scmp.lt.s32.totalorder %s17, 1
          %s2813 = scalar_select %p2812, %s17, 1
          %s2814 = smul.addr %s2813, 2
          %s2815 = smul.addr %s2814, 4
          %s2816 = scalar_lea.vmem %s3, %s2815
        $region52: #{encoder_forward.4} parent=47 // pred_fallthru
          _
      $region48: #{encoder_forward.4} parent=5 // pred_fallthru
        _
    $region6: #{encoder_forward.4} parent=1 // loop_footer
      %s15 = sadd.s32 1, %s11
    $region7: #{encoder_forward.4} parent=1 // loop_footer_branch
      %10 = sbr.rel target = $region3
    $region8: #{encoder_forward.4} parent=1 // loop_exit
      _
    %2817 = vsyncpa [#allocation3], 1
    %s2818 = scalar_lea.sflag [#allocation3], 1
    %2819 = vsyncpa %s2818, 1
    %2820 = vsyncpa [#allocation5], 1

// kernel: encoder_forward.5
$region0: #{encoder_forward.5}
  #allocation0 [shape = 'u32[]', space=smem, size = 0x4, offset = 0x4, fixed_abs, tag = 'smem constant byte address 0x4 - core index']
  #allocation1 [shape = 'u32[144,128]{1,0:T(1,128)}', space=vmem, size = 0x12000, scoped, tag = 'internal scratch']
  #allocation2 [shape = 'f32[16,1024]{1,0:T(8,128)}', space=vmem, size = 0x10000, scoped, tag = 'scratch operand']
  %s0 = inlined_call_operand.vmem [shape: bf16[16,2048], index: 0, kind: input, shape index: {}]
  %s1 = inlined_call_operand.hbm [shape: bf16[2048,1024], index: 1, kind: input, shape index: {}]
  %s2 = inlined_call_operand.hbm [shape: f32[1,1024], index: 2, kind: input, shape index: {}]
  %s3 = inlined_call_operand.hbm [shape: bf16[1024,128], index: 3, kind: input, shape index: {}]
  %s4 = inlined_call_operand.hbm [shape: f32[1,128], index: 4, kind: input, shape index: {}]
  %s5 = inlined_call_operand.vmem [shape: f32[16,128], index: 5, kind: output, shape index: {}]
  %s6 = sld [smem:[#allocation0]]
  $region100: #{encoder_forward.5} parent=0
    _
  %s8 = ssub.s32 1, %s6
  %s9 = scalar_select 0, %s8, %s6
  $region1: #{encoder_forward.5} parent=0
    #allocation3 [shape = 'u8[32768]{0}', space=vmem, size = 0x8000, scoped, tag = 'input window, operand 0']
    #allocation4 [shape = 'u8[2097152]{0}', space=vmem, size = 0x200000, scoped, tag = 'input window, operand 1']
    #allocation5 [shape = 's32[2]{0}', space=sflag, size = 0x8, scoped, tag = 'scoped memory for encoder_forward.5']
    #allocation6 [shape = 'u8[4096]{0}', space=vmem, size = 0x1000, scoped, tag = 'input window, operand 2, single buffered']
    #allocation7 [shape = 's32[1]{0}', space=sflag, size = 0x4, scoped, tag = 'scoped memory for encoder_forward.5']
    #allocation8 [shape = 'u8[262144]{0}', space=vmem, size = 0x40000, scoped, tag = 'input window, operand 3, single buffered']
    #allocation9 [shape = 'u8[512]{0}', space=vmem, size = 0x400, scoped, tag = 'input window, operand 4, single buffered']
    #allocation10 [shape = 's32[1]{0}', space=sflag, size = 0x4, scoped, tag = 'scoped memory for encoder_forward.5']
    %10 = vsyncpa [#allocation5], 0
    %s11 = scalar_lea.sflag [#allocation5], 1
    %12 = vsyncpa %s11, 0
    %13 = vsyncpa [#allocation7], 0
    %14 = vsyncpa [#allocation10], 0
    loop: start=0, step=1, limit=6
    $region2: #{encoder_forward.5} parent=1 // loop_pre_header
      _
    $region3: #{encoder_forward.5} parent=1 // loop_header
      %s16 = sphi 0, %s20
      %p17 = scmp.ge.s32.totalorder %s16, 6
      %s23 = sphi 0, %s35
      %s24 = sphi 0, %s31
      %s25 = sphi 0, %s23
      %s26 = sphi 0, %s24
      %s27 = sphi 0, %s25
      %s28 = sphi 0, %s26
      %s40 = sphi 0, %s42
      %s43 = sphi 0, %s40
      %s44 = sphi 0, %s43
      %s60 = sphi 0, %s44
      %s66 = sphi 0, %s68
      %s69 = sphi 0, %s66
      %s70 = sphi 0, %s69
      %s86 = sphi 0, %s70
      %s90 = sphi 0, %s90
      %s92 = sphi 0, %s90
      %s93 = sphi 0, %s92
      %s107 = sphi 0, %s93
      %s111 = sphi 0, %s111
      %s113 = sphi 0, %s111
      %s114 = sphi 0, %s113
      %s128 = sphi 0, %s114
      %s132 = sphi 0, %s132
      %s134 = sphi 0, %s132
      %s135 = sphi 0, %s134
      %s149 = sphi 0, %s135
      %s155 = sphi 0, %s157
      %s158 = sphi 0, %s155
      %s159 = sphi 0, %s158
      %s175 = sphi 0, %s159
    $region4: #{encoder_forward.5} parent=1 // loop_header_branch
      %19 = sbr.rel (%p17) target = $region8
    $region5: #{encoder_forward.5} parent=1 // loop_body
      %s21 = ssub.s32 %s16, 1
      %s22 = ssub.s32 %s16, 2
      %s29 = sadd.s32 1, %s24
      %p30 = scmp.ge.s32.totalorder %s29, 4
      %s31 = scalar_select %p30, 0, %s29
      %s32 = sadd.s32 1, %s23
      %s33 = scalar_select %p30, %s32, %s23
      %p34 = scmp.ge.s32.totalorder %s33, 1
      %s35 = scalar_select %p34, 0, %s33
      %s36 = ssub.s32 %s23, %s35
      %s37 = ssub.s32 %s24, %s31
      %s38 = sor.u32 %s36, %s37
      %p39 = scmp.eq.s32.totalorder %s38, 0
      %s41 = sadd.s32 %s40, 1
      %s42 = scalar_select %p39, %s40, %s41
      %p45 = pneg %p39
      %p46 = scmp.eq.s32.totalorder %s16, 3
      %p47 = por %p45, %p46
      %p48 = scmp.ne.s32.totalorder %s40, %s43
      %p49 = scmp.eq.s32.totalorder %s16, 0
      %p50 = por %p48, %p49
      %p51 = scmp.ne.s32.totalorder %s40, %s43
      %p52 = scmp.eq.s32.totalorder %s21, 3
      %p53 = por %p51, %p52
      %p54 = scmp.ne.s32.totalorder %s43, %s44
      %p55 = scmp.eq.s32.totalorder %s21, 0
      %p56 = por %p54, %p55
      %p57 = scmp.ne.s32.totalorder %s43, %s44
      %p58 = scmp.eq.s32.totalorder %s22, 3
      %p59 = por %p57, %p58
      %p61 = scmp.ne.s32.totalorder %s44, %s60
      %p62 = scmp.eq.s32.totalorder %s22, 0
      %p63 = por %p61, %p62
      %s64 = ssub.s32 %s24, %s31
      %p65 = scmp.eq.s32.totalorder %s64, 0
      %s67 = sadd.s32 %s66, 1
      %s68 = scalar_select %p65, %s66, %s67
      %p71 = pneg %p65
      %p72 = scmp.eq.s32.totalorder %s16, 3
      %p73 = por %p71, %p72
      %p74 = scmp.ne.s32.totalorder %s66, %s69
      %p75 = scmp.eq.s32.totalorder %s16, 0
      %p76 = por %p74, %p75
      %p77 = scmp.ne.s32.totalorder %s66, %s69
      %p78 = scmp.eq.s32.totalorder %s21, 3
      %p79 = por %p77, %p78
      %p80 = scmp.ne.s32.totalorder %s69, %s70
      %p81 = scmp.eq.s32.totalorder %s21, 0
      %p82 = por %p80, %p81
      %p83 = scmp.ne.s32.totalorder %s69, %s70
      %p84 = scmp.eq.s32.totalorder %s22, 3
      %p85 = por %p83, %p84
      %p87 = scmp.ne.s32.totalorder %s70, %s86
      %p88 = scmp.eq.s32.totalorder %s22, 0
      %p89 = por %p87, %p88
      %s91 = sadd.s32 %s90, 1
      %p94 = scmp.eq.s32.totalorder %s16, 3
      %p95 = scmp.ne.s32.totalorder %s90, %s92
      %p96 = scmp.eq.s32.totalorder %s16, 0
      %p97 = por %p95, %p96
      %p98 = scmp.ne.s32.totalorder %s90, %s92
      %p99 = scmp.eq.s32.totalorder %s21, 3
      %p100 = por %p98, %p99
      %p101 = scmp.ne.s32.totalorder %s92, %s93
      %p102 = scmp.eq.s32.totalorder %s21, 0
      %p103 = por %p101, %p102
      %p104 = scmp.ne.s32.totalorder %s92, %s93
      %p105 = scmp.eq.s32.totalorder %s22, 3
      %p106 = por %p104, %p105
      %p108 = scmp.ne.s32.totalorder %s93, %s107
      %p109 = scmp.eq.s32.totalorder %s22, 0
      %p110 = por %p108, %p109
      %s112 = sadd.s32 %s111, 1
      %p115 = scmp.eq.s32.totalorder %s16, 3
      %p116 = scmp.ne.s32.totalorder %s111, %s113
      %p117 = scmp.eq.s32.totalorder %s16, 0
      %p118 = por %p116, %p117
      %p119 = scmp.ne.s32.totalorder %s111, %s113
      %p120 = scmp.eq.s32.totalorder %s21, 3
      %p121 = por %p119, %p120
      %p122 = scmp.ne.s32.totalorder %s113, %s114
      %p123 = scmp.eq.s32.totalorder %s21, 0
      %p124 = por %p122, %p123
      %p125 = scmp.ne.s32.totalorder %s113, %s114
      %p126 = scmp.eq.s32.totalorder %s22, 3
      %p127 = por %p125, %p126
      %p129 = scmp.ne.s32.totalorder %s114, %s128
      %p130 = scmp.eq.s32.totalorder %s22, 0
      %p131 = por %p129, %p130
      %s133 = sadd.s32 %s132, 1
      %p136 = scmp.eq.s32.totalorder %s16, 3
      %p137 = scmp.ne.s32.totalorder %s132, %s134
      %p138 = scmp.eq.s32.totalorder %s16, 0
      %p139 = por %p137, %p138
      %p140 = scmp.ne.s32.totalorder %s132, %s134
      %p141 = scmp.eq.s32.totalorder %s21, 3
      %p142 = por %p140, %p141
      %p143 = scmp.ne.s32.totalorder %s134, %s135
      %p144 = scmp.eq.s32.totalorder %s21, 0
      %p145 = por %p143, %p144
      %p146 = scmp.ne.s32.totalorder %s134, %s135
      %p147 = scmp.eq.s32.totalorder %s22, 3
      %p148 = por %p146, %p147
      %p150 = scmp.ne.s32.totalorder %s135, %s149
      %p151 = scmp.eq.s32.totalorder %s22, 0
      %p152 = por %p150, %p151
      %s153 = ssub.s32 %s23, %s35
      %p154 = scmp.eq.s32.totalorder %s153, 0
      %s156 = sadd.s32 %s155, 1
      %s157 = scalar_select %p154, %s155, %s156
      %p160 = pneg %p154
      %p161 = scmp.eq.s32.totalorder %s16, 3
      %p162 = por %p160, %p161
      %p163 = scmp.ne.s32.totalorder %s155, %s158
      %p164 = scmp.eq.s32.totalorder %s16, 0
      %p165 = por %p163, %p164
      %p166 = scmp.ne.s32.totalorder %s155, %s158
      %p167 = scmp.eq.s32.totalorder %s21, 3
      %p168 = por %p166, %p167
      %p169 = scmp.ne.s32.totalorder %s158, %s159
      %p170 = scmp.eq.s32.totalorder %s21, 0
      %p171 = por %p169, %p170
      %p172 = scmp.ne.s32.totalorder %s158, %s159
      %p173 = scmp.eq.s32.totalorder %s22, 3
      %p174 = por %p172, %p173
      %p176 = scmp.ne.s32.totalorder %s159, %s175
      %p177 = scmp.eq.s32.totalorder %s22, 0
      %p178 = por %p176, %p177
      %p179 = scmp.le.s32.totalorder 1, %s16
      %p180 = scmp.lt.s32.totalorder %s16, 5
      %p181 = pnand %p179, %p180
      %p182 = pneg %p181
      // Predicated region
      $region9: #{encoder_forward.5} parent=5 // pred_check
        _
      $region10: #{encoder_forward.5} parent=5 // pred_check_branch
        %184 = sbr.rel (%p181) target = $region12
      $region11: #{encoder_forward.5} parent=5 // pred_region
        %s185 = ssub.s32 %s16, 1
        // Predicated region
        $region13: #{encoder_forward.5} parent=11 // pred_check
          %p186 = pneg %p103
        $region14: #{encoder_forward.5} parent=11 // pred_check_branch
          %188 = sbr.rel (%p186) target = $region16
        $region15: #{encoder_forward.5} parent=11 // pred_region
          %s190 = ssub.s32 128, 128
          %191 = vsyncadd [#allocation7], %s190
          %s193 = sshll.u32 [#allocation6], 4
          %s194 = int_to_ptr.vmem [resolvable:$true] %s193
          %196 = dma.hbm_to_vmem [thread:$0]  %s2, 128, %s194, [#allocation7]
        $region16: #{encoder_forward.5} parent=11 // pred_fallthru
          _
        // Predicated region
        $region17: #{encoder_forward.5} parent=11 // pred_check
          %p197 = pneg %p124
        $region18: #{encoder_forward.5} parent=11 // pred_check_branch
          %199 = sbr.rel (%p197) target = $region20
        $region19: #{encoder_forward.5} parent=11 // pred_region
          %s201 = ssub.s32 8192, 8192
          %202 = vsyncadd [#allocation7], %s201
          %s203 = sshll.u32 [#allocation8], 4
          %s204 = int_to_ptr.vmem [resolvable:$true] %s203
          %209 = dma.hbm_to_vmem [thread:$0]  %s3, 8192, %s204, [#allocation7], 64, 64, 4
        $region20: #{encoder_forward.5} parent=11 // pred_fallthru
          _
        // Predicated region
        $region21: #{encoder_forward.5} parent=11 // pred_check
          %p210 = pneg %p145
        $region22: #{encoder_forward.5} parent=11 // pred_check_branch
          %212 = sbr.rel (%p210) target = $region24
        $region23: #{encoder_forward.5} parent=11 // pred_region
          %s214 = ssub.s32 16, 16
          %215 = vsyncadd [#allocation10], %s214
          %s217 = sshll.u32 [#allocation9], 4
          %s218 = int_to_ptr.vmem [resolvable:$true] %s217
          %220 = dma.hbm_to_vmem [thread:$0]  %s4, 16, %s218, [#allocation10]
        $region24: #{encoder_forward.5} parent=11 // pred_fallthru
          _
      $region12: #{encoder_forward.5} parent=5 // pred_fallthru
        _
      %p221 = scmp.lt.s32.totalorder %s16, 4
      // Predicated region
      $region25: #{encoder_forward.5} parent=5 // pred_check
        %p222 = pneg %p221
      $region26: #{encoder_forward.5} parent=5 // pred_check_branch
        %224 = sbr.rel (%p222) target = $region28
      $region27: #{encoder_forward.5} parent=5 // pred_region
        // Predicated region
        $region29: #{encoder_forward.5} parent=27 // pred_check
          %p225 = pneg %p50
        $region30: #{encoder_forward.5} parent=27 // pred_check_branch
          %227 = sbr.rel (%p225) target = $region32
        $region31: #{encoder_forward.5} parent=27 // pred_region
          %s228 = sand.u32 %s40, 1
          %s229 = sand.u32 %s40, 1
          %s230 = smul.addr %s229, 32
          %s231 = scalar_lea.vmem [#allocation3], %s230
          %s232 = smul.u32 2, %s23
          %s233 = smul.u32 4, %s24
          %s234 = smul.addr %s232, 16
          %s235 = sadd.s32 %s233, %s234
          %s236 = smul.addr %s235, 4
          %s237 = scalar_lea.vmem %s0, %s236
          // Predicated region
          $region33: #{encoder_forward.5} parent=31 // pred_check
            _
          $region34: #{encoder_forward.5} parent=31 // pred_check_branch
            %239 = sbr.rel (0) target = $region36
          $region35: #{encoder_forward.5} parent=31 // pred_region
            // Predicated region
            $region37: #{encoder_forward.5} parent=35 // pred_check
              _
            $region38: #{encoder_forward.5} parent=35 // pred_check_branch
              %241 = sbr.rel (0) target = $region40
            $region39: #{encoder_forward.5} parent=35 // pred_region
              loop: start=0, step=1, limit=1
              $region41: #{encoder_forward.5} parent=39 // loop_pre_header
                _
              $region42: #{encoder_forward.5} parent=39 // loop_header
                %s243 = sphi 0, %s247
                %p244 = scmp.ge.s32.totalorder %s243, 1
                %s248 = sphi %s237, %s237
                %s249 = sphi %s231, %s231
              $region43: #{encoder_forward.5} parent=39 // loop_header_branch
                %246 = sbr.rel (%p244) target = $region47
              $region44: #{encoder_forward.5} parent=39 // loop_body
                %v250 = vld [vmem:[%s248] sm:$0xff]
                %251 = vst [vmem:[%s249] sm:$0xff] %v250
                %v252 = vld [vmem:[%s248 + $0x8] sm:$0xff]
                %253 = vst [vmem:[%s249 + $0x8] sm:$0xff] %v252
                %v254 = vld [vmem:[%s248 + $0x40] sm:$0xff]
                %255 = vst [vmem:[%s249 + $0x10] sm:$0xff] %v254
                %v256 = vld [vmem:[%s248 + $0x48] sm:$0xff]
                %257 = vst [vmem:[%s249 + $0x18] sm:$0xff] %v256
              $region45: #{encoder_forward.5} parent=39 // loop_footer
                %s247 = sadd.s32 1, %s243
              $region46: #{encoder_forward.5} parent=39 // loop_footer_branch
                %242 = sbr.rel target = $region42
              $region47: #{encoder_forward.5} parent=39 // loop_exit
                _
            $region40: #{encoder_forward.5} parent=35 // pred_fallthru
              _
            // Predicated region
            $region48: #{encoder_forward.5} parent=35 // pred_check
              _
            $region49: #{encoder_forward.5} parent=35 // pred_check_branch
              %259 = sbr.rel target = $region51
            $region50: #{encoder_forward.5} parent=35 // pred_region
              _
            $region51: #{encoder_forward.5} parent=35 // pred_fallthru
              _
          $region36: #{encoder_forward.5} parent=31 // pred_fallthru
            _
          %260 = vnop
        $region32: #{encoder_forward.5} parent=27 // pred_fallthru
          _
        // Predicated region
        $region52: #{encoder_forward.5} parent=27 // pred_check
          %p261 = pneg %p76
        $region53: #{encoder_forward.5} parent=27 // pred_check_branch
          %263 = sbr.rel (%p261) target = $region55
        $region54: #{encoder_forward.5} parent=27 // pred_region
          %s264 = sand.u32 %s66, 1
          %s265 = scalar_lea.sflag [#allocation5], %s264
          %s266 = sand.u32 %s66, 1
          %s267 = smul.addr %s266, 2048
          %s268 = scalar_lea.vmem [#allocation4], %s267
          %s269 = smul.u32 64, %s24
          %s271 = ssub.s32 32768, 32768
          %272 = vsyncadd %s265, %s271
          %s273 = smul.addr %s269, 8
          %s274 = smul.addr %s273, 64
          %s275 = scalar_lea.hbm %s1, %s274
          %s276 = sshll.u32 %s268, 4
          %s277 = int_to_ptr.vmem [resolvable:$true] %s276
          %282 = dma.hbm_to_vmem [thread:$0]  %s275, 32768, %s277, %s265, 512, 512, 32
        $region55: #{encoder_forward.5} parent=27 // pred_fallthru
          _
      $region28: #{encoder_forward.5} parent=5 // pred_fallthru
        _
      %p283 = scmp.le.s32.totalorder 1, %s16
      %p284 = scmp.lt.s32.totalorder %s16, 5
      %p285 = pnand %p283, %p284
      %p286 = pneg %p285
      // Predicated region
      $region56: #{encoder_forward.5} parent=5 // pred_check
        _
      $region57: #{encoder_forward.5} parent=5 // pred_check_branch
        %288 = sbr.rel (%p285) target = $region59
      $region58: #{encoder_forward.5} parent=5 // pred_region
        %s289 = ssub.s32 %s16, 1
        %s290 = sand.u32 %s43, 1
        %s291 = sand.u32 %s43, 1
        %s292 = smul.addr %s291, 32
        %s293 = scalar_lea.vmem [#allocation3], %s292
        // Predicated region
        $region60: #{encoder_forward.5} parent=58 // pred_check
          %p294 = pneg %p56
        $region61: #{encoder_forward.5} parent=58 // pred_check_branch
          %296 = sbr.rel (%p294) target = $region63
        $region62: #{encoder_forward.5} parent=58 // pred_region
          _
        $region63: #{encoder_forward.5} parent=58 // pred_fallthru
          _
        %s297 = sand.u32 %s69, 1
        %s298 = scalar_lea.sflag [#allocation5], %s297
        %s299 = sand.u32 %s69, 1
        %s300 = smul.addr %s299, 2048
        %s301 = scalar_lea.vmem [#allocation4], %s300
        // Predicated region
        $region64: #{encoder_forward.5} parent=58 // pred_check
          %p302 = pneg %p82
        $region65: #{encoder_forward.5} parent=58 // pred_check_branch
          %304 = sbr.rel (%p302) target = $region67
        $region66: #{encoder_forward.5} parent=58 // pred_region
          %305 = dma.done %s298, 32768
        $region67: #{encoder_forward.5} parent=58 // pred_fallthru
          _
        // Predicated region
        $region68: #{encoder_forward.5} parent=58 // pred_check
          %p306 = pneg %p103
        $region69: #{encoder_forward.5} parent=58 // pred_check_branch
          %308 = sbr.rel (%p306) target = $region71
        $region70: #{encoder_forward.5} parent=58 // pred_region
          %309 = dma.done [#allocation7], 128
        $region71: #{encoder_forward.5} parent=58 // pred_fallthru
          _
        // Predicated region
        $region72: #{encoder_forward.5} parent=58 // pred_check
          %p310 = pneg %p124
        $region73: #{encoder_forward.5} parent=58 // pred_check_branch
          %312 = sbr.rel (%p310) target = $region75
        $region74: #{encoder_forward.5} parent=58 // pred_region
          %313 = dma.done [#allocation7], 8192
        $region75: #{encoder_forward.5} parent=58 // pred_fallthru
          _
        // Predicated region
        $region76: #{encoder_forward.5} parent=58 // pred_check
          %p314 = pneg %p145
        $region77: #{encoder_forward.5} parent=58 // pred_check_branch
          %316 = sbr.rel (%p314) target = $region79
        $region78: #{encoder_forward.5} parent=58 // pred_region
          %317 = dma.done [#allocation10], 16
        $region79: #{encoder_forward.5} parent=58 // pred_fallthru
          _
        %s318 = sand.u32 %s43, 1
        %s319 = sand.u32 %s43, 1
        %s320 = smul.addr %s319, 32
        %s321 = scalar_lea.vmem [#allocation3], %s320
        %p322 = pneg %p56
        %p323 = pneg %p53
        %s324 = sand.u32 %s69, 1
        %s325 = scalar_lea.sflag [#allocation5], %s324
        %s326 = sand.u32 %s69, 1
        %s327 = smul.addr %s326, 2048
        %s328 = scalar_lea.vmem [#allocation4], %s327
        %p329 = pneg %p82
        %p330 = pneg %p79
        %p331 = pneg %p103
        %p332 = pneg %p100
        %p333 = pneg %p124
        %p334 = pneg %p121
        %p335 = pneg %p145
        %p336 = pneg %p142
        %p337 = pneg %p171
        %p338 = pneg %p168
        %s339 = smul.u32 2, %s25
        %p340 = scmp.lt.s32.totalorder %s339, 1
        %s341 = scalar_select %p340, %s339, 1
        %s342 = smul.addr %s341, 8
        %s343 = scalar_lea.vmem %s5, %s342
        %s344 = smul.u32 2, %s25
        %s345 = smul.u32 4, %s26
        %s346 = smul.u32 64, %s26
        %s347 = smul.u32 2, %s25
        %p348 = scmp.lt.s32.totalorder %s347, 1
        %s349 = scalar_select %p348, %s347, 1
        %s350 = smul.addr %s349, 8
        %s351 = scalar_lea.vmem %s5, %s350
        %s352 = smul.u32 2, %s25
        %p354 = scmp.eq.s32.totalorder %s26, 0
        // Predicated region
        $region80: #{encoder_forward.5} parent=58 // pred_check
          %p355 = pneg %p354
        $region81: #{encoder_forward.5} parent=58 // pred_check_branch
          %357 = sbr.rel (%p355) target = $region83
        $region82: #{encoder_forward.5} parent=58 // pred_region
          %358 = vst [vmem:[#allocation2] sm:$0xff] 0.0
          %359 = vst [vmem:[#allocation2 + $0x8] sm:$0xff] 0.0
          %360 = vst [vmem:[#allocation2 + $0x10] sm:$0xff] 0.0
          %361 = vst [vmem:[#allocation2 + $0x18] sm:$0xff] 0.0
          %362 = vst [vmem:[#allocation2 + $0x20] sm:$0xff] 0.0
          %363 = vst [vmem:[#allocation2 + $0x28] sm:$0xff] 0.0
          %364 = vst [vmem:[#allocation2 + $0x30] sm:$0xff] 0.0
          %365 = vst [vmem:[#allocation2 + $0x38] sm:$0xff] 0.0
          %366 = vst [vmem:[#allocation2 + $0x40] sm:$0xff] 0.0
          %367 = vst [vmem:[#allocation2 + $0x48] sm:$0xff] 0.0
          %368 = vst [vmem:[#allocation2 + $0x50] sm:$0xff] 0.0
          %369 = vst [vmem:[#allocation2 + $0x58] sm:$0xff] 0.0
          %370 = vst [vmem:[#allocation2 + $0x60] sm:$0xff] 0.0
          %371 = vst [vmem:[#allocation2 + $0x68] sm:$0xff] 0.0
          %372 = vst [vmem:[#allocation2 + $0x70] sm:$0xff] 0.0
          %373 = vst [vmem:[#allocation2 + $0x78] sm:$0xff] 0.0
        $region83: #{encoder_forward.5} parent=58 // pred_fallthru
          _
        %v374 = vld [vmem:[#allocation2] sm:$0xff]
        %v375 = vld [vmem:[#allocation2 + $0x8] sm:$0xff]
        %v376 = vld [vmem:[#allocation2 + $0x10] sm:$0xff]
        %v377 = vld [vmem:[#allocation2 + $0x18] sm:$0xff]
        %v378 = vld [vmem:[#allocation2 + $0x20] sm:$0xff]
        %v379 = vld [vmem:[#allocation2 + $0x28] sm:$0xff]
        %v380 = vld [vmem:[#allocation2 + $0x30] sm:$0xff]
        %v381 = vld [vmem:[#allocation2 + $0x38] sm:$0xff]
        %v382 = vld [vmem:[#allocation2 + $0x40] sm:$0xff]
        %v383 = vld [vmem:[#allocation2 + $0x48] sm:$0xff]
        %v384 = vld [vmem:[#allocation2 + $0x50] sm:$0xff]
        %v385 = vld [vmem:[#allocation2 + $0x58] sm:$0xff]
        %v386 = vld [vmem:[#allocation2 + $0x60] sm:$0xff]
        %v387 = vld [vmem:[#allocation2 + $0x68] sm:$0xff]
        %v388 = vld [vmem:[#allocation2 + $0x70] sm:$0xff]
        %v389 = vld [vmem:[#allocation2 + $0x78] sm:$0xff]
        %v390 = vld [vmem:[%s293] sm:$0xff]
        %v391 = vld [vmem:[%s293 + $0x8] sm:$0xff]
        %v392 = vld [vmem:[%s293 + $0x10] sm:$0xff]
        %v393 = vld [vmem:[%s293 + $0x18] sm:$0xff]
        %v394 = vld [vmem:[%s301] sm:$0xff]
        %v395 = vld [vmem:[%s301 + $0x8] sm:$0xff]
        %v396 = vld [vmem:[%s301 + $0x10] sm:$0xff]
        %v397 = vld [vmem:[%s301 + $0x18] sm:$0xff]
        %v398 = vld [vmem:[%s301 + $0x20] sm:$0xff]
        %v399 = vld [vmem:[%s301 + $0x28] sm:$0xff]
        %v400 = vld [vmem:[%s301 + $0x30] sm:$0xff]
        %v401 = vld [vmem:[%s301 + $0x38] sm:$0xff]
        %v402 = vld [vmem:[%s301 + $0x40] sm:$0xff]
        %v403 = vld [vmem:[%s301 + $0x48] sm:$0xff]
        %v404 = vld [vmem:[%s301 + $0x50] sm:$0xff]
        %v405 = vld [vmem:[%s301 + $0x58] sm:$0xff]
        %v406 = vld [vmem:[%s301 + $0x60] sm:$0xff]
        %v407 = vld [vmem:[%s301 + $0x68] sm:$0xff]
        %v408 = vld [vmem:[%s301 + $0x70] sm:$0xff]
        %v409 = vld [vmem:[%s301 + $0x78] sm:$0xff]
        %v410 = vld [vmem:[%s301 + $0x80] sm:$0xff]
        %v411 = vld [vmem:[%s301 + $0x88] sm:$0xff]
        %v412 = vld [vmem:[%s301 + $0x90] sm:$0xff]
        %v413 = vld [vmem:[%s301 + $0x98] sm:$0xff]
        %v414 = vld [vmem:[%s301 + $0xa0] sm:$0xff]
        %v415 = vld [vmem:[%s301 + $0xa8] sm:$0xff]
        %v416 = vld [vmem:[%s301 + $0xb0] sm:$0xff]
        %v417 = vld [vmem:[%s301 + $0xb8] sm:$0xff]
        %v418 = vld [vmem:[%s301 + $0xc0] sm:$0xff]
        %v419 = vld [vmem:[%s301 + $0xc8] sm:$0xff]
        %v420 = vld [vmem:[%s301 + $0xd0] sm:$0xff]
        %v421 = vld [vmem:[%s301 + $0xd8] sm:$0xff]
        %v422 = vld [vmem:[%s301 + $0xe0] sm:$0xff]
        %v423 = vld [vmem:[%s301 + $0xe8] sm:$0xff]
        %v424 = vld [vmem:[%s301 + $0xf0] sm:$0xff]
        %v425 = vld [vmem:[%s301 + $0xf8] sm:$0xff]
        %v426 = vld [vmem:[%s301 + $0x100] sm:$0xff]
        %v427 = vld [vmem:[%s301 + $0x108] sm:$0xff]
        %v428 = vld [vmem:[%s301 + $0x110] sm:$0xff]
        %v429 = vld [vmem:[%s301 + $0x118] sm:$0xff]
        %v430 = vld [vmem:[%s301 + $0x120] sm:$0xff]
        %v431 = vld [vmem:[%s301 + $0x128] sm:$0xff]
        %v432 = vld [vmem:[%s301 + $0x130] sm:$0xff]
        %v433 = vld [vmem:[%s301 + $0x138] sm:$0xff]
        %v434 = vld [vmem:[%s301 + $0x140] sm:$0xff]
        %v435 = vld [vmem:[%s301 + $0x148] sm:$0xff]
        %v436 = vld [vmem:[%s301 + $0x150] sm:$0xff]
        %v437 = vld [vmem:[%s301 + $0x158] sm:$0xff]
        %v438 = vld [vmem:[%s301 + $0x160] sm:$0xff]
        %v439 = vld [vmem:[%s301 + $0x168] sm:$0xff]
        %v440 = vld [vmem:[%s301 + $0x170] sm:$0xff]
        %v441 = vld [vmem:[%s301 + $0x178] sm:$0xff]
        %v442 = vld [vmem:[%s301 + $0x180] sm:$0xff]
        %v443 = vld [vmem:[%s301 + $0x188] sm:$0xff]
        %v444 = vld [vmem:[%s301 + $0x190] sm:$0xff]
        %v445 = vld [vmem:[%s301 + $0x198] sm:$0xff]
        %v446 = vld [vmem:[%s301 + $0x1a0] sm:$0xff]
        %v447 = vld [vmem:[%s301 + $0x1a8] sm:$0xff]
        %v448 = vld [vmem:[%s301 + $0x1b0] sm:$0xff]
        %v449 = vld [vmem:[%s301 + $0x1b8] sm:$0xff]
        %v450 = vld [vmem:[%s301 + $0x1c0] sm:$0xff]
        %v451 = vld [vmem:[%s301 + $0x1c8] sm:$0xff]
        %v452 = vld [vmem:[%s301 + $0x1d0] sm:$0xff]
        %v453 = vld [vmem:[%s301 + $0x1d8] sm:$0xff]
        %v454 = vld [vmem:[%s301 + $0x1e0] sm:$0xff]
        %v455 = vld [vmem:[%s301 + $0x1e8] sm:$0xff]
        %v456 = vld [vmem:[%s301 + $0x1f0] sm:$0xff]
        %v457 = vld [vmem:[%s301 + $0x1f8] sm:$0xff]
        %v458 = vld [vmem:[%s301 + $0x200] sm:$0xff]
        %v459 = vld [vmem:[%s301 + $0x208] sm:$0xff]
        %v460 = vld [vmem:[%s301 + $0x210] sm:$0xff]
        %v461 = vld [vmem:[%s301 + $0x218] sm:$0xff]
        %v462 = vld [vmem:[%s301 + $0x220] sm:$0xff]
        %v463 = vld [vmem:[%s301 + $0x228] sm:$0xff]
        %v464 = vld [vmem:[%s301 + $0x230] sm:$0xff]
        %v465 = vld [vmem:[%s301 + $0x238] sm:$0xff]
        %v466 = vld [vmem:[%s301 + $0x240] sm:$0xff]
        %v467 = vld [vmem:[%s301 + $0x248] sm:$0xff]
        %v468 = vld [vmem:[%s301 + $0x250] sm:$0xff]
        %v469 = vld [vmem:[%s301 + $0x258] sm:$0xff]
        %v470 = vld [vmem:[%s301 + $0x260] sm:$0xff]
        %v471 = vld [vmem:[%s301 + $0x268] sm:$0xff]
        %v472 = vld [vmem:[%s301 + $0x270] sm:$0xff]
        %v473 = vld [vmem:[%s301 + $0x278] sm:$0xff]
        %v474 = vld [vmem:[%s301 + $0x280] sm:$0xff]
        %v475 = vld [vmem:[%s301 + $0x288] sm:$0xff]
        %v476 = vld [vmem:[%s301 + $0x290] sm:$0xff]
        %v477 = vld [vmem:[%s301 + $0x298] sm:$0xff]
        %v478 = vld [vmem:[%s301 + $0x2a0] sm:$0xff]
        %v479 = vld [vmem:[%s301 + $0x2a8] sm:$0xff]
        %v480 = vld [vmem:[%s301 + $0x2b0] sm:$0xff]
        %v481 = vld [vmem:[%s301 + $0x2b8] sm:$0xff]
        %v482 = vld [vmem:[%s301 + $0x2c0] sm:$0xff]
        %v483 = vld [vmem:[%s301 + $0x2c8] sm:$0xff]
        %v484 = vld [vmem:[%s301 + $0x2d0] sm:$0xff]
        %v485 = vld [vmem:[%s301 + $0x2d8] sm:$0xff]
        %v486 = vld [vmem:[%s301 + $0x2e0] sm:$0xff]
        %v487 = vld [vmem:[%s301 + $0x2e8] sm:$0xff]
        %v488 = vld [vmem:[%s301 + $0x2f0] sm:$0xff]
        %v489 = vld [vmem:[%s301 + $0x2f8] sm:$0xff]
        %v490 = vld [vmem:[%s301 + $0x300] sm:$0xff]
        %v491 = vld [vmem:[%s301 + $0x308] sm:$0xff]
        %v492 = vld [vmem:[%s301 + $0x310] sm:$0xff]
        %v493 = vld [vmem:[%s301 + $0x318] sm:$0xff]
        %v494 = vld [vmem:[%s301 + $0x320] sm:$0xff]
        %v495 = vld [vmem:[%s301 + $0x328] sm:$0xff]
        %v496 = vld [vmem:[%s301 + $0x330] sm:$0xff]
        %v497 = vld [vmem:[%s301 + $0x338] sm:$0xff]
        %v498 = vld [vmem:[%s301 + $0x340] sm:$0xff]
        %v499 = vld [vmem:[%s301 + $0x348] sm:$0xff]
        %v500 = vld [vmem:[%s301 + $0x350] sm:$0xff]
        %v501 = vld [vmem:[%s301 + $0x358] sm:$0xff]
        %v502 = vld [vmem:[%s301 + $0x360] sm:$0xff]
        %v503 = vld [vmem:[%s301 + $0x368] sm:$0xff]
        %v504 = vld [vmem:[%s301 + $0x370] sm:$0xff]
        %v505 = vld [vmem:[%s301 + $0x378] sm:$0xff]
        %v506 = vld [vmem:[%s301 + $0x380] sm:$0xff]
        %v507 = vld [vmem:[%s301 + $0x388] sm:$0xff]
        %v508 = vld [vmem:[%s301 + $0x390] sm:$0xff]
        %v509 = vld [vmem:[%s301 + $0x398] sm:$0xff]
        %v510 = vld [vmem:[%s301 + $0x3a0] sm:$0xff]
        %v511 = vld [vmem:[%s301 + $0x3a8] sm:$0xff]
        %v512 = vld [vmem:[%s301 + $0x3b0] sm:$0xff]
        %v513 = vld [vmem:[%s301 + $0x3b8] sm:$0xff]
        %v514 = vld [vmem:[%s301 + $0x3c0] sm:$0xff]
        %v515 = vld [vmem:[%s301 + $0x3c8] sm:$0xff]
        %v516 = vld [vmem:[%s301 + $0x3d0] sm:$0xff]
        %v517 = vld [vmem:[%s301 + $0x3d8] sm:$0xff]
        %v518 = vld [vmem:[%s301 + $0x3e0] sm:$0xff]
        %v519 = vld [vmem:[%s301 + $0x3e8] sm:$0xff]
        %v520 = vld [vmem:[%s301 + $0x3f0] sm:$0xff]
        %v521 = vld [vmem:[%s301 + $0x3f8] sm:$0xff]
        %v522 = vld [vmem:[%s301 + $0x400] sm:$0xff]
        %v523 = vld [vmem:[%s301 + $0x408] sm:$0xff]
        %v524 = vld [vmem:[%s301 + $0x410] sm:$0xff]
        %v525 = vld [vmem:[%s301 + $0x418] sm:$0xff]
        %v526 = vld [vmem:[%s301 + $0x420] sm:$0xff]
        %v527 = vld [vmem:[%s301 + $0x428] sm:$0xff]
        %v528 = vld [vmem:[%s301 + $0x430] sm:$0xff]
        %v529 = vld [vmem:[%s301 + $0x438] sm:$0xff]
        %v530 = vld [vmem:[%s301 + $0x440] sm:$0xff]
        %v531 = vld [vmem:[%s301 + $0x448] sm:$0xff]
        %v532 = vld [vmem:[%s301 + $0x450] sm:$0xff]
        %v533 = vld [vmem:[%s301 + $0x458] sm:$0xff]
        %v534 = vld [vmem:[%s301 + $0x460] sm:$0xff]
        %v535 = vld [vmem:[%s301 + $0x468] sm:$0xff]
        %v536 = vld [vmem:[%s301 + $0x470] sm:$0xff]
        %v537 = vld [vmem:[%s301 + $0x478] sm:$0xff]
        %v538 = vld [vmem:[%s301 + $0x480] sm:$0xff]
        %v539 = vld [vmem:[%s301 + $0x488] sm:$0xff]
        %v540 = vld [vmem:[%s301 + $0x490] sm:$0xff]
        %v541 = vld [vmem:[%s301 + $0x498] sm:$0xff]
        %v542 = vld [vmem:[%s301 + $0x4a0] sm:$0xff]
        %v543 = vld [vmem:[%s301 + $0x4a8] sm:$0xff]
        %v544 = vld [vmem:[%s301 + $0x4b0] sm:$0xff]
        %v545 = vld [vmem:[%s301 + $0x4b8] sm:$0xff]
        %v546 = vld [vmem:[%s301 + $0x4c0] sm:$0xff]
        %v547 = vld [vmem:[%s301 + $0x4c8] sm:$0xff]
        %v548 = vld [vmem:[%s301 + $0x4d0] sm:$0xff]
        %v549 = vld [vmem:[%s301 + $0x4d8] sm:$0xff]
        %v550 = vld [vmem:[%s301 + $0x4e0] sm:$0xff]
        %v551 = vld [vmem:[%s301 + $0x4e8] sm:$0xff]
        %v552 = vld [vmem:[%s301 + $0x4f0] sm:$0xff]
        %v553 = vld [vmem:[%s301 + $0x4f8] sm:$0xff]
        %v554 = vld [vmem:[%s301 + $0x500] sm:$0xff]
        %v555 = vld [vmem:[%s301 + $0x508] sm:$0xff]
        %v556 = vld [vmem:[%s301 + $0x510] sm:$0xff]
        %v557 = vld [vmem:[%s301 + $0x518] sm:$0xff]
        %v558 = vld [vmem:[%s301 + $0x520] sm:$0xff]
        %v559 = vld [vmem:[%s301 + $0x528] sm:$0xff]
        %v560 = vld [vmem:[%s301 + $0x530] sm:$0xff]
        %v561 = vld [vmem:[%s301 + $0x538] sm:$0xff]
        %v562 = vld [vmem:[%s301 + $0x540] sm:$0xff]
        %v563 = vld [vmem:[%s301 + $0x548] sm:$0xff]
        %v564 = vld [vmem:[%s301 + $0x550] sm:$0xff]
        %v565 = vld [vmem:[%s301 + $0x558] sm:$0xff]
        %v566 = vld [vmem:[%s301 + $0x560] sm:$0xff]
        %v567 = vld [vmem:[%s301 + $0x568] sm:$0xff]
        %v568 = vld [vmem:[%s301 + $0x570] sm:$0xff]
        %v569 = vld [vmem:[%s301 + $0x578] sm:$0xff]
        %v570 = vld [vmem:[%s301 + $0x580] sm:$0xff]
        %v571 = vld [vmem:[%s301 + $0x588] sm:$0xff]
        %v572 = vld [vmem:[%s301 + $0x590] sm:$0xff]
        %v573 = vld [vmem:[%s301 + $0x598] sm:$0xff]
        %v574 = vld [vmem:[%s301 + $0x5a0] sm:$0xff]
        %v575 = vld [vmem:[%s301 + $0x5a8] sm:$0xff]
        %v576 = vld [vmem:[%s301 + $0x5b0] sm:$0xff]
        %v577 = vld [vmem:[%s301 + $0x5b8] sm:$0xff]
        %v578 = vld [vmem:[%s301 + $0x5c0] sm:$0xff]
        %v579 = vld [vmem:[%s301 + $0x5c8] sm:$0xff]
        %v580 = vld [vmem:[%s301 + $0x5d0] sm:$0xff]
        %v581 = vld [vmem:[%s301 + $0x5d8] sm:$0xff]
        %v582 = vld [vmem:[%s301 + $0x5e0] sm:$0xff]
        %v583 = vld [vmem:[%s301 + $0x5e8] sm:$0xff]
        %v584 = vld [vmem:[%s301 + $0x5f0] sm:$0xff]
        %v585 = vld [vmem:[%s301 + $0x5f8] sm:$0xff]
        %v586 = vld [vmem:[%s301 + $0x600] sm:$0xff]
        %v587 = vld [vmem:[%s301 + $0x608] sm:$0xff]
        %v588 = vld [vmem:[%s301 + $0x610] sm:$0xff]
        %v589 = vld [vmem:[%s301 + $0x618] sm:$0xff]
        %v590 = vld [vmem:[%s301 + $0x620] sm:$0xff]
        %v591 = vld [vmem:[%s301 + $0x628] sm:$0xff]
        %v592 = vld [vmem:[%s301 + $0x630] sm:$0xff]
        %v593 = vld [vmem:[%s301 + $0x638] sm:$0xff]
        %v594 = vld [vmem:[%s301 + $0x640] sm:$0xff]
        %v595 = vld [vmem:[%s301 + $0x648] sm:$0xff]
        %v596 = vld [vmem:[%s301 + $0x650] sm:$0xff]
        %v597 = vld [vmem:[%s301 + $0x658] sm:$0xff]
        %v598 = vld [vmem:[%s301 + $0x660] sm:$0xff]
        %v599 = vld [vmem:[%s301 + $0x668] sm:$0xff]
        %v600 = vld [vmem:[%s301 + $0x670] sm:$0xff]
        %v601 = vld [vmem:[%s301 + $0x678] sm:$0xff]
        %v602 = vld [vmem:[%s301 + $0x680] sm:$0xff]
        %v603 = vld [vmem:[%s301 + $0x688] sm:$0xff]
        %v604 = vld [vmem:[%s301 + $0x690] sm:$0xff]
        %v605 = vld [vmem:[%s301 + $0x698] sm:$0xff]
        %v606 = vld [vmem:[%s301 + $0x6a0] sm:$0xff]
        %v607 = vld [vmem:[%s301 + $0x6a8] sm:$0xff]
        %v608 = vld [vmem:[%s301 + $0x6b0] sm:$0xff]
        %v609 = vld [vmem:[%s301 + $0x6b8] sm:$0xff]
        %v610 = vld [vmem:[%s301 + $0x6c0] sm:$0xff]
        %v611 = vld [vmem:[%s301 + $0x6c8] sm:$0xff]
        %v612 = vld [vmem:[%s301 + $0x6d0] sm:$0xff]
        %v613 = vld [vmem:[%s301 + $0x6d8] sm:$0xff]
        %v614 = vld [vmem:[%s301 + $0x6e0] sm:$0xff]
        %v615 = vld [vmem:[%s301 + $0x6e8] sm:$0xff]
        %v616 = vld [vmem:[%s301 + $0x6f0] sm:$0xff]
        %v617 = vld [vmem:[%s301 + $0x6f8] sm:$0xff]
        %v618 = vld [vmem:[%s301 + $0x700] sm:$0xff]
        %v619 = vld [vmem:[%s301 + $0x708] sm:$0xff]
        %v620 = vld [vmem:[%s301 + $0x710] sm:$0xff]
        %v621 = vld [vmem:[%s301 + $0x718] sm:$0xff]
        %v622 = vld [vmem:[%s301 + $0x720] sm:$0xff]
        %v623 = vld [vmem:[%s301 + $0x728] sm:$0xff]
        %v624 = vld [vmem:[%s301 + $0x730] sm:$0xff]
        %v625 = vld [vmem:[%s301 + $0x738] sm:$0xff]
        %v626 = vld [vmem:[%s301 + $0x740] sm:$0xff]
        %v627 = vld [vmem:[%s301 + $0x748] sm:$0xff]
        %v628 = vld [vmem:[%s301 + $0x750] sm:$0xff]
        %v629 = vld [vmem:[%s301 + $0x758] sm:$0xff]
        %v630 = vld [vmem:[%s301 + $0x760] sm:$0xff]
        %v631 = vld [vmem:[%s301 + $0x768] sm:$0xff]
        %v632 = vld [vmem:[%s301 + $0x770] sm:$0xff]
        %v633 = vld [vmem:[%s301 + $0x778] sm:$0xff]
        %v634 = vld [vmem:[%s301 + $0x780] sm:$0xff]
        %v635 = vld [vmem:[%s301 + $0x788] sm:$0xff]
        %v636 = vld [vmem:[%s301 + $0x790] sm:$0xff]
        %v637 = vld [vmem:[%s301 + $0x798] sm:$0xff]
        %v638 = vld [vmem:[%s301 + $0x7a0] sm:$0xff]
        %v639 = vld [vmem:[%s301 + $0x7a8] sm:$0xff]
        %v640 = vld [vmem:[%s301 + $0x7b0] sm:$0xff]
        %v641 = vld [vmem:[%s301 + $0x7b8] sm:$0xff]
        %v642 = vld [vmem:[%s301 + $0x7c0] sm:$0xff]
        %v643 = vld [vmem:[%s301 + $0x7c8] sm:$0xff]
        %v644 = vld [vmem:[%s301 + $0x7d0] sm:$0xff]
        %v645 = vld [vmem:[%s301 + $0x7d8] sm:$0xff]
        %v646 = vld [vmem:[%s301 + $0x7e0] sm:$0xff]
        %v647 = vld [vmem:[%s301 + $0x7e8] sm:$0xff]
        %v648 = vld [vmem:[%s301 + $0x7f0] sm:$0xff]
        %v649 = vld [vmem:[%s301 + $0x7f8] sm:$0xff]
        %v654 = vunpack.c.l.b16 %v390
        %v655 = vunpack.c.h.b16 %v390
        %v656 = vunpack.c.l.b16 %v391
        %v657 = vunpack.c.h.b16 %v391
        %v658 = vunpack.c.l.b16 %v392
        %v659 = vunpack.c.h.b16 %v392
        %v660 = vunpack.c.l.b16 %v393
        %v661 = vunpack.c.h.b16 %v393
        %v662 = vpack.c.b16 %v658, %v654
        %v663 = vpack.c.b16 %v659, %v655
        %v664 = vpack.c.b16 %v660, %v656
        %v665 = vpack.c.b16 %v661, %v657
        %v926 = vunpack.c.l.b16 %v394
        %v927 = vunpack.c.h.b16 %v394
        %v928 = vunpack.c.l.b16 %v395
        %v929 = vunpack.c.h.b16 %v395
        %v930 = vunpack.c.l.b16 %v396
        %v931 = vunpack.c.h.b16 %v396
        %v932 = vunpack.c.l.b16 %v397
        %v933 = vunpack.c.h.b16 %v397
        %v934 = vunpack.c.l.b16 %v398
        %v935 = vunpack.c.h.b16 %v398
        %v936 = vunpack.c.l.b16 %v399
        %v937 = vunpack.c.h.b16 %v399
        %v938 = vunpack.c.l.b16 %v400
        %v939 = vunpack.c.h.b16 %v400
        %v940 = vunpack.c.l.b16 %v401
        %v941 = vunpack.c.h.b16 %v401
        %v942 = vunpack.c.l.b16 %v402
        %v943 = vunpack.c.h.b16 %v402
        %v944 = vunpack.c.l.b16 %v403
        %v945 = vunpack.c.h.b16 %v403
        %v946 = vunpack.c.l.b16 %v404
        %v947 = vunpack.c.h.b16 %v404
        %v948 = vunpack.c.l.b16 %v405
        %v949 = vunpack.c.h.b16 %v405
        %v950 = vunpack.c.l.b16 %v406
        %v951 = vunpack.c.h.b16 %v406
        %v952 = vunpack.c.l.b16 %v407
        %v953 = vunpack.c.h.b16 %v407
        %v954 = vunpack.c.l.b16 %v408
        %v955 = vunpack.c.h.b16 %v408
        %v956 = vunpack.c.l.b16 %v409
        %v957 = vunpack.c.h.b16 %v409
        %v958 = vunpack.c.l.b16 %v410
        %v959 = vunpack.c.h.b16 %v410
        %v960 = vunpack.c.l.b16 %v411
        %v961 = vunpack.c.h.b16 %v411
        %v962 = vunpack.c.l.b16 %v412
        %v963 = vunpack.c.h.b16 %v412
        %v964 = vunpack.c.l.b16 %v413
        %v965 = vunpack.c.h.b16 %v413
        %v966 = vunpack.c.l.b16 %v414
        %v967 = vunpack.c.h.b16 %v414
        %v968 = vunpack.c.l.b16 %v415
        %v969 = vunpack.c.h.b16 %v415
        %v970 = vunpack.c.l.b16 %v416
        %v971 = vunpack.c.h.b16 %v416
        %v972 = vunpack.c.l.b16 %v417
        %v973 = vunpack.c.h.b16 %v417
        %v974 = vunpack.c.l.b16 %v418
        %v975 = vunpack.c.h.b16 %v418
        %v976 = vunpack.c.l.b16 %v419
        %v977 = vunpack.c.h.b16 %v419
        %v978 = vunpack.c.l.b16 %v420
        %v979 = vunpack.c.h.b16 %v420
        %v980 = vunpack.c.l.b16 %v421
        %v981 = vunpack.c.h.b16 %v421
        %v982 = vunpack.c.l.b16 %v422
        %v983 = vunpack.c.h.b16 %v422
        %v984 = vunpack.c.l.b16 %v423
        %v985 = vunpack.c.h.b16 %v423
        %v986 = vunpack.c.l.b16 %v424
        %v987 = vunpack.c.h.b16 %v424
        %v988 = vunpack.c.l.b16 %v425
        %v989 = vunpack.c.h.b16 %v425
        %v990 = vunpack.c.l.b16 %v426
        %v991 = vunpack.c.h.b16 %v426
        %v992 = vunpack.c.l.b16 %v427
        %v993 = vunpack.c.h.b16 %v427
        %v994 = vunpack.c.l.b16 %v428
        %v995 = vunpack.c.h.b16 %v428
        %v996 = vunpack.c.l.b16 %v429
        %v997 = vunpack.c.h.b16 %v429
        %v998 = vunpack.c.l.b16 %v430
        %v999 = vunpack.c.h.b16 %v430
        %v1000 = vunpack.c.l.b16 %v431
        %v1001 = vunpack.c.h.b16 %v431
        %v1002 = vunpack.c.l.b16 %v432
        %v1003 = vunpack.c.h.b16 %v432
        %v1004 = vunpack.c.l.b16 %v433
        %v1005 = vunpack.c.h.b16 %v433
        %v1006 = vunpack.c.l.b16 %v434
        %v1007 = vunpack.c.h.b16 %v434
        %v1008 = vunpack.c.l.b16 %v435
        %v1009 = vunpack.c.h.b16 %v435
        %v1010 = vunpack.c.l.b16 %v436
        %v1011 = vunpack.c.h.b16 %v436
        %v1012 = vunpack.c.l.b16 %v437
        %v1013 = vunpack.c.h.b16 %v437
        %v1014 = vunpack.c.l.b16 %v438
        %v1015 = vunpack.c.h.b16 %v438
        %v1016 = vunpack.c.l.b16 %v439
        %v1017 = vunpack.c.h.b16 %v439
        %v1018 = vunpack.c.l.b16 %v440
        %v1019 = vunpack.c.h.b16 %v440
        %v1020 = vunpack.c.l.b16 %v441
        %v1021 = vunpack.c.h.b16 %v441
        %v1022 = vunpack.c.l.b16 %v442
        %v1023 = vunpack.c.h.b16 %v442
        %v1024 = vunpack.c.l.b16 %v443
        %v1025 = vunpack.c.h.b16 %v443
        %v1026 = vunpack.c.l.b16 %v444
        %v1027 = vunpack.c.h.b16 %v444
        %v1028 = vunpack.c.l.b16 %v445
        %v1029 = vunpack.c.h.b16 %v445
        %v1030 = vunpack.c.l.b16 %v446
        %v1031 = vunpack.c.h.b16 %v446
        %v1032 = vunpack.c.l.b16 %v447
        %v1033 = vunpack.c.h.b16 %v447
        %v1034 = vunpack.c.l.b16 %v448
        %v1035 = vunpack.c.h.b16 %v448
        %v1036 = vunpack.c.l.b16 %v449
        %v1037 = vunpack.c.h.b16 %v449
        %v1038 = vunpack.c.l.b16 %v450
        %v1039 = vunpack.c.h.b16 %v450
        %v1040 = vunpack.c.l.b16 %v451
        %v1041 = vunpack.c.h.b16 %v451
        %v1042 = vunpack.c.l.b16 %v452
        %v1043 = vunpack.c.h.b16 %v452
        %v1044 = vunpack.c.l.b16 %v453
        %v1045 = vunpack.c.h.b16 %v453
        %v1046 = vunpack.c.l.b16 %v454
        %v1047 = vunpack.c.h.b16 %v454
        %v1048 = vunpack.c.l.b16 %v455
        %v1049 = vunpack.c.h.b16 %v455
        %v1050 = vunpack.c.l.b16 %v456
        %v1051 = vunpack.c.h.b16 %v456
        %v1052 = vunpack.c.l.b16 %v457
        %v1053 = vunpack.c.h.b16 %v457
        %v1054 = vunpack.c.l.b16 %v458
        %v1055 = vunpack.c.h.b16 %v458
        %v1056 = vunpack.c.l.b16 %v459
        %v1057 = vunpack.c.h.b16 %v459
        %v1058 = vunpack.c.l.b16 %v460
        %v1059 = vunpack.c.h.b16 %v460
        %v1060 = vunpack.c.l.b16 %v461
        %v1061 = vunpack.c.h.b16 %v461
        %v1062 = vunpack.c.l.b16 %v462
        %v1063 = vunpack.c.h.b16 %v462
        %v1064 = vunpack.c.l.b16 %v463
        %v1065 = vunpack.c.h.b16 %v463
        %v1066 = vunpack.c.l.b16 %v464
        %v1067 = vunpack.c.h.b16 %v464
        %v1068 = vunpack.c.l.b16 %v465
        %v1069 = vunpack.c.h.b16 %v465
        %v1070 = vunpack.c.l.b16 %v466
        %v1071 = vunpack.c.h.b16 %v466
        %v1072 = vunpack.c.l.b16 %v467
        %v1073 = vunpack.c.h.b16 %v467
        %v1074 = vunpack.c.l.b16 %v468
        %v1075 = vunpack.c.h.b16 %v468
        %v1076 = vunpack.c.l.b16 %v469
        %v1077 = vunpack.c.h.b16 %v469
        %v1078 = vunpack.c.l.b16 %v470
        %v1079 = vunpack.c.h.b16 %v470
        %v1080 = vunpack.c.l.b16 %v471
        %v1081 = vunpack.c.h.b16 %v471
        %v1082 = vunpack.c.l.b16 %v472
        %v1083 = vunpack.c.h.b16 %v472
        %v1084 = vunpack.c.l.b16 %v473
        %v1085 = vunpack.c.h.b16 %v473
        %v1086 = vunpack.c.l.b16 %v474
        %v1087 = vunpack.c.h.b16 %v474
        %v1088 = vunpack.c.l.b16 %v475
        %v1089 = vunpack.c.h.b16 %v475
        %v1090 = vunpack.c.l.b16 %v476
        %v1091 = vunpack.c.h.b16 %v476
        %v1092 = vunpack.c.l.b16 %v477
        %v1093 = vunpack.c.h.b16 %v477
        %v1094 = vunpack.c.l.b16 %v478
        %v1095 = vunpack.c.h.b16 %v478
        %v1096 = vunpack.c.l.b16 %v479
        %v1097 = vunpack.c.h.b16 %v479
        %v1098 = vunpack.c.l.b16 %v480
        %v1099 = vunpack.c.h.b16 %v480
        %v1100 = vunpack.c.l.b16 %v481
        %v1101 = vunpack.c.h.b16 %v481
        %v1102 = vunpack.c.l.b16 %v482
        %v1103 = vunpack.c.h.b16 %v482
        %v1104 = vunpack.c.l.b16 %v483
        %v1105 = vunpack.c.h.b16 %v483
        %v1106 = vunpack.c.l.b16 %v484
        %v1107 = vunpack.c.h.b16 %v484
        %v1108 = vunpack.c.l.b16 %v485
        %v1109 = vunpack.c.h.b16 %v485
        %v1110 = vunpack.c.l.b16 %v486
        %v1111 = vunpack.c.h.b16 %v486
        %v1112 = vunpack.c.l.b16 %v487
        %v1113 = vunpack.c.h.b16 %v487
        %v1114 = vunpack.c.l.b16 %v488
        %v1115 = vunpack.c.h.b16 %v488
        %v1116 = vunpack.c.l.b16 %v489
        %v1117 = vunpack.c.h.b16 %v489
        %v1118 = vunpack.c.l.b16 %v490
        %v1119 = vunpack.c.h.b16 %v490
        %v1120 = vunpack.c.l.b16 %v491
        %v1121 = vunpack.c.h.b16 %v491
        %v1122 = vunpack.c.l.b16 %v492
        %v1123 = vunpack.c.h.b16 %v492
        %v1124 = vunpack.c.l.b16 %v493
        %v1125 = vunpack.c.h.b16 %v493
        %v1126 = vunpack.c.l.b16 %v494
        %v1127 = vunpack.c.h.b16 %v494
        %v1128 = vunpack.c.l.b16 %v495
        %v1129 = vunpack.c.h.b16 %v495
        %v1130 = vunpack.c.l.b16 %v496
        %v1131 = vunpack.c.h.b16 %v496
        %v1132 = vunpack.c.l.b16 %v497
        %v1133 = vunpack.c.h.b16 %v497
        %v1134 = vunpack.c.l.b16 %v498
        %v1135 = vunpack.c.h.b16 %v498
        %v1136 = vunpack.c.l.b16 %v499
        %v1137 = vunpack.c.h.b16 %v499
        %v1138 = vunpack.c.l.b16 %v500
        %v1139 = vunpack.c.h.b16 %v500
        %v1140 = vunpack.c.l.b16 %v501
        %v1141 = vunpack.c.h.b16 %v501
        %v1142 = vunpack.c.l.b16 %v502
        %v1143 = vunpack.c.h.b16 %v502
        %v1144 = vunpack.c.l.b16 %v503
        %v1145 = vunpack.c.h.b16 %v503
        %v1146 = vunpack.c.l.b16 %v504
        %v1147 = vunpack.c.h.b16 %v504
        %v1148 = vunpack.c.l.b16 %v505
        %v1149 = vunpack.c.h.b16 %v505
        %v1150 = vunpack.c.l.b16 %v506
        %v1151 = vunpack.c.h.b16 %v506
        %v1152 = vunpack.c.l.b16 %v507
        %v1153 = vunpack.c.h.b16 %v507
        %v1154 = vunpack.c.l.b16 %v508
        %v1155 = vunpack.c.h.b16 %v508
        %v1156 = vunpack.c.l.b16 %v509
        %v1157 = vunpack.c.h.b16 %v509
        %v1158 = vunpack.c.l.b16 %v510
        %v1159 = vunpack.c.h.b16 %v510
        %v1160 = vunpack.c.l.b16 %v511
        %v1161 = vunpack.c.h.b16 %v511
        %v1162 = vunpack.c.l.b16 %v512
        %v1163 = vunpack.c.h.b16 %v512
        %v1164 = vunpack.c.l.b16 %v513
        %v1165 = vunpack.c.h.b16 %v513
        %v1166 = vunpack.c.l.b16 %v514
        %v1167 = vunpack.c.h.b16 %v514
        %v1168 = vunpack.c.l.b16 %v515
        %v1169 = vunpack.c.h.b16 %v515
        %v1170 = vunpack.c.l.b16 %v516
        %v1171 = vunpack.c.h.b16 %v516
        %v1172 = vunpack.c.l.b16 %v517
        %v1173 = vunpack.c.h.b16 %v517
        %v1174 = vunpack.c.l.b16 %v518
        %v1175 = vunpack.c.h.b16 %v518
        %v1176 = vunpack.c.l.b16 %v519
        %v1177 = vunpack.c.h.b16 %v519
        %v1178 = vunpack.c.l.b16 %v520
        %v1179 = vunpack.c.h.b16 %v520
        %v1180 = vunpack.c.l.b16 %v521
        %v1181 = vunpack.c.h.b16 %v521
        %v1182 = vunpack.c.l.b16 %v522
        %v1183 = vunpack.c.h.b16 %v522
        %v1184 = vunpack.c.l.b16 %v523
        %v1185 = vunpack.c.h.b16 %v523
        %v1186 = vunpack.c.l.b16 %v524
        %v1187 = vunpack.c.h.b16 %v524
        %v1188 = vunpack.c.l.b16 %v525
        %v1189 = vunpack.c.h.b16 %v525
        %v1190 = vunpack.c.l.b16 %v526
        %v1191 = vunpack.c.h.b16 %v526
        %v1192 = vunpack.c.l.b16 %v527
        %v1193 = vunpack.c.h.b16 %v527
        %v1194 = vunpack.c.l.b16 %v528
        %v1195 = vunpack.c.h.b16 %v528
        %v1196 = vunpack.c.l.b16 %v529
        %v1197 = vunpack.c.h.b16 %v529
        %v1198 = vunpack.c.l.b16 %v530
        %v1199 = vunpack.c.h.b16 %v530
        %v1200 = vunpack.c.l.b16 %v531
        %v1201 = vunpack.c.h.b16 %v531
        %v1202 = vunpack.c.l.b16 %v532
        %v1203 = vunpack.c.h.b16 %v532
        %v1204 = vunpack.c.l.b16 %v533
        %v1205 = vunpack.c.h.b16 %v533
        %v1206 = vunpack.c.l.b16 %v534
        %v1207 = vunpack.c.h.b16 %v534
        %v1208 = vunpack.c.l.b16 %v535
        %v1209 = vunpack.c.h.b16 %v535
        %v1210 = vunpack.c.l.b16 %v536
        %v1211 = vunpack.c.h.b16 %v536
        %v1212 = vunpack.c.l.b16 %v537
        %v1213 = vunpack.c.h.b16 %v537
        %v1214 = vunpack.c.l.b16 %v538
        %v1215 = vunpack.c.h.b16 %v538
        %v1216 = vunpack.c.l.b16 %v539
        %v1217 = vunpack.c.h.b16 %v539
        %v1218 = vunpack.c.l.b16 %v540
        %v1219 = vunpack.c.h.b16 %v540
        %v1220 = vunpack.c.l.b16 %v541
        %v1221 = vunpack.c.h.b16 %v541
        %v1222 = vunpack.c.l.b16 %v542
        %v1223 = vunpack.c.h.b16 %v542
        %v1224 = vunpack.c.l.b16 %v543
        %v1225 = vunpack.c.h.b16 %v543
        %v1226 = vunpack.c.l.b16 %v544
        %v1227 = vunpack.c.h.b16 %v544
        %v1228 = vunpack.c.l.b16 %v545
        %v1229 = vunpack.c.h.b16 %v545
        %v1230 = vunpack.c.l.b16 %v546
        %v1231 = vunpack.c.h.b16 %v546
        %v1232 = vunpack.c.l.b16 %v547
        %v1233 = vunpack.c.h.b16 %v547
        %v1234 = vunpack.c.l.b16 %v548
        %v1235 = vunpack.c.h.b16 %v548
        %v1236 = vunpack.c.l.b16 %v549
        %v1237 = vunpack.c.h.b16 %v549
        %v1238 = vunpack.c.l.b16 %v550
        %v1239 = vunpack.c.h.b16 %v550
        %v1240 = vunpack.c.l.b16 %v551
        %v1241 = vunpack.c.h.b16 %v551
        %v1242 = vunpack.c.l.b16 %v552
        %v1243 = vunpack.c.h.b16 %v552
        %v1244 = vunpack.c.l.b16 %v553
        %v1245 = vunpack.c.h.b16 %v553
        %v1246 = vunpack.c.l.b16 %v554
        %v1247 = vunpack.c.h.b16 %v554
        %v1248 = vunpack.c.l.b16 %v555
        %v1249 = vunpack.c.h.b16 %v555
        %v1250 = vunpack.c.l.b16 %v556
        %v1251 = vunpack.c.h.b16 %v556
        %v1252 = vunpack.c.l.b16 %v557
        %v1253 = vunpack.c.h.b16 %v557
        %v1254 = vunpack.c.l.b16 %v558
        %v1255 = vunpack.c.h.b16 %v558
        %v1256 = vunpack.c.l.b16 %v559
        %v1257 = vunpack.c.h.b16 %v559
        %v1258 = vunpack.c.l.b16 %v560
        %v1259 = vunpack.c.h.b16 %v560
        %v1260 = vunpack.c.l.b16 %v561
        %v1261 = vunpack.c.h.b16 %v561
        %v1262 = vunpack.c.l.b16 %v562
        %v1263 = vunpack.c.h.b16 %v562
        %v1264 = vunpack.c.l.b16 %v563
        %v1265 = vunpack.c.h.b16 %v563
        %v1266 = vunpack.c.l.b16 %v564
        %v1267 = vunpack.c.h.b16 %v564
        %v1268 = vunpack.c.l.b16 %v565
        %v1269 = vunpack.c.h.b16 %v565
        %v1270 = vunpack.c.l.b16 %v566
        %v1271 = vunpack.c.h.b16 %v566
        %v1272 = vunpack.c.l.b16 %v567
        %v1273 = vunpack.c.h.b16 %v567
        %v1274 = vunpack.c.l.b16 %v568
        %v1275 = vunpack.c.h.b16 %v568
        %v1276 = vunpack.c.l.b16 %v569
        %v1277 = vunpack.c.h.b16 %v569
        %v1278 = vunpack.c.l.b16 %v570
        %v1279 = vunpack.c.h.b16 %v570
        %v1280 = vunpack.c.l.b16 %v571
        %v1281 = vunpack.c.h.b16 %v571
        %v1282 = vunpack.c.l.b16 %v572
        %v1283 = vunpack.c.h.b16 %v572
        %v1284 = vunpack.c.l.b16 %v573
        %v1285 = vunpack.c.h.b16 %v573
        %v1286 = vunpack.c.l.b16 %v574
        %v1287 = vunpack.c.h.b16 %v574
        %v1288 = vunpack.c.l.b16 %v575
        %v1289 = vunpack.c.h.b16 %v575
        %v1290 = vunpack.c.l.b16 %v576
        %v1291 = vunpack.c.h.b16 %v576
        %v1292 = vunpack.c.l.b16 %v577
        %v1293 = vunpack.c.h.b16 %v577
        %v1294 = vunpack.c.l.b16 %v578
        %v1295 = vunpack.c.h.b16 %v578
        %v1296 = vunpack.c.l.b16 %v579
        %v1297 = vunpack.c.h.b16 %v579
        %v1298 = vunpack.c.l.b16 %v580
        %v1299 = vunpack.c.h.b16 %v580
        %v1300 = vunpack.c.l.b16 %v581
        %v1301 = vunpack.c.h.b16 %v581
        %v1302 = vunpack.c.l.b16 %v582
        %v1303 = vunpack.c.h.b16 %v582
        %v1304 = vunpack.c.l.b16 %v583
        %v1305 = vunpack.c.h.b16 %v583
        %v1306 = vunpack.c.l.b16 %v584
        %v1307 = vunpack.c.h.b16 %v584
        %v1308 = vunpack.c.l.b16 %v585
        %v1309 = vunpack.c.h.b16 %v585
        %v1310 = vunpack.c.l.b16 %v586
        %v1311 = vunpack.c.h.b16 %v586
        %v1312 = vunpack.c.l.b16 %v587
        %v1313 = vunpack.c.h.b16 %v587
        %v1314 = vunpack.c.l.b16 %v588
        %v1315 = vunpack.c.h.b16 %v588
        %v1316 = vunpack.c.l.b16 %v589
        %v1317 = vunpack.c.h.b16 %v589
        %v1318 = vunpack.c.l.b16 %v590
        %v1319 = vunpack.c.h.b16 %v590
        %v1320 = vunpack.c.l.b16 %v591
        %v1321 = vunpack.c.h.b16 %v591
        %v1322 = vunpack.c.l.b16 %v592
        %v1323 = vunpack.c.h.b16 %v592
        %v1324 = vunpack.c.l.b16 %v593
        %v1325 = vunpack.c.h.b16 %v593
        %v1326 = vunpack.c.l.b16 %v594
        %v1327 = vunpack.c.h.b16 %v594
        %v1328 = vunpack.c.l.b16 %v595
        %v1329 = vunpack.c.h.b16 %v595
        %v1330 = vunpack.c.l.b16 %v596
        %v1331 = vunpack.c.h.b16 %v596
        %v1332 = vunpack.c.l.b16 %v597
        %v1333 = vunpack.c.h.b16 %v597
        %v1334 = vunpack.c.l.b16 %v598
        %v1335 = vunpack.c.h.b16 %v598
        %v1336 = vunpack.c.l.b16 %v599
        %v1337 = vunpack.c.h.b16 %v599
        %v1338 = vunpack.c.l.b16 %v600
        %v1339 = vunpack.c.h.b16 %v600
        %v1340 = vunpack.c.l.b16 %v601
        %v1341 = vunpack.c.h.b16 %v601
        %v1342 = vunpack.c.l.b16 %v602
        %v1343 = vunpack.c.h.b16 %v602
        %v1344 = vunpack.c.l.b16 %v603
        %v1345 = vunpack.c.h.b16 %v603
        %v1346 = vunpack.c.l.b16 %v604
        %v1347 = vunpack.c.h.b16 %v604
        %v1348 = vunpack.c.l.b16 %v605
        %v1349 = vunpack.c.h.b16 %v605
        %v1350 = vunpack.c.l.b16 %v606
        %v1351 = vunpack.c.h.b16 %v606
        %v1352 = vunpack.c.l.b16 %v607
        %v1353 = vunpack.c.h.b16 %v607
        %v1354 = vunpack.c.l.b16 %v608
        %v1355 = vunpack.c.h.b16 %v608
        %v1356 = vunpack.c.l.b16 %v609
        %v1357 = vunpack.c.h.b16 %v609
        %v1358 = vunpack.c.l.b16 %v610
        %v1359 = vunpack.c.h.b16 %v610
        %v1360 = vunpack.c.l.b16 %v611
        %v1361 = vunpack.c.h.b16 %v611
        %v1362 = vunpack.c.l.b16 %v612
        %v1363 = vunpack.c.h.b16 %v612
        %v1364 = vunpack.c.l.b16 %v613
        %v1365 = vunpack.c.h.b16 %v613
        %v1366 = vunpack.c.l.b16 %v614
        %v1367 = vunpack.c.h.b16 %v614
        %v1368 = vunpack.c.l.b16 %v615
        %v1369 = vunpack.c.h.b16 %v615
        %v1370 = vunpack.c.l.b16 %v616
        %v1371 = vunpack.c.h.b16 %v616
        %v1372 = vunpack.c.l.b16 %v617
        %v1373 = vunpack.c.h.b16 %v617
        %v1374 = vunpack.c.l.b16 %v618
        %v1375 = vunpack.c.h.b16 %v618
        %v1376 = vunpack.c.l.b16 %v619
        %v1377 = vunpack.c.h.b16 %v619
        %v1378 = vunpack.c.l.b16 %v620
        %v1379 = vunpack.c.h.b16 %v620
        %v1380 = vunpack.c.l.b16 %v621
        %v1381 = vunpack.c.h.b16 %v621
        %v1382 = vunpack.c.l.b16 %v622
        %v1383 = vunpack.c.h.b16 %v622
        %v1384 = vunpack.c.l.b16 %v623
        %v1385 = vunpack.c.h.b16 %v623
        %v1386 = vunpack.c.l.b16 %v624
        %v1387 = vunpack.c.h.b16 %v624
        %v1388 = vunpack.c.l.b16 %v625
        %v1389 = vunpack.c.h.b16 %v625
        %v1390 = vunpack.c.l.b16 %v626
        %v1391 = vunpack.c.h.b16 %v626
        %v1392 = vunpack.c.l.b16 %v627
        %v1393 = vunpack.c.h.b16 %v627
        %v1394 = vunpack.c.l.b16 %v628
        %v1395 = vunpack.c.h.b16 %v628
        %v1396 = vunpack.c.l.b16 %v629
        %v1397 = vunpack.c.h.b16 %v629
        %v1398 = vunpack.c.l.b16 %v630
        %v1399 = vunpack.c.h.b16 %v630
        %v1400 = vunpack.c.l.b16 %v631
        %v1401 = vunpack.c.h.b16 %v631
        %v1402 = vunpack.c.l.b16 %v632
        %v1403 = vunpack.c.h.b16 %v632
        %v1404 = vunpack.c.l.b16 %v633
        %v1405 = vunpack.c.h.b16 %v633
        %v1406 = vunpack.c.l.b16 %v634
        %v1407 = vunpack.c.h.b16 %v634
        %v1408 = vunpack.c.l.b16 %v635
        %v1409 = vunpack.c.h.b16 %v635
        %v1410 = vunpack.c.l.b16 %v636
        %v1411 = vunpack.c.h.b16 %v636
        %v1412 = vunpack.c.l.b16 %v637
        %v1413 = vunpack.c.h.b16 %v637
        %v1414 = vunpack.c.l.b16 %v638
        %v1415 = vunpack.c.h.b16 %v638
        %v1416 = vunpack.c.l.b16 %v639
        %v1417 = vunpack.c.h.b16 %v639
        %v1418 = vunpack.c.l.b16 %v640
        %v1419 = vunpack.c.h.b16 %v640
        %v1420 = vunpack.c.l.b16 %v641
        %v1421 = vunpack.c.h.b16 %v641
        %v1422 = vunpack.c.l.b16 %v642
        %v1423 = vunpack.c.h.b16 %v642
        %v1424 = vunpack.c.l.b16 %v643
        %v1425 = vunpack.c.h.b16 %v643
        %v1426 = vunpack.c.l.b16 %v644
        %v1427 = vunpack.c.h.b16 %v644
        %v1428 = vunpack.c.l.b16 %v645
        %v1429 = vunpack.c.h.b16 %v645
        %v1430 = vunpack.c.l.b16 %v646
        %v1431 = vunpack.c.h.b16 %v646
        %v1432 = vunpack.c.l.b16 %v647
        %v1433 = vunpack.c.h.b16 %v647
        %v1434 = vunpack.c.l.b16 %v648
        %v1435 = vunpack.c.h.b16 %v648
        %v1436 = vunpack.c.l.b16 %v649
        %v1437 = vunpack.c.h.b16 %v649
        %v1438 = vpack.c.b16 %v934, %v926
        %v1439 = vpack.c.b16 %v935, %v927
        %v1440 = vpack.c.b16 %v936, %v928
        %v1441 = vpack.c.b16 %v937, %v929
        %v1442 = vpack.c.b16 %v938, %v930
        %v1443 = vpack.c.b16 %v939, %v931
        %v1444 = vpack.c.b16 %v940, %v932
        %v1445 = vpack.c.b16 %v941, %v933
        %v1446 = vpack.c.b16 %v950, %v942
        %v1447 = vpack.c.b16 %v951, %v943
        %v1448 = vpack.c.b16 %v952, %v944
        %v1449 = vpack.c.b16 %v953, %v945
        %v1450 = vpack.c.b16 %v954, %v946
        %v1451 = vpack.c.b16 %v955, %v947
        %v1452 = vpack.c.b16 %v956, %v948
        %v1453 = vpack.c.b16 %v957, %v949
        %v1454 = vpack.c.b16 %v966, %v958
        %v1455 = vpack.c.b16 %v967, %v959
        %v1456 = vpack.c.b16 %v968, %v960
        %v1457 = vpack.c.b16 %v969, %v961
        %v1458 = vpack.c.b16 %v970, %v962
        %v1459 = vpack.c.b16 %v971, %v963
        %v1460 = vpack.c.b16 %v972, %v964
        %v1461 = vpack.c.b16 %v973, %v965
        %v1462 = vpack.c.b16 %v982, %v974
        %v1463 = vpack.c.b16 %v983, %v975
        %v1464 = vpack.c.b16 %v984, %v976
        %v1465 = vpack.c.b16 %v985, %v977
        %v1466 = vpack.c.b16 %v986, %v978
        %v1467 = vpack.c.b16 %v987, %v979
        %v1468 = vpack.c.b16 %v988, %v980
        %v1469 = vpack.c.b16 %v989, %v981
        %v1470 = vpack.c.b16 %v998, %v990
        %v1471 = vpack.c.b16 %v999, %v991
        %v1472 = vpack.c.b16 %v1000, %v992
        %v1473 = vpack.c.b16 %v1001, %v993
        %v1474 = vpack.c.b16 %v1002, %v994
        %v1475 = vpack.c.b16 %v1003, %v995
        %v1476 = vpack.c.b16 %v1004, %v996
        %v1477 = vpack.c.b16 %v1005, %v997
        %v1478 = vpack.c.b16 %v1014, %v1006
        %v1479 = vpack.c.b16 %v1015, %v1007
        %v1480 = vpack.c.b16 %v1016, %v1008
        %v1481 = vpack.c.b16 %v1017, %v1009
        %v1482 = vpack.c.b16 %v1018, %v1010
        %v1483 = vpack.c.b16 %v1019, %v1011
        %v1484 = vpack.c.b16 %v1020, %v1012
        %v1485 = vpack.c.b16 %v1021, %v1013
        %v1486 = vpack.c.b16 %v1030, %v1022
        %v1487 = vpack.c.b16 %v1031, %v1023
        %v1488 = vpack.c.b16 %v1032, %v1024
        %v1489 = vpack.c.b16 %v1033, %v1025
        %v1490 = vpack.c.b16 %v1034, %v1026
        %v1491 = vpack.c.b16 %v1035, %v1027
        %v1492 = vpack.c.b16 %v1036, %v1028
        %v1493 = vpack.c.b16 %v1037, %v1029
        %v1494 = vpack.c.b16 %v1046, %v1038
        %v1495 = vpack.c.b16 %v1047, %v1039
        %v1496 = vpack.c.b16 %v1048, %v1040
        %v1497 = vpack.c.b16 %v1049, %v1041
        %v1498 = vpack.c.b16 %v1050, %v1042
        %v1499 = vpack.c.b16 %v1051, %v1043
        %v1500 = vpack.c.b16 %v1052, %v1044
        %v1501 = vpack.c.b16 %v1053, %v1045
        %v1502 = vpack.c.b16 %v1062, %v1054
        %v1503 = vpack.c.b16 %v1063, %v1055
        %v1504 = vpack.c.b16 %v1064, %v1056
        %v1505 = vpack.c.b16 %v1065, %v1057
        %v1506 = vpack.c.b16 %v1066, %v1058
        %v1507 = vpack.c.b16 %v1067, %v1059
        %v1508 = vpack.c.b16 %v1068, %v1060
        %v1509 = vpack.c.b16 %v1069, %v1061
        %v1510 = vpack.c.b16 %v1078, %v1070
        %v1511 = vpack.c.b16 %v1079, %v1071
        %v1512 = vpack.c.b16 %v1080, %v1072
        %v1513 = vpack.c.b16 %v1081, %v1073
        %v1514 = vpack.c.b16 %v1082, %v1074
        %v1515 = vpack.c.b16 %v1083, %v1075
        %v1516 = vpack.c.b16 %v1084, %v1076
        %v1517 = vpack.c.b16 %v1085, %v1077
        %v1518 = vpack.c.b16 %v1094, %v1086
        %v1519 = vpack.c.b16 %v1095, %v1087
        %v1520 = vpack.c.b16 %v1096, %v1088
        %v1521 = vpack.c.b16 %v1097, %v1089
        %v1522 = vpack.c.b16 %v1098, %v1090
        %v1523 = vpack.c.b16 %v1099, %v1091
        %v1524 = vpack.c.b16 %v1100, %v1092
        %v1525 = vpack.c.b16 %v1101, %v1093
        %v1526 = vpack.c.b16 %v1110, %v1102
        %v1527 = vpack.c.b16 %v1111, %v1103
        %v1528 = vpack.c.b16 %v1112, %v1104
        %v1529 = vpack.c.b16 %v1113, %v1105
        %v1530 = vpack.c.b16 %v1114, %v1106
        %v1531 = vpack.c.b16 %v1115, %v1107
        %v1532 = vpack.c.b16 %v1116, %v1108
        %v1533 = vpack.c.b16 %v1117, %v1109
        %v1534 = vpack.c.b16 %v1126, %v1118
        %v1535 = vpack.c.b16 %v1127, %v1119
        %v1536 = vpack.c.b16 %v1128, %v1120
        %v1537 = vpack.c.b16 %v1129, %v1121
        %v1538 = vpack.c.b16 %v1130, %v1122
        %v1539 = vpack.c.b16 %v1131, %v1123
        %v1540 = vpack.c.b16 %v1132, %v1124
        %v1541 = vpack.c.b16 %v1133, %v1125
        %v1542 = vpack.c.b16 %v1142, %v1134
        %v1543 = vpack.c.b16 %v1143, %v1135
        %v1544 = vpack.c.b16 %v1144, %v1136
        %v1545 = vpack.c.b16 %v1145, %v1137
        %v1546 = vpack.c.b16 %v1146, %v1138
        %v1547 = vpack.c.b16 %v1147, %v1139
        %v1548 = vpack.c.b16 %v1148, %v1140
        %v1549 = vpack.c.b16 %v1149, %v1141
        %v1550 = vpack.c.b16 %v1158, %v1150
        %v1551 = vpack.c.b16 %v1159, %v1151
        %v1552 = vpack.c.b16 %v1160, %v1152
        %v1553 = vpack.c.b16 %v1161, %v1153
        %v1554 = vpack.c.b16 %v1162, %v1154
        %v1555 = vpack.c.b16 %v1163, %v1155
        %v1556 = vpack.c.b16 %v1164, %v1156
        %v1557 = vpack.c.b16 %v1165, %v1157
        %v1558 = vpack.c.b16 %v1174, %v1166
        %v1559 = vpack.c.b16 %v1175, %v1167
        %v1560 = vpack.c.b16 %v1176, %v1168
        %v1561 = vpack.c.b16 %v1177, %v1169
        %v1562 = vpack.c.b16 %v1178, %v1170
        %v1563 = vpack.c.b16 %v1179, %v1171
        %v1564 = vpack.c.b16 %v1180, %v1172
        %v1565 = vpack.c.b16 %v1181, %v1173
        %v1566 = vpack.c.b16 %v1190, %v1182
        %v1567 = vpack.c.b16 %v1191, %v1183
        %v1568 = vpack.c.b16 %v1192, %v1184
        %v1569 = vpack.c.b16 %v1193, %v1185
        %v1570 = vpack.c.b16 %v1194, %v1186
        %v1571 = vpack.c.b16 %v1195, %v1187
        %v1572 = vpack.c.b16 %v1196, %v1188
        %v1573 = vpack.c.b16 %v1197, %v1189
        %v1574 = vpack.c.b16 %v1206, %v1198
        %v1575 = vpack.c.b16 %v1207, %v1199
        %v1576 = vpack.c.b16 %v1208, %v1200
        %v1577 = vpack.c.b16 %v1209, %v1201
        %v1578 = vpack.c.b16 %v1210, %v1202
        %v1579 = vpack.c.b16 %v1211, %v1203
        %v1580 = vpack.c.b16 %v1212, %v1204
        %v1581 = vpack.c.b16 %v1213, %v1205
        %v1582 = vpack.c.b16 %v1222, %v1214
        %v1583 = vpack.c.b16 %v1223, %v1215
        %v1584 = vpack.c.b16 %v1224, %v1216
        %v1585 = vpack.c.b16 %v1225, %v1217
        %v1586 = vpack.c.b16 %v1226, %v1218
        %v1587 = vpack.c.b16 %v1227, %v1219
        %v1588 = vpack.c.b16 %v1228, %v1220
        %v1589 = vpack.c.b16 %v1229, %v1221
        %v1590 = vpack.c.b16 %v1238, %v1230
        %v1591 = vpack.c.b16 %v1239, %v1231
        %v1592 = vpack.c.b16 %v1240, %v1232
        %v1593 = vpack.c.b16 %v1241, %v1233
        %v1594 = vpack.c.b16 %v1242, %v1234
        %v1595 = vpack.c.b16 %v1243, %v1235
        %v1596 = vpack.c.b16 %v1244, %v1236
        %v1597 = vpack.c.b16 %v1245, %v1237
        %v1598 = vpack.c.b16 %v1254, %v1246
        %v1599 = vpack.c.b16 %v1255, %v1247
        %v1600 = vpack.c.b16 %v1256, %v1248
        %v1601 = vpack.c.b16 %v1257, %v1249
        %v1602 = vpack.c.b16 %v1258, %v1250
        %v1603 = vpack.c.b16 %v1259, %v1251
        %v1604 = vpack.c.b16 %v1260, %v1252
        %v1605 = vpack.c.b16 %v1261, %v1253
        %v1606 = vpack.c.b16 %v1270, %v1262
        %v1607 = vpack.c.b16 %v1271, %v1263
        %v1608 = vpack.c.b16 %v1272, %v1264
        %v1609 = vpack.c.b16 %v1273, %v1265
        %v1610 = vpack.c.b16 %v1274, %v1266
        %v1611 = vpack.c.b16 %v1275, %v1267
        %v1612 = vpack.c.b16 %v1276, %v1268
        %v1613 = vpack.c.b16 %v1277, %v1269
        %v1614 = vpack.c.b16 %v1286, %v1278
        %v1615 = vpack.c.b16 %v1287, %v1279
        %v1616 = vpack.c.b16 %v1288, %v1280
        %v1617 = vpack.c.b16 %v1289, %v1281
        %v1618 = vpack.c.b16 %v1290, %v1282
        %v1619 = vpack.c.b16 %v1291, %v1283
        %v1620 = vpack.c.b16 %v1292, %v1284
        %v1621 = vpack.c.b16 %v1293, %v1285
        %v1622 = vpack.c.b16 %v1302, %v1294
        %v1623 = vpack.c.b16 %v1303, %v1295
        %v1624 = vpack.c.b16 %v1304, %v1296
        %v1625 = vpack.c.b16 %v1305, %v1297
        %v1626 = vpack.c.b16 %v1306, %v1298
        %v1627 = vpack.c.b16 %v1307, %v1299
        %v1628 = vpack.c.b16 %v1308, %v1300
        %v1629 = vpack.c.b16 %v1309, %v1301
        %v1630 = vpack.c.b16 %v1318, %v1310
        %v1631 = vpack.c.b16 %v1319, %v1311
        %v1632 = vpack.c.b16 %v1320, %v1312
        %v1633 = vpack.c.b16 %v1321, %v1313
        %v1634 = vpack.c.b16 %v1322, %v1314
        %v1635 = vpack.c.b16 %v1323, %v1315
        %v1636 = vpack.c.b16 %v1324, %v1316
        %v1637 = vpack.c.b16 %v1325, %v1317
        %v1638 = vpack.c.b16 %v1334, %v1326
        %v1639 = vpack.c.b16 %v1335, %v1327
        %v1640 = vpack.c.b16 %v1336, %v1328
        %v1641 = vpack.c.b16 %v1337, %v1329
        %v1642 = vpack.c.b16 %v1338, %v1330
        %v1643 = vpack.c.b16 %v1339, %v1331
        %v1644 = vpack.c.b16 %v1340, %v1332
        %v1645 = vpack.c.b16 %v1341, %v1333
        %v1646 = vpack.c.b16 %v1350, %v1342
        %v1647 = vpack.c.b16 %v1351, %v1343
        %v1648 = vpack.c.b16 %v1352, %v1344
        %v1649 = vpack.c.b16 %v1353, %v1345
        %v1650 = vpack.c.b16 %v1354, %v1346
        %v1651 = vpack.c.b16 %v1355, %v1347
        %v1652 = vpack.c.b16 %v1356, %v1348
        %v1653 = vpack.c.b16 %v1357, %v1349
        %v1654 = vpack.c.b16 %v1366, %v1358
        %v1655 = vpack.c.b16 %v1367, %v1359
        %v1656 = vpack.c.b16 %v1368, %v1360
        %v1657 = vpack.c.b16 %v1369, %v1361
        %v1658 = vpack.c.b16 %v1370, %v1362
        %v1659 = vpack.c.b16 %v1371, %v1363
        %v1660 = vpack.c.b16 %v1372, %v1364
        %v1661 = vpack.c.b16 %v1373, %v1365
        %v1662 = vpack.c.b16 %v1382, %v1374
        %v1663 = vpack.c.b16 %v1383, %v1375
        %v1664 = vpack.c.b16 %v1384, %v1376
        %v1665 = vpack.c.b16 %v1385, %v1377
        %v1666 = vpack.c.b16 %v1386, %v1378
        %v1667 = vpack.c.b16 %v1387, %v1379
        %v1668 = vpack.c.b16 %v1388, %v1380
        %v1669 = vpack.c.b16 %v1389, %v1381
        %v1670 = vpack.c.b16 %v1398, %v1390
        %v1671 = vpack.c.b16 %v1399, %v1391
        %v1672 = vpack.c.b16 %v1400, %v1392
        %v1673 = vpack.c.b16 %v1401, %v1393
        %v1674 = vpack.c.b16 %v1402, %v1394
        %v1675 = vpack.c.b16 %v1403, %v1395
        %v1676 = vpack.c.b16 %v1404, %v1396
        %v1677 = vpack.c.b16 %v1405, %v1397
        %v1678 = vpack.c.b16 %v1414, %v1406
        %v1679 = vpack.c.b16 %v1415, %v1407
        %v1680 = vpack.c.b16 %v1416, %v1408
        %v1681 = vpack.c.b16 %v1417, %v1409
        %v1682 = vpack.c.b16 %v1418, %v1410
        %v1683 = vpack.c.b16 %v1419, %v1411
        %v1684 = vpack.c.b16 %v1420, %v1412
        %v1685 = vpack.c.b16 %v1421, %v1413
        %v1686 = vpack.c.b16 %v1430, %v1422
        %v1687 = vpack.c.b16 %v1431, %v1423
        %v1688 = vpack.c.b16 %v1432, %v1424
        %v1689 = vpack.c.b16 %v1433, %v1425
        %v1690 = vpack.c.b16 %v1434, %v1426
        %v1691 = vpack.c.b16 %v1435, %v1427
        %v1692 = vpack.c.b16 %v1436, %v1428
        %v1693 = vpack.c.b16 %v1437, %v1429
        %1950 = vmatprep.subr.bf16.mxu0 %v1439
        %1951 = vmatpush1.bf16.msra.mxu0 %v1438
        %1952 = vmatprep.subr.bf16.mxu0 %v1447
        %1953 = vmatpush1.bf16.msra.mxu0 %v1446
        %1954 = vmatprep.subr.bf16.mxu0 %v1455
        %1955 = vmatpush1.bf16.msra.mxu0 %v1454
        %1956 = vmatprep.subr.bf16.mxu0 %v1463
        %1957 = vmatpush1.bf16.msra.mxu0 %v1462
        %1958 = vmatprep.subr.bf16.mxu0 %v1471
        %1959 = vmatpush1.bf16.msra.mxu0 %v1470
        %1960 = vmatprep.subr.bf16.mxu0 %v1479
        %1961 = vmatpush1.bf16.msra.mxu0 %v1478
        %1962 = vmatprep.subr.bf16.mxu0 %v1487
        %1963 = vmatpush1.bf16.msra.mxu0 %v1486
        %1964 = vmatprep.subr.bf16.mxu0 %v1495
        %1965 = vmatpush1.bf16.msra.mxu0 %v1494
        %1966 = vmatprep.subr.bf16.mxu0 %v1503
        %1967 = vmatpush1.bf16.msra.mxu0 %v1502
        %1968 = vmatprep.subr.bf16.mxu0 %v1511
        %1969 = vmatpush1.bf16.msra.mxu0 %v1510
        %1970 = vmatprep.subr.bf16.mxu0 %v1519
        %1971 = vmatpush1.bf16.msra.mxu0 %v1518
        %1972 = vmatprep.subr.bf16.mxu0 %v1527
        %1973 = vmatpush1.bf16.msra.mxu0 %v1526
        %1974 = vmatprep.subr.bf16.mxu0 %v1535
        %1975 = vmatpush1.bf16.msra.mxu0 %v1534
        %1976 = vmatprep.subr.bf16.mxu0 %v1543
        %1977 = vmatpush1.bf16.msra.mxu0 %v1542
        %1978 = vmatprep.subr.bf16.mxu0 %v1551
        %1979 = vmatpush1.bf16.msra.mxu0 %v1550
        %1980 = vmatprep.subr.bf16.mxu0 %v1559
        %1981 = vmatpush1.bf16.msra.mxu0 %v1558
        %1982 = vmatprep.mubr.bf16.mxu0 %v663
        %1983 = vmatmul.mubr.bf16.gmra.mrb[0].mxu0 %v662
        %v1984 = vpop.f32.mrb[0].mxu0
        %v1985 = vadd.f32 0.0, %v1984
        %v1986 = vpop.f32.mrb[0].mxu0
        %v1987 = vadd.f32 0.0, %v1986
        %v1988 = vpop.f32.mrb[0].mxu0
        %v1989 = vadd.f32 0.0, %v1988
        %v1990 = vpop.f32.mrb[0].mxu0
        %v1991 = vadd.f32 0.0, %v1990
        %1992 = vdwg.mxu0
        %1993 = vmatprep.subr.bf16.mxu0 %v1567
        %1994 = vmatpush1.bf16.msra.mxu0 %v1566
        %1995 = vmatprep.subr.bf16.mxu0 %v1575
        %1996 = vmatpush1.bf16.msra.mxu0 %v1574
        %1997 = vmatprep.subr.bf16.mxu0 %v1583
        %1998 = vmatpush1.bf16.msra.mxu0 %v1582
        %1999 = vmatprep.subr.bf16.mxu0 %v1591
        %2000 = vmatpush1.bf16.msra.mxu0 %v1590
        %2001 = vmatprep.subr.bf16.mxu0 %v1599
        %2002 = vmatpush1.bf16.msra.mxu0 %v1598
        %2003 = vmatprep.subr.bf16.mxu0 %v1607
        %2004 = vmatpush1.bf16.msra.mxu0 %v1606
        %2005 = vmatprep.subr.bf16.mxu0 %v1615
        %2006 = vmatpush1.bf16.msra.mxu0 %v1614
        %2007 = vmatprep.subr.bf16.mxu0 %v1623
        %2008 = vmatpush1.bf16.msra.mxu0 %v1622
        %2009 = vmatprep.subr.bf16.mxu0 %v1631
        %2010 = vmatpush1.bf16.msra.mxu0 %v1630
        %2011 = vmatprep.subr.bf16.mxu0 %v1639
        %2012 = vmatpush1.bf16.msra.mxu0 %v1638
        %2013 = vmatprep.subr.bf16.mxu0 %v1647
        %2014 = vmatpush1.bf16.msra.mxu0 %v1646
        %2015 = vmatprep.subr.bf16.mxu0 %v1655
        %2016 = vmatpush1.bf16.msra.mxu0 %v1654
        %2017 = vmatprep.subr.bf16.mxu0 %v1663
        %2018 = vmatpush1.bf16.msra.mxu0 %v1662
        %2019 = vmatprep.subr.bf16.mxu0 %v1671
        %2020 = vmatpush1.bf16.msra.mxu0 %v1670
        %2021 = vmatprep.subr.bf16.mxu0 %v1679
        %2022 = vmatpush1.bf16.msra.mxu0 %v1678
        %2023 = vmatprep.subr.bf16.mxu0 %v1687
        %2024 = vmatpush1.bf16.msra.mxu0 %v1686
        %2025 = vmatprep.mubr.bf16.mxu0 %v665
        %2026 = vmatmul.mubr.bf16.gmra.mrb[0].mxu0 %v664
        %v2027 = vpop.f32.mrb[0].mxu0
        %v2028 = vadd.f32 %v1985, %v2027
        %v2029 = vpop.f32.mrb[0].mxu0
        %v2030 = vadd.f32 %v1987, %v2029
        %v2031 = vpop.f32.mrb[0].mxu0
        %v2032 = vadd.f32 %v1989, %v2031
        %v2033 = vpop.f32.mrb[0].mxu0
        %v2034 = vadd.f32 %v1991, %v2033
        %2035 = vdwg.mxu0
        %2036 = vmatprep.subr.bf16.mxu0 %v1441
        %2037 = vmatpush1.bf16.msra.mxu0 %v1440
        %2038 = vmatprep.subr.bf16.mxu0 %v1449
        %2039 = vmatpush1.bf16.msra.mxu0 %v1448
        %2040 = vmatprep.subr.bf16.mxu0 %v1457
        %2041 = vmatpush1.bf16.msra.mxu0 %v1456
        %2042 = vmatprep.subr.bf16.mxu0 %v1465
        %2043 = vmatpush1.bf16.msra.mxu0 %v1464
        %2044 = vmatprep.subr.bf16.mxu0 %v1473
        %2045 = vmatpush1.bf16.msra.mxu0 %v1472
        %2046 = vmatprep.subr.bf16.mxu0 %v1481
        %2047 = vmatpush1.bf16.msra.mxu0 %v1480
        %2048 = vmatprep.subr.bf16.mxu0 %v1489
        %2049 = vmatpush1.bf16.msra.mxu0 %v1488
        %2050 = vmatprep.subr.bf16.mxu0 %v1497
        %2051 = vmatpush1.bf16.msra.mxu0 %v1496
        %2052 = vmatprep.subr.bf16.mxu0 %v1505
        %2053 = vmatpush1.bf16.msra.mxu0 %v1504
        %2054 = vmatprep.subr.bf16.mxu0 %v1513
        %2055 = vmatpush1.bf16.msra.mxu0 %v1512
        %2056 = vmatprep.subr.bf16.mxu0 %v1521
        %2057 = vmatpush1.bf16.msra.mxu0 %v1520
        %2058 = vmatprep.subr.bf16.mxu0 %v1529
        %2059 = vmatpush1.bf16.msra.mxu0 %v1528
        %2060 = vmatprep.subr.bf16.mxu0 %v1537
        %2061 = vmatpush1.bf16.msra.mxu0 %v1536
        %2062 = vmatprep.subr.bf16.mxu0 %v1545
        %2063 = vmatpush1.bf16.msra.mxu0 %v1544
        %2064 = vmatprep.subr.bf16.mxu0 %v1553
        %2065 = vmatpush1.bf16.msra.mxu0 %v1552
        %2066 = vmatprep.subr.bf16.mxu0 %v1561
        %2067 = vmatpush1.bf16.msra.mxu0 %v1560
        %2068 = vmatprep.mubr.bf16.mxu0 %v663
        %2069 = vmatmul.mubr.bf16.gmra.mrb[0].mxu0 %v662
        %v2070 = vpop.f32.mrb[0].mxu0
        %v2071 = vadd.f32 0.0, %v2070
        %v2072 = vpop.f32.mrb[0].mxu0
        %v2073 = vadd.f32 0.0, %v2072
        %v2074 = vpop.f32.mrb[0].mxu0
        %v2075 = vadd.f32 0.0, %v2074
        %v2076 = vpop.f32.mrb[0].mxu0
        %v2077 = vadd.f32 0.0, %v2076
        %2078 = vdwg.mxu0
        %2079 = vmatprep.subr.bf16.mxu0 %v1569
        %2080 = vmatpush1.bf16.msra.mxu0 %v1568
        %2081 = vmatprep.subr.bf16.mxu0 %v1577
        %2082 = vmatpush1.bf16.msra.mxu0 %v1576
        %2083 = vmatprep.subr.bf16.mxu0 %v1585
        %2084 = vmatpush1.bf16.msra.mxu0 %v1584
        %2085 = vmatprep.subr.bf16.mxu0 %v1593
        %2086 = vmatpush1.bf16.msra.mxu0 %v1592
        %2087 = vmatprep.subr.bf16.mxu0 %v1601
        %2088 = vmatpush1.bf16.msra.mxu0 %v1600
        %2089 = vmatprep.subr.bf16.mxu0 %v1609
        %2090 = vmatpush1.bf16.msra.mxu0 %v1608
        %2091 = vmatprep.subr.bf16.mxu0 %v1617
        %2092 = vmatpush1.bf16.msra.mxu0 %v1616
        %2093 = vmatprep.subr.bf16.mxu0 %v1625
        %2094 = vmatpush1.bf16.msra.mxu0 %v1624
        %2095 = vmatprep.subr.bf16.mxu0 %v1633
        %2096 = vmatpush1.bf16.msra.mxu0 %v1632
        %2097 = vmatprep.subr.bf16.mxu0 %v1641
        %2098 = vmatpush1.bf16.msra.mxu0 %v1640
        %2099 = vmatprep.subr.bf16.mxu0 %v1649
        %2100 = vmatpush1.bf16.msra.mxu0 %v1648
        %2101 = vmatprep.subr.bf16.mxu0 %v1657
        %2102 = vmatpush1.bf16.msra.mxu0 %v1656
        %2103 = vmatprep.subr.bf16.mxu0 %v1665
        %2104 = vmatpush1.bf16.msra.mxu0 %v1664
        %2105 = vmatprep.subr.bf16.mxu0 %v1673
        %2106 = vmatpush1.bf16.msra.mxu0 %v1672
        %2107 = vmatprep.subr.bf16.mxu0 %v1681
        %2108 = vmatpush1.bf16.msra.mxu0 %v1680
        %2109 = vmatprep.subr.bf16.mxu0 %v1689
        %2110 = vmatpush1.bf16.msra.mxu0 %v1688
        %2111 = vmatprep.mubr.bf16.mxu0 %v665
        %2112 = vmatmul.mubr.bf16.gmra.mrb[0].mxu0 %v664
        %v2113 = vpop.f32.mrb[0].mxu0
        %v2114 = vadd.f32 %v2071, %v2113
        %v2115 = vpop.f32.mrb[0].mxu0
        %v2116 = vadd.f32 %v2073, %v2115
        %v2117 = vpop.f32.mrb[0].mxu0
        %v2118 = vadd.f32 %v2075, %v2117
        %v2119 = vpop.f32.mrb[0].mxu0
        %v2120 = vadd.f32 %v2077, %v2119
        %2121 = vdwg.mxu0
        %2122 = vmatprep.subr.bf16.mxu0 %v1443
        %2123 = vmatpush1.bf16.msra.mxu0 %v1442
        %2124 = vmatprep.subr.bf16.mxu0 %v1451
        %2125 = vmatpush1.bf16.msra.mxu0 %v1450
        %2126 = vmatprep.subr.bf16.mxu0 %v1459
        %2127 = vmatpush1.bf16.msra.mxu0 %v1458
        %2128 = vmatprep.subr.bf16.mxu0 %v1467
        %2129 = vmatpush1.bf16.msra.mxu0 %v1466
        %2130 = vmatprep.subr.bf16.mxu0 %v1475
        %2131 = vmatpush1.bf16.msra.mxu0 %v1474
        %2132 = vmatprep.subr.bf16.mxu0 %v1483
        %2133 = vmatpush1.bf16.msra.mxu0 %v1482
        %2134 = vmatprep.subr.bf16.mxu0 %v1491
        %2135 = vmatpush1.bf16.msra.mxu0 %v1490
        %2136 = vmatprep.subr.bf16.mxu0 %v1499
        %2137 = vmatpush1.bf16.msra.mxu0 %v1498
        %2138 = vmatprep.subr.bf16.mxu0 %v1507
        %2139 = vmatpush1.bf16.msra.mxu0 %v1506
        %2140 = vmatprep.subr.bf16.mxu0 %v1515
        %2141 = vmatpush1.bf16.msra.mxu0 %v1514
        %2142 = vmatprep.subr.bf16.mxu0 %v1523
        %2143 = vmatpush1.bf16.msra.mxu0 %v1522
        %2144 = vmatprep.subr.bf16.mxu0 %v1531
        %2145 = vmatpush1.bf16.msra.mxu0 %v1530
        %2146 = vmatprep.subr.bf16.mxu0 %v1539
        %2147 = vmatpush1.bf16.msra.mxu0 %v1538
        %2148 = vmatprep.subr.bf16.mxu0 %v1547
        %2149 = vmatpush1.bf16.msra.mxu0 %v1546
        %2150 = vmatprep.subr.bf16.mxu0 %v1555
        %2151 = vmatpush1.bf16.msra.mxu0 %v1554
        %2152 = vmatprep.subr.bf16.mxu0 %v1563
        %2153 = vmatpush1.bf16.msra.mxu0 %v1562
        %2154 = vmatprep.mubr.bf16.mxu0 %v663
        %2155 = vmatmul.mubr.bf16.gmra.mrb[0].mxu0 %v662
        %v2156 = vpop.f32.mrb[0].mxu0
        %v2157 = vadd.f32 0.0, %v2156
        %v2158 = vpop.f32.mrb[0].mxu0
        %v2159 = vadd.f32 0.0, %v2158
        %v2160 = vpop.f32.mrb[0].mxu0
        %v2161 = vadd.f32 0.0, %v2160
        %v2162 = vpop.f32.mrb[0].mxu0
        %v2163 = vadd.f32 0.0, %v2162
        %2164 = vdwg.mxu0
        %2165 = vmatprep.subr.bf16.mxu0 %v1571
        %2166 = vmatpush1.bf16.msra.mxu0 %v1570
        %2167 = vmatprep.subr.bf16.mxu0 %v1579
        %2168 = vmatpush1.bf16.msra.mxu0 %v1578
        %2169 = vmatprep.subr.bf16.mxu0 %v1587
        %2170 = vmatpush1.bf16.msra.mxu0 %v1586
        %2171 = vmatprep.subr.bf16.mxu0 %v1595
        %2172 = vmatpush1.bf16.msra.mxu0 %v1594
        %2173 = vmatprep.subr.bf16.mxu0 %v1603
        %2174 = vmatpush1.bf16.msra.mxu0 %v1602
        %2175 = vmatprep.subr.bf16.mxu0 %v1611
        %2176 = vmatpush1.bf16.msra.mxu0 %v1610
        %2177 = vmatprep.subr.bf16.mxu0 %v1619
        %2178 = vmatpush1.bf16.msra.mxu0 %v1618
        %2179 = vmatprep.subr.bf16.mxu0 %v1627
        %2180 = vmatpush1.bf16.msra.mxu0 %v1626
        %2181 = vmatprep.subr.bf16.mxu0 %v1635
        %2182 = vmatpush1.bf16.msra.mxu0 %v1634
        %2183 = vmatprep.subr.bf16.mxu0 %v1643
        %2184 = vmatpush1.bf16.msra.mxu0 %v1642
        %2185 = vmatprep.subr.bf16.mxu0 %v1651
        %2186 = vmatpush1.bf16.msra.mxu0 %v1650
        %2187 = vmatprep.subr.bf16.mxu0 %v1659
        %2188 = vmatpush1.bf16.msra.mxu0 %v1658
        %2189 = vmatprep.subr.bf16.mxu0 %v1667
        %2190 = vmatpush1.bf16.msra.mxu0 %v1666
        %2191 = vmatprep.subr.bf16.mxu0 %v1675
        %2192 = vmatpush1.bf16.msra.mxu0 %v1674
        %2193 = vmatprep.subr.bf16.mxu0 %v1683
        %2194 = vmatpush1.bf16.msra.mxu0 %v1682
        %2195 = vmatprep.subr.bf16.mxu0 %v1691
        %2196 = vmatpush1.bf16.msra.mxu0 %v1690
        %2197 = vmatprep.mubr.bf16.mxu0 %v665
        %2198 = vmatmul.mubr.bf16.gmra.mrb[0].mxu0 %v664
        %v2199 = vpop.f32.mrb[0].mxu0
        %v2200 = vadd.f32 %v2157, %v2199
        %v2201 = vpop.f32.mrb[0].mxu0
        %v2202 = vadd.f32 %v2159, %v2201
        %v2203 = vpop.f32.mrb[0].mxu0
        %v2204 = vadd.f32 %v2161, %v2203
        %v2205 = vpop.f32.mrb[0].mxu0
        %v2206 = vadd.f32 %v2163, %v2205
        %2207 = vdwg.mxu0
        %2208 = vmatprep.subr.bf16.mxu0 %v1445
        %2209 = vmatpush1.bf16.msra.mxu0 %v1444
        %2210 = vmatprep.subr.bf16.mxu0 %v1453
        %2211 = vmatpush1.bf16.msra.mxu0 %v1452
        %2212 = vmatprep.subr.bf16.mxu0 %v1461
        %2213 = vmatpush1.bf16.msra.mxu0 %v1460
        %2214 = vmatprep.subr.bf16.mxu0 %v1469
        %2215 = vmatpush1.bf16.msra.mxu0 %v1468
        %2216 = vmatprep.subr.bf16.mxu0 %v1477
        %2217 = vmatpush1.bf16.msra.mxu0 %v1476
        %2218 = vmatprep.subr.bf16.mxu0 %v1485
        %2219 = vmatpush1.bf16.msra.mxu0 %v1484
        %2220 = vmatprep.subr.bf16.mxu0 %v1493
        %2221 = vmatpush1.bf16.msra.mxu0 %v1492
        %2222 = vmatprep.subr.bf16.mxu0 %v1501
        %2223 = vmatpush1.bf16.msra.mxu0 %v1500
        %2224 = vmatprep.subr.bf16.mxu0 %v1509
        %2225 = vmatpush1.bf16.msra.mxu0 %v1508
        %2226 = vmatprep.subr.bf16.mxu0 %v1517
        %2227 = vmatpush1.bf16.msra.mxu0 %v1516
        %2228 = vmatprep.subr.bf16.mxu0 %v1525
        %2229 = vmatpush1.bf16.msra.mxu0 %v1524
        %2230 = vmatprep.subr.bf16.mxu0 %v1533
        %2231 = vmatpush1.bf16.msra.mxu0 %v1532
        %2232 = vmatprep.subr.bf16.mxu0 %v1541
        %2233 = vmatpush1.bf16.msra.mxu0 %v1540
        %2234 = vmatprep.subr.bf16.mxu0 %v1549
        %2235 = vmatpush1.bf16.msra.mxu0 %v1548
        %2236 = vmatprep.subr.bf16.mxu0 %v1557
        %2237 = vmatpush1.bf16.msra.mxu0 %v1556
        %2238 = vmatprep.subr.bf16.mxu0 %v1565
        %2239 = vmatpush1.bf16.msra.mxu0 %v1564
        %2240 = vmatprep.mubr.bf16.mxu0 %v663
        %2241 = vmatmul.mubr.bf16.gmra.mrb[0].mxu0 %v662
        %v2242 = vpop.f32.mrb[0].mxu0
        %v2243 = vadd.f32 0.0, %v2242
        %v2244 = vpop.f32.mrb[0].mxu0
        %v2245 = vadd.f32 0.0, %v2244
        %v2246 = vpop.f32.mrb[0].mxu0
        %v2247 = vadd.f32 0.0, %v2246
        %v2248 = vpop.f32.mrb[0].mxu0
        %v2249 = vadd.f32 0.0, %v2248
        %2250 = vdwg.mxu0
        %2251 = vmatprep.subr.bf16.mxu0 %v1573
        %2252 = vmatpush1.bf16.msra.mxu0 %v1572
        %2253 = vmatprep.subr.bf16.mxu0 %v1581
        %2254 = vmatpush1.bf16.msra.mxu0 %v1580
        %2255 = vmatprep.subr.bf16.mxu0 %v1589
        %2256 = vmatpush1.bf16.msra.mxu0 %v1588
        %2257 = vmatprep.subr.bf16.mxu0 %v1597
        %2258 = vmatpush1.bf16.msra.mxu0 %v1596
        %2259 = vmatprep.subr.bf16.mxu0 %v1605
        %2260 = vmatpush1.bf16.msra.mxu0 %v1604
        %2261 = vmatprep.subr.bf16.mxu0 %v1613
        %2262 = vmatpush1.bf16.msra.mxu0 %v1612
        %2263 = vmatprep.subr.bf16.mxu0 %v1621
        %2264 = vmatpush1.bf16.msra.mxu0 %v1620
        %2265 = vmatprep.subr.bf16.mxu0 %v1629
        %2266 = vmatpush1.bf16.msra.mxu0 %v1628
        %2267 = vmatprep.subr.bf16.mxu0 %v1637
        %2268 = vmatpush1.bf16.msra.mxu0 %v1636
        %2269 = vmatprep.subr.bf16.mxu0 %v1645
        %2270 = vmatpush1.bf16.msra.mxu0 %v1644
        %2271 = vmatprep.subr.bf16.mxu0 %v1653
        %2272 = vmatpush1.bf16.msra.mxu0 %v1652
        %2273 = vmatprep.subr.bf16.mxu0 %v1661
        %2274 = vmatpush1.bf16.msra.mxu0 %v1660
        %2275 = vmatprep.subr.bf16.mxu0 %v1669
        %2276 = vmatpush1.bf16.msra.mxu0 %v1668
        %2277 = vmatprep.subr.bf16.mxu0 %v1677
        %2278 = vmatpush1.bf16.msra.mxu0 %v1676
        %2279 = vmatprep.subr.bf16.mxu0 %v1685
        %2280 = vmatpush1.bf16.msra.mxu0 %v1684
        %2281 = vmatprep.subr.bf16.mxu0 %v1693
        %2282 = vmatpush1.bf16.msra.mxu0 %v1692
        %2283 = vmatprep.mubr.bf16.mxu0 %v665
        %2284 = vmatmul.mubr.bf16.gmra.mrb[0].mxu0 %v664
        %v2285 = vpop.f32.mrb[0].mxu0
        %v2286 = vadd.f32 %v2243, %v2285
        %v2287 = vpop.f32.mrb[0].mxu0
        %v2288 = vadd.f32 %v2245, %v2287
        %v2289 = vpop.f32.mrb[0].mxu0
        %v2290 = vadd.f32 %v2247, %v2289
        %v2291 = vpop.f32.mrb[0].mxu0
        %v2292 = vadd.f32 %v2249, %v2291
        %2293 = vdwg.mxu0
        %v2294 = vadd.f32 %v374, %v2028
        %v2295 = vadd.f32 %v375, %v2030
        %v2296 = vadd.f32 %v376, %v2114
        %v2297 = vadd.f32 %v377, %v2116
        %v2298 = vadd.f32 %v378, %v2200
        %v2299 = vadd.f32 %v379, %v2202
        %v2300 = vadd.f32 %v380, %v2286
        %v2301 = vadd.f32 %v381, %v2288
        %v2302 = vadd.f32 %v382, %v2032
        %v2303 = vadd.f32 %v383, %v2034
        %v2304 = vadd.f32 %v384, %v2118
        %v2305 = vadd.f32 %v385, %v2120
        %v2306 = vadd.f32 %v386, %v2204
        %v2307 = vadd.f32 %v387, %v2206
        %v2308 = vadd.f32 %v388, %v2290
        %v2309 = vadd.f32 %v389, %v2292
        %2310 = vst [vmem:[#allocation2] sm:$0xff] %v2294
        %2311 = vst [vmem:[#allocation2 + $0x8] sm:$0xff] %v2295
        %2312 = vst [vmem:[#allocation2 + $0x10] sm:$0xff] %v2296
        %2313 = vst [vmem:[#allocation2 + $0x18] sm:$0xff] %v2297
        %2314 = vst [vmem:[#allocation2 + $0x20] sm:$0xff] %v2298
        %2315 = vst [vmem:[#allocation2 + $0x28] sm:$0xff] %v2299
        %2316 = vst [vmem:[#allocation2 + $0x30] sm:$0xff] %v2300
        %2317 = vst [vmem:[#allocation2 + $0x38] sm:$0xff] %v2301
        %2318 = vst [vmem:[#allocation2 + $0x40] sm:$0xff] %v2302
        %2319 = vst [vmem:[#allocation2 + $0x48] sm:$0xff] %v2303
        %2320 = vst [vmem:[#allocation2 + $0x50] sm:$0xff] %v2304
        %2321 = vst [vmem:[#allocation2 + $0x58] sm:$0xff] %v2305
        %2322 = vst [vmem:[#allocation2 + $0x60] sm:$0xff] %v2306
        %2323 = vst [vmem:[#allocation2 + $0x68] sm:$0xff] %v2307
        %2324 = vst [vmem:[#allocation2 + $0x70] sm:$0xff] %v2308
        %2325 = vst [vmem:[#allocation2 + $0x78] sm:$0xff] %v2309
        %p2326 = scmp.eq.s32.totalorder %s26, 3
        // Predicated region
        $region84: #{encoder_forward.5} parent=58 // pred_check
          %p2327 = pneg %p2326
        $region85: #{encoder_forward.5} parent=58 // pred_check_branch
          %2329 = sbr.rel (%p2327) target = $region87
        $region86: #{encoder_forward.5} parent=58 // pred_region
          %v2330 = vld [vmem:[#allocation2] sm:$0xff]
          %v2331 = vld [vmem:[#allocation2 + $0x8] sm:$0xff]
          %v2332 = vld [vmem:[#allocation2 + $0x10] sm:$0xff]
          %v2333 = vld [vmem:[#allocation2 + $0x18] sm:$0xff]
          %v2334 = vld [vmem:[#allocation2 + $0x20] sm:$0xff]
          %v2335 = vld [vmem:[#allocation2 + $0x28] sm:$0xff]
          %v2336 = vld [vmem:[#allocation2 + $0x30] sm:$0xff]
          %v2337 = vld [vmem:[#allocation2 + $0x38] sm:$0xff]
          %v2338 = vld [vmem:[#allocation2 + $0x40] sm:$0xff]
          %v2339 = vld [vmem:[#allocation2 + $0x48] sm:$0xff]
          %v2340 = vld [vmem:[#allocation2 + $0x50] sm:$0xff]
          %v2341 = vld [vmem:[#allocation2 + $0x58] sm:$0xff]
          %v2342 = vld [vmem:[#allocation2 + $0x60] sm:$0xff]
          %v2343 = vld [vmem:[#allocation2 + $0x68] sm:$0xff]
          %v2344 = vld [vmem:[#allocation2 + $0x70] sm:$0xff]
          %v2345 = vld [vmem:[#allocation2 + $0x78] sm:$0xff]
          %v2346 = vld [vmem:[#allocation6] sm:$0xff]
          %v2348 = vlaneseq
          %v2349 = vshrl.u32 %v2348, 7
          %v2350 = vsub.s32 0, %v2349
          %v2351 = vrot.slane %v2346, %v2350
          %v2352 = vlaneseq
          %v2353 = vshrl.u32 %v2352, 7
          %v2354 = vsub.s32 1, %v2353
          %v2355 = vrot.slane %v2346, %v2354
          %v2356 = vlaneseq
          %v2357 = vshrl.u32 %v2356, 7
          %v2358 = vsub.s32 2, %v2357
          %v2359 = vrot.slane %v2346, %v2358
          %v2360 = vlaneseq
          %v2361 = vshrl.u32 %v2360, 7
          %v2362 = vsub.s32 3, %v2361
          %v2363 = vrot.slane %v2346, %v2362
          %v2364 = vlaneseq
          %v2365 = vshrl.u32 %v2364, 7
          %v2366 = vsub.s32 4, %v2365
          %v2367 = vrot.slane %v2346, %v2366
          %v2368 = vlaneseq
          %v2369 = vshrl.u32 %v2368, 7
          %v2370 = vsub.s32 5, %v2369
          %v2371 = vrot.slane %v2346, %v2370
          %v2372 = vlaneseq
          %v2373 = vshrl.u32 %v2372, 7
          %v2374 = vsub.s32 6, %v2373
          %v2375 = vrot.slane %v2346, %v2374
          %v2376 = vlaneseq
          %v2377 = vshrl.u32 %v2376, 7
          %v2378 = vsub.s32 7, %v2377
          %v2379 = vrot.slane %v2346, %v2378
          %v2388 = vadd.f32 %v2330, %v2351
          %v2389 = vadd.f32 %v2331, %v2355
          %v2390 = vadd.f32 %v2332, %v2359
          %v2391 = vadd.f32 %v2333, %v2363
          %v2392 = vadd.f32 %v2334, %v2367
          %v2393 = vadd.f32 %v2335, %v2371
          %v2394 = vadd.f32 %v2336, %v2375
          %v2395 = vadd.f32 %v2337, %v2379
          %v2396 = vadd.f32 %v2338, %v2351
          %v2397 = vadd.f32 %v2339, %v2355
          %v2398 = vadd.f32 %v2340, %v2359
          %v2399 = vadd.f32 %v2341, %v2363
          %v2400 = vadd.f32 %v2342, %v2367
          %v2401 = vadd.f32 %v2343, %v2371
          %v2402 = vadd.f32 %v2344, %v2375
          %v2403 = vadd.f32 %v2345, %v2379
          %vm2404 = vcmp.ge.f32.partialorder %v2388, 0.0
          %vm2405 = vcmp.ge.f32.partialorder %v2389, 0.0
          %vm2406 = vcmp.ge.f32.partialorder %v2390, 0.0
          %vm2407 = vcmp.ge.f32.partialorder %v2391, 0.0
          %vm2408 = vcmp.ge.f32.partialorder %v2392, 0.0
          %vm2409 = vcmp.ge.f32.partialorder %v2393, 0.0
          %vm2410 = vcmp.ge.f32.partialorder %v2394, 0.0
          %vm2411 = vcmp.ge.f32.partialorder %v2395, 0.0
          %vm2412 = vcmp.ge.f32.partialorder %v2396, 0.0
          %vm2413 = vcmp.ge.f32.partialorder %v2397, 0.0
          %vm2414 = vcmp.ge.f32.partialorder %v2398, 0.0
          %vm2415 = vcmp.ge.f32.partialorder %v2399, 0.0
          %vm2416 = vcmp.ge.f32.partialorder %v2400, 0.0
          %vm2417 = vcmp.ge.f32.partialorder %v2401, 0.0
          %vm2418 = vcmp.ge.f32.partialorder %v2402, 0.0
          %vm2419 = vcmp.ge.f32.partialorder %v2403, 0.0
          %v2420 = vmul.f32 %v2388, 0.01
          %v2421 = vmul.f32 %v2389, 0.01
          %v2422 = vmul.f32 %v2390, 0.01
          %v2423 = vmul.f32 %v2391, 0.01
          %v2424 = vmul.f32 %v2392, 0.01
          %v2425 = vmul.f32 %v2393, 0.01
          %v2426 = vmul.f32 %v2394, 0.01
          %v2427 = vmul.f32 %v2395, 0.01
          %v2428 = vmul.f32 %v2396, 0.01
          %v2429 = vmul.f32 %v2397, 0.01
          %v2430 = vmul.f32 %v2398, 0.01
          %v2431 = vmul.f32 %v2399, 0.01
          %v2432 = vmul.f32 %v2400, 0.01
          %v2433 = vmul.f32 %v2401, 0.01
          %v2434 = vmul.f32 %v2402, 0.01
          %v2435 = vmul.f32 %v2403, 0.01
          %v2436 = vsel %vm2404, %v2388, %v2420
          %v2437 = vsel %vm2405, %v2389, %v2421
          %v2438 = vsel %vm2406, %v2390, %v2422
          %v2439 = vsel %vm2407, %v2391, %v2423
          %v2440 = vsel %vm2408, %v2392, %v2424
          %v2441 = vsel %vm2409, %v2393, %v2425
          %v2442 = vsel %vm2410, %v2394, %v2426
          %v2443 = vsel %vm2411, %v2395, %v2427
          %v2444 = vsel %vm2412, %v2396, %v2428
          %v2445 = vsel %vm2413, %v2397, %v2429
          %v2446 = vsel %vm2414, %v2398, %v2430
          %v2447 = vsel %vm2415, %v2399, %v2431
          %v2448 = vsel %vm2416, %v2400, %v2432
          %v2449 = vsel %vm2417, %v2401, %v2433
          %v2450 = vsel %vm2418, %v2402, %v2434
          %v2451 = vsel %vm2419, %v2403, %v2435
          %v2452 = vpack.c.bf16 %v2444, %v2436
          %v2453 = vpack.c.bf16 %v2445, %v2437
          %v2454 = vpack.c.bf16 %v2446, %v2438
          %v2455 = vpack.c.bf16 %v2447, %v2439
          %v2456 = vpack.c.bf16 %v2448, %v2440
          %v2457 = vpack.c.bf16 %v2449, %v2441
          %v2458 = vpack.c.bf16 %v2450, %v2442
          %v2459 = vpack.c.bf16 %v2451, %v2443
          %v2460 = vld [vmem:[#allocation8] sm:$0xf]
          %v2461 = vld [vmem:[#allocation8 + $0x4] sm:$0xf]
          %v2462 = vld [vmem:[#allocation8 + $0x8] sm:$0xf]
          %v2463 = vld [vmem:[#allocation8 + $0xc] sm:$0xf]
          %v2464 = vld [vmem:[#allocation8 + $0x10] sm:$0xf]
          %v2465 = vld [vmem:[#allocation8 + $0x14] sm:$0xf]
          %v2466 = vld [vmem:[#allocation8 + $0x18] sm:$0xf]
          %v2467 = vld [vmem:[#allocation8 + $0x1c] sm:$0xf]
          %v2468 = vld [vmem:[#allocation8 + $0x20] sm:$0xf]
          %v2469 = vld [vmem:[#allocation8 + $0x24] sm:$0xf]
          %v2470 = vld [vmem:[#allocation8 + $0x28] sm:$0xf]
          %v2471 = vld [vmem:[#allocation8 + $0x2c] sm:$0xf]
          %v2472 = vld [vmem:[#allocation8 + $0x30] sm:$0xf]
          %v2473 = vld [vmem:[#allocation8 + $0x34] sm:$0xf]
          %v2474 = vld [vmem:[#allocation8 + $0x38] sm:$0xf]
          %v2475 = vld [vmem:[#allocation8 + $0x3c] sm:$0xf]
          %v2476 = vld [vmem:[#allocation8 + $0x40] sm:$0xf]
          %v2477 = vld [vmem:[#allocation8 + $0x44] sm:$0xf]
          %v2478 = vld [vmem:[#allocation8 + $0x48] sm:$0xf]
          %v2479 = vld [vmem:[#allocation8 + $0x4c] sm:$0xf]
          %v2480 = vld [vmem:[#allocation8 + $0x50] sm:$0xf]
          %v2481 = vld [vmem:[#allocation8 + $0x54] sm:$0xf]
          %v2482 = vld [vmem:[#allocation8 + $0x58] sm:$0xf]
          %v2483 = vld [vmem:[#allocation8 + $0x5c] sm:$0xf]
          %v2484 = vld [vmem:[#allocation8 + $0x60] sm:$0xf]
          %v2485 = vld [vmem:[#allocation8 + $0x64] sm:$0xf]
          %v2486 = vld [vmem:[#allocation8 + $0x68] sm:$0xf]
          %v2487 = vld [vmem:[#allocation8 + $0x6c] sm:$0xf]
          %v2488 = vld [vmem:[#allocation8 + $0x70] sm:$0xf]
          %v2489 = vld [vmem:[#allocation8 + $0x74] sm:$0xf]
          %v2490 = vld [vmem:[#allocation8 + $0x78] sm:$0xf]
          %v2491 = vld [vmem:[#allocation8 + $0x7c] sm:$0xf]
          %v2492 = vld [vmem:[#allocation8 + $0x80] sm:$0xf]
          %v2493 = vld [vmem:[#allocation8 + $0x84] sm:$0xf]
          %v2494 = vld [vmem:[#allocation8 + $0x88] sm:$0xf]
          %v2495 = vld [vmem:[#allocation8 + $0x8c] sm:$0xf]
          %v2496 = vld [vmem:[#allocation8 + $0x90] sm:$0xf]
          %v2497 = vld [vmem:[#allocation8 + $0x94] sm:$0xf]
          %v2498 = vld [vmem:[#allocation8 + $0x98] sm:$0xf]
          %v2499 = vld [vmem:[#allocation8 + $0x9c] sm:$0xf]
          %v2500 = vld [vmem:[#allocation8 + $0xa0] sm:$0xf]
          %v2501 = vld [vmem:[#allocation8 + $0xa4] sm:$0xf]
          %v2502 = vld [vmem:[#allocation8 + $0xa8] sm:$0xf]
          %v2503 = vld [vmem:[#allocation8 + $0xac] sm:$0xf]
          %v2504 = vld [vmem:[#allocation8 + $0xb0] sm:$0xf]
          %v2505 = vld [vmem:[#allocation8 + $0xb4] sm:$0xf]
          %v2506 = vld [vmem:[#allocation8 + $0xb8] sm:$0xf]
          %v2507 = vld [vmem:[#allocation8 + $0xbc] sm:$0xf]
          %v2508 = vld [vmem:[#allocation8 + $0xc0] sm:$0xf]
          %v2509 = vld [vmem:[#allocation8 + $0xc4] sm:$0xf]
          %v2510 = vld [vmem:[#allocation8 + $0xc8] sm:$0xf]
          %v2511 = vld [vmem:[#allocation8 + $0xcc] sm:$0xf]
          %v2512 = vld [vmem:[#allocation8 + $0xd0] sm:$0xf]
          %v2513 = vld [vmem:[#allocation8 + $0xd4] sm:$0xf]
          %v2514 = vld [vmem:[#allocation8 + $0xd8] sm:$0xf]
          %v2515 = vld [vmem:[#allocation8 + $0xdc] sm:$0xf]
          %v2516 = vld [vmem:[#allocation8 + $0xe0] sm:$0xf]
          %v2517 = vld [vmem:[#allocation8 + $0xe4] sm:$0xf]
          %v2518 = vld [vmem:[#allocation8 + $0xe8] sm:$0xf]
          %v2519 = vld [vmem:[#allocation8 + $0xec] sm:$0xf]
          %v2520 = vld [vmem:[#allocation8 + $0xf0] sm:$0xf]
          %v2521 = vld [vmem:[#allocation8 + $0xf4] sm:$0xf]
          %v2522 = vld [vmem:[#allocation8 + $0xf8] sm:$0xf]
          %v2523 = vld [vmem:[#allocation8 + $0xfc] sm:$0xf]
          %v2524 = vld [vmem:[#allocation8 + $0x100] sm:$0xf]
          %v2525 = vld [vmem:[#allocation8 + $0x104] sm:$0xf]
          %v2526 = vld [vmem:[#allocation8 + $0x108] sm:$0xf]
          %v2527 = vld [vmem:[#allocation8 + $0x10c] sm:$0xf]
          %v2528 = vld [vmem:[#allocation8 + $0x110] sm:$0xf]
          %v2529 = vld [vmem:[#allocation8 + $0x114] sm:$0xf]
          %v2530 = vld [vmem:[#allocation8 + $0x118] sm:$0xf]
          %v2531 = vld [vmem:[#allocation8 + $0x11c] sm:$0xf]
          %v2532 = vld [vmem:[#allocation8 + $0x120] sm:$0xf]
          %v2533 = vld [vmem:[#allocation8 + $0x124] sm:$0xf]
          %v2534 = vld [vmem:[#allocation8 + $0x128] sm:$0xf]
          %v2535 = vld [vmem:[#allocation8 + $0x12c] sm:$0xf]
          %v2536 = vld [vmem:[#allocation8 + $0x130] sm:$0xf]
          %v2537 = vld [vmem:[#allocation8 + $0x134] sm:$0xf]
          %v2538 = vld [vmem:[#allocation8 + $0x138] sm:$0xf]
          %v2539 = vld [vmem:[#allocation8 + $0x13c] sm:$0xf]
          %v2540 = vld [vmem:[#allocation8 + $0x140] sm:$0xf]
          %v2541 = vld [vmem:[#allocation8 + $0x144] sm:$0xf]
          %v2542 = vld [vmem:[#allocation8 + $0x148] sm:$0xf]
          %v2543 = vld [vmem:[#allocation8 + $0x14c] sm:$0xf]
          %v2544 = vld [vmem:[#allocation8 + $0x150] sm:$0xf]
          %v2545 = vld [vmem:[#allocation8 + $0x154] sm:$0xf]
          %v2546 = vld [vmem:[#allocation8 + $0x158] sm:$0xf]
          %v2547 = vld [vmem:[#allocation8 + $0x15c] sm:$0xf]
          %v2548 = vld [vmem:[#allocation8 + $0x160] sm:$0xf]
          %v2549 = vld [vmem:[#allocation8 + $0x164] sm:$0xf]
          %v2550 = vld [vmem:[#allocation8 + $0x168] sm:$0xf]
          %v2551 = vld [vmem:[#allocation8 + $0x16c] sm:$0xf]
          %v2552 = vld [vmem:[#allocation8 + $0x170] sm:$0xf]
          %v2553 = vld [vmem:[#allocation8 + $0x174] sm:$0xf]
          %v2554 = vld [vmem:[#allocation8 + $0x178] sm:$0xf]
          %v2555 = vld [vmem:[#allocation8 + $0x17c] sm:$0xf]
          %v2556 = vld [vmem:[#allocation8 + $0x180] sm:$0xf]
          %v2557 = vld [vmem:[#allocation8 + $0x184] sm:$0xf]
          %v2558 = vld [vmem:[#allocation8 + $0x188] sm:$0xf]
          %v2559 = vld [vmem:[#allocation8 + $0x18c] sm:$0xf]
          %v2560 = vld [vmem:[#allocation8 + $0x190] sm:$0xf]
          %v2561 = vld [vmem:[#allocation8 + $0x194] sm:$0xf]
          %v2562 = vld [vmem:[#allocation8 + $0x198] sm:$0xf]
          %v2563 = vld [vmem:[#allocation8 + $0x19c] sm:$0xf]
          %v2564 = vld [vmem:[#allocation8 + $0x1a0] sm:$0xf]
          %v2565 = vld [vmem:[#allocation8 + $0x1a4] sm:$0xf]
          %v2566 = vld [vmem:[#allocation8 + $0x1a8] sm:$0xf]
          %v2567 = vld [vmem:[#allocation8 + $0x1ac] sm:$0xf]
          %v2568 = vld [vmem:[#allocation8 + $0x1b0] sm:$0xf]
          %v2569 = vld [vmem:[#allocation8 + $0x1b4] sm:$0xf]
          %v2570 = vld [vmem:[#allocation8 + $0x1b8] sm:$0xf]
          %v2571 = vld [vmem:[#allocation8 + $0x1bc] sm:$0xf]
          %v2572 = vld [vmem:[#allocation8 + $0x1c0] sm:$0xf]
          %v2573 = vld [vmem:[#allocation8 + $0x1c4] sm:$0xf]
          %v2574 = vld [vmem:[#allocation8 + $0x1c8] sm:$0xf]
          %v2575 = vld [vmem:[#allocation8 + $0x1cc] sm:$0xf]
          %v2576 = vld [vmem:[#allocation8 + $0x1d0] sm:$0xf]
          %v2577 = vld [vmem:[#allocation8 + $0x1d4] sm:$0xf]
          %v2578 = vld [vmem:[#allocation8 + $0x1d8] sm:$0xf]
          %v2579 = vld [vmem:[#allocation8 + $0x1dc] sm:$0xf]
          %v2580 = vld [vmem:[#allocation8 + $0x1e0] sm:$0xf]
          %v2581 = vld [vmem:[#allocation8 + $0x1e4] sm:$0xf]
          %v2582 = vld [vmem:[#allocation8 + $0x1e8] sm:$0xf]
          %v2583 = vld [vmem:[#allocation8 + $0x1ec] sm:$0xf]
          %v2584 = vld [vmem:[#allocation8 + $0x1f0] sm:$0xf]
          %v2585 = vld [vmem:[#allocation8 + $0x1f4] sm:$0xf]
          %v2586 = vld [vmem:[#allocation8 + $0x1f8] sm:$0xf]
          %v2587 = vld [vmem:[#allocation8 + $0x1fc] sm:$0xf]
          %v2588 = vld [vmem:[#allocation9] sm:$0x1]
          %v2590 = vlaneseq
          %v2591 = vshrl.u32 %v2590, 7
          %v2592 = vsub.s32 0, %v2591
          %v2593 = vrot.slane %v2588, %v2592
          %v2723 = vunpack.c.l.b16 %v2460
          %v2724 = vunpack.c.l.b16 %v2461
          %v2725 = vunpack.c.l.b16 %v2462
          %v2726 = vunpack.c.l.b16 %v2463
          %v2727 = vunpack.c.l.b16 %v2464
          %v2728 = vunpack.c.l.b16 %v2465
          %v2729 = vunpack.c.l.b16 %v2466
          %v2730 = vunpack.c.l.b16 %v2467
          %v2731 = vunpack.c.l.b16 %v2468
          %v2732 = vunpack.c.l.b16 %v2469
          %v2733 = vunpack.c.l.b16 %v2470
          %v2734 = vunpack.c.l.b16 %v2471
          %v2735 = vunpack.c.l.b16 %v2472
          %v2736 = vunpack.c.l.b16 %v2473
          %v2737 = vunpack.c.l.b16 %v2474
          %v2738 = vunpack.c.l.b16 %v2475
          %v2739 = vunpack.c.l.b16 %v2476
          %v2740 = vunpack.c.l.b16 %v2477
          %v2741 = vunpack.c.l.b16 %v2478
          %v2742 = vunpack.c.l.b16 %v2479
          %v2743 = vunpack.c.l.b16 %v2480
          %v2744 = vunpack.c.l.b16 %v2481
          %v2745 = vunpack.c.l.b16 %v2482
          %v2746 = vunpack.c.l.b16 %v2483
          %v2747 = vunpack.c.l.b16 %v2484
          %v2748 = vunpack.c.l.b16 %v2485
          %v2749 = vunpack.c.l.b16 %v2486
          %v2750 = vunpack.c.l.b16 %v2487
          %v2751 = vunpack.c.l.b16 %v2488
          %v2752 = vunpack.c.l.b16 %v2489
          %v2753 = vunpack.c.l.b16 %v2490
          %v2754 = vunpack.c.l.b16 %v2491
          %v2755 = vunpack.c.l.b16 %v2492
          %v2756 = vunpack.c.l.b16 %v2493
          %v2757 = vunpack.c.l.b16 %v2494
          %v2758 = vunpack.c.l.b16 %v2495
          %v2759 = vunpack.c.l.b16 %v2496
          %v2760 = vunpack.c.l.b16 %v2497
          %v2761 = vunpack.c.l.b16 %v2498
          %v2762 = vunpack.c.l.b16 %v2499
          %v2763 = vunpack.c.l.b16 %v2500
          %v2764 = vunpack.c.l.b16 %v2501
          %v2765 = vunpack.c.l.b16 %v2502
          %v2766 = vunpack.c.l.b16 %v2503
          %v2767 = vunpack.c.l.b16 %v2504
          %v2768 = vunpack.c.l.b16 %v2505
          %v2769 = vunpack.c.l.b16 %v2506
          %v2770 = vunpack.c.l.b16 %v2507
          %v2771 = vunpack.c.l.b16 %v2508
          %v2772 = vunpack.c.l.b16 %v2509
          %v2773 = vunpack.c.l.b16 %v2510
          %v2774 = vunpack.c.l.b16 %v2511
          %v2775 = vunpack.c.l.b16 %v2512
          %v2776 = vunpack.c.l.b16 %v2513
          %v2777 = vunpack.c.l.b16 %v2514
          %v2778 = vunpack.c.l.b16 %v2515
          %v2779 = vunpack.c.l.b16 %v2516
          %v2780 = vunpack.c.l.b16 %v2517
          %v2781 = vunpack.c.l.b16 %v2518
          %v2782 = vunpack.c.l.b16 %v2519
          %v2783 = vunpack.c.l.b16 %v2520
          %v2784 = vunpack.c.l.b16 %v2521
          %v2785 = vunpack.c.l.b16 %v2522
          %v2786 = vunpack.c.l.b16 %v2523
          %v2787 = vunpack.c.l.b16 %v2524
          %v2788 = vunpack.c.l.b16 %v2525
          %v2789 = vunpack.c.l.b16 %v2526
          %v2790 = vunpack.c.l.b16 %v2527
          %v2791 = vunpack.c.l.b16 %v2528
          %v2792 = vunpack.c.l.b16 %v2529
          %v2793 = vunpack.c.l.b16 %v2530
          %v2794 = vunpack.c.l.b16 %v2531
          %v2795 = vunpack.c.l.b16 %v2532
          %v2796 = vunpack.c.l.b16 %v2533
          %v2797 = vunpack.c.l.b16 %v2534
          %v2798 = vunpack.c.l.b16 %v2535
          %v2799 = vunpack.c.l.b16 %v2536
          %v2800 = vunpack.c.l.b16 %v2537
          %v2801 = vunpack.c.l.b16 %v2538
          %v2802 = vunpack.c.l.b16 %v2539
          %v2803 = vunpack.c.l.b16 %v2540
          %v2804 = vunpack.c.l.b16 %v2541
          %v2805 = vunpack.c.l.b16 %v2542
          %v2806 = vunpack.c.l.b16 %v2543
          %v2807 = vunpack.c.l.b16 %v2544
          %v2808 = vunpack.c.l.b16 %v2545
          %v2809 = vunpack.c.l.b16 %v2546
          %v2810 = vunpack.c.l.b16 %v2547
          %v2811 = vunpack.c.l.b16 %v2548
          %v2812 = vunpack.c.l.b16 %v2549
          %v2813 = vunpack.c.l.b16 %v2550
          %v2814 = vunpack.c.l.b16 %v2551
          %v2815 = vunpack.c.l.b16 %v2552
          %v2816 = vunpack.c.l.b16 %v2553
          %v2817 = vunpack.c.l.b16 %v2554
          %v2818 = vunpack.c.l.b16 %v2555
          %v2819 = vunpack.c.l.b16 %v2556
          %v2820 = vunpack.c.l.b16 %v2557
          %v2821 = vunpack.c.l.b16 %v2558
          %v2822 = vunpack.c.l.b16 %v2559
          %v2823 = vunpack.c.l.b16 %v2560
          %v2824 = vunpack.c.l.b16 %v2561
          %v2825 = vunpack.c.l.b16 %v2562
          %v2826 = vunpack.c.l.b16 %v2563
          %v2827 = vunpack.c.l.b16 %v2564
          %v2828 = vunpack.c.l.b16 %v2565
          %v2829 = vunpack.c.l.b16 %v2566
          %v2830 = vunpack.c.l.b16 %v2567
          %v2831 = vunpack.c.l.b16 %v2568
          %v2832 = vunpack.c.l.b16 %v2569
          %v2833 = vunpack.c.l.b16 %v2570
          %v2834 = vunpack.c.l.b16 %v2571
          %v2835 = vunpack.c.l.b16 %v2572
          %v2836 = vunpack.c.l.b16 %v2573
          %v2837 = vunpack.c.l.b16 %v2574
          %v2838 = vunpack.c.l.b16 %v2575
          %v2839 = vunpack.c.l.b16 %v2576
          %v2840 = vunpack.c.l.b16 %v2577
          %v2841 = vunpack.c.l.b16 %v2578
          %v2842 = vunpack.c.l.b16 %v2579
          %v2843 = vunpack.c.l.b16 %v2580
          %v2844 = vunpack.c.l.b16 %v2581
          %v2845 = vunpack.c.l.b16 %v2582
          %v2846 = vunpack.c.l.b16 %v2583
          %v2847 = vunpack.c.l.b16 %v2584
          %v2848 = vunpack.c.l.b16 %v2585
          %v2849 = vunpack.c.l.b16 %v2586
          %v2850 = vunpack.c.l.b16 %v2587
          %v2851 = vpack.c.b16 %v2724, %v2723
          %v2852 = vpack.c.b16 %v2726, %v2725
          %v2853 = vpack.c.b16 %v2728, %v2727
          %v2854 = vpack.c.b16 %v2730, %v2729
          %v2855 = vpack.c.b16 %v2732, %v2731
          %v2856 = vpack.c.b16 %v2734, %v2733
          %v2857 = vpack.c.b16 %v2736, %v2735
          %v2858 = vpack.c.b16 %v2738, %v2737
          %v2859 = vpack.c.b16 %v2740, %v2739
          %v2860 = vpack.c.b16 %v2742, %v2741
          %v2861 = vpack.c.b16 %v2744, %v2743
          %v2862 = vpack.c.b16 %v2746, %v2745
          %v2863 = vpack.c.b16 %v2748, %v2747
          %v2864 = vpack.c.b16 %v2750, %v2749
          %v2865 = vpack.c.b16 %v2752, %v2751
          %v2866 = vpack.c.b16 %v2754, %v2753
          %v2867 = vpack.c.b16 %v2756, %v2755
          %v2868 = vpack.c.b16 %v2758, %v2757
          %v2869 = vpack.c.b16 %v2760, %v2759
          %v2870 = vpack.c.b16 %v2762, %v2761
          %v2871 = vpack.c.b16 %v2764, %v2763
          %v2872 = vpack.c.b16 %v2766, %v2765
          %v2873 = vpack.c.b16 %v2768, %v2767
          %v2874 = vpack.c.b16 %v2770, %v2769
          %v2875 = vpack.c.b16 %v2772, %v2771
          %v2876 = vpack.c.b16 %v2774, %v2773
          %v2877 = vpack.c.b16 %v2776, %v2775
          %v2878 = vpack.c.b16 %v2778, %v2777
          %v2879 = vpack.c.b16 %v2780, %v2779
          %v2880 = vpack.c.b16 %v2782, %v2781
          %v2881 = vpack.c.b16 %v2784, %v2783
          %v2882 = vpack.c.b16 %v2786, %v2785
          %v2883 = vpack.c.b16 %v2788, %v2787
          %v2884 = vpack.c.b16 %v2790, %v2789
          %v2885 = vpack.c.b16 %v2792, %v2791
          %v2886 = vpack.c.b16 %v2794, %v2793
          %v2887 = vpack.c.b16 %v2796, %v2795
          %v2888 = vpack.c.b16 %v2798, %v2797
          %v2889 = vpack.c.b16 %v2800, %v2799
          %v2890 = vpack.c.b16 %v2802, %v2801
          %v2891 = vpack.c.b16 %v2804, %v2803
          %v2892 = vpack.c.b16 %v2806, %v2805
          %v2893 = vpack.c.b16 %v2808, %v2807
          %v2894 = vpack.c.b16 %v2810, %v2809
          %v2895 = vpack.c.b16 %v2812, %v2811
          %v2896 = vpack.c.b16 %v2814, %v2813
          %v2897 = vpack.c.b16 %v2816, %v2815
          %v2898 = vpack.c.b16 %v2818, %v2817
          %v2899 = vpack.c.b16 %v2820, %v2819
          %v2900 = vpack.c.b16 %v2822, %v2821
          %v2901 = vpack.c.b16 %v2824, %v2823
          %v2902 = vpack.c.b16 %v2826, %v2825
          %v2903 = vpack.c.b16 %v2828, %v2827
          %v2904 = vpack.c.b16 %v2830, %v2829
          %v2905 = vpack.c.b16 %v2832, %v2831
          %v2906 = vpack.c.b16 %v2834, %v2833
          %v2907 = vpack.c.b16 %v2836, %v2835
          %v2908 = vpack.c.b16 %v2838, %v2837
          %v2909 = vpack.c.b16 %v2840, %v2839
          %v2910 = vpack.c.b16 %v2842, %v2841
          %v2911 = vpack.c.b16 %v2844, %v2843
          %v2912 = vpack.c.b16 %v2846, %v2845
          %v2913 = vpack.c.b16 %v2848, %v2847
          %v2914 = vpack.c.b16 %v2850, %v2849
          %2979 = vmatprep.subr.bf16.mxu0 0
          %2980 = vmatpush1.bf16.msra.mxu0 %v2851
          %2981 = vmatprep.subr.bf16.mxu0 0
          %2982 = vmatpush1.bf16.msra.mxu0 %v2852
          %2983 = vmatprep.subr.bf16.mxu0 0
          %2984 = vmatpush1.bf16.msra.mxu0 %v2853
          %2985 = vmatprep.subr.bf16.mxu0 0
          %2986 = vmatpush1.bf16.msra.mxu0 %v2854
          %2987 = vmatprep.subr.bf16.mxu0 0
          %2988 = vmatpush1.bf16.msra.mxu0 %v2855
          %2989 = vmatprep.subr.bf16.mxu0 0
          %2990 = vmatpush1.bf16.msra.mxu0 %v2856
          %2991 = vmatprep.subr.bf16.mxu0 0
          %2992 = vmatpush1.bf16.msra.mxu0 %v2857
          %2993 = vmatprep.subr.bf16.mxu0 0
          %2994 = vmatpush1.bf16.msra.mxu0 %v2858
          %2995 = vmatprep.subr.bf16.mxu0 0
          %2996 = vmatpush1.bf16.msra.mxu0 %v2859
          %2997 = vmatprep.subr.bf16.mxu0 0
          %2998 = vmatpush1.bf16.msra.mxu0 %v2860
          %2999 = vmatprep.subr.bf16.mxu0 0
          %3000 = vmatpush1.bf16.msra.mxu0 %v2861
          %3001 = vmatprep.subr.bf16.mxu0 0
          %3002 = vmatpush1.bf16.msra.mxu0 %v2862
          %3003 = vmatprep.subr.bf16.mxu0 0
          %3004 = vmatpush1.bf16.msra.mxu0 %v2863
          %3005 = vmatprep.subr.bf16.mxu0 0
          %3006 = vmatpush1.bf16.msra.mxu0 %v2864
          %3007 = vmatprep.subr.bf16.mxu0 0
          %3008 = vmatpush1.bf16.msra.mxu0 %v2865
          %3009 = vmatprep.subr.bf16.mxu0 0
          %3010 = vmatpush1.bf16.msra.mxu0 %v2866
          %3011 = vmatprep.mubr.bf16.mxu0 %v2453
          %3012 = vmatmul.mubr.bf16.gmra.mrb[0].mxu0 %v2452
          %v3013 = vpop.f32.mrb[0].mxu0
          %v3014 = vadd.f32 %v2593, %v3013
          %v3015 = vpop.f32.mrb[0].mxu0
          %v3016 = vpop.f32.mrb[0].mxu0
          %v3017 = vadd.f32 %v2593, %v3016
          %v3018 = vpop.f32.mrb[0].mxu0
          %3019 = vdwg.mxu0
          %3020 = vmatprep.subr.bf16.mxu0 0
          %3021 = vmatpush1.bf16.msra.mxu0 %v2867
          %3022 = vmatprep.subr.bf16.mxu0 0
          %3023 = vmatpush1.bf16.msra.mxu0 %v2868
          %3024 = vmatprep.subr.bf16.mxu0 0
          %3025 = vmatpush1.bf16.msra.mxu0 %v2869
          %3026 = vmatprep.subr.bf16.mxu0 0
          %3027 = vmatpush1.bf16.msra.mxu0 %v2870
          %3028 = vmatprep.subr.bf16.mxu0 0
          %3029 = vmatpush1.bf16.msra.mxu0 %v2871
          %3030 = vmatprep.subr.bf16.mxu0 0
          %3031 = vmatpush1.bf16.msra.mxu0 %v2872
          %3032 = vmatprep.subr.bf16.mxu0 0
          %3033 = vmatpush1.bf16.msra.mxu0 %v2873
          %3034 = vmatprep.subr.bf16.mxu0 0
          %3035 = vmatpush1.bf16.msra.mxu0 %v2874
          %3036 = vmatprep.subr.bf16.mxu0 0
          %3037 = vmatpush1.bf16.msra.mxu0 %v2875
          %3038 = vmatprep.subr.bf16.mxu0 0
          %3039 = vmatpush1.bf16.msra.mxu0 %v2876
          %3040 = vmatprep.subr.bf16.mxu0 0
          %3041 = vmatpush1.bf16.msra.mxu0 %v2877
          %3042 = vmatprep.subr.bf16.mxu0 0
          %3043 = vmatpush1.bf16.msra.mxu0 %v2878
          %3044 = vmatprep.subr.bf16.mxu0 0
          %3045 = vmatpush1.bf16.msra.mxu0 %v2879
          %3046 = vmatprep.subr.bf16.mxu0 0
          %3047 = vmatpush1.bf16.msra.mxu0 %v2880
          %3048 = vmatprep.subr.bf16.mxu0 0
          %3049 = vmatpush1.bf16.msra.mxu0 %v2881
          %3050 = vmatprep.subr.bf16.mxu0 0
          %3051 = vmatpush1.bf16.msra.mxu0 %v2882
          %3052 = vmatprep.mubr.bf16.mxu0 %v2455
          %3053 = vmatmul.mubr.bf16.gmra.mrb[0].mxu0 %v2454
          %v3054 = vpop.f32.mrb[0].mxu0
          %v3055 = vadd.f32 %v3014, %v3054
          %v3056 = vpop.f32.mrb[0].mxu0
          %v3057 = vpop.f32.mrb[0].mxu0
          %v3058 = vadd.f32 %v3017, %v3057
          %v3059 = vpop.f32.mrb[0].mxu0
          %3060 = vdwg.mxu0
          %3061 = vmatprep.subr.bf16.mxu0 0
          %3062 = vmatpush1.bf16.msra.mxu0 %v2883
          %3063 = vmatprep.subr.bf16.mxu0 0
          %3064 = vmatpush1.bf16.msra.mxu0 %v2884
          %3065 = vmatprep.subr.bf16.mxu0 0
          %3066 = vmatpush1.bf16.msra.mxu0 %v2885
          %3067 = vmatprep.subr.bf16.mxu0 0
          %3068 = vmatpush1.bf16.msra.mxu0 %v2886
          %3069 = vmatprep.subr.bf16.mxu0 0
          %3070 = vmatpush1.bf16.msra.mxu0 %v2887
          %3071 = vmatprep.subr.bf16.mxu0 0
          %3072 = vmatpush1.bf16.msra.mxu0 %v2888
          %3073 = vmatprep.subr.bf16.mxu0 0
          %3074 = vmatpush1.bf16.msra.mxu0 %v2889
          %3075 = vmatprep.subr.bf16.mxu0 0
          %3076 = vmatpush1.bf16.msra.mxu0 %v2890
          %3077 = vmatprep.subr.bf16.mxu0 0
          %3078 = vmatpush1.bf16.msra.mxu0 %v2891
          %3079 = vmatprep.subr.bf16.mxu0 0
          %3080 = vmatpush1.bf16.msra.mxu0 %v2892
          %3081 = vmatprep.subr.bf16.mxu0 0
          %3082 = vmatpush1.bf16.msra.mxu0 %v2893
          %3083 = vmatprep.subr.bf16.mxu0 0
          %3084 = vmatpush1.bf16.msra.mxu0 %v2894
          %3085 = vmatprep.subr.bf16.mxu0 0
          %3086 = vmatpush1.bf16.msra.mxu0 %v2895
          %3087 = vmatprep.subr.bf16.mxu0 0
          %3088 = vmatpush1.bf16.msra.mxu0 %v2896
          %3089 = vmatprep.subr.bf16.mxu0 0
          %3090 = vmatpush1.bf16.msra.mxu0 %v2897
          %3091 = vmatprep.subr.bf16.mxu0 0
          %3092 = vmatpush1.bf16.msra.mxu0 %v2898
          %3093 = vmatprep.mubr.bf16.mxu0 %v2457
          %3094 = vmatmul.mubr.bf16.gmra.mrb[0].mxu0 %v2456
          %v3095 = vpop.f32.mrb[0].mxu0
          %v3096 = vadd.f32 %v3055, %v3095
          %v3097 = vpop.f32.mrb[0].mxu0
          %v3098 = vpop.f32.mrb[0].mxu0
          %v3099 = vadd.f32 %v3058, %v3098
          %v3100 = vpop.f32.mrb[0].mxu0
          %3101 = vdwg.mxu0
          %3102 = vmatprep.subr.bf16.mxu0 0
          %3103 = vmatpush1.bf16.msra.mxu0 %v2899
          %3104 = vmatprep.subr.bf16.mxu0 0
          %3105 = vmatpush1.bf16.msra.mxu0 %v2900
          %3106 = vmatprep.subr.bf16.mxu0 0
          %3107 = vmatpush1.bf16.msra.mxu0 %v2901
          %3108 = vmatprep.subr.bf16.mxu0 0
          %3109 = vmatpush1.bf16.msra.mxu0 %v2902
          %3110 = vmatprep.subr.bf16.mxu0 0
          %3111 = vmatpush1.bf16.msra.mxu0 %v2903
          %3112 = vmatprep.subr.bf16.mxu0 0
          %3113 = vmatpush1.bf16.msra.mxu0 %v2904
          %3114 = vmatprep.subr.bf16.mxu0 0
          %3115 = vmatpush1.bf16.msra.mxu0 %v2905
          %3116 = vmatprep.subr.bf16.mxu0 0
          %3117 = vmatpush1.bf16.msra.mxu0 %v2906
          %3118 = vmatprep.subr.bf16.mxu0 0
          %3119 = vmatpush1.bf16.msra.mxu0 %v2907
          %3120 = vmatprep.subr.bf16.mxu0 0
          %3121 = vmatpush1.bf16.msra.mxu0 %v2908
          %3122 = vmatprep.subr.bf16.mxu0 0
          %3123 = vmatpush1.bf16.msra.mxu0 %v2909
          %3124 = vmatprep.subr.bf16.mxu0 0
          %3125 = vmatpush1.bf16.msra.mxu0 %v2910
          %3126 = vmatprep.subr.bf16.mxu0 0
          %3127 = vmatpush1.bf16.msra.mxu0 %v2911
          %3128 = vmatprep.subr.bf16.mxu0 0
          %3129 = vmatpush1.bf16.msra.mxu0 %v2912
          %3130 = vmatprep.subr.bf16.mxu0 0
          %3131 = vmatpush1.bf16.msra.mxu0 %v2913
          %3132 = vmatprep.subr.bf16.mxu0 0
          %3133 = vmatpush1.bf16.msra.mxu0 %v2914
          %3134 = vmatprep.mubr.bf16.mxu0 %v2459
          %3135 = vmatmul.mubr.bf16.gmra.mrb[0].mxu0 %v2458
          %v3136 = vpop.f32.mrb[0].mxu0
          %v3137 = vadd.f32 %v3096, %v3136
          %v3138 = vpop.f32.mrb[0].mxu0
          %v3139 = vpop.f32.mrb[0].mxu0
          %v3140 = vadd.f32 %v3099, %v3139
          %v3141 = vpop.f32.mrb[0].mxu0
          %3142 = vdwg.mxu0
          %3143 = vst [vmem:[%s351] sm:$0xff] %v3137
          %3144 = vst [vmem:[%s351 + $0x8] sm:$0xff] %v3140
        $region87: #{encoder_forward.5} parent=58 // pred_fallthru
          _
        %s3145 = smul.u32 2, %s25
        %p3146 = scmp.lt.s32.totalorder %s3145, 1
        %s3147 = scalar_select %p3146, %s3145, 1
        %s3148 = smul.addr %s3147, 8
        %s3149 = scalar_lea.vmem %s5, %s3148
        // Predicated region
        $region88: #{encoder_forward.5} parent=58 // pred_check
          %p3150 = pneg %p168
        $region89: #{encoder_forward.5} parent=58 // pred_check_branch
          %3152 = sbr.rel (%p3150) target = $region91
        $region90: #{encoder_forward.5} parent=58 // pred_region
          %s3153 = smul.u32 2, %s25
        $region91: #{encoder_forward.5} parent=58 // pred_fallthru
          _
        // Predicated region
        $region92: #{encoder_forward.5} parent=58 // pred_check
          %p3154 = pneg %p168
        $region93: #{encoder_forward.5} parent=58 // pred_check_branch
          %3156 = sbr.rel (%p3154) target = $region95
        $region94: #{encoder_forward.5} parent=58 // pred_region
          %s3157 = smul.u32 2, %s25
          %p3158 = scmp.lt.s32.totalorder %s3157, 1
          %s3159 = scalar_select %p3158, %s3157, 1
          %s3160 = smul.addr %s3159, 8
          %s3161 = scalar_lea.vmem %s5, %s3160
        $region95: #{encoder_forward.5} parent=58 // pred_fallthru
          _
      $region59: #{encoder_forward.5} parent=5 // pred_fallthru
        _
      %p3162 = scmp.le.s32.totalorder 2, %s16
      // Predicated region
      $region96: #{encoder_forward.5} parent=5 // pred_check
        %p3163 = pneg %p3162
      $region97: #{encoder_forward.5} parent=5 // pred_check_branch
        %3165 = sbr.rel (%p3163) target = $region99
      $region98: #{encoder_forward.5} parent=5 // pred_region
        %s3166 = ssub.s32 %s16, 2
      $region99: #{encoder_forward.5} parent=5 // pred_fallthru
        _
    $region6: #{encoder_forward.5} parent=1 // loop_footer
      %s20 = sadd.s32 1, %s16
    $region7: #{encoder_forward.5} parent=1 // loop_footer_branch
      %15 = sbr.rel target = $region3
    $region8: #{encoder_forward.5} parent=1 // loop_exit
      _
    %3167 = vsyncpa [#allocation5], 1
    %s3168 = scalar_lea.sflag [#allocation5], 1
    %3169 = vsyncpa %s3168, 1
    %3170 = vsyncpa [#allocation7], 1
    %3171 = vsyncpa [#allocation10], 1

</llo_original>
